<compile_context>
chip_gen: v6e
topology: v6e:2x2x1
jax: 0.10.0
libtpu: 0.0.40
codegen_flags: <defaults>
</compile_context>

<pallas_src>
import functools

import numpy as np
import jax
import jax.numpy as jnp
from jax import lax
from jax.experimental import pallas as pl
from jax.experimental.pallas import tpu as pltpu


# ------------------------------------------------------------------- kernel --

def _forward_kernel(x_ref, edge_ref, pool_ref,
                    scw_ref, scb_ref, scs_ref, sch_ref,
                    wih_ref, whh_ref, bih_ref, bhh_ref, wih_all_ref,
                    c1w_ref, c1b_ref, c1s_ref, c1h_ref,
                    c2w_ref, c2b_ref, c2s_ref, c2h_ref,
                    fcw_ref, fcb_ref, hw_ref, hb_ref,
                    map_ref, head_ref, orth_ref,
                    gi_ref, seq_ref, *, batch, seq_len):
    br = pl.program_id(0)
    m = batch * seq_len
    m_prev = edge_ref[:, 0:1]          # 0 on the first timestep of each sequence
    m_next = edge_ref[:, 1:2]          # 0 on the last timestep of each sequence

    def conv3(inp, w3, b, scale, shift):
        # k=3 pad=1 Conv1d + folded BN + ReLU on time-major (T*B, Cin) rows.
        # A +/-1 time shift is a +/-batch row shift: XLU roll + boundary mask.
        prev = pltpu.roll(inp, shift=batch, axis=0) * m_prev
        nxt = pltpu.roll(inp, shift=m - batch, axis=0) * m_next
        acc = (jnp.dot(prev, w3[0], preferred_element_type=jnp.float32)
               + jnp.dot(inp, w3[1], preferred_element_type=jnp.float32)
               + jnp.dot(nxt, w3[2], preferred_element_type=jnp.float32))
        return jnp.maximum((acc + b) * scale + shift, 0.0)

    # Shared conv (recomputed per branch: a tiny (T*B,40)x(40,64) conv twice is
    # far cheaper than an extra launch + HBM round trip, and it keeps the two
    # branches fully independent so v7x can run them on separate TensorCores).
    x = x_ref[...]
    h_conv = conv3(x, scw_ref[...], scb_ref[...], scs_ref[...], sch_ref[...])

    # GRU (hidden 64) for this branch.  Input projection for every timestep is
    # one hoisted matmul; the recurrence is fully unrolled (static loop).
    hsz = whh_ref.shape[1]
    gi_ref[...] = (jnp.dot(h_conv, wih_ref[0], preferred_element_type=jnp.float32)
                   + bih_ref[0])
    bhh = bhh_ref[0]
    h = jnp.zeros((batch, hsz), jnp.float32)
    # TODO(synk): hold whh resident on the MXU across steps with
    # pltpu.matmul_push_rhs / matmul_acc_lhs / matmul_pop if the recurrence
    # ever dominates at larger batch.
    for t in range(seq_len):                       # static, fully unrolled
        lo = t * batch
        gi_t = gi_ref[lo:lo + batch, :]            # (B, 3H) static slice
        gh = jnp.dot(h, whh_ref[0], preferred_element_type=jnp.float32) + bhh
        r = jax.nn.sigmoid(gi_t[:, :hsz] + gh[:, :hsz])
        z = jax.nn.sigmoid(gi_t[:, hsz:2 * hsz] + gh[:, hsz:2 * hsz])
        n = jnp.tanh(gi_t[:, 2 * hsz:] + r * gh[:, 2 * hsz:])
        h = (1.0 - z) * n + z * h
        seq_ref[lo:lo + batch, :] = h

    # Branch: conv1 -> conv2 -> adaptive-avg-pool(1) -> fc.
    feats = seq_ref[...]
    a1 = conv3(feats, c1w_ref[0], c1b_ref[0], c1s_ref[0], c1h_ref[0])
    a2 = conv3(a1, c2w_ref[0], c2b_ref[0], c2s_ref[0], c2h_ref[0])
    pooled = jnp.dot(pool_ref[...], a2, preferred_element_type=jnp.float32)
    fmap = jnp.dot(pooled, fcw_ref[0], preferred_element_type=jnp.float32) + fcb_ref[0]
    map_ref[0] = fmap

    # kw_head + orthogonality loss only on the kws branch (sv head is unused).
    n_cls = hw_ref.shape[1]

    @pl.when(br == 0)
    def _():
        head_ref[0] = (jnp.dot(fmap, hw_ref[...],
                               preferred_element_type=jnp.float32) + hb_ref[...])
        cross = lax.dot_general(wih_all_ref[0], wih_all_ref[1],
                                dimension_numbers=(((1,), (1,)), ((), ())),
                                preferred_element_type=jnp.float32)
        orth_ref[0] = jnp.sum(jnp.abs(cross), keepdims=True)

    @pl.when(br != 0)
    def _():
        head_ref[0] = jnp.zeros((batch, n_cls), jnp.float32)
        orth_ref[0] = jnp.zeros((1, 1), jnp.float32)


# ----------------------------------------------------------------- wrappers --

def fused_forward(x_tm, edge, pool_mat, p, *, batch, seq_len):
    m = x_tm.shape[0]
    hsz = p['gru_whh_t'].shape[1]
    n_classes = p['head_w_t'].shape[1]
    fc_out = p['fc_w'].shape[2]

    def full(arr):
        zeros = (0,) * arr.ndim
        return pl.BlockSpec(arr.shape, lambda br: zeros)

    def per_branch(arr):
        trail = (0,) * (arr.ndim - 1)
        return pl.BlockSpec((1,) + arr.shape[1:], lambda br: (br,) + trail)

    maps, heads, orth = pl.pallas_call(
        functools.partial(_forward_kernel, batch=batch, seq_len=seq_len),
        out_shape=(jax.ShapeDtypeStruct((2, batch, fc_out), jnp.float32),
                   jax.ShapeDtypeStruct((2, batch, n_classes), jnp.float32),
                   jax.ShapeDtypeStruct((2, 1, 1), jnp.float32)),
        grid=(2,),
        in_specs=[full(x_tm), full(edge), full(pool_mat),
                  full(p['sc_w']), full(p['sc_b']),
                  full(p['sc_scale']), full(p['sc_shift']),
                  per_branch(p['gru_wih_t']), per_branch(p['gru_whh_t']),
                  per_branch(p['gru_bih']), per_branch(p['gru_bhh']),
                  full(p['gru_wih_t']),            # full stack again, for orth
                  per_branch(p['c1_w']), per_branch(p['c1_b']),
                  per_branch(p['c1_scale']), per_branch(p['c1_shift']),
                  per_branch(p['c2_w']), per_branch(p['c2_b']),
                  per_branch(p['c2_scale']), per_branch(p['c2_shift']),
                  per_branch(p['fc_w']), per_branch(p['fc_b']),
                  full(p['head_w_t']), full(p['head_b'])],
        out_specs=(pl.BlockSpec((1, batch, fc_out), lambda br: (br, 0, 0)),
                   pl.BlockSpec((1, batch, n_classes), lambda br: (br, 0, 0)),
                   pl.BlockSpec((1, 1, 1), lambda br: (br, 0, 0))),
        scratch_shapes=[pltpu.VMEM((m, 3 * hsz), jnp.float32),   # gi
                        pltpu.VMEM((m, hsz), jnp.float32)],      # GRU sequence
        compiler_params=pltpu.CompilerParams(
            dimension_semantics=("parallel",)),
    )(x_tm, edge, pool_mat,
      p['sc_w'], p['sc_b'], p['sc_scale'], p['sc_shift'],
      p['gru_wih_t'], p['gru_whh_t'], p['gru_bih'], p['gru_bhh'],
      p['gru_wih_t'],
      p['c1_w'], p['c1_b'], p['c1_scale'], p['c1_shift'],
      p['c2_w'], p['c2_b'], p['c2_scale'], p['c2_shift'],
      p['fc_w'], p['fc_b'], p['head_w_t'], p['head_b'])
    return maps, heads, orth


def decouple_net_forward(x, p):
    # x: (B, F, 1, T) -- same axis convention as the PyTorch module.
    x = jnp.squeeze(x, axis=2)                            # (B, F, T)
    b, _, t = x.shape
    m = b * t
    x_tm = jnp.transpose(x, (2, 0, 1)).reshape(m, -1)     # time-major rows t*B+b

    # Host-precomputed constants (boundary masks for the k=3 convs and the
    # per-sequence mean-pool matrix); baked as literals under jit.
    rows = np.arange(m)
    edge = jnp.asarray(np.stack([(rows >= b).astype(np.float32),
                                 (rows < m - b).astype(np.float32)], axis=1))
    pool_mat = jnp.asarray(
        ((rows[None, :] % b) == np.arange(b)[:, None]).astype(np.float32) / t)

    maps, heads, orth = fused_forward(x_tm, edge, pool_mat, p, batch=b, seq_len=t)
    k_map, s_map = maps[0], maps[1]
    out_k = heads[0]
    o_loss = orth[0, 0, 0]
    return (out_k, out_k, k_map, s_map), o_loss


# ------------------------------------------------------------------- params --

def _bn_fold(gamma, beta, mean, var, eps=1e-5):
    scale = gamma / jnp.sqrt(var + eps)
    return scale, beta - mean * scale


def init_params(key, n_classes=10, input_features=40, hidden=64):
    ks = iter(jax.random.split(key, 80))

    def nrm(shape, s=0.1):
        return s * jax.random.normal(next(ks), shape, dtype=jnp.float32)

    def bn(c):
        gamma = 1.0 + 0.1 * jax.random.normal(next(ks), (c,), dtype=jnp.float32)
        beta = 0.1 * jax.random.normal(next(ks), (c,), dtype=jnp.float32)
        mean = 0.1 * jax.random.normal(next(ks), (c,), dtype=jnp.float32)
        var = jax.random.uniform(next(ks), (c,), minval=0.5, maxval=1.5,
                                 dtype=jnp.float32)
        scale, shift = _bn_fold(gamma, beta, mean, var)
        return scale.reshape(1, c), shift.reshape(1, c)

    def conv_w(cout, cin):
        # torch Conv1d weight (Cout, Cin, 3) -> tap-major (3, Cin, Cout)
        return jnp.transpose(nrm((cout, cin, 3)), (2, 1, 0))

    h = hidden
    p = {}

    # shared_conv: Conv1d(F, 64, 3, pad=1) + BN + ReLU (BN folded, inference mode)
    p['sc_w'] = conv_w(64, input_features)
    p['sc_b'] = nrm((1, 64))
    p['sc_scale'], p['sc_shift'] = bn(64)

    # GRUs: torch weight_ih/hh_l0 are (3H, H); stored transposed and stacked on
    # a leading branch axis (0 = kws, 1 = sv).  Single source of truth.
    wih, whh, bih, bhh = [], [], [], []
    for _ in range(2):
        wih.append(jnp.transpose(nrm((3 * h, h)), (1, 0)))   # (H, 3H)
        whh.append(jnp.transpose(nrm((3 * h, h)), (1, 0)))   # (H, 3H)
        bih.append(nrm((1, 3 * h)))
        bhh.append(nrm((1, 3 * h)))
    p['gru_wih_t'] = jnp.stack(wih)
    p['gru_whh_t'] = jnp.stack(whh)
    p['gru_bih'] = jnp.stack(bih)
    p['gru_bhh'] = jnp.stack(bhh)

    # Branch params, stacked on a leading branch axis (0 = kws, 1 = sv).
    stacks = {k: [] for k in ('c1_w', 'c1_b', 'c1_scale', 'c1_shift',
                              'c2_w', 'c2_b', 'c2_scale', 'c2_shift',
                              'fc_w', 'fc_b')}
    for _ in range(2):
        stacks['c1_w'].append(conv_w(128, 64))
        stacks['c1_b'].append(nrm((1, 128)))
        s, sh = bn(128)
        stacks['c1_scale'].append(s); stacks['c1_shift'].append(sh)
        stacks['c2_w'].append(conv_w(256, 128))
        stacks['c2_b'].append(nrm((1, 256)))
        s, sh = bn(256)
        stacks['c2_scale'].append(s); stacks['c2_shift'].append(sh)
        stacks['fc_w'].append(jnp.transpose(nrm((512, 256)), (1, 0)))   # (256, 512)
        stacks['fc_b'].append(nrm((1, 512)))
    for k, v in stacks.items():
        p[k] = jnp.stack(v, axis=0)

    # kw_head
    p['head_w_t'] = jnp.transpose(nrm((n_classes, 512)), (1, 0))        # (512, C)
    p['head_b'] = nrm((1, n_classes))
    return p


# -------------------------------------------------------- pure-JAX reference --

def _conv_ref(x, w3, b, scale, shift):
    t = x.shape[1]
    xp = jnp.pad(x, ((0, 0), (1, 1), (0, 0)))
    acc = (jnp.einsum('btc,cd->btd', xp[:, 0:t], w3[0])
           + jnp.einsum('btc,cd->btd', xp[:, 1:t + 1], w3[1])
           + jnp.einsum('btc,cd->btd', xp[:, 2:t + 2], w3[2]))
    return jnp.maximum((acc + b) * scale + shift, 0.0)


def _gru_ref(x, wih_t, whh_t, bih, bhh):
    b = x.shape[0]
    h = whh_t.shape[0]

    def step(carry, x_t):
        gi = x_t @ wih_t + bih
        gh = carry @ whh_t + bhh
        r = jax.nn.sigmoid(gi[:, :h] + gh[:, :h])
        z = jax.nn.sigmoid(gi[:, h:2 * h] + gh[:, h:2 * h])
        n = jnp.tanh(gi[:, 2 * h:] + r * gh[:, 2 * h:])
        hn = (1.0 - z) * n + z * carry
        return hn, hn

    _, ys = lax.scan(step, jnp.zeros((b, h), jnp.float32),
                     jnp.transpose(x, (1, 0, 2)))
    return jnp.transpose(ys, (1, 0, 2))


def _forward_ref(x, p):
    x = jnp.transpose(jnp.squeeze(x, axis=2), (0, 2, 1))   # (B, T, F)
    hc = _conv_ref(x, p['sc_w'], p['sc_b'], p['sc_scale'], p['sc_shift'])

    def branch(br):
        f = _gru_ref(hc, p['gru_wih_t'][br], p['gru_whh_t'][br],
                     p['gru_bih'][br], p['gru_bhh'][br])
        a = _conv_ref(f, p['c1_w'][br], p['c1_b'][br],
                      p['c1_scale'][br], p['c1_shift'][br])
        a = _conv_ref(a, p['c2_w'][br], p['c2_b'][br],
                      p['c2_scale'][br], p['c2_shift'][br])
        return jnp.mean(a, axis=1) @ p['fc_w'][br] + p['fc_b'][br]

    k_map = branch(0)
    s_map = branch(1)
    out_k = k_map @ p['head_w_t'] + p['head_b']
    orth = jnp.sum(jnp.abs(p['gru_wih_t'][0] @ p['gru_wih_t'][1].T))
    return out_k, k_map, s_map, orth


# --------------------------------------------------------------------- main --

if __name__ == "__main__":
    key = jax.random.PRNGKey(0)
    kx, kp = jax.random.split(key)

    B, Fin, T = 2, 40, 16
    x = jax.random.normal(kx, (B, Fin, 1, T), dtype=jnp.float32)
    params = init_params(kp, n_classes=10, input_features=Fin, hidden=64)

    fwd = jax.jit(decouple_net_forward)
    (out_k, out_k2, k_map, s_map), o_loss = fwd(x, params)
    jax.block_until_ready((out_k, out_k2, k_map, s_map, o_loss))

    # sanity check against a pure-JAX reference
    ref_out_k, ref_k_map, ref_s_map, ref_orth = jax.jit(_forward_ref)(x, params)
    assert out_k.shape == (B, 10) and k_map.shape == (B, 512) and s_map.shape == (B, 512)
    assert jnp.allclose(out_k, ref_out_k, atol=2e-3, rtol=5e-3)
    assert jnp.allclose(k_map, ref_k_map, atol=2e-3, rtol=5e-3)
    assert jnp.allclose(s_map, ref_s_map, atol=2e-3, rtol=5e-3)
    assert jnp.allclose(o_loss, ref_orth, atol=1e-2, rtol=5e-3)
    assert jnp.allclose(out_k, out_k2)

    print("KERNEL_OK")
</pallas_src>

<mosaic_0001>
module attributes {stable_mosaic.version = 11 : i64} {
  func.func @_forward_kernel(%arg0: i32, %arg1: memref<32x40xf32, #tpu.memory_space<vmem>>, %arg2: memref<32x2xf32, #tpu.memory_space<vmem>>, %arg3: memref<2x32xf32, #tpu.memory_space<vmem>>, %arg4: memref<3x40x64xf32, #tpu.memory_space<vmem>>, %arg5: memref<1x64xf32, #tpu.memory_space<vmem>>, %arg6: memref<1x64xf32, #tpu.memory_space<vmem>>, %arg7: memref<1x64xf32, #tpu.memory_space<vmem>>, %arg8: memref<1x64x192xf32, #tpu.memory_space<vmem>>, %arg9: memref<1x64x192xf32, #tpu.memory_space<vmem>>, %arg10: memref<1x1x192xf32, #tpu.memory_space<vmem>>, %arg11: memref<1x1x192xf32, #tpu.memory_space<vmem>>, %arg12: memref<2x64x192xf32, #tpu.memory_space<vmem>>, %arg13: memref<1x3x64x128xf32, #tpu.memory_space<vmem>>, %arg14: memref<1x1x128xf32, #tpu.memory_space<vmem>>, %arg15: memref<1x1x128xf32, #tpu.memory_space<vmem>>, %arg16: memref<1x1x128xf32, #tpu.memory_space<vmem>>, %arg17: memref<1x3x128x256xf32, #tpu.memory_space<vmem>>, %arg18: memref<1x1x256xf32, #tpu.memory_space<vmem>>, %arg19: memref<1x1x256xf32, #tpu.memory_space<vmem>>, %arg20: memref<1x1x256xf32, #tpu.memory_space<vmem>>, %arg21: memref<1x256x512xf32, #tpu.memory_space<vmem>>, %arg22: memref<1x1x512xf32, #tpu.memory_space<vmem>>, %arg23: memref<512x10xf32, #tpu.memory_space<vmem>>, %arg24: memref<1x10xf32, #tpu.memory_space<vmem>>, %arg25: memref<1x2x512xf32, #tpu.memory_space<vmem>>, %arg26: memref<1x2x10xf32, #tpu.memory_space<vmem>>, %arg27: memref<1x1x1xf32, #tpu.memory_space<vmem>>, %arg28: memref<32x192xf32, #tpu.memory_space<vmem>>, %arg29: memref<32x64xf32, #tpu.memory_space<vmem>>) attributes {dimension_semantics = [#tpu.dimension_semantics<parallel>], iteration_bounds = array<i64: 2>, scalar_prefetch = 0 : i64, scratch_operands = 2 : i64, tpu.core_type = #tpu.core_type<tc>, window_params = [{pipeline_mode = #tpu.pipeline_mode<synchronous>, transform_indices = @transform_0, window_bounds = array<i64: 32, 40>}, {pipeline_mode = #tpu.pipeline_mode<synchronous>, transform_indices = @transform_1, window_bounds = array<i64: 32, 2>}, {pipeline_mode = #tpu.pipeline_mode<synchronous>, transform_indices = @transform_2, window_bounds = array<i64: 2, 32>}, {pipeline_mode = #tpu.pipeline_mode<synchronous>, transform_indices = @transform_3, window_bounds = array<i64: 3, 40, 64>}, {pipeline_mode = #tpu.pipeline_mode<synchronous>, transform_indices = @transform_4, window_bounds = array<i64: 1, 64>}, {pipeline_mode = #tpu.pipeline_mode<synchronous>, transform_indices = @transform_5, window_bounds = array<i64: 1, 64>}, {pipeline_mode = #tpu.pipeline_mode<synchronous>, transform_indices = @transform_6, window_bounds = array<i64: 1, 64>}, {transform_indices = @transform_7, window_bounds = array<i64: 1, 64, 192>}, {transform_indices = @transform_8, window_bounds = array<i64: 1, 64, 192>}, {transform_indices = @transform_9, window_bounds = array<i64: 1, 1, 192>}, {transform_indices = @transform_10, window_bounds = array<i64: 1, 1, 192>}, {pipeline_mode = #tpu.pipeline_mode<synchronous>, transform_indices = @transform_11, window_bounds = array<i64: 2, 64, 192>}, {transform_indices = @transform_12, window_bounds = array<i64: 1, 3, 64, 128>}, {transform_indices = @transform_13, window_bounds = array<i64: 1, 1, 128>}, {transform_indices = @transform_14, window_bounds = array<i64: 1, 1, 128>}, {transform_indices = @transform_15, window_bounds = array<i64: 1, 1, 128>}, {transform_indices = @transform_16, window_bounds = array<i64: 1, 3, 128, 256>}, {transform_indices = @transform_17, window_bounds = array<i64: 1, 1, 256>}, {transform_indices = @transform_18, window_bounds = array<i64: 1, 1, 256>}, {transform_indices = @transform_19, window_bounds = array<i64: 1, 1, 256>}, {transform_indices = @transform_20, window_bounds = array<i64: 1, 256, 512>}, {transform_indices = @transform_21, window_bounds = array<i64: 1, 1, 512>}, {pipeline_mode = #tpu.pipeline_mode<synchronous>, transform_indices = @transform_22, window_bounds = array<i64: 512, 10>}, {pipeline_mode = #tpu.pipeline_mode<synchronous>, transform_indices = @transform_23, window_bounds = array<i64: 1, 10>}, {transform_indices = @transform_24, window_bounds = array<i64: 1, 2, 512>}, {transform_indices = @transform_25, window_bounds = array<i64: 1, 2, 10>}, {transform_indices = @transform_26, window_bounds = array<i64: 1, 1, 1>}]} {
    %c0 = arith.constant 0 : index
    %c0_0 = arith.constant 0 : index
    %0 = vector.load %arg2[%c0, %c0_0] : memref<32x2xf32, #tpu.memory_space<vmem>>, vector<32x1xf32>
    %c0_1 = arith.constant 0 : index
    %c1 = arith.constant 1 : index
    %1 = vector.load %arg2[%c0_1, %c1] : memref<32x2xf32, #tpu.memory_space<vmem>>, vector<32x1xf32>
    %c0_2 = arith.constant 0 : index
    %c0_3 = arith.constant 0 : index
    %2 = vector.load %arg1[%c0_2, %c0_3] : memref<32x40xf32, #tpu.memory_space<vmem>>, vector<32x40xf32>
    %c0_4 = arith.constant 0 : index
    %c0_5 = arith.constant 0 : index
    %c0_6 = arith.constant 0 : index
    %3 = vector.load %arg4[%c0_4, %c0_5, %c0_6] : memref<3x40x64xf32, #tpu.memory_space<vmem>>, vector<3x40x64xf32>
    %c0_7 = arith.constant 0 : index
    %c0_8 = arith.constant 0 : index
    %4 = vector.load %arg5[%c0_7, %c0_8] : memref<1x64xf32, #tpu.memory_space<vmem>>, vector<1x64xf32>
    %c0_9 = arith.constant 0 : index
    %c0_10 = arith.constant 0 : index
    %5 = vector.load %arg6[%c0_9, %c0_10] : memref<1x64xf32, #tpu.memory_space<vmem>>, vector<1x64xf32>
    %c0_11 = arith.constant 0 : index
    %c0_12 = arith.constant 0 : index
    %6 = vector.load %arg7[%c0_11, %c0_12] : memref<1x64xf32, #tpu.memory_space<vmem>>, vector<1x64xf32>
    %c2_i32 = arith.constant 2 : i32
    %7 = tpu.dynamic_rotate %2 by %c2_i32 dim 0 : vector<32x40xf32>, i32 -> vector<32x40xf32>
    %8 = vector.broadcast %0 : vector<32x1xf32> to vector<32x40xf32>
    %9 = arith.mulf %7, %8 : vector<32x40xf32>
    %c30_i32 = arith.constant 30 : i32
    %10 = tpu.dynamic_rotate %2 by %c30_i32 dim 0 : vector<32x40xf32>, i32 -> vector<32x40xf32>
    %11 = vector.broadcast %1 : vector<32x1xf32> to vector<32x40xf32>
    %12 = arith.mulf %10, %11 : vector<32x40xf32>
    %13 = vector.extract_strided_slice %3 {offsets = [0, 0, 0], sizes = [1, 40, 64], strides = [1, 1, 1]} : vector<3x40x64xf32> to vector<1x40x64xf32>
    %14 = vector.shape_cast %13 : vector<1x40x64xf32> to vector<40x64xf32>
    %cst = arith.constant dense<0.000000e+00> : vector<32x64xf32>
    %15 = tpu.matmul %9, %14, %cst {dimension_numbers = #tpu.dot_dimension_numbers<[1], [0], [0], [1], [0, 0, 1, 1], [], []>} : vector<32x40xf32>, vector<40x64xf32>, vector<32x64xf32> -> vector<32x64xf32>
    %16 = vector.extract_strided_slice %3 {offsets = [1, 0, 0], sizes = [1, 40, 64], strides = [1, 1, 1]} : vector<3x40x64xf32> to vector<1x40x64xf32>
    %17 = vector.shape_cast %16 : vector<1x40x64xf32> to vector<40x64xf32>
    %cst_13 = arith.constant dense<0.000000e+00> : vector<32x64xf32>
    %18 = tpu.matmul %2, %17, %cst_13 {dimension_numbers = #tpu.dot_dimension_numbers<[1], [0], [0], [1], [0, 0, 1, 1], [], []>} : vector<32x40xf32>, vector<40x64xf32>, vector<32x64xf32> -> vector<32x64xf32>
    %19 = arith.addf %15, %18 : vector<32x64xf32>
    %20 = vector.extract_strided_slice %3 {offsets = [2, 0, 0], sizes = [1, 40, 64], strides = [1, 1, 1]} : vector<3x40x64xf32> to vector<1x40x64xf32>
    %21 = vector.shape_cast %20 : vector<1x40x64xf32> to vector<40x64xf32>
    %cst_14 = arith.constant dense<0.000000e+00> : vector<32x64xf32>
    %22 = tpu.matmul %12, %21, %cst_14 {dimension_numbers = #tpu.dot_dimension_numbers<[1], [0], [0], [1], [0, 0, 1, 1], [], []>} : vector<32x40xf32>, vector<40x64xf32>, vector<32x64xf32> -> vector<32x64xf32>
    %23 = arith.addf %19, %22 : vector<32x64xf32>
    %24 = vector.broadcast %4 : vector<1x64xf32> to vector<32x64xf32>
    %25 = arith.addf %23, %24 : vector<32x64xf32>
    %26 = vector.broadcast %5 : vector<1x64xf32> to vector<32x64xf32>
    %27 = arith.mulf %25, %26 : vector<32x64xf32>
    %28 = vector.broadcast %6 : vector<1x64xf32> to vector<32x64xf32>
    %29 = arith.addf %27, %28 : vector<32x64xf32>
    %cst_15 = arith.constant 0.000000e+00 : f32
    %30 = vector.broadcast %cst_15 : f32 to vector<32x64xf32>
    %31 = arith.maximumf %29, %30 : vector<32x64xf32>
    %c0_16 = arith.constant 0 : index
    %c0_17 = arith.constant 0 : index
    %c0_18 = arith.constant 0 : index
    %32 = vector.load %arg8[%c0_16, %c0_17, %c0_18] : memref<1x64x192xf32, #tpu.memory_space<vmem>>, vector<1x64x192xf32>
    %33 = vector.shape_cast %32 : vector<1x64x192xf32> to vector<64x192xf32>
    %cst_19 = arith.constant dense<0.000000e+00> : vector<32x192xf32>
    %34 = tpu.matmul %31, %33, %cst_19 {dimension_numbers = #tpu.dot_dimension_numbers<[1], [0], [0], [1], [0, 0, 1, 1], [], []>} : vector<32x64xf32>, vector<64x192xf32>, vector<32x192xf32> -> vector<32x192xf32>
    %c0_20 = arith.constant 0 : index
    %c0_21 = arith.constant 0 : index
    %c0_22 = arith.constant 0 : index
    %35 = vector.load %arg10[%c0_20, %c0_21, %c0_22] : memref<1x1x192xf32, #tpu.memory_space<vmem>>, vector<1x1x192xf32>
    %36 = vector.shape_cast %35 : vector<1x1x192xf32> to vector<1x192xf32>
    %37 = vector.broadcast %36 : vector<1x192xf32> to vector<32x192xf32>
    %38 = arith.addf %34, %37 : vector<32x192xf32>
    %c0_23 = arith.constant 0 : index
    %c0_24 = arith.constant 0 : index
    %39 = vector.load %arg28[%c0_23, %c0_24] : memref<32x192xf32, #tpu.memory_space<vmem>>, vector<32x192xf32>
    tpu.vector_store %arg28[%c0_23, %c0_24], %38 {strides = array<i32>} : memref<32x192xf32, #tpu.memory_space<vmem>>, vector<32x192xf32>,
    %c0_25 = arith.constant 0 : index
    %c0_26 = arith.constant 0 : index
    %c0_27 = arith.constant 0 : index
    %40 = vector.load %arg11[%c0_25, %c0_26, %c0_27] : memref<1x1x192xf32, #tpu.memory_space<vmem>>, vector<1x1x192xf32>
    %41 = vector.shape_cast %40 : vector<1x1x192xf32> to vector<1x192xf32>
    %cst_28 = arith.constant 0.000000e+00 : f32
    %42 = vector.broadcast %cst_28 : f32 to vector<2x64xf32>
    %c0_29 = arith.constant 0 : index
    %c0_30 = arith.constant 0 : index
    %43 = vector.load %arg28[%c0_29, %c0_30] : memref<32x192xf32, #tpu.memory_space<vmem>>, vector<2x192xf32>
    %c0_31 = arith.constant 0 : index
    %c0_32 = arith.constant 0 : index
    %c0_33 = arith.constant 0 : index
    %44 = vector.load %arg9[%c0_31, %c0_32, %c0_33] : memref<1x64x192xf32, #tpu.memory_space<vmem>>, vector<1x64x192xf32>
    %45 = vector.shape_cast %44 : vector<1x64x192xf32> to vector<64x192xf32>
    %cst_34 = arith.constant dense<0.000000e+00> : vector<2x192xf32>
    %46 = tpu.matmul %42, %45, %cst_34 {dimension_numbers = #tpu.dot_dimension_numbers<[1], [0], [0], [1], [0, 0, 1, 1], [], []>} : vector<2x64xf32>, vector<64x192xf32>, vector<2x192xf32> -> vector<2x192xf32>
    %47 = vector.broadcast %41 : vector<1x192xf32> to vector<2x192xf32>
    %48 = arith.addf %46, %47 : vector<2x192xf32>
    %49 = vector.extract_strided_slice %43 {offsets = [0, 0], sizes = [2, 64], strides = [1, 1]} : vector<2x192xf32> to vector<2x64xf32>
    %50 = vector.extract_strided_slice %48 {offsets = [0, 0], sizes = [2, 64], strides = [1, 1]} : vector<2x192xf32> to vector<2x64xf32>
    %51 = arith.addf %49, %50 : vector<2x64xf32>
    %52 = arith.negf %51 : vector<2x64xf32>
    %53 = math.exp %52 : vector<2x64xf32>
    %cst_35 = arith.constant 1.000000e+00 : f32
    %54 = vector.broadcast %cst_35 : f32 to vector<2x64xf32>
    %55 = arith.addf %54, %53 : vector<2x64xf32>
    %56 = arith.divf %54, %55 : vector<2x64xf32>
    %57 = vector.extract_strided_slice %43 {offsets = [0, 64], sizes = [2, 64], strides = [1, 1]} : vector<2x192xf32> to vector<2x64xf32>
    %58 = vector.extract_strided_slice %48 {offsets = [0, 64], sizes = [2, 64], strides = [1, 1]} : vector<2x192xf32> to vector<2x64xf32>
    %59 = arith.addf %57, %58 : vector<2x64xf32>
    %60 = arith.negf %59 : vector<2x64xf32>
    %61 = math.exp %60 : vector<2x64xf32>
    %cst_36 = arith.constant 1.000000e+00 : f32
    %62 = vector.broadcast %cst_36 : f32 to vector<2x64xf32>
    %63 = arith.addf %62, %61 : vector<2x64xf32>
    %64 = arith.divf %62, %63 : vector<2x64xf32>
    %65 = vector.extract_strided_slice %43 {offsets = [0, 128], sizes = [2, 64], strides = [1, 1]} : vector<2x192xf32> to vector<2x64xf32>
    %66 = vector.extract_strided_slice %48 {offsets = [0, 128], sizes = [2, 64], strides = [1, 1]} : vector<2x192xf32> to vector<2x64xf32>
    %67 = arith.mulf %56, %66 : vector<2x64xf32>
    %68 = arith.addf %65, %67 : vector<2x64xf32>
    %69 = math.tanh %68 : vector<2x64xf32>
    %cst_37 = arith.constant 1.000000e+00 : f32
    %70 = vector.broadcast %cst_37 : f32 to vector<2x64xf32>
    %71 = arith.subf %70, %64 : vector<2x64xf32>
    %72 = arith.mulf %71, %69 : vector<2x64xf32>
    %73 = arith.mulf %64, %42 : vector<2x64xf32>
    %74 = arith.addf %72, %73 : vector<2x64xf32>
    %c0_38 = arith.constant 0 : index
    %c0_39 = arith.constant 0 : index
    %75 = vector.load %arg29[%c0_38, %c0_39] : memref<32x64xf32, #tpu.memory_space<vmem>>, vector<2x64xf32>
    tpu.vector_store %arg29[%c0_38, %c0_39], %74 {strides = array<i32>} : memref<32x64xf32, #tpu.memory_space<vmem>>, vector<2x64xf32>,
    %c2 = arith.constant 2 : index
    %c0_40 = arith.constant 0 : index
    %76 = vector.load %arg28[%c2, %c0_40] : memref<32x192xf32, #tpu.memory_space<vmem>>, vector<2x192xf32>
    %c0_41 = arith.constant 0 : index
    %c0_42 = arith.constant 0 : index
    %c0_43 = arith.constant 0 : index
    %77 = vector.load %arg9[%c0_41, %c0_42, %c0_43] : memref<1x64x192xf32, #tpu.memory_space<vmem>>, vector<1x64x192xf32>
    %78 = vector.shape_cast %77 : vector<1x64x192xf32> to vector<64x192xf32>
    %cst_44 = arith.constant dense<0.000000e+00> : vector<2x192xf32>
    %79 = tpu.matmul %74, %78, %cst_44 {dimension_numbers = #tpu.dot_dimension_numbers<[1], [0], [0], [1], [0, 0, 1, 1], [], []>} : vector<2x64xf32>, vector<64x192xf32>, vector<2x192xf32> -> vector<2x192xf32>
    %80 = vector.broadcast %41 : vector<1x192xf32> to vector<2x192xf32>
    %81 = arith.addf %79, %80 : vector<2x192xf32>
    %82 = vector.extract_strided_slice %76 {offsets = [0, 0], sizes = [2, 64], strides = [1, 1]} : vector<2x192xf32> to vector<2x64xf32>
    %83 = vector.extract_strided_slice %81 {offsets = [0, 0], sizes = [2, 64], strides = [1, 1]} : vector<2x192xf32> to vector<2x64xf32>
    %84 = arith.addf %82, %83 : vector<2x64xf32>
    %85 = arith.negf %84 : vector<2x64xf32>
    %86 = math.exp %85 : vector<2x64xf32>
    %cst_45 = arith.constant 1.000000e+00 : f32
    %87 = vector.broadcast %cst_45 : f32 to vector<2x64xf32>
    %88 = arith.addf %87, %86 : vector<2x64xf32>
    %89 = arith.divf %87, %88 : vector<2x64xf32>
    %90 = vector.extract_strided_slice %76 {offsets = [0, 64], sizes = [2, 64], strides = [1, 1]} : vector<2x192xf32> to vector<2x64xf32>
    %91 = vector.extract_strided_slice %81 {offsets = [0, 64], sizes = [2, 64], strides = [1, 1]} : vector<2x192xf32> to vector<2x64xf32>
    %92 = arith.addf %90, %91 : vector<2x64xf32>
    %93 = arith.negf %92 : vector<2x64xf32>
    %94 = math.exp %93 : vector<2x64xf32>
    %cst_46 = arith.constant 1.000000e+00 : f32
    %95 = vector.broadcast %cst_46 : f32 to vector<2x64xf32>
    %96 = arith.addf %95, %94 : vector<2x64xf32>
    %97 = arith.divf %95, %96 : vector<2x64xf32>
    %98 = vector.extract_strided_slice %76 {offsets = [0, 128], sizes = [2, 64], strides = [1, 1]} : vector<2x192xf32> to vector<2x64xf32>
    %99 = vector.extract_strided_slice %81 {offsets = [0, 128], sizes = [2, 64], strides = [1, 1]} : vector<2x192xf32> to vector<2x64xf32>
    %100 = arith.mulf %89, %99 : vector<2x64xf32>
    %101 = arith.addf %98, %100 : vector<2x64xf32>
    %102 = math.tanh %101 : vector<2x64xf32>
    %cst_47 = arith.constant 1.000000e+00 : f32
    %103 = vector.broadcast %cst_47 : f32 to vector<2x64xf32>
    %104 = arith.subf %103, %97 : vector<2x64xf32>
    %105 = arith.mulf %104, %102 : vector<2x64xf32>
    %106 = arith.mulf %97, %74 : vector<2x64xf32>
    %107 = arith.addf %105, %106 : vector<2x64xf32>
    %c2_48 = arith.constant 2 : index
    %c0_49 = arith.constant 0 : index
    %108 = vector.load %arg29[%c2_48, %c0_49] : memref<32x64xf32, #tpu.memory_space<vmem>>, vector<2x64xf32>
    tpu.vector_store %arg29[%c2_48, %c0_49], %107 {strides = array<i32>} : memref<32x64xf32, #tpu.memory_space<vmem>>, vector<2x64xf32>,
    %c4 = arith.constant 4 : index
    %c0_50 = arith.constant 0 : index
    %109 = vector.load %arg28[%c4, %c0_50] : memref<32x192xf32, #tpu.memory_space<vmem>>, vector<2x192xf32>
    %c0_51 = arith.constant 0 : index
    %c0_52 = arith.constant 0 : index
    %c0_53 = arith.constant 0 : index
    %110 = vector.load %arg9[%c0_51, %c0_52, %c0_53] : memref<1x64x192xf32, #tpu.memory_space<vmem>>, vector<1x64x192xf32>
    %111 = vector.shape_cast %110 : vector<1x64x192xf32> to vector<64x192xf32>
    %cst_54 = arith.constant dense<0.000000e+00> : vector<2x192xf32>
    %112 = tpu.matmul %107, %111, %cst_54 {dimension_numbers = #tpu.dot_dimension_numbers<[1], [0], [0], [1], [0, 0, 1, 1], [], []>} : vector<2x64xf32>, vector<64x192xf32>, vector<2x192xf32> -> vector<2x192xf32>
    %113 = vector.broadcast %41 : vector<1x192xf32> to vector<2x192xf32>
    %114 = arith.addf %112, %113 : vector<2x192xf32>
    %115 = vector.extract_strided_slice %109 {offsets = [0, 0], sizes = [2, 64], strides = [1, 1]} : vector<2x192xf32> to vector<2x64xf32>
    %116 = vector.extract_strided_slice %114 {offsets = [0, 0], sizes = [2, 64], strides = [1, 1]} : vector<2x192xf32> to vector<2x64xf32>
    %117 = arith.addf %115, %116 : vector<2x64xf32>
    %118 = arith.negf %117 : vector<2x64xf32>
    %119 = math.exp %118 : vector<2x64xf32>
    %cst_55 = arith.constant 1.000000e+00 : f32
    %120 = vector.broadcast %cst_55 : f32 to vector<2x64xf32>
    %121 = arith.addf %120, %119 : vector<2x64xf32>
    %122 = arith.divf %120, %121 : vector<2x64xf32>
    %123 = vector.extract_strided_slice %109 {offsets = [0, 64], sizes = [2, 64], strides = [1, 1]} : vector<2x192xf32> to vector<2x64xf32>
    %124 = vector.extract_strided_slice %114 {offsets = [0, 64], sizes = [2, 64], strides = [1, 1]} : vector<2x192xf32> to vector<2x64xf32>
    %125 = arith.addf %123, %124 : vector<2x64xf32>
    %126 = arith.negf %125 : vector<2x64xf32>
    %127 = math.exp %126 : vector<2x64xf32>
    %cst_56 = arith.constant 1.000000e+00 : f32
    %128 = vector.broadcast %cst_56 : f32 to vector<2x64xf32>
    %129 = arith.addf %128, %127 : vector<2x64xf32>
    %130 = arith.divf %128, %129 : vector<2x64xf32>
    %131 = vector.extract_strided_slice %109 {offsets = [0, 128], sizes = [2, 64], strides = [1, 1]} : vector<2x192xf32> to vector<2x64xf32>
    %132 = vector.extract_strided_slice %114 {offsets = [0, 128], sizes = [2, 64], strides = [1, 1]} : vector<2x192xf32> to vector<2x64xf32>
    %133 = arith.mulf %122, %132 : vector<2x64xf32>
    %134 = arith.addf %131, %133 : vector<2x64xf32>
    %135 = math.tanh %134 : vector<2x64xf32>
    %cst_57 = arith.constant 1.000000e+00 : f32
    %136 = vector.broadcast %cst_57 : f32 to vector<2x64xf32>
    %137 = arith.subf %136, %130 : vector<2x64xf32>
    %138 = arith.mulf %137, %135 : vector<2x64xf32>
    %139 = arith.mulf %130, %107 : vector<2x64xf32>
    %140 = arith.addf %138, %139 : vector<2x64xf32>
    %c4_58 = arith.constant 4 : index
    %c0_59 = arith.constant 0 : index
    %141 = vector.load %arg29[%c4_58, %c0_59] : memref<32x64xf32, #tpu.memory_space<vmem>>, vector<2x64xf32>
    tpu.vector_store %arg29[%c4_58, %c0_59], %140 {strides = array<i32>} : memref<32x64xf32, #tpu.memory_space<vmem>>, vector<2x64xf32>,
    %c6 = arith.constant 6 : index
    %c0_60 = arith.constant 0 : index
    %142 = vector.load %arg28[%c6, %c0_60] : memref<32x192xf32, #tpu.memory_space<vmem>>, vector<2x192xf32>
    %c0_61 = arith.constant 0 : index
    %c0_62 = arith.constant 0 : index
    %c0_63 = arith.constant 0 : index
    %143 = vector.load %arg9[%c0_61, %c0_62, %c0_63] : memref<1x64x192xf32, #tpu.memory_space<vmem>>, vector<1x64x192xf32>
    %144 = vector.shape_cast %143 : vector<1x64x192xf32> to vector<64x192xf32>
    %cst_64 = arith.constant dense<0.000000e+00> : vector<2x192xf32>
    %145 = tpu.matmul %140, %144, %cst_64 {dimension_numbers = #tpu.dot_dimension_numbers<[1], [0], [0], [1], [0, 0, 1, 1], [], []>} : vector<2x64xf32>, vector<64x192xf32>, vector<2x192xf32> -> vector<2x192xf32>
    %146 = vector.broadcast %41 : vector<1x192xf32> to vector<2x192xf32>
    %147 = arith.addf %145, %146 : vector<2x192xf32>
    %148 = vector.extract_strided_slice %142 {offsets = [0, 0], sizes = [2, 64], strides = [1, 1]} : vector<2x192xf32> to vector<2x64xf32>
    %149 = vector.extract_strided_slice %147 {offsets = [0, 0], sizes = [2, 64], strides = [1, 1]} : vector<2x192xf32> to vector<2x64xf32>
    %150 = arith.addf %148, %149 : vector<2x64xf32>
    %151 = arith.negf %150 : vector<2x64xf32>
    %152 = math.exp %151 : vector<2x64xf32>
    %cst_65 = arith.constant 1.000000e+00 : f32
    %153 = vector.broadcast %cst_65 : f32 to vector<2x64xf32>
    %154 = arith.addf %153, %152 : vector<2x64xf32>
    %155 = arith.divf %153, %154 : vector<2x64xf32>
    %156 = vector.extract_strided_slice %142 {offsets = [0, 64], sizes = [2, 64], strides = [1, 1]} : vector<2x192xf32> to vector<2x64xf32>
    %157 = vector.extract_strided_slice %147 {offsets = [0, 64], sizes = [2, 64], strides = [1, 1]} : vector<2x192xf32> to vector<2x64xf32>
    %158 = arith.addf %156, %157 : vector<2x64xf32>
    %159 = arith.negf %158 : vector<2x64xf32>
    %160 = math.exp %159 : vector<2x64xf32>
    %cst_66 = arith.constant 1.000000e+00 : f32
    %161 = vector.broadcast %cst_66 : f32 to vector<2x64xf32>
    %162 = arith.addf %161, %160 : vector<2x64xf32>
    %163 = arith.divf %161, %162 : vector<2x64xf32>
    %164 = vector.extract_strided_slice %142 {offsets = [0, 128], sizes = [2, 64], strides = [1, 1]} : vector<2x192xf32> to vector<2x64xf32>
    %165 = vector.extract_strided_slice %147 {offsets = [0, 128], sizes = [2, 64], strides = [1, 1]} : vector<2x192xf32> to vector<2x64xf32>
    %166 = arith.mulf %155, %165 : vector<2x64xf32>
    %167 = arith.addf %164, %166 : vector<2x64xf32>
    %168 = math.tanh %167 : vector<2x64xf32>
    %cst_67 = arith.constant 1.000000e+00 : f32
    %169 = vector.broadcast %cst_67 : f32 to vector<2x64xf32>
    %170 = arith.subf %169, %163 : vector<2x64xf32>
    %171 = arith.mulf %170, %168 : vector<2x64xf32>
    %172 = arith.mulf %163, %140 : vector<2x64xf32>
    %173 = arith.addf %171, %172 : vector<2x64xf32>
    %c6_68 = arith.constant 6 : index
    %c0_69 = arith.constant 0 : index
    %174 = vector.load %arg29[%c6_68, %c0_69] : memref<32x64xf32, #tpu.memory_space<vmem>>, vector<2x64xf32>
    tpu.vector_store %arg29[%c6_68, %c0_69], %173 {strides = array<i32>} : memref<32x64xf32, #tpu.memory_space<vmem>>, vector<2x64xf32>,
    %c8 = arith.constant 8 : index
    %c0_70 = arith.constant 0 : index
    %175 = vector.load %arg28[%c8, %c0_70] : memref<32x192xf32, #tpu.memory_space<vmem>>, vector<2x192xf32>
    %c0_71 = arith.constant 0 : index
    %c0_72 = arith.constant 0 : index
    %c0_73 = arith.constant 0 : index
    %176 = vector.load %arg9[%c0_71, %c0_72, %c0_73] : memref<1x64x192xf32, #tpu.memory_space<vmem>>, vector<1x64x192xf32>
    %177 = vector.shape_cast %176 : vector<1x64x192xf32> to vector<64x192xf32>
    %cst_74 = arith.constant dense<0.000000e+00> : vector<2x192xf32>
    %178 = tpu.matmul %173, %177, %cst_74 {dimension_numbers = #tpu.dot_dimension_numbers<[1], [0], [0], [1], [0, 0, 1, 1], [], []>} : vector<2x64xf32>, vector<64x192xf32>, vector<2x192xf32> -> vector<2x192xf32>
    %179 = vector.broadcast %41 : vector<1x192xf32> to vector<2x192xf32>
    %180 = arith.addf %178, %179 : vector<2x192xf32>
    %181 = vector.extract_strided_slice %175 {offsets = [0, 0], sizes = [2, 64], strides = [1, 1]} : vector<2x192xf32> to vector<2x64xf32>
    %182 = vector.extract_strided_slice %180 {offsets = [0, 0], sizes = [2, 64], strides = [1, 1]} : vector<2x192xf32> to vector<2x64xf32>
    %183 = arith.addf %181, %182 : vector<2x64xf32>
    %184 = arith.negf %183 : vector<2x64xf32>
    %185 = math.exp %184 : vector<2x64xf32>
    %cst_75 = arith.constant 1.000000e+00 : f32
    %186 = vector.broadcast %cst_75 : f32 to vector<2x64xf32>
    %187 = arith.addf %186, %185 : vector<2x64xf32>
    %188 = arith.divf %186, %187 : vector<2x64xf32>
    %189 = vector.extract_strided_slice %175 {offsets = [0, 64], sizes = [2, 64], strides = [1, 1]} : vector<2x192xf32> to vector<2x64xf32>
    %190 = vector.extract_strided_slice %180 {offsets = [0, 64], sizes = [2, 64], strides = [1, 1]} : vector<2x192xf32> to vector<2x64xf32>
    %191 = arith.addf %189, %190 : vector<2x64xf32>
    %192 = arith.negf %191 : vector<2x64xf32>
    %193 = math.exp %192 : vector<2x64xf32>
    %cst_76 = arith.constant 1.000000e+00 : f32
    %194 = vector.broadcast %cst_76 : f32 to vector<2x64xf32>
    %195 = arith.addf %194, %193 : vector<2x64xf32>
    %196 = arith.divf %194, %195 : vector<2x64xf32>
    %197 = vector.extract_strided_slice %175 {offsets = [0, 128], sizes = [2, 64], strides = [1, 1]} : vector<2x192xf32> to vector<2x64xf32>
    %198 = vector.extract_strided_slice %180 {offsets = [0, 128], sizes = [2, 64], strides = [1, 1]} : vector<2x192xf32> to vector<2x64xf32>
    %199 = arith.mulf %188, %198 : vector<2x64xf32>
    %200 = arith.addf %197, %199 : vector<2x64xf32>
    %201 = math.tanh %200 : vector<2x64xf32>
    %cst_77 = arith.constant 1.000000e+00 : f32
    %202 = vector.broadcast %cst_77 : f32 to vector<2x64xf32>
    %203 = arith.subf %202, %196 : vector<2x64xf32>
    %204 = arith.mulf %203, %201 : vector<2x64xf32>
    %205 = arith.mulf %196, %173 : vector<2x64xf32>
    %206 = arith.addf %204, %205 : vector<2x64xf32>
    %c8_78 = arith.constant 8 : index
    %c0_79 = arith.constant 0 : index
    %207 = vector.load %arg29[%c8_78, %c0_79] : memref<32x64xf32, #tpu.memory_space<vmem>>, vector<2x64xf32>
    tpu.vector_store %arg29[%c8_78, %c0_79], %206 {strides = array<i32>} : memref<32x64xf32, #tpu.memory_space<vmem>>, vector<2x64xf32>,
    %c10 = arith.constant 10 : index
    %c0_80 = arith.constant 0 : index
    %208 = vector.load %arg28[%c10, %c0_80] : memref<32x192xf32, #tpu.memory_space<vmem>>, vector<2x192xf32>
    %c0_81 = arith.constant 0 : index
    %c0_82 = arith.constant 0 : index
    %c0_83 = arith.constant 0 : index
    %209 = vector.load %arg9[%c0_81, %c0_82, %c0_83] : memref<1x64x192xf32, #tpu.memory_space<vmem>>, vector<1x64x192xf32>
    %210 = vector.shape_cast %209 : vector<1x64x192xf32> to vector<64x192xf32>
    %cst_84 = arith.constant dense<0.000000e+00> : vector<2x192xf32>
    %211 = tpu.matmul %206, %210, %cst_84 {dimension_numbers = #tpu.dot_dimension_numbers<[1], [0], [0], [1], [0, 0, 1, 1], [], []>} : vector<2x64xf32>, vector<64x192xf32>, vector<2x192xf32> -> vector<2x192xf32>
    %212 = vector.broadcast %41 : vector<1x192xf32> to vector<2x192xf32>
    %213 = arith.addf %211, %212 : vector<2x192xf32>
    %214 = vector.extract_strided_slice %208 {offsets = [0, 0], sizes = [2, 64], strides = [1, 1]} : vector<2x192xf32> to vector<2x64xf32>
    %215 = vector.extract_strided_slice %213 {offsets = [0, 0], sizes = [2, 64], strides = [1, 1]} : vector<2x192xf32> to vector<2x64xf32>
    %216 = arith.addf %214, %215 : vector<2x64xf32>
    %217 = arith.negf %216 : vector<2x64xf32>
    %218 = math.exp %217 : vector<2x64xf32>
    %cst_85 = arith.constant 1.000000e+00 : f32
    %219 = vector.broadcast %cst_85 : f32 to vector<2x64xf32>
    %220 = arith.addf %219, %218 : vector<2x64xf32>
    %221 = arith.divf %219, %220 : vector<2x64xf32>
    %222 = vector.extract_strided_slice %208 {offsets = [0, 64], sizes = [2, 64], strides = [1, 1]} : vector<2x192xf32> to vector<2x64xf32>
    %223 = vector.extract_strided_slice %213 {offsets = [0, 64], sizes = [2, 64], strides = [1, 1]} : vector<2x192xf32> to vector<2x64xf32>
    %224 = arith.addf %222, %223 : vector<2x64xf32>
    %225 = arith.negf %224 : vector<2x64xf32>
    %226 = math.exp %225 : vector<2x64xf32>
    %cst_86 = arith.constant 1.000000e+00 : f32
    %227 = vector.broadcast %cst_86 : f32 to vector<2x64xf32>
    %228 = arith.addf %227, %226 : vector<2x64xf32>
    %229 = arith.divf %227, %228 : vector<2x64xf32>
    %230 = vector.extract_strided_slice %208 {offsets = [0, 128], sizes = [2, 64], strides = [1, 1]} : vector<2x192xf32> to vector<2x64xf32>
    %231 = vector.extract_strided_slice %213 {offsets = [0, 128], sizes = [2, 64], strides = [1, 1]} : vector<2x192xf32> to vector<2x64xf32>
    %232 = arith.mulf %221, %231 : vector<2x64xf32>
    %233 = arith.addf %230, %232 : vector<2x64xf32>
    %234 = math.tanh %233 : vector<2x64xf32>
    %cst_87 = arith.constant 1.000000e+00 : f32
    %235 = vector.broadcast %cst_87 : f32 to vector<2x64xf32>
    %236 = arith.subf %235, %229 : vector<2x64xf32>
    %237 = arith.mulf %236, %234 : vector<2x64xf32>
    %238 = arith.mulf %229, %206 : vector<2x64xf32>
    %239 = arith.addf %237, %238 : vector<2x64xf32>
    %c10_88 = arith.constant 10 : index
    %c0_89 = arith.constant 0 : index
    %240 = vector.load %arg29[%c10_88, %c0_89] : memref<32x64xf32, #tpu.memory_space<vmem>>, vector<2x64xf32>
    tpu.vector_store %arg29[%c10_88, %c0_89], %239 {strides = array<i32>} : memref<32x64xf32, #tpu.memory_space<vmem>>, vector<2x64xf32>,
    %c12 = arith.constant 12 : index
    %c0_90 = arith.constant 0 : index
    %241 = vector.load %arg28[%c12, %c0_90] : memref<32x192xf32, #tpu.memory_space<vmem>>, vector<2x192xf32>
    %c0_91 = arith.constant 0 : index
    %c0_92 = arith.constant 0 : index
    %c0_93 = arith.constant 0 : index
    %242 = vector.load %arg9[%c0_91, %c0_92, %c0_93] : memref<1x64x192xf32, #tpu.memory_space<vmem>>, vector<1x64x192xf32>
    %243 = vector.shape_cast %242 : vector<1x64x192xf32> to vector<64x192xf32>
    %cst_94 = arith.constant dense<0.000000e+00> : vector<2x192xf32>
    %244 = tpu.matmul %239, %243, %cst_94 {dimension_numbers = #tpu.dot_dimension_numbers<[1], [0], [0], [1], [0, 0, 1, 1], [], []>} : vector<2x64xf32>, vector<64x192xf32>, vector<2x192xf32> -> vector<2x192xf32>
    %245 = vector.broadcast %41 : vector<1x192xf32> to vector<2x192xf32>
    %246 = arith.addf %244, %245 : vector<2x192xf32>
    %247 = vector.extract_strided_slice %241 {offsets = [0, 0], sizes = [2, 64], strides = [1, 1]} : vector<2x192xf32> to vector<2x64xf32>
    %248 = vector.extract_strided_slice %246 {offsets = [0, 0], sizes = [2, 64], strides = [1, 1]} : vector<2x192xf32> to vector<2x64xf32>
    %249 = arith.addf %247, %248 : vector<2x64xf32>
    %250 = arith.negf %249 : vector<2x64xf32>
    %251 = math.exp %250 : vector<2x64xf32>
    %cst_95 = arith.constant 1.000000e+00 : f32
    %252 = vector.broadcast %cst_95 : f32 to vector<2x64xf32>
    %253 = arith.addf %252, %251 : vector<2x64xf32>
    %254 = arith.divf %252, %253 : vector<2x64xf32>
    %255 = vector.extract_strided_slice %241 {offsets = [0, 64], sizes = [2, 64], strides = [1, 1]} : vector<2x192xf32> to vector<2x64xf32>
    %256 = vector.extract_strided_slice %246 {offsets = [0, 64], sizes = [2, 64], strides = [1, 1]} : vector<2x192xf32> to vector<2x64xf32>
    %257 = arith.addf %255, %256 : vector<2x64xf32>
    %258 = arith.negf %257 : vector<2x64xf32>
    %259 = math.exp %258 : vector<2x64xf32>
    %cst_96 = arith.constant 1.000000e+00 : f32
    %260 = vector.broadcast %cst_96 : f32 to vector<2x64xf32>
    %261 = arith.addf %260, %259 : vector<2x64xf32>
    %262 = arith.divf %260, %261 : vector<2x64xf32>
    %263 = vector.extract_strided_slice %241 {offsets = [0, 128], sizes = [2, 64], strides = [1, 1]} : vector<2x192xf32> to vector<2x64xf32>
    %264 = vector.extract_strided_slice %246 {offsets = [0, 128], sizes = [2, 64], strides = [1, 1]} : vector<2x192xf32> to vector<2x64xf32>
    %265 = arith.mulf %254, %264 : vector<2x64xf32>
    %266 = arith.addf %263, %265 : vector<2x64xf32>
    %267 = math.tanh %266 : vector<2x64xf32>
    %cst_97 = arith.constant 1.000000e+00 : f32
    %268 = vector.broadcast %cst_97 : f32 to vector<2x64xf32>
    %269 = arith.subf %268, %262 : vector<2x64xf32>
    %270 = arith.mulf %269, %267 : vector<2x64xf32>
    %271 = arith.mulf %262, %239 : vector<2x64xf32>
    %272 = arith.addf %270, %271 : vector<2x64xf32>
    %c12_98 = arith.constant 12 : index
    %c0_99 = arith.constant 0 : index
    %273 = vector.load %arg29[%c12_98, %c0_99] : memref<32x64xf32, #tpu.memory_space<vmem>>, vector<2x64xf32>
    tpu.vector_store %arg29[%c12_98, %c0_99], %272 {strides = array<i32>} : memref<32x64xf32, #tpu.memory_space<vmem>>, vector<2x64xf32>,
    %c14 = arith.constant 14 : index
    %c0_100 = arith.constant 0 : index
    %274 = vector.load %arg28[%c14, %c0_100] : memref<32x192xf32, #tpu.memory_space<vmem>>, vector<2x192xf32>
    %c0_101 = arith.constant 0 : index
    %c0_102 = arith.constant 0 : index
    %c0_103 = arith.constant 0 : index
    %275 = vector.load %arg9[%c0_101, %c0_102, %c0_103] : memref<1x64x192xf32, #tpu.memory_space<vmem>>, vector<1x64x192xf32>
    %276 = vector.shape_cast %275 : vector<1x64x192xf32> to vector<64x192xf32>
    %cst_104 = arith.constant dense<0.000000e+00> : vector<2x192xf32>
    %277 = tpu.matmul %272, %276, %cst_104 {dimension_numbers = #tpu.dot_dimension_numbers<[1], [0], [0], [1], [0, 0, 1, 1], [], []>} : vector<2x64xf32>, vector<64x192xf32>, vector<2x192xf32> -> vector<2x192xf32>
    %278 = vector.broadcast %41 : vector<1x192xf32> to vector<2x192xf32>
    %279 = arith.addf %277, %278 : vector<2x192xf32>
    %280 = vector.extract_strided_slice %274 {offsets = [0, 0], sizes = [2, 64], strides = [1, 1]} : vector<2x192xf32> to vector<2x64xf32>
    %281 = vector.extract_strided_slice %279 {offsets = [0, 0], sizes = [2, 64], strides = [1, 1]} : vector<2x192xf32> to vector<2x64xf32>
    %282 = arith.addf %280, %281 : vector<2x64xf32>
    %283 = arith.negf %282 : vector<2x64xf32>
    %284 = math.exp %283 : vector<2x64xf32>
    %cst_105 = arith.constant 1.000000e+00 : f32
    %285 = vector.broadcast %cst_105 : f32 to vector<2x64xf32>
    %286 = arith.addf %285, %284 : vector<2x64xf32>
    %287 = arith.divf %285, %286 : vector<2x64xf32>
    %288 = vector.extract_strided_slice %274 {offsets = [0, 64], sizes = [2, 64], strides = [1, 1]} : vector<2x192xf32> to vector<2x64xf32>
    %289 = vector.extract_strided_slice %279 {offsets = [0, 64], sizes = [2, 64], strides = [1, 1]} : vector<2x192xf32> to vector<2x64xf32>
    %290 = arith.addf %288, %289 : vector<2x64xf32>
    %291 = arith.negf %290 : vector<2x64xf32>
    %292 = math.exp %291 : vector<2x64xf32>
    %cst_106 = arith.constant 1.000000e+00 : f32
    %293 = vector.broadcast %cst_106 : f32 to vector<2x64xf32>
    %294 = arith.addf %293, %292 : vector<2x64xf32>
    %295 = arith.divf %293, %294 : vector<2x64xf32>
    %296 = vector.extract_strided_slice %274 {offsets = [0, 128], sizes = [2, 64], strides = [1, 1]} : vector<2x192xf32> to vector<2x64xf32>
    %297 = vector.extract_strided_slice %279 {offsets = [0, 128], sizes = [2, 64], strides = [1, 1]} : vector<2x192xf32> to vector<2x64xf32>
    %298 = arith.mulf %287, %297 : vector<2x64xf32>
    %299 = arith.addf %296, %298 : vector<2x64xf32>
    %300 = math.tanh %299 : vector<2x64xf32>
    %cst_107 = arith.constant 1.000000e+00 : f32
    %301 = vector.broadcast %cst_107 : f32 to vector<2x64xf32>
    %302 = arith.subf %301, %295 : vector<2x64xf32>
    %303 = arith.mulf %302, %300 : vector<2x64xf32>
    %304 = arith.mulf %295, %272 : vector<2x64xf32>
    %305 = arith.addf %303, %304 : vector<2x64xf32>
    %c14_108 = arith.constant 14 : index
    %c0_109 = arith.constant 0 : index
    %306 = vector.load %arg29[%c14_108, %c0_109] : memref<32x64xf32, #tpu.memory_space<vmem>>, vector<2x64xf32>
    tpu.vector_store %arg29[%c14_108, %c0_109], %305 {strides = array<i32>} : memref<32x64xf32, #tpu.memory_space<vmem>>, vector<2x64xf32>,
    %c16 = arith.constant 16 : index
    %c0_110 = arith.constant 0 : index
    %307 = vector.load %arg28[%c16, %c0_110] : memref<32x192xf32, #tpu.memory_space<vmem>>, vector<2x192xf32>
    %c0_111 = arith.constant 0 : index
    %c0_112 = arith.constant 0 : index
    %c0_113 = arith.constant 0 : index
    %308 = vector.load %arg9[%c0_111, %c0_112, %c0_113] : memref<1x64x192xf32, #tpu.memory_space<vmem>>, vector<1x64x192xf32>
    %309 = vector.shape_cast %308 : vector<1x64x192xf32> to vector<64x192xf32>
    %cst_114 = arith.constant dense<0.000000e+00> : vector<2x192xf32>
    %310 = tpu.matmul %305, %309, %cst_114 {dimension_numbers = #tpu.dot_dimension_numbers<[1], [0], [0], [1], [0, 0, 1, 1], [], []>} : vector<2x64xf32>, vector<64x192xf32>, vector<2x192xf32> -> vector<2x192xf32>
    %311 = vector.broadcast %41 : vector<1x192xf32> to vector<2x192xf32>
    %312 = arith.addf %310, %311 : vector<2x192xf32>
    %313 = vector.extract_strided_slice %307 {offsets = [0, 0], sizes = [2, 64], strides = [1, 1]} : vector<2x192xf32> to vector<2x64xf32>
    %314 = vector.extract_strided_slice %312 {offsets = [0, 0], sizes = [2, 64], strides = [1, 1]} : vector<2x192xf32> to vector<2x64xf32>
    %315 = arith.addf %313, %314 : vector<2x64xf32>
    %316 = arith.negf %315 : vector<2x64xf32>
    %317 = math.exp %316 : vector<2x64xf32>
    %cst_115 = arith.constant 1.000000e+00 : f32
    %318 = vector.broadcast %cst_115 : f32 to vector<2x64xf32>
    %319 = arith.addf %318, %317 : vector<2x64xf32>
    %320 = arith.divf %318, %319 : vector<2x64xf32>
    %321 = vector.extract_strided_slice %307 {offsets = [0, 64], sizes = [2, 64], strides = [1, 1]} : vector<2x192xf32> to vector<2x64xf32>
    %322 = vector.extract_strided_slice %312 {offsets = [0, 64], sizes = [2, 64], strides = [1, 1]} : vector<2x192xf32> to vector<2x64xf32>
    %323 = arith.addf %321, %322 : vector<2x64xf32>
    %324 = arith.negf %323 : vector<2x64xf32>
    %325 = math.exp %324 : vector<2x64xf32>
    %cst_116 = arith.constant 1.000000e+00 : f32
    %326 = vector.broadcast %cst_116 : f32 to vector<2x64xf32>
    %327 = arith.addf %326, %325 : vector<2x64xf32>
    %328 = arith.divf %326, %327 : vector<2x64xf32>
    %329 = vector.extract_strided_slice %307 {offsets = [0, 128], sizes = [2, 64], strides = [1, 1]} : vector<2x192xf32> to vector<2x64xf32>
    %330 = vector.extract_strided_slice %312 {offsets = [0, 128], sizes = [2, 64], strides = [1, 1]} : vector<2x192xf32> to vector<2x64xf32>
    %331 = arith.mulf %320, %330 : vector<2x64xf32>
    %332 = arith.addf %329, %331 : vector<2x64xf32>
    %333 = math.tanh %332 : vector<2x64xf32>
    %cst_117 = arith.constant 1.000000e+00 : f32
    %334 = vector.broadcast %cst_117 : f32 to vector<2x64xf32>
    %335 = arith.subf %334, %328 : vector<2x64xf32>
    %336 = arith.mulf %335, %333 : vector<2x64xf32>
    %337 = arith.mulf %328, %305 : vector<2x64xf32>
    %338 = arith.addf %336, %337 : vector<2x64xf32>
    %c16_118 = arith.constant 16 : index
    %c0_119 = arith.constant 0 : index
    %339 = vector.load %arg29[%c16_118, %c0_119] : memref<32x64xf32, #tpu.memory_space<vmem>>, vector<2x64xf32>
    tpu.vector_store %arg29[%c16_118, %c0_119], %338 {strides = array<i32>} : memref<32x64xf32, #tpu.memory_space<vmem>>, vector<2x64xf32>,
    %c18 = arith.constant 18 : index
    %c0_120 = arith.constant 0 : index
    %340 = vector.load %arg28[%c18, %c0_120] : memref<32x192xf32, #tpu.memory_space<vmem>>, vector<2x192xf32>
    %c0_121 = arith.constant 0 : index
    %c0_122 = arith.constant 0 : index
    %c0_123 = arith.constant 0 : index
    %341 = vector.load %arg9[%c0_121, %c0_122, %c0_123] : memref<1x64x192xf32, #tpu.memory_space<vmem>>, vector<1x64x192xf32>
    %342 = vector.shape_cast %341 : vector<1x64x192xf32> to vector<64x192xf32>
    %cst_124 = arith.constant dense<0.000000e+00> : vector<2x192xf32>
    %343 = tpu.matmul %338, %342, %cst_124 {dimension_numbers = #tpu.dot_dimension_numbers<[1], [0], [0], [1], [0, 0, 1, 1], [], []>} : vector<2x64xf32>, vector<64x192xf32>, vector<2x192xf32> -> vector<2x192xf32>
    %344 = vector.broadcast %41 : vector<1x192xf32> to vector<2x192xf32>
    %345 = arith.addf %343, %344 : vector<2x192xf32>
    %346 = vector.extract_strided_slice %340 {offsets = [0, 0], sizes = [2, 64], strides = [1, 1]} : vector<2x192xf32> to vector<2x64xf32>
    %347 = vector.extract_strided_slice %345 {offsets = [0, 0], sizes = [2, 64], strides = [1, 1]} : vector<2x192xf32> to vector<2x64xf32>
    %348 = arith.addf %346, %347 : vector<2x64xf32>
    %349 = arith.negf %348 : vector<2x64xf32>
    %350 = math.exp %349 : vector<2x64xf32>
    %cst_125 = arith.constant 1.000000e+00 : f32
    %351 = vector.broadcast %cst_125 : f32 to vector<2x64xf32>
    %352 = arith.addf %351, %350 : vector<2x64xf32>
    %353 = arith.divf %351, %352 : vector<2x64xf32>
    %354 = vector.extract_strided_slice %340 {offsets = [0, 64], sizes = [2, 64], strides = [1, 1]} : vector<2x192xf32> to vector<2x64xf32>
    %355 = vector.extract_strided_slice %345 {offsets = [0, 64], sizes = [2, 64], strides = [1, 1]} : vector<2x192xf32> to vector<2x64xf32>
    %356 = arith.addf %354, %355 : vector<2x64xf32>
    %357 = arith.negf %356 : vector<2x64xf32>
    %358 = math.exp %357 : vector<2x64xf32>
    %cst_126 = arith.constant 1.000000e+00 : f32
    %359 = vector.broadcast %cst_126 : f32 to vector<2x64xf32>
    %360 = arith.addf %359, %358 : vector<2x64xf32>
    %361 = arith.divf %359, %360 : vector<2x64xf32>
    %362 = vector.extract_strided_slice %340 {offsets = [0, 128], sizes = [2, 64], strides = [1, 1]} : vector<2x192xf32> to vector<2x64xf32>
    %363 = vector.extract_strided_slice %345 {offsets = [0, 128], sizes = [2, 64], strides = [1, 1]} : vector<2x192xf32> to vector<2x64xf32>
    %364 = arith.mulf %353, %363 : vector<2x64xf32>
    %365 = arith.addf %362, %364 : vector<2x64xf32>
    %366 = math.tanh %365 : vector<2x64xf32>
    %cst_127 = arith.constant 1.000000e+00 : f32
    %367 = vector.broadcast %cst_127 : f32 to vector<2x64xf32>
    %368 = arith.subf %367, %361 : vector<2x64xf32>
    %369 = arith.mulf %368, %366 : vector<2x64xf32>
    %370 = arith.mulf %361, %338 : vector<2x64xf32>
    %371 = arith.addf %369, %370 : vector<2x64xf32>
    %c18_128 = arith.constant 18 : index
    %c0_129 = arith.constant 0 : index
    %372 = vector.load %arg29[%c18_128, %c0_129] : memref<32x64xf32, #tpu.memory_space<vmem>>, vector<2x64xf32>
    tpu.vector_store %arg29[%c18_128, %c0_129], %371 {strides = array<i32>} : memref<32x64xf32, #tpu.memory_space<vmem>>, vector<2x64xf32>,
    %c20 = arith.constant 20 : index
    %c0_130 = arith.constant 0 : index
    %373 = vector.load %arg28[%c20, %c0_130] : memref<32x192xf32, #tpu.memory_space<vmem>>, vector<2x192xf32>
    %c0_131 = arith.constant 0 : index
    %c0_132 = arith.constant 0 : index
    %c0_133 = arith.constant 0 : index
    %374 = vector.load %arg9[%c0_131, %c0_132, %c0_133] : memref<1x64x192xf32, #tpu.memory_space<vmem>>, vector<1x64x192xf32>
    %375 = vector.shape_cast %374 : vector<1x64x192xf32> to vector<64x192xf32>
    %cst_134 = arith.constant dense<0.000000e+00> : vector<2x192xf32>
    %376 = tpu.matmul %371, %375, %cst_134 {dimension_numbers = #tpu.dot_dimension_numbers<[1], [0], [0], [1], [0, 0, 1, 1], [], []>} : vector<2x64xf32>, vector<64x192xf32>, vector<2x192xf32> -> vector<2x192xf32>
    %377 = vector.broadcast %41 : vector<1x192xf32> to vector<2x192xf32>
    %378 = arith.addf %376, %377 : vector<2x192xf32>
    %379 = vector.extract_strided_slice %373 {offsets = [0, 0], sizes = [2, 64], strides = [1, 1]} : vector<2x192xf32> to vector<2x64xf32>
    %380 = vector.extract_strided_slice %378 {offsets = [0, 0], sizes = [2, 64], strides = [1, 1]} : vector<2x192xf32> to vector<2x64xf32>
    %381 = arith.addf %379, %380 : vector<2x64xf32>
    %382 = arith.negf %381 : vector<2x64xf32>
    %383 = math.exp %382 : vector<2x64xf32>
    %cst_135 = arith.constant 1.000000e+00 : f32
    %384 = vector.broadcast %cst_135 : f32 to vector<2x64xf32>
    %385 = arith.addf %384, %383 : vector<2x64xf32>
    %386 = arith.divf %384, %385 : vector<2x64xf32>
    %387 = vector.extract_strided_slice %373 {offsets = [0, 64], sizes = [2, 64], strides = [1, 1]} : vector<2x192xf32> to vector<2x64xf32>
    %388 = vector.extract_strided_slice %378 {offsets = [0, 64], sizes = [2, 64], strides = [1, 1]} : vector<2x192xf32> to vector<2x64xf32>
    %389 = arith.addf %387, %388 : vector<2x64xf32>
    %390 = arith.negf %389 : vector<2x64xf32>
    %391 = math.exp %390 : vector<2x64xf32>
    %cst_136 = arith.constant 1.000000e+00 : f32
    %392 = vector.broadcast %cst_136 : f32 to vector<2x64xf32>
    %393 = arith.addf %392, %391 : vector<2x64xf32>
    %394 = arith.divf %392, %393 : vector<2x64xf32>
    %395 = vector.extract_strided_slice %373 {offsets = [0, 128], sizes = [2, 64], strides = [1, 1]} : vector<2x192xf32> to vector<2x64xf32>
    %396 = vector.extract_strided_slice %378 {offsets = [0, 128], sizes = [2, 64], strides = [1, 1]} : vector<2x192xf32> to vector<2x64xf32>
    %397 = arith.mulf %386, %396 : vector<2x64xf32>
    %398 = arith.addf %395, %397 : vector<2x64xf32>
    %399 = math.tanh %398 : vector<2x64xf32>
    %cst_137 = arith.constant 1.000000e+00 : f32
    %400 = vector.broadcast %cst_137 : f32 to vector<2x64xf32>
    %401 = arith.subf %400, %394 : vector<2x64xf32>
    %402 = arith.mulf %401, %399 : vector<2x64xf32>
    %403 = arith.mulf %394, %371 : vector<2x64xf32>
    %404 = arith.addf %402, %403 : vector<2x64xf32>
    %c20_138 = arith.constant 20 : index
    %c0_139 = arith.constant 0 : index
    %405 = vector.load %arg29[%c20_138, %c0_139] : memref<32x64xf32, #tpu.memory_space<vmem>>, vector<2x64xf32>
    tpu.vector_store %arg29[%c20_138, %c0_139], %404 {strides = array<i32>} : memref<32x64xf32, #tpu.memory_space<vmem>>, vector<2x64xf32>,
    %c22 = arith.constant 22 : index
    %c0_140 = arith.constant 0 : index
    %406 = vector.load %arg28[%c22, %c0_140] : memref<32x192xf32, #tpu.memory_space<vmem>>, vector<2x192xf32>
    %c0_141 = arith.constant 0 : index
    %c0_142 = arith.constant 0 : index
    %c0_143 = arith.constant 0 : index
    %407 = vector.load %arg9[%c0_141, %c0_142, %c0_143] : memref<1x64x192xf32, #tpu.memory_space<vmem>>, vector<1x64x192xf32>
    %408 = vector.shape_cast %407 : vector<1x64x192xf32> to vector<64x192xf32>
    %cst_144 = arith.constant dense<0.000000e+00> : vector<2x192xf32>
    %409 = tpu.matmul %404, %408, %cst_144 {dimension_numbers = #tpu.dot_dimension_numbers<[1], [0], [0], [1], [0, 0, 1, 1], [], []>} : vector<2x64xf32>, vector<64x192xf32>, vector<2x192xf32> -> vector<2x192xf32>
    %410 = vector.broadcast %41 : vector<1x192xf32> to vector<2x192xf32>
    %411 = arith.addf %409, %410 : vector<2x192xf32>
    %412 = vector.extract_strided_slice %406 {offsets = [0, 0], sizes = [2, 64], strides = [1, 1]} : vector<2x192xf32> to vector<2x64xf32>
    %413 = vector.extract_strided_slice %411 {offsets = [0, 0], sizes = [2, 64], strides = [1, 1]} : vector<2x192xf32> to vector<2x64xf32>
    %414 = arith.addf %412, %413 : vector<2x64xf32>
    %415 = arith.negf %414 : vector<2x64xf32>
    %416 = math.exp %415 : vector<2x64xf32>
    %cst_145 = arith.constant 1.000000e+00 : f32
    %417 = vector.broadcast %cst_145 : f32 to vector<2x64xf32>
    %418 = arith.addf %417, %416 : vector<2x64xf32>
    %419 = arith.divf %417, %418 : vector<2x64xf32>
    %420 = vector.extract_strided_slice %406 {offsets = [0, 64], sizes = [2, 64], strides = [1, 1]} : vector<2x192xf32> to vector<2x64xf32>
    %421 = vector.extract_strided_slice %411 {offsets = [0, 64], sizes = [2, 64], strides = [1, 1]} : vector<2x192xf32> to vector<2x64xf32>
    %422 = arith.addf %420, %421 : vector<2x64xf32>
    %423 = arith.negf %422 : vector<2x64xf32>
    %424 = math.exp %423 : vector<2x64xf32>
    %cst_146 = arith.constant 1.000000e+00 : f32
    %425 = vector.broadcast %cst_146 : f32 to vector<2x64xf32>
    %426 = arith.addf %425, %424 : vector<2x64xf32>
    %427 = arith.divf %425, %426 : vector<2x64xf32>
    %428 = vector.extract_strided_slice %406 {offsets = [0, 128], sizes = [2, 64], strides = [1, 1]} : vector<2x192xf32> to vector<2x64xf32>
    %429 = vector.extract_strided_slice %411 {offsets = [0, 128], sizes = [2, 64], strides = [1, 1]} : vector<2x192xf32> to vector<2x64xf32>
    %430 = arith.mulf %419, %429 : vector<2x64xf32>
    %431 = arith.addf %428, %430 : vector<2x64xf32>
    %432 = math.tanh %431 : vector<2x64xf32>
    %cst_147 = arith.constant 1.000000e+00 : f32
    %433 = vector.broadcast %cst_147 : f32 to vector<2x64xf32>
    %434 = arith.subf %433, %427 : vector<2x64xf32>
    %435 = arith.mulf %434, %432 : vector<2x64xf32>
    %436 = arith.mulf %427, %404 : vector<2x64xf32>
    %437 = arith.addf %435, %436 : vector<2x64xf32>
    %c22_148 = arith.constant 22 : index
    %c0_149 = arith.constant 0 : index
    %438 = vector.load %arg29[%c22_148, %c0_149] : memref<32x64xf32, #tpu.memory_space<vmem>>, vector<2x64xf32>
    tpu.vector_store %arg29[%c22_148, %c0_149], %437 {strides = array<i32>} : memref<32x64xf32, #tpu.memory_space<vmem>>, vector<2x64xf32>,
    %c24 = arith.constant 24 : index
    %c0_150 = arith.constant 0 : index
    %439 = vector.load %arg28[%c24, %c0_150] : memref<32x192xf32, #tpu.memory_space<vmem>>, vector<2x192xf32>
    %c0_151 = arith.constant 0 : index
    %c0_152 = arith.constant 0 : index
    %c0_153 = arith.constant 0 : index
    %440 = vector.load %arg9[%c0_151, %c0_152, %c0_153] : memref<1x64x192xf32, #tpu.memory_space<vmem>>, vector<1x64x192xf32>
    %441 = vector.shape_cast %440 : vector<1x64x192xf32> to vector<64x192xf32>
    %cst_154 = arith.constant dense<0.000000e+00> : vector<2x192xf32>
    %442 = tpu.matmul %437, %441, %cst_154 {dimension_numbers = #tpu.dot_dimension_numbers<[1], [0], [0], [1], [0, 0, 1, 1], [], []>} : vector<2x64xf32>, vector<64x192xf32>, vector<2x192xf32> -> vector<2x192xf32>
    %443 = vector.broadcast %41 : vector<1x192xf32> to vector<2x192xf32>
    %444 = arith.addf %442, %443 : vector<2x192xf32>
    %445 = vector.extract_strided_slice %439 {offsets = [0, 0], sizes = [2, 64], strides = [1, 1]} : vector<2x192xf32> to vector<2x64xf32>
    %446 = vector.extract_strided_slice %444 {offsets = [0, 0], sizes = [2, 64], strides = [1, 1]} : vector<2x192xf32> to vector<2x64xf32>
    %447 = arith.addf %445, %446 : vector<2x64xf32>
    %448 = arith.negf %447 : vector<2x64xf32>
    %449 = math.exp %448 : vector<2x64xf32>
    %cst_155 = arith.constant 1.000000e+00 : f32
    %450 = vector.broadcast %cst_155 : f32 to vector<2x64xf32>
    %451 = arith.addf %450, %449 : vector<2x64xf32>
    %452 = arith.divf %450, %451 : vector<2x64xf32>
    %453 = vector.extract_strided_slice %439 {offsets = [0, 64], sizes = [2, 64], strides = [1, 1]} : vector<2x192xf32> to vector<2x64xf32>
    %454 = vector.extract_strided_slice %444 {offsets = [0, 64], sizes = [2, 64], strides = [1, 1]} : vector<2x192xf32> to vector<2x64xf32>
    %455 = arith.addf %453, %454 : vector<2x64xf32>
    %456 = arith.negf %455 : vector<2x64xf32>
    %457 = math.exp %456 : vector<2x64xf32>
    %cst_156 = arith.constant 1.000000e+00 : f32
    %458 = vector.broadcast %cst_156 : f32 to vector<2x64xf32>
    %459 = arith.addf %458, %457 : vector<2x64xf32>
    %460 = arith.divf %458, %459 : vector<2x64xf32>
    %461 = vector.extract_strided_slice %439 {offsets = [0, 128], sizes = [2, 64], strides = [1, 1]} : vector<2x192xf32> to vector<2x64xf32>
    %462 = vector.extract_strided_slice %444 {offsets = [0, 128], sizes = [2, 64], strides = [1, 1]} : vector<2x192xf32> to vector<2x64xf32>
    %463 = arith.mulf %452, %462 : vector<2x64xf32>
    %464 = arith.addf %461, %463 : vector<2x64xf32>
    %465 = math.tanh %464 : vector<2x64xf32>
    %cst_157 = arith.constant 1.000000e+00 : f32
    %466 = vector.broadcast %cst_157 : f32 to vector<2x64xf32>
    %467 = arith.subf %466, %460 : vector<2x64xf32>
    %468 = arith.mulf %467, %465 : vector<2x64xf32>
    %469 = arith.mulf %460, %437 : vector<2x64xf32>
    %470 = arith.addf %468, %469 : vector<2x64xf32>
    %c24_158 = arith.constant 24 : index
    %c0_159 = arith.constant 0 : index
    %471 = vector.load %arg29[%c24_158, %c0_159] : memref<32x64xf32, #tpu.memory_space<vmem>>, vector<2x64xf32>
    tpu.vector_store %arg29[%c24_158, %c0_159], %470 {strides = array<i32>} : memref<32x64xf32, #tpu.memory_space<vmem>>, vector<2x64xf32>,
    %c26 = arith.constant 26 : index
    %c0_160 = arith.constant 0 : index
    %472 = vector.load %arg28[%c26, %c0_160] : memref<32x192xf32, #tpu.memory_space<vmem>>, vector<2x192xf32>
    %c0_161 = arith.constant 0 : index
    %c0_162 = arith.constant 0 : index
    %c0_163 = arith.constant 0 : index
    %473 = vector.load %arg9[%c0_161, %c0_162, %c0_163] : memref<1x64x192xf32, #tpu.memory_space<vmem>>, vector<1x64x192xf32>
    %474 = vector.shape_cast %473 : vector<1x64x192xf32> to vector<64x192xf32>
    %cst_164 = arith.constant dense<0.000000e+00> : vector<2x192xf32>
    %475 = tpu.matmul %470, %474, %cst_164 {dimension_numbers = #tpu.dot_dimension_numbers<[1], [0], [0], [1], [0, 0, 1, 1], [], []>} : vector<2x64xf32>, vector<64x192xf32>, vector<2x192xf32> -> vector<2x192xf32>
    %476 = vector.broadcast %41 : vector<1x192xf32> to vector<2x192xf32>
    %477 = arith.addf %475, %476 : vector<2x192xf32>
    %478 = vector.extract_strided_slice %472 {offsets = [0, 0], sizes = [2, 64], strides = [1, 1]} : vector<2x192xf32> to vector<2x64xf32>
    %479 = vector.extract_strided_slice %477 {offsets = [0, 0], sizes = [2, 64], strides = [1, 1]} : vector<2x192xf32> to vector<2x64xf32>
    %480 = arith.addf %478, %479 : vector<2x64xf32>
    %481 = arith.negf %480 : vector<2x64xf32>
    %482 = math.exp %481 : vector<2x64xf32>
    %cst_165 = arith.constant 1.000000e+00 : f32
    %483 = vector.broadcast %cst_165 : f32 to vector<2x64xf32>
    %484 = arith.addf %483, %482 : vector<2x64xf32>
    %485 = arith.divf %483, %484 : vector<2x64xf32>
    %486 = vector.extract_strided_slice %472 {offsets = [0, 64], sizes = [2, 64], strides = [1, 1]} : vector<2x192xf32> to vector<2x64xf32>
    %487 = vector.extract_strided_slice %477 {offsets = [0, 64], sizes = [2, 64], strides = [1, 1]} : vector<2x192xf32> to vector<2x64xf32>
    %488 = arith.addf %486, %487 : vector<2x64xf32>
    %489 = arith.negf %488 : vector<2x64xf32>
    %490 = math.exp %489 : vector<2x64xf32>
    %cst_166 = arith.constant 1.000000e+00 : f32
    %491 = vector.broadcast %cst_166 : f32 to vector<2x64xf32>
    %492 = arith.addf %491, %490 : vector<2x64xf32>
    %493 = arith.divf %491, %492 : vector<2x64xf32>
    %494 = vector.extract_strided_slice %472 {offsets = [0, 128], sizes = [2, 64], strides = [1, 1]} : vector<2x192xf32> to vector<2x64xf32>
    %495 = vector.extract_strided_slice %477 {offsets = [0, 128], sizes = [2, 64], strides = [1, 1]} : vector<2x192xf32> to vector<2x64xf32>
    %496 = arith.mulf %485, %495 : vector<2x64xf32>
    %497 = arith.addf %494, %496 : vector<2x64xf32>
    %498 = math.tanh %497 : vector<2x64xf32>
    %cst_167 = arith.constant 1.000000e+00 : f32
    %499 = vector.broadcast %cst_167 : f32 to vector<2x64xf32>
    %500 = arith.subf %499, %493 : vector<2x64xf32>
    %501 = arith.mulf %500, %498 : vector<2x64xf32>
    %502 = arith.mulf %493, %470 : vector<2x64xf32>
    %503 = arith.addf %501, %502 : vector<2x64xf32>
    %c26_168 = arith.constant 26 : index
    %c0_169 = arith.constant 0 : index
    %504 = vector.load %arg29[%c26_168, %c0_169] : memref<32x64xf32, #tpu.memory_space<vmem>>, vector<2x64xf32>
    tpu.vector_store %arg29[%c26_168, %c0_169], %503 {strides = array<i32>} : memref<32x64xf32, #tpu.memory_space<vmem>>, vector<2x64xf32>,
    %c28 = arith.constant 28 : index
    %c0_170 = arith.constant 0 : index
    %505 = vector.load %arg28[%c28, %c0_170] : memref<32x192xf32, #tpu.memory_space<vmem>>, vector<2x192xf32>
    %c0_171 = arith.constant 0 : index
    %c0_172 = arith.constant 0 : index
    %c0_173 = arith.constant 0 : index
    %506 = vector.load %arg9[%c0_171, %c0_172, %c0_173] : memref<1x64x192xf32, #tpu.memory_space<vmem>>, vector<1x64x192xf32>
    %507 = vector.shape_cast %506 : vector<1x64x192xf32> to vector<64x192xf32>
    %cst_174 = arith.constant dense<0.000000e+00> : vector<2x192xf32>
    %508 = tpu.matmul %503, %507, %cst_174 {dimension_numbers = #tpu.dot_dimension_numbers<[1], [0], [0], [1], [0, 0, 1, 1], [], []>} : vector<2x64xf32>, vector<64x192xf32>, vector<2x192xf32> -> vector<2x192xf32>
    %509 = vector.broadcast %41 : vector<1x192xf32> to vector<2x192xf32>
    %510 = arith.addf %508, %509 : vector<2x192xf32>
    %511 = vector.extract_strided_slice %505 {offsets = [0, 0], sizes = [2, 64], strides = [1, 1]} : vector<2x192xf32> to vector<2x64xf32>
    %512 = vector.extract_strided_slice %510 {offsets = [0, 0], sizes = [2, 64], strides = [1, 1]} : vector<2x192xf32> to vector<2x64xf32>
    %513 = arith.addf %511, %512 : vector<2x64xf32>
    %514 = arith.negf %513 : vector<2x64xf32>
    %515 = math.exp %514 : vector<2x64xf32>
    %cst_175 = arith.constant 1.000000e+00 : f32
    %516 = vector.broadcast %cst_175 : f32 to vector<2x64xf32>
    %517 = arith.addf %516, %515 : vector<2x64xf32>
    %518 = arith.divf %516, %517 : vector<2x64xf32>
    %519 = vector.extract_strided_slice %505 {offsets = [0, 64], sizes = [2, 64], strides = [1, 1]} : vector<2x192xf32> to vector<2x64xf32>
    %520 = vector.extract_strided_slice %510 {offsets = [0, 64], sizes = [2, 64], strides = [1, 1]} : vector<2x192xf32> to vector<2x64xf32>
    %521 = arith.addf %519, %520 : vector<2x64xf32>
    %522 = arith.negf %521 : vector<2x64xf32>
    %523 = math.exp %522 : vector<2x64xf32>
    %cst_176 = arith.constant 1.000000e+00 : f32
    %524 = vector.broadcast %cst_176 : f32 to vector<2x64xf32>
    %525 = arith.addf %524, %523 : vector<2x64xf32>
    %526 = arith.divf %524, %525 : vector<2x64xf32>
    %527 = vector.extract_strided_slice %505 {offsets = [0, 128], sizes = [2, 64], strides = [1, 1]} : vector<2x192xf32> to vector<2x64xf32>
    %528 = vector.extract_strided_slice %510 {offsets = [0, 128], sizes = [2, 64], strides = [1, 1]} : vector<2x192xf32> to vector<2x64xf32>
    %529 = arith.mulf %518, %528 : vector<2x64xf32>
    %530 = arith.addf %527, %529 : vector<2x64xf32>
    %531 = math.tanh %530 : vector<2x64xf32>
    %cst_177 = arith.constant 1.000000e+00 : f32
    %532 = vector.broadcast %cst_177 : f32 to vector<2x64xf32>
    %533 = arith.subf %532, %526 : vector<2x64xf32>
    %534 = arith.mulf %533, %531 : vector<2x64xf32>
    %535 = arith.mulf %526, %503 : vector<2x64xf32>
    %536 = arith.addf %534, %535 : vector<2x64xf32>
    %c28_178 = arith.constant 28 : index
    %c0_179 = arith.constant 0 : index
    %537 = vector.load %arg29[%c28_178, %c0_179] : memref<32x64xf32, #tpu.memory_space<vmem>>, vector<2x64xf32>
    tpu.vector_store %arg29[%c28_178, %c0_179], %536 {strides = array<i32>} : memref<32x64xf32, #tpu.memory_space<vmem>>, vector<2x64xf32>,
    %c30 = arith.constant 30 : index
    %c0_180 = arith.constant 0 : index
    %538 = vector.load %arg28[%c30, %c0_180] : memref<32x192xf32, #tpu.memory_space<vmem>>, vector<2x192xf32>
    %c0_181 = arith.constant 0 : index
    %c0_182 = arith.constant 0 : index
    %c0_183 = arith.constant 0 : index
    %539 = vector.load %arg9[%c0_181, %c0_182, %c0_183] : memref<1x64x192xf32, #tpu.memory_space<vmem>>, vector<1x64x192xf32>
    %540 = vector.shape_cast %539 : vector<1x64x192xf32> to vector<64x192xf32>
    %cst_184 = arith.constant dense<0.000000e+00> : vector<2x192xf32>
    %541 = tpu.matmul %536, %540, %cst_184 {dimension_numbers = #tpu.dot_dimension_numbers<[1], [0], [0], [1], [0, 0, 1, 1], [], []>} : vector<2x64xf32>, vector<64x192xf32>, vector<2x192xf32> -> vector<2x192xf32>
    %542 = vector.broadcast %41 : vector<1x192xf32> to vector<2x192xf32>
    %543 = arith.addf %541, %542 : vector<2x192xf32>
    %544 = vector.extract_strided_slice %538 {offsets = [0, 0], sizes = [2, 64], strides = [1, 1]} : vector<2x192xf32> to vector<2x64xf32>
    %545 = vector.extract_strided_slice %543 {offsets = [0, 0], sizes = [2, 64], strides = [1, 1]} : vector<2x192xf32> to vector<2x64xf32>
    %546 = arith.addf %544, %545 : vector<2x64xf32>
    %547 = arith.negf %546 : vector<2x64xf32>
    %548 = math.exp %547 : vector<2x64xf32>
    %cst_185 = arith.constant 1.000000e+00 : f32
    %549 = vector.broadcast %cst_185 : f32 to vector<2x64xf32>
    %550 = arith.addf %549, %548 : vector<2x64xf32>
    %551 = arith.divf %549, %550 : vector<2x64xf32>
    %552 = vector.extract_strided_slice %538 {offsets = [0, 64], sizes = [2, 64], strides = [1, 1]} : vector<2x192xf32> to vector<2x64xf32>
    %553 = vector.extract_strided_slice %543 {offsets = [0, 64], sizes = [2, 64], strides = [1, 1]} : vector<2x192xf32> to vector<2x64xf32>
    %554 = arith.addf %552, %553 : vector<2x64xf32>
    %555 = arith.negf %554 : vector<2x64xf32>
    %556 = math.exp %555 : vector<2x64xf32>
    %cst_186 = arith.constant 1.000000e+00 : f32
    %557 = vector.broadcast %cst_186 : f32 to vector<2x64xf32>
    %558 = arith.addf %557, %556 : vector<2x64xf32>
    %559 = arith.divf %557, %558 : vector<2x64xf32>
    %560 = vector.extract_strided_slice %538 {offsets = [0, 128], sizes = [2, 64], strides = [1, 1]} : vector<2x192xf32> to vector<2x64xf32>
    %561 = vector.extract_strided_slice %543 {offsets = [0, 128], sizes = [2, 64], strides = [1, 1]} : vector<2x192xf32> to vector<2x64xf32>
    %562 = arith.mulf %551, %561 : vector<2x64xf32>
    %563 = arith.addf %560, %562 : vector<2x64xf32>
    %564 = math.tanh %563 : vector<2x64xf32>
    %cst_187 = arith.constant 1.000000e+00 : f32
    %565 = vector.broadcast %cst_187 : f32 to vector<2x64xf32>
    %566 = arith.subf %565, %559 : vector<2x64xf32>
    %567 = arith.mulf %566, %564 : vector<2x64xf32>
    %568 = arith.mulf %559, %536 : vector<2x64xf32>
    %569 = arith.addf %567, %568 : vector<2x64xf32>
    %c30_188 = arith.constant 30 : index
    %c0_189 = arith.constant 0 : index
    %570 = vector.load %arg29[%c30_188, %c0_189] : memref<32x64xf32, #tpu.memory_space<vmem>>, vector<2x64xf32>
    tpu.vector_store %arg29[%c30_188, %c0_189], %569 {strides = array<i32>} : memref<32x64xf32, #tpu.memory_space<vmem>>, vector<2x64xf32>,
    %c0_190 = arith.constant 0 : index
    %c0_191 = arith.constant 0 : index
    %571 = vector.load %arg29[%c0_190, %c0_191] : memref<32x64xf32, #tpu.memory_space<vmem>>, vector<32x64xf32>
    %c0_192 = arith.constant 0 : index
    %c0_193 = arith.constant 0 : index
    %c0_194 = arith.constant 0 : index
    %c0_195 = arith.constant 0 : index
    %572 = vector.load %arg13[%c0_192, %c0_193, %c0_194, %c0_195] : memref<1x3x64x128xf32, #tpu.memory_space<vmem>>, vector<1x3x64x128xf32>
    %573 = vector.shape_cast %572 : vector<1x3x64x128xf32> to vector<3x64x128xf32>
    %c0_196 = arith.constant 0 : index
    %c0_197 = arith.constant 0 : index
    %c0_198 = arith.constant 0 : index
    %574 = vector.load %arg14[%c0_196, %c0_197, %c0_198] : memref<1x1x128xf32, #tpu.memory_space<vmem>>, vector<1x1x128xf32>
    %575 = vector.shape_cast %574 : vector<1x1x128xf32> to vector<1x128xf32>
    %c0_199 = arith.constant 0 : index
    %c0_200 = arith.constant 0 : index
    %c0_201 = arith.constant 0 : index
    %576 = vector.load %arg15[%c0_199, %c0_200, %c0_201] : memref<1x1x128xf32, #tpu.memory_space<vmem>>, vector<1x1x128xf32>
    %577 = vector.shape_cast %576 : vector<1x1x128xf32> to vector<1x128xf32>
    %c0_202 = arith.constant 0 : index
    %c0_203 = arith.constant 0 : index
    %c0_204 = arith.constant 0 : index
    %578 = vector.load %arg16[%c0_202, %c0_203, %c0_204] : memref<1x1x128xf32, #tpu.memory_space<vmem>>, vector<1x1x128xf32>
    %579 = vector.shape_cast %578 : vector<1x1x128xf32> to vector<1x128xf32>
    %c2_i32_205 = arith.constant 2 : i32
    %580 = tpu.dynamic_rotate %571 by %c2_i32_205 dim 0 : vector<32x64xf32>, i32 -> vector<32x64xf32>
    %581 = vector.broadcast %0 : vector<32x1xf32> to vector<32x64xf32>
    %582 = arith.mulf %580, %581 : vector<32x64xf32>
    %c30_i32_206 = arith.constant 30 : i32
    %583 = tpu.dynamic_rotate %571 by %c30_i32_206 dim 0 : vector<32x64xf32>, i32 -> vector<32x64xf32>
    %584 = vector.broadcast %1 : vector<32x1xf32> to vector<32x64xf32>
    %585 = arith.mulf %583, %584 : vector<32x64xf32>
    %586 = vector.extract_strided_slice %573 {offsets = [0, 0, 0], sizes = [1, 64, 128], strides = [1, 1, 1]} : vector<3x64x128xf32> to vector<1x64x128xf32>
    %587 = vector.shape_cast %586 : vector<1x64x128xf32> to vector<64x128xf32>
    %cst_207 = arith.constant dense<0.000000e+00> : vector<32x128xf32>
    %588 = tpu.matmul %582, %587, %cst_207 {dimension_numbers = #tpu.dot_dimension_numbers<[1], [0], [0], [1], [0, 0, 1, 1], [], []>} : vector<32x64xf32>, vector<64x128xf32>, vector<32x128xf32> -> vector<32x128xf32>
    %589 = vector.extract_strided_slice %573 {offsets = [1, 0, 0], sizes = [1, 64, 128], strides = [1, 1, 1]} : vector<3x64x128xf32> to vector<1x64x128xf32>
    %590 = vector.shape_cast %589 : vector<1x64x128xf32> to vector<64x128xf32>
    %cst_208 = arith.constant dense<0.000000e+00> : vector<32x128xf32>
    %591 = tpu.matmul %571, %590, %cst_208 {dimension_numbers = #tpu.dot_dimension_numbers<[1], [0], [0], [1], [0, 0, 1, 1], [], []>} : vector<32x64xf32>, vector<64x128xf32>, vector<32x128xf32> -> vector<32x128xf32>
    %592 = arith.addf %588, %591 : vector<32x128xf32>
    %593 = vector.extract_strided_slice %573 {offsets = [2, 0, 0], sizes = [1, 64, 128], strides = [1, 1, 1]} : vector<3x64x128xf32> to vector<1x64x128xf32>
    %594 = vector.shape_cast %593 : vector<1x64x128xf32> to vector<64x128xf32>
    %cst_209 = arith.constant dense<0.000000e+00> : vector<32x128xf32>
    %595 = tpu.matmul %585, %594, %cst_209 {dimension_numbers = #tpu.dot_dimension_numbers<[1], [0], [0], [1], [0, 0, 1, 1], [], []>} : vector<32x64xf32>, vector<64x128xf32>, vector<32x128xf32> -> vector<32x128xf32>
    %596 = arith.addf %592, %595 : vector<32x128xf32>
    %597 = vector.broadcast %575 : vector<1x128xf32> to vector<32x128xf32>
    %598 = arith.addf %596, %597 : vector<32x128xf32>
    %599 = vector.broadcast %577 : vector<1x128xf32> to vector<32x128xf32>
    %600 = arith.mulf %598, %599 : vector<32x128xf32>
    %601 = vector.broadcast %579 : vector<1x128xf32> to vector<32x128xf32>
    %602 = arith.addf %600, %601 : vector<32x128xf32>
    %cst_210 = arith.constant 0.000000e+00 : f32
    %603 = vector.broadcast %cst_210 : f32 to vector<32x128xf32>
    %604 = arith.maximumf %602, %603 : vector<32x128xf32>
    %c0_211 = arith.constant 0 : index
    %c0_212 = arith.constant 0 : index
    %c0_213 = arith.constant 0 : index
    %c0_214 = arith.constant 0 : index
    %605 = vector.load %arg17[%c0_211, %c0_212, %c0_213, %c0_214] : memref<1x3x128x256xf32, #tpu.memory_space<vmem>>, vector<1x3x128x256xf32>
    %606 = vector.shape_cast %605 : vector<1x3x128x256xf32> to vector<3x128x256xf32>
    %c0_215 = arith.constant 0 : index
    %c0_216 = arith.constant 0 : index
    %c0_217 = arith.constant 0 : index
    %607 = vector.load %arg18[%c0_215, %c0_216, %c0_217] : memref<1x1x256xf32, #tpu.memory_space<vmem>>, vector<1x1x256xf32>
    %608 = vector.shape_cast %607 : vector<1x1x256xf32> to vector<1x256xf32>
    %c0_218 = arith.constant 0 : index
    %c0_219 = arith.constant 0 : index
    %c0_220 = arith.constant 0 : index
    %609 = vector.load %arg19[%c0_218, %c0_219, %c0_220] : memref<1x1x256xf32, #tpu.memory_space<vmem>>, vector<1x1x256xf32>
    %610 = vector.shape_cast %609 : vector<1x1x256xf32> to vector<1x256xf32>
    %c0_221 = arith.constant 0 : index
    %c0_222 = arith.constant 0 : index
    %c0_223 = arith.constant 0 : index
    %611 = vector.load %arg20[%c0_221, %c0_222, %c0_223] : memref<1x1x256xf32, #tpu.memory_space<vmem>>, vector<1x1x256xf32>
    %612 = vector.shape_cast %611 : vector<1x1x256xf32> to vector<1x256xf32>
    %c2_i32_224 = arith.constant 2 : i32
    %613 = tpu.dynamic_rotate %604 by %c2_i32_224 dim 0 : vector<32x128xf32>, i32 -> vector<32x128xf32>
    %614 = vector.broadcast %0 : vector<32x1xf32> to vector<32x128xf32>
    %615 = arith.mulf %613, %614 : vector<32x128xf32>
    %c30_i32_225 = arith.constant 30 : i32
    %616 = tpu.dynamic_rotate %604 by %c30_i32_225 dim 0 : vector<32x128xf32>, i32 -> vector<32x128xf32>
    %617 = vector.broadcast %1 : vector<32x1xf32> to vector<32x128xf32>
    %618 = arith.mulf %616, %617 : vector<32x128xf32>
    %619 = vector.extract_strided_slice %606 {offsets = [0, 0, 0], sizes = [1, 128, 256], strides = [1, 1, 1]} : vector<3x128x256xf32> to vector<1x128x256xf32>
    %620 = vector.shape_cast %619 : vector<1x128x256xf32> to vector<128x256xf32>
    %cst_226 = arith.constant dense<0.000000e+00> : vector<32x256xf32>
    %621 = tpu.matmul %615, %620, %cst_226 {dimension_numbers = #tpu.dot_dimension_numbers<[1], [0], [0], [1], [0, 0, 1, 1], [], []>} : vector<32x128xf32>, vector<128x256xf32>, vector<32x256xf32> -> vector<32x256xf32>
    %622 = vector.extract_strided_slice %606 {offsets = [1, 0, 0], sizes = [1, 128, 256], strides = [1, 1, 1]} : vector<3x128x256xf32> to vector<1x128x256xf32>
    %623 = vector.shape_cast %622 : vector<1x128x256xf32> to vector<128x256xf32>
    %cst_227 = arith.constant dense<0.000000e+00> : vector<32x256xf32>
    %624 = tpu.matmul %604, %623, %cst_227 {dimension_numbers = #tpu.dot_dimension_numbers<[1], [0], [0], [1], [0, 0, 1, 1], [], []>} : vector<32x128xf32>, vector<128x256xf32>, vector<32x256xf32> -> vector<32x256xf32>
    %625 = arith.addf %621, %624 : vector<32x256xf32>
    %626 = vector.extract_strided_slice %606 {offsets = [2, 0, 0], sizes = [1, 128, 256], strides = [1, 1, 1]} : vector<3x128x256xf32> to vector<1x128x256xf32>
    %627 = vector.shape_cast %626 : vector<1x128x256xf32> to vector<128x256xf32>
    %cst_228 = arith.constant dense<0.000000e+00> : vector<32x256xf32>
    %628 = tpu.matmul %618, %627, %cst_228 {dimension_numbers = #tpu.dot_dimension_numbers<[1], [0], [0], [1], [0, 0, 1, 1], [], []>} : vector<32x128xf32>, vector<128x256xf32>, vector<32x256xf32> -> vector<32x256xf32>
    %629 = arith.addf %625, %628 : vector<32x256xf32>
    %630 = vector.broadcast %608 : vector<1x256xf32> to vector<32x256xf32>
    %631 = arith.addf %629, %630 : vector<32x256xf32>
    %632 = vector.broadcast %610 : vector<1x256xf32> to vector<32x256xf32>
    %633 = arith.mulf %631, %632 : vector<32x256xf32>
    %634 = vector.broadcast %612 : vector<1x256xf32> to vector<32x256xf32>
    %635 = arith.addf %633, %634 : vector<32x256xf32>
    %cst_229 = arith.constant 0.000000e+00 : f32
    %636 = vector.broadcast %cst_229 : f32 to vector<32x256xf32>
    %637 = arith.maximumf %635, %636 : vector<32x256xf32>
    %c0_230 = arith.constant 0 : index
    %c0_231 = arith.constant 0 : index
    %638 = vector.load %arg3[%c0_230, %c0_231] : memref<2x32xf32, #tpu.memory_space<vmem>>, vector<2x32xf32>
    %cst_232 = arith.constant dense<0.000000e+00> : vector<2x256xf32>
    %639 = tpu.matmul %638, %637, %cst_232 {dimension_numbers = #tpu.dot_dimension_numbers<[1], [0], [0], [1], [0, 0, 1, 1], [], []>} : vector<2x32xf32>, vector<32x256xf32>, vector<2x256xf32> -> vector<2x256xf32>
    %c0_233 = arith.constant 0 : index
    %c0_234 = arith.constant 0 : index
    %c0_235 = arith.constant 0 : index
    %640 = vector.load %arg21[%c0_233, %c0_234, %c0_235] : memref<1x256x512xf32, #tpu.memory_space<vmem>>, vector<1x256x512xf32>
    %641 = vector.shape_cast %640 : vector<1x256x512xf32> to vector<256x512xf32>
    %cst_236 = arith.constant dense<0.000000e+00> : vector<2x512xf32>
    %642 = tpu.matmul %639, %641, %cst_236 {dimension_numbers = #tpu.dot_dimension_numbers<[1], [0], [0], [1], [0, 0, 1, 1], [], []>} : vector<2x256xf32>, vector<256x512xf32>, vector<2x512xf32> -> vector<2x512xf32>
    %c0_237 = arith.constant 0 : index
    %c0_238 = arith.constant 0 : index
    %c0_239 = arith.constant 0 : index
    %643 = vector.load %arg22[%c0_237, %c0_238, %c0_239] : memref<1x1x512xf32, #tpu.memory_space<vmem>>, vector<1x1x512xf32>
    %644 = vector.shape_cast %643 : vector<1x1x512xf32> to vector<1x512xf32>
    %645 = vector.broadcast %644 : vector<1x512xf32> to vector<2x512xf32>
    %646 = arith.addf %642, %645 : vector<2x512xf32>
    %c0_240 = arith.constant 0 : index
    %c0_241 = arith.constant 0 : index
    %c0_242 = arith.constant 0 : index
    %647 = vector.load %arg25[%c0_240, %c0_241, %c0_242] : memref<1x2x512xf32, #tpu.memory_space<vmem>>, vector<1x2x512xf32>
    %648 = vector.shape_cast %647 : vector<1x2x512xf32> to vector<2x512xf32>
    %649 = vector.shape_cast %646 : vector<2x512xf32> to vector<1x2x512xf32>
    tpu.vector_store %arg25[%c0_240, %c0_241, %c0_242], %649 {strides = array<i32>} : memref<1x2x512xf32, #tpu.memory_space<vmem>>, vector<1x2x512xf32>,
    %c0_i32 = arith.constant 0 : i32
    %650 = arith.cmpi eq, %arg0, %c0_i32 : i32
    %651 = arith.extui %650 : i1 to i32
    %c0_i32_243 = arith.constant 0 : i32
    %652 = arith.cmpi ne, %651, %c0_i32_243 : i32
    scf.if %652 {
      %c0_246 = arith.constant 0 : index
      %c0_247 = arith.constant 0 : index
      %656 = vector.load %arg23[%c0_246, %c0_247] : memref<512x10xf32, #tpu.memory_space<vmem>>, vector<512x10xf32>
      %cst_248 = arith.constant dense<0.000000e+00> : vector<2x10xf32>
      %657 = tpu.matmul %646, %656, %cst_248 {dimension_numbers = #tpu.dot_dimension_numbers<[1], [0], [0], [1], [0, 0, 1, 1], [], []>} : vector<2x512xf32>, vector<512x10xf32>, vector<2x10xf32> -> vector<2x10xf32>
      %c0_249 = arith.constant 0 : index
      %c0_250 = arith.constant 0 : index
      %658 = vector.load %arg24[%c0_249, %c0_250] : memref<1x10xf32, #tpu.memory_space<vmem>>, vector<1x10xf32>
      %659 = vector.broadcast %658 : vector<1x10xf32> to vector<2x10xf32>
      %660 = arith.addf %657, %659 : vector<2x10xf32>
      %c0_251 = arith.constant 0 : index
      %c0_252 = arith.constant 0 : index
      %c0_253 = arith.constant 0 : index
      %661 = vector.load %arg26[%c0_251, %c0_252, %c0_253] : memref<1x2x10xf32, #tpu.memory_space<vmem>>, vector<1x2x10xf32>
      %662 = vector.shape_cast %661 : vector<1x2x10xf32> to vector<2x10xf32>
      %663 = vector.shape_cast %660 : vector<2x10xf32> to vector<1x2x10xf32>
      tpu.vector_store %arg26[%c0_251, %c0_252, %c0_253], %663 {strides = array<i32>} : memref<1x2x10xf32, #tpu.memory_space<vmem>>, vector<1x2x10xf32>,
      %c0_254 = arith.constant 0 : index
      %c0_255 = arith.constant 0 : index
      %c0_256 = arith.constant 0 : index
      %664 = vector.load %arg12[%c0_254, %c0_255, %c0_256] : memref<2x64x192xf32, #tpu.memory_space<vmem>>, vector<1x64x192xf32>
      %665 = vector.shape_cast %664 : vector<1x64x192xf32> to vector<64x192xf32>
      %c1_257 = arith.constant 1 : index
      %c0_258 = arith.constant 0 : index
      %c0_259 = arith.constant 0 : index
      %666 = vector.load %arg12[%c1_257, %c0_258, %c0_259] : memref<2x64x192xf32, #tpu.memory_space<vmem>>, vector<1x64x192xf32>
      %667 = vector.shape_cast %666 : vector<1x64x192xf32> to vector<64x192xf32>
      %cst_260 = arith.constant dense<0.000000e+00> : vector<64x64xf32>
      %668 = tpu.matmul %665, %667, %cst_260 {dimension_numbers = #tpu.dot_dimension_numbers<[1], [1], [0], [0], [0, 0, 1, 0], [], []>} : vector<64x192xf32>, vector<64x192xf32>, vector<64x64xf32> -> vector<64x64xf32>
      %669 = math.absf %668 : vector<64x64xf32>
      %670 = vector.shape_cast %669 : vector<64x64xf32> to vector<1x64x64xf32>
      %cst_261 = arith.constant dense<0.000000e+00> : vector<1xf32>
      %671 = vector.multi_reduction <add>, %670, %cst_261 [1, 2] : vector<1x64x64xf32> to vector<1xf32>
      %672 = vector.shape_cast %671 : vector<1xf32> to vector<1x1x1xf32>
      %673 = vector.extract %672[0, 0, 0] : f32 from vector<1x1x1xf32>
      %674 = vector.broadcast %673 : f32 to vector<1x1xf32>
      %c0_262 = arith.constant 0 : index
      %c0_263 = arith.constant 0 : index
      %c0_264 = arith.constant 0 : index
      %675 = vector.load %arg27[%c0_262, %c0_263, %c0_264] : memref<1x1x1xf32, #tpu.memory_space<vmem>>, vector<1x1x1xf32>
      %676 = vector.shape_cast %675 : vector<1x1x1xf32> to vector<1x1xf32>
      %677 = vector.shape_cast %674 : vector<1x1xf32> to vector<1x1x1xf32>
      tpu.vector_store %arg27[%c0_262, %c0_263, %c0_264], %677 {strides = array<i32>} : memref<1x1x1xf32, #tpu.memory_space<vmem>>, vector<1x1x1xf32>,
    } else {
    }
    %c0_i32_244 = arith.constant 0 : i32
    %653 = arith.cmpi ne, %arg0, %c0_i32_244 : i32
    %654 = arith.extui %653 : i1 to i32
    %c0_i32_245 = arith.constant 0 : i32
    %655 = arith.cmpi ne, %654, %c0_i32_245 : i32
    scf.if %655 {
      %cst_246 = arith.constant 0.000000e+00 : f32
      %656 = vector.broadcast %cst_246 : f32 to vector<2x10xf32>
      %c0_247 = arith.constant 0 : index
      %c0_248 = arith.constant 0 : index
      %c0_249 = arith.constant 0 : index
      %657 = vector.load %arg26[%c0_247, %c0_248, %c0_249] : memref<1x2x10xf32, #tpu.memory_space<vmem>>, vector<1x2x10xf32>
      %658 = vector.shape_cast %657 : vector<1x2x10xf32> to vector<2x10xf32>
      %659 = vector.shape_cast %656 : vector<2x10xf32> to vector<1x2x10xf32>
      tpu.vector_store %arg26[%c0_247, %c0_248, %c0_249], %659 {strides = array<i32>} : memref<1x2x10xf32, #tpu.memory_space<vmem>>, vector<1x2x10xf32>,
      %cst_250 = arith.constant 0.000000e+00 : f32
      %660 = vector.broadcast %cst_250 : f32 to vector<1x1xf32>
      %c0_251 = arith.constant 0 : index
      %c0_252 = arith.constant 0 : index
      %c0_253 = arith.constant 0 : index
      %661 = vector.load %arg27[%c0_251, %c0_252, %c0_253] : memref<1x1x1xf32, #tpu.memory_space<vmem>>, vector<1x1x1xf32>
      %662 = vector.shape_cast %661 : vector<1x1x1xf32> to vector<1x1xf32>
      %663 = vector.shape_cast %660 : vector<1x1xf32> to vector<1x1x1xf32>
      tpu.vector_store %arg27[%c0_251, %c0_252, %c0_253], %663 {strides = array<i32>} : memref<1x1x1xf32, #tpu.memory_space<vmem>>, vector<1x1x1xf32>,
    } else {
    }
    return
  }
  func.func @transform_0(%arg0: i32) -> (i32, i32) {
    %c0_i32 = arith.constant 0 : i32
    %c0_i32_0 = arith.constant 0 : i32
    %c0_i32_1 = arith.constant 0 : i32
    return %c0_i32, %c0_i32_0 : i32, i32
  }
  func.func @transform_1(%arg0: i32) -> (i32, i32) {
    %c0_i32 = arith.constant 0 : i32
    %c0_i32_0 = arith.constant 0 : i32
    %c0_i32_1 = arith.constant 0 : i32
    return %c0_i32, %c0_i32_0 : i32, i32
  }
  func.func @transform_2(%arg0: i32) -> (i32, i32) {
    %c0_i32 = arith.constant 0 : i32
    %c0_i32_0 = arith.constant 0 : i32
    %c0_i32_1 = arith.constant 0 : i32
    return %c0_i32, %c0_i32_0 : i32, i32
  }
  func.func @transform_3(%arg0: i32) -> (i32, i32, i32) {
    %c0_i32 = arith.constant 0 : i32
    %c0_i32_0 = arith.constant 0 : i32
    %c0_i32_1 = arith.constant 0 : i32
    %c0_i32_2 = arith.constant 0 : i32
    return %c0_i32, %c0_i32_0, %c0_i32_1 : i32, i32, i32
  }
  func.func @transform_4(%arg0: i32) -> (i32, i32) {
    %c0_i32 = arith.constant 0 : i32
    %c0_i32_0 = arith.constant 0 : i32
    %c0_i32_1 = arith.constant 0 : i32
    return %c0_i32, %c0_i32_0 : i32, i32
  }
  func.func @transform_5(%arg0: i32) -> (i32, i32) {
    %c0_i32 = arith.constant 0 : i32
    %c0_i32_0 = arith.constant 0 : i32
    %c0_i32_1 = arith.constant 0 : i32
    return %c0_i32, %c0_i32_0 : i32, i32
  }
  func.func @transform_6(%arg0: i32) -> (i32, i32) {
    %c0_i32 = arith.constant 0 : i32
    %c0_i32_0 = arith.constant 0 : i32
    %c0_i32_1 = arith.constant 0 : i32
    return %c0_i32, %c0_i32_0 : i32, i32
  }
  func.func @transform_7(%arg0: i32) -> (i32, i32, i32) {
    %c0_i32 = arith.constant 0 : i32
    %c0_i32_0 = arith.constant 0 : i32
    %c0_i32_1 = arith.constant 0 : i32
    return %arg0, %c0_i32, %c0_i32_0 : i32, i32, i32
  }
  func.func @transform_8(%arg0: i32) -> (i32, i32, i32) {
    %c0_i32 = arith.constant 0 : i32
    %c0_i32_0 = arith.constant 0 : i32
    %c0_i32_1 = arith.constant 0 : i32
    return %arg0, %c0_i32, %c0_i32_0 : i32, i32, i32
  }
  func.func @transform_9(%arg0: i32) -> (i32, i32, i32) {
    %c0_i32 = arith.constant 0 : i32
    %c0_i32_0 = arith.constant 0 : i32
    %c0_i32_1 = arith.constant 0 : i32
    return %arg0, %c0_i32, %c0_i32_0 : i32, i32, i32
  }
  func.func @transform_10(%arg0: i32) -> (i32, i32, i32) {
    %c0_i32 = arith.constant 0 : i32
    %c0_i32_0 = arith.constant 0 : i32
    %c0_i32_1 = arith.constant 0 : i32
    return %arg0, %c0_i32, %c0_i32_0 : i32, i32, i32
  }
  func.func @transform_11(%arg0: i32) -> (i32, i32, i32) {
    %c0_i32 = arith.constant 0 : i32
    %c0_i32_0 = arith.constant 0 : i32
    %c0_i32_1 = arith.constant 0 : i32
    %c0_i32_2 = arith.constant 0 : i32
    return %c0_i32, %c0_i32_0, %c0_i32_1 : i32, i32, i32
  }
  func.func @transform_12(%arg0: i32) -> (i32, i32, i32, i32) {
    %c0_i32 = arith.constant 0 : i32
    %c0_i32_0 = arith.constant 0 : i32
    %c0_i32_1 = arith.constant 0 : i32
    %c0_i32_2 = arith.constant 0 : i32
    return %arg0, %c0_i32, %c0_i32_0, %c0_i32_1 : i32, i32, i32, i32
  }
  func.func @transform_13(%arg0: i32) -> (i32, i32, i32) {
    %c0_i32 = arith.constant 0 : i32
    %c0_i32_0 = arith.constant 0 : i32
    %c0_i32_1 = arith.constant 0 : i32
    return %arg0, %c0_i32, %c0_i32_0 : i32, i32, i32
  }
  func.func @transform_14(%arg0: i32) -> (i32, i32, i32) {
    %c0_i32 = arith.constant 0 : i32
    %c0_i32_0 = arith.constant 0 : i32
    %c0_i32_1 = arith.constant 0 : i32
    return %arg0, %c0_i32, %c0_i32_0 : i32, i32, i32
  }
  func.func @transform_15(%arg0: i32) -> (i32, i32, i32) {
    %c0_i32 = arith.constant 0 : i32
    %c0_i32_0 = arith.constant 0 : i32
    %c0_i32_1 = arith.constant 0 : i32
    return %arg0, %c0_i32, %c0_i32_0 : i32, i32, i32
  }
  func.func @transform_16(%arg0: i32) -> (i32, i32, i32, i32) {
    %c0_i32 = arith.constant 0 : i32
    %c0_i32_0 = arith.constant 0 : i32
    %c0_i32_1 = arith.constant 0 : i32
    %c0_i32_2 = arith.constant 0 : i32
    return %arg0, %c0_i32, %c0_i32_0, %c0_i32_1 : i32, i32, i32, i32
  }
  func.func @transform_17(%arg0: i32) -> (i32, i32, i32) {
    %c0_i32 = arith.constant 0 : i32
    %c0_i32_0 = arith.constant 0 : i32
    %c0_i32_1 = arith.constant 0 : i32
    return %arg0, %c0_i32, %c0_i32_0 : i32, i32, i32
  }
  func.func @transform_18(%arg0: i32) -> (i32, i32, i32) {
    %c0_i32 = arith.constant 0 : i32
    %c0_i32_0 = arith.constant 0 : i32
    %c0_i32_1 = arith.constant 0 : i32
    return %arg0, %c0_i32, %c0_i32_0 : i32, i32, i32
  }
  func.func @transform_19(%arg0: i32) -> (i32, i32, i32) {
    %c0_i32 = arith.constant 0 : i32
    %c0_i32_0 = arith.constant 0 : i32
    %c0_i32_1 = arith.constant 0 : i32
    return %arg0, %c0_i32, %c0_i32_0 : i32, i32, i32
  }
  func.func @transform_20(%arg0: i32) -> (i32, i32, i32) {
    %c0_i32 = arith.constant 0 : i32
    %c0_i32_0 = arith.constant 0 : i32
    %c0_i32_1 = arith.constant 0 : i32
    return %arg0, %c0_i32, %c0_i32_0 : i32, i32, i32
  }
  func.func @transform_21(%arg0: i32) -> (i32, i32, i32) {
    %c0_i32 = arith.constant 0 : i32
    %c0_i32_0 = arith.constant 0 : i32
    %c0_i32_1 = arith.constant 0 : i32
    return %arg0, %c0_i32, %c0_i32_0 : i32, i32, i32
  }
  func.func @transform_22(%arg0: i32) -> (i32, i32) {
    %c0_i32 = arith.constant 0 : i32
    %c0_i32_0 = arith.constant 0 : i32
    %c0_i32_1 = arith.constant 0 : i32
    return %c0_i32, %c0_i32_0 : i32, i32
  }
  func.func @transform_23(%arg0: i32) -> (i32, i32) {
    %c0_i32 = arith.constant 0 : i32
    %c0_i32_0 = arith.constant 0 : i32
    %c0_i32_1 = arith.constant 0 : i32
    return %c0_i32, %c0_i32_0 : i32, i32
  }
  func.func @transform_24(%arg0: i32) -> (i32, i32, i32) {
    %c0_i32 = arith.constant 0 : i32
    %c0_i32_0 = arith.constant 0 : i32
    %c0_i32_1 = arith.constant 0 : i32
    return %arg0, %c0_i32, %c0_i32_0 : i32, i32, i32
  }
  func.func @transform_25(%arg0: i32) -> (i32, i32, i32) {
    %c0_i32 = arith.constant 0 : i32
    %c0_i32_0 = arith.constant 0 : i32
    %c0_i32_1 = arith.constant 0 : i32
    return %arg0, %c0_i32, %c0_i32_0 : i32, i32, i32
  }
  func.func @transform_26(%arg0: i32) -> (i32, i32, i32) {
    %c0_i32 = arith.constant 0 : i32
    %c0_i32_0 = arith.constant 0 : i32
    %c0_i32_1 = arith.constant 0 : i32
    return %arg0, %c0_i32, %c0_i32_0 : i32, i32, i32
  }
}

</mosaic_0001>

<llo_original>
// kernel: decouple_net_forward.1
$region0: #{decouple_net_forward.1}
  #allocation0 [shape = 'u32[]', space=smem, size = 0x4, offset = 0x4, fixed_abs, tag = 'smem constant byte address 0x4 - core index']
  #allocation1 [shape = 'u32[144,128]{1,0:T(1,128)}', space=vmem, size = 0x12000, scoped, tag = 'internal scratch']
  #allocation2 [shape = 'f32[32,192]{1,0:T(8,128)}', space=vmem, size = 0x8000, scoped, tag = 'scratch operand']
  #allocation3 [shape = 'f32[32,64]{1,0:T(8,128)}', space=vmem, size = 0x4000, scoped, tag = 'scratch operand']
  %s0 = inlined_call_operand.vmem [shape: f32[32,40], index: 0, kind: input, shape index: {}]
  %s1 = inlined_call_operand.vmem [shape: f32[32,2], index: 1, kind: input, shape index: {}]
  %s2 = inlined_call_operand.hbm [shape: f32[2,32], index: 2, kind: input, shape index: {}]
  %s3 = inlined_call_operand.hbm [shape: f32[3,40,64], index: 3, kind: input, shape index: {}]
  %s4 = inlined_call_operand.hbm [shape: f32[1,64], index: 4, kind: input, shape index: {}]
  %s5 = inlined_call_operand.hbm [shape: f32[1,64], index: 5, kind: input, shape index: {}]
  %s6 = inlined_call_operand.hbm [shape: f32[1,64], index: 6, kind: input, shape index: {}]
  %s7 = inlined_call_operand.vmem [shape: f32[2,64,192], index: 7, kind: input, shape index: {}, may-alias: {7,11}]
  %s8 = inlined_call_operand.hbm [shape: f32[2,64,192], index: 8, kind: input, shape index: {}]
  %s9 = inlined_call_operand.vmem [shape: f32[2,1,192], index: 9, kind: input, shape index: {}]
  %s10 = inlined_call_operand.hbm [shape: f32[2,1,192], index: 10, kind: input, shape index: {}]
  %s11 = inlined_call_operand.vmem [shape: f32[2,64,192], index: 11, kind: input, shape index: {}, may-alias: {7,11}]
  %s12 = inlined_call_operand.vmem [shape: f32[2,3,64,128], index: 12, kind: input, shape index: {}]
  %s13 = inlined_call_operand.vmem [shape: f32[2,1,128], index: 13, kind: input, shape index: {}]
  %s14 = inlined_call_operand.hbm [shape: f32[2,1,128], index: 14, kind: input, shape index: {}]
  %s15 = inlined_call_operand.hbm [shape: f32[2,1,128], index: 15, kind: input, shape index: {}]
  %s16 = inlined_call_operand.hbm [shape: f32[2,3,128,256], index: 16, kind: input, shape index: {}]
  %s17 = inlined_call_operand.hbm [shape: f32[2,1,256], index: 17, kind: input, shape index: {}]
  %s18 = inlined_call_operand.hbm [shape: f32[2,1,256], index: 18, kind: input, shape index: {}]
  %s19 = inlined_call_operand.hbm [shape: f32[2,1,256], index: 19, kind: input, shape index: {}]
  %s20 = inlined_call_operand.hbm [shape: f32[2,256,512], index: 20, kind: input, shape index: {}]
  %s21 = inlined_call_operand.hbm [shape: f32[2,1,512], index: 21, kind: input, shape index: {}]
  %s22 = inlined_call_operand.vmem [shape: f32[512,10], index: 22, kind: input, shape index: {}]
  %s23 = inlined_call_operand.hbm [shape: f32[1,10], index: 23, kind: input, shape index: {}]
  %s24 = inlined_call_operand.vmem [shape: f32[2,2,512], index: 24, kind: output, shape index: {0}]
  %s25 = inlined_call_operand.vmem [shape: f32[2,2,10], index: 25, kind: output, shape index: {1}]
  %s26 = inlined_call_operand.vmem [shape: f32[2,1,1], index: 26, kind: output, shape index: {2}]
  %27 = xla_tuple %s24, %s25, %s26
  %s28 = sld [smem:[#allocation0]]
  $region217: #{decouple_net_forward.1} parent=0
    _
  %s30 = ssub.s32 1, %s28
  %s31 = scalar_select 0, %s30, %s28
  $region1: #{decouple_net_forward.1} parent=0
    #allocation4 [shape = 'u8[1024]{0}', space=vmem, size = 0x400, scoped, tag = 'input window, operand 2, single buffered']
    #allocation5 [shape = 's32[2]{0}', space=sflag, size = 0x8, scoped, tag = 'scoped memory for decouple_net_forward.1']
    #allocation6 [shape = 'u8[61440]{0}', space=vmem, size = 0xf000, scoped, tag = 'input window, operand 3, single buffered']
    #allocation7 [shape = 's32[1]{0}', space=sflag, size = 0x4, scoped, tag = 'scoped memory for decouple_net_forward.1']
    #allocation8 [shape = 'u8[512]{0}', space=vmem, size = 0x400, scoped, tag = 'input window, operand 4, single buffered']
    #allocation9 [shape = 'u8[512]{0}', space=vmem, size = 0x400, scoped, tag = 'input window, operand 5, single buffered']
    #allocation10 [shape = 's32[1]{0}', space=sflag, size = 0x4, scoped, tag = 'scoped memory for decouple_net_forward.1']
    #allocation11 [shape = 'u8[512]{0}', space=vmem, size = 0x400, scoped, tag = 'input window, operand 6, single buffered']
    #allocation12 [shape = 'u8[131072]{0}', space=vmem, size = 0x20000, scoped, tag = 'input window, operand 8']
    #allocation13 [shape = 's32[2]{0}', space=sflag, size = 0x8, scoped, tag = 'scoped memory for decouple_net_forward.1']
    #allocation14 [shape = 'u8[2048]{0}', space=vmem, size = 0x800, scoped, tag = 'input window, operand 10']
    #allocation15 [shape = 'u8[1024]{0}', space=vmem, size = 0x400, scoped, tag = 'input window, operand 14']
    #allocation16 [shape = 's32[2]{0}', space=sflag, size = 0x8, scoped, tag = 'scoped memory for decouple_net_forward.1']
    #allocation17 [shape = 'u8[1024]{0}', space=vmem, size = 0x400, scoped, tag = 'input window, operand 15']
    #allocation18 [shape = 'u8[786432]{0}', space=vmem, size = 0xc0000, scoped, tag = 'input window, operand 16']
    #allocation19 [shape = 's32[2]{0}', space=sflag, size = 0x8, scoped, tag = 'scoped memory for decouple_net_forward.1']
    #allocation20 [shape = 'u8[2048]{0}', space=vmem, size = 0x800, scoped, tag = 'input window, operand 17']
    #allocation21 [shape = 'u8[2048]{0}', space=vmem, size = 0x800, scoped, tag = 'input window, operand 18']
    #allocation22 [shape = 's32[2]{0}', space=sflag, size = 0x8, scoped, tag = 'scoped memory for decouple_net_forward.1']
    #allocation23 [shape = 'u8[2048]{0}', space=vmem, size = 0x800, scoped, tag = 'input window, operand 19']
    #allocation24 [shape = 'u8[1048576]{0}', space=vmem, size = 0x100000, scoped, tag = 'input window, operand 20']
    #allocation25 [shape = 's32[2]{0}', space=sflag, size = 0x8, scoped, tag = 'scoped memory for decouple_net_forward.1']
    #allocation26 [shape = 'u8[4096]{0}', space=vmem, size = 0x1000, scoped, tag = 'input window, operand 21']
    #allocation27 [shape = 'u8[512]{0}', space=vmem, size = 0x400, scoped, tag = 'input window, operand 23, single buffered']
    #allocation28 [shape = 's32[1]{0}', space=sflag, size = 0x4, scoped, tag = 'scoped memory for decouple_net_forward.1']
    %32 = vsyncpa [#allocation5], 0
    %33 = vsyncpa [#allocation7], 0
    %34 = vsyncpa [#allocation10], 0
    %35 = vsyncpa [#allocation13], 0
    %s36 = scalar_lea.sflag [#allocation13], 1
    %37 = vsyncpa %s36, 0
    %38 = vsyncpa [#allocation16], 0
    %s39 = scalar_lea.sflag [#allocation16], 1
    %40 = vsyncpa %s39, 0
    %41 = vsyncpa [#allocation19], 0
    %s42 = scalar_lea.sflag [#allocation19], 1
    %43 = vsyncpa %s42, 0
    %44 = vsyncpa [#allocation22], 0
    %s45 = scalar_lea.sflag [#allocation22], 1
    %46 = vsyncpa %s45, 0
    %47 = vsyncpa [#allocation25], 0
    %s48 = scalar_lea.sflag [#allocation25], 1
    %49 = vsyncpa %s48, 0
    %50 = vsyncpa [#allocation28], 0
    loop: start=0, step=1, limit=4
    $region2: #{decouple_net_forward.1} parent=1 // loop_pre_header
      _
    $region3: #{decouple_net_forward.1} parent=1 // loop_header
      %s52 = sphi 0, %s56
      %p53 = scmp.ge.s32.totalorder %s52, 4
      %s60 = sphi 0, %s60
      %s62 = sphi 0, %s60
      %s63 = sphi 0, %s62
      %s77 = sphi 0, %s63
      %s81 = sphi 0, %s81
      %s83 = sphi 0, %s81
      %s84 = sphi 0, %s83
      %s98 = sphi 0, %s84
      %s102 = sphi 0, %s102
      %s104 = sphi 0, %s102
      %s105 = sphi 0, %s104
      %s119 = sphi 0, %s105
      %s123 = sphi 0, %s123
      %s125 = sphi 0, %s123
      %s126 = sphi 0, %s125
      %s140 = sphi 0, %s126
      %s144 = sphi 0, %s144
      %s146 = sphi 0, %s144
      %s147 = sphi 0, %s146
      %s161 = sphi 0, %s147
      %s165 = sphi 0, %s165
      %s167 = sphi 0, %s165
      %s168 = sphi 0, %s167
      %s182 = sphi 0, %s168
      %s186 = sphi 0, %s186
      %s188 = sphi 0, %s186
      %s189 = sphi 0, %s188
      %s203 = sphi 0, %s189
      %s209 = sphi 0, %s211
      %s212 = sphi 0, %s209
      %s213 = sphi 0, %s212
      %s229 = sphi 0, %s213
      %s235 = sphi 0, %s237
      %s238 = sphi 0, %s235
      %s239 = sphi 0, %s238
      %s255 = sphi 0, %s239
      %s261 = sphi 0, %s263
      %s264 = sphi 0, %s261
      %s265 = sphi 0, %s264
      %s281 = sphi 0, %s265
      %s287 = sphi 0, %s289
      %s290 = sphi 0, %s287
      %s291 = sphi 0, %s290
      %s307 = sphi 0, %s291
      %s311 = sphi 0, %s311
      %s313 = sphi 0, %s311
      %s314 = sphi 0, %s313
      %s328 = sphi 0, %s314
      %s334 = sphi 0, %s336
      %s337 = sphi 0, %s334
      %s338 = sphi 0, %s337
      %s354 = sphi 0, %s338
      %s360 = sphi 0, %s362
      %s363 = sphi 0, %s360
      %s364 = sphi 0, %s363
      %s380 = sphi 0, %s364
      %s386 = sphi 0, %s388
      %s389 = sphi 0, %s386
      %s390 = sphi 0, %s389
      %s406 = sphi 0, %s390
      %s412 = sphi 0, %s414
      %s415 = sphi 0, %s412
      %s416 = sphi 0, %s415
      %s432 = sphi 0, %s416
      %s438 = sphi 0, %s440
      %s441 = sphi 0, %s438
      %s442 = sphi 0, %s441
      %s458 = sphi 0, %s442
      %s464 = sphi 0, %s466
      %s467 = sphi 0, %s464
      %s468 = sphi 0, %s467
      %s484 = sphi 0, %s468
      %s490 = sphi 0, %s492
      %s493 = sphi 0, %s490
      %s494 = sphi 0, %s493
      %s510 = sphi 0, %s494
      %s516 = sphi 0, %s518
      %s519 = sphi 0, %s516
      %s520 = sphi 0, %s519
      %s536 = sphi 0, %s520
      %s542 = sphi 0, %s544
      %s545 = sphi 0, %s542
      %s546 = sphi 0, %s545
      %s562 = sphi 0, %s546
      %s568 = sphi 0, %s570
      %s571 = sphi 0, %s568
      %s572 = sphi 0, %s571
      %s588 = sphi 0, %s572
      %s592 = sphi 0, %s592
      %s594 = sphi 0, %s592
      %s595 = sphi 0, %s594
      %s609 = sphi 0, %s595
      %s613 = sphi 0, %s613
      %s615 = sphi 0, %s613
      %s616 = sphi 0, %s615
      %s630 = sphi 0, %s616
      %s636 = sphi 0, %s638
      %s639 = sphi 0, %s636
      %s640 = sphi 0, %s639
      %s656 = sphi 0, %s640
      %s662 = sphi 0, %s664
      %s665 = sphi 0, %s662
      %s666 = sphi 0, %s665
      %s682 = sphi 0, %s666
      %s688 = sphi 0, %s690
      %s691 = sphi 0, %s688
      %s692 = sphi 0, %s691
      %s708 = sphi 0, %s692
    $region4: #{decouple_net_forward.1} parent=1 // loop_header_branch
      %55 = sbr.rel (%p53) target = $region8
    $region5: #{decouple_net_forward.1} parent=1 // loop_body
      %s57 = ssub.s32 %s52, 1
      %s58 = ssub.s32 %s52, 2
      %s59 = sadd.s32 %s52, 1
      %s61 = sadd.s32 %s60, 1
      %p64 = scmp.eq.s32.totalorder %s52, 1
      %p65 = scmp.ne.s32.totalorder %s60, %s62
      %p66 = scmp.eq.s32.totalorder %s52, 0
      %p67 = por %p65, %p66
      %p68 = scmp.ne.s32.totalorder %s60, %s62
      %p69 = scmp.eq.s32.totalorder %s57, 1
      %p70 = por %p68, %p69
      %p71 = scmp.ne.s32.totalorder %s62, %s63
      %p72 = scmp.eq.s32.totalorder %s57, 0
      %p73 = por %p71, %p72
      %p74 = scmp.ne.s32.totalorder %s62, %s63
      %p75 = scmp.eq.s32.totalorder %s58, 1
      %p76 = por %p74, %p75
      %p78 = scmp.ne.s32.totalorder %s63, %s77
      %p79 = scmp.eq.s32.totalorder %s58, 0
      %p80 = por %p78, %p79
      %s82 = sadd.s32 %s81, 1
      %p85 = scmp.eq.s32.totalorder %s52, 1
      %p86 = scmp.ne.s32.totalorder %s81, %s83
      %p87 = scmp.eq.s32.totalorder %s52, 0
      %p88 = por %p86, %p87
      %p89 = scmp.ne.s32.totalorder %s81, %s83
      %p90 = scmp.eq.s32.totalorder %s57, 1
      %p91 = por %p89, %p90
      %p92 = scmp.ne.s32.totalorder %s83, %s84
      %p93 = scmp.eq.s32.totalorder %s57, 0
      %p94 = por %p92, %p93
      %p95 = scmp.ne.s32.totalorder %s83, %s84
      %p96 = scmp.eq.s32.totalorder %s58, 1
      %p97 = por %p95, %p96
      %p99 = scmp.ne.s32.totalorder %s84, %s98
      %p100 = scmp.eq.s32.totalorder %s58, 0
      %p101 = por %p99, %p100
      %s103 = sadd.s32 %s102, 1
      %p106 = scmp.eq.s32.totalorder %s52, 1
      %p107 = scmp.ne.s32.totalorder %s102, %s104
      %p108 = scmp.eq.s32.totalorder %s52, 0
      %p109 = por %p107, %p108
      %p110 = scmp.ne.s32.totalorder %s102, %s104
      %p111 = scmp.eq.s32.totalorder %s57, 1
      %p112 = por %p110, %p111
      %p113 = scmp.ne.s32.totalorder %s104, %s105
      %p114 = scmp.eq.s32.totalorder %s57, 0
      %p115 = por %p113, %p114
      %p116 = scmp.ne.s32.totalorder %s104, %s105
      %p117 = scmp.eq.s32.totalorder %s58, 1
      %p118 = por %p116, %p117
      %p120 = scmp.ne.s32.totalorder %s105, %s119
      %p121 = scmp.eq.s32.totalorder %s58, 0
      %p122 = por %p120, %p121
      %s124 = sadd.s32 %s123, 1
      %p127 = scmp.eq.s32.totalorder %s52, 1
      %p128 = scmp.ne.s32.totalorder %s123, %s125
      %p129 = scmp.eq.s32.totalorder %s52, 0
      %p130 = por %p128, %p129
      %p131 = scmp.ne.s32.totalorder %s123, %s125
      %p132 = scmp.eq.s32.totalorder %s57, 1
      %p133 = por %p131, %p132
      %p134 = scmp.ne.s32.totalorder %s125, %s126
      %p135 = scmp.eq.s32.totalorder %s57, 0
      %p136 = por %p134, %p135
      %p137 = scmp.ne.s32.totalorder %s125, %s126
      %p138 = scmp.eq.s32.totalorder %s58, 1
      %p139 = por %p137, %p138
      %p141 = scmp.ne.s32.totalorder %s126, %s140
      %p142 = scmp.eq.s32.totalorder %s58, 0
      %p143 = por %p141, %p142
      %s145 = sadd.s32 %s144, 1
      %p148 = scmp.eq.s32.totalorder %s52, 1
      %p149 = scmp.ne.s32.totalorder %s144, %s146
      %p150 = scmp.eq.s32.totalorder %s52, 0
      %p151 = por %p149, %p150
      %p152 = scmp.ne.s32.totalorder %s144, %s146
      %p153 = scmp.eq.s32.totalorder %s57, 1
      %p154 = por %p152, %p153
      %p155 = scmp.ne.s32.totalorder %s146, %s147
      %p156 = scmp.eq.s32.totalorder %s57, 0
      %p157 = por %p155, %p156
      %p158 = scmp.ne.s32.totalorder %s146, %s147
      %p159 = scmp.eq.s32.totalorder %s58, 1
      %p160 = por %p158, %p159
      %p162 = scmp.ne.s32.totalorder %s147, %s161
      %p163 = scmp.eq.s32.totalorder %s58, 0
      %p164 = por %p162, %p163
      %s166 = sadd.s32 %s165, 1
      %p169 = scmp.eq.s32.totalorder %s52, 1
      %p170 = scmp.ne.s32.totalorder %s165, %s167
      %p171 = scmp.eq.s32.totalorder %s52, 0
      %p172 = por %p170, %p171
      %p173 = scmp.ne.s32.totalorder %s165, %s167
      %p174 = scmp.eq.s32.totalorder %s57, 1
      %p175 = por %p173, %p174
      %p176 = scmp.ne.s32.totalorder %s167, %s168
      %p177 = scmp.eq.s32.totalorder %s57, 0
      %p178 = por %p176, %p177
      %p179 = scmp.ne.s32.totalorder %s167, %s168
      %p180 = scmp.eq.s32.totalorder %s58, 1
      %p181 = por %p179, %p180
      %p183 = scmp.ne.s32.totalorder %s168, %s182
      %p184 = scmp.eq.s32.totalorder %s58, 0
      %p185 = por %p183, %p184
      %s187 = sadd.s32 %s186, 1
      %p190 = scmp.eq.s32.totalorder %s52, 1
      %p191 = scmp.ne.s32.totalorder %s186, %s188
      %p192 = scmp.eq.s32.totalorder %s52, 0
      %p193 = por %p191, %p192
      %p194 = scmp.ne.s32.totalorder %s186, %s188
      %p195 = scmp.eq.s32.totalorder %s57, 1
      %p196 = por %p194, %p195
      %p197 = scmp.ne.s32.totalorder %s188, %s189
      %p198 = scmp.eq.s32.totalorder %s57, 0
      %p199 = por %p197, %p198
      %p200 = scmp.ne.s32.totalorder %s188, %s189
      %p201 = scmp.eq.s32.totalorder %s58, 1
      %p202 = por %p200, %p201
      %p204 = scmp.ne.s32.totalorder %s189, %s203
      %p205 = scmp.eq.s32.totalorder %s58, 0
      %p206 = por %p204, %p205
      %s207 = ssub.s32 %s52, %s59
      %p208 = scmp.eq.s32.totalorder %s207, 0
      %s210 = sadd.s32 %s209, 1
      %s211 = scalar_select %p208, %s209, %s210
      %p214 = pneg %p208
      %p215 = scmp.eq.s32.totalorder %s52, 1
      %p216 = por %p214, %p215
      %p217 = scmp.ne.s32.totalorder %s209, %s212
      %p218 = scmp.eq.s32.totalorder %s52, 0
      %p219 = por %p217, %p218
      %p220 = scmp.ne.s32.totalorder %s209, %s212
      %p221 = scmp.eq.s32.totalorder %s57, 1
      %p222 = por %p220, %p221
      %p223 = scmp.ne.s32.totalorder %s212, %s213
      %p224 = scmp.eq.s32.totalorder %s57, 0
      %p225 = por %p223, %p224
      %p226 = scmp.ne.s32.totalorder %s212, %s213
      %p227 = scmp.eq.s32.totalorder %s58, 1
      %p228 = por %p226, %p227
      %p230 = scmp.ne.s32.totalorder %s213, %s229
      %p231 = scmp.eq.s32.totalorder %s58, 0
      %p232 = por %p230, %p231
      %s233 = ssub.s32 %s52, %s59
      %p234 = scmp.eq.s32.totalorder %s233, 0
      %s236 = sadd.s32 %s235, 1
      %s237 = scalar_select %p234, %s235, %s236
      %p240 = pneg %p234
      %p241 = scmp.eq.s32.totalorder %s52, 1
      %p242 = por %p240, %p241
      %p243 = scmp.ne.s32.totalorder %s235, %s238
      %p244 = scmp.eq.s32.totalorder %s52, 0
      %p245 = por %p243, %p244
      %p246 = scmp.ne.s32.totalorder %s235, %s238
      %p247 = scmp.eq.s32.totalorder %s57, 1
      %p248 = por %p246, %p247
      %p249 = scmp.ne.s32.totalorder %s238, %s239
      %p250 = scmp.eq.s32.totalorder %s57, 0
      %p251 = por %p249, %p250
      %p252 = scmp.ne.s32.totalorder %s238, %s239
      %p253 = scmp.eq.s32.totalorder %s58, 1
      %p254 = por %p252, %p253
      %p256 = scmp.ne.s32.totalorder %s239, %s255
      %p257 = scmp.eq.s32.totalorder %s58, 0
      %p258 = por %p256, %p257
      %s259 = ssub.s32 %s52, %s59
      %p260 = scmp.eq.s32.totalorder %s259, 0
      %s262 = sadd.s32 %s261, 1
      %s263 = scalar_select %p260, %s261, %s262
      %p266 = pneg %p260
      %p267 = scmp.eq.s32.totalorder %s52, 1
      %p268 = por %p266, %p267
      %p269 = scmp.ne.s32.totalorder %s261, %s264
      %p270 = scmp.eq.s32.totalorder %s52, 0
      %p271 = por %p269, %p270
      %p272 = scmp.ne.s32.totalorder %s261, %s264
      %p273 = scmp.eq.s32.totalorder %s57, 1
      %p274 = por %p272, %p273
      %p275 = scmp.ne.s32.totalorder %s264, %s265
      %p276 = scmp.eq.s32.totalorder %s57, 0
      %p277 = por %p275, %p276
      %p278 = scmp.ne.s32.totalorder %s264, %s265
      %p279 = scmp.eq.s32.totalorder %s58, 1
      %p280 = por %p278, %p279
      %p282 = scmp.ne.s32.totalorder %s265, %s281
      %p283 = scmp.eq.s32.totalorder %s58, 0
      %p284 = por %p282, %p283
      %s285 = ssub.s32 %s52, %s59
      %p286 = scmp.eq.s32.totalorder %s285, 0
      %s288 = sadd.s32 %s287, 1
      %s289 = scalar_select %p286, %s287, %s288
      %p292 = pneg %p286
      %p293 = scmp.eq.s32.totalorder %s52, 1
      %p294 = por %p292, %p293
      %p295 = scmp.ne.s32.totalorder %s287, %s290
      %p296 = scmp.eq.s32.totalorder %s52, 0
      %p297 = por %p295, %p296
      %p298 = scmp.ne.s32.totalorder %s287, %s290
      %p299 = scmp.eq.s32.totalorder %s57, 1
      %p300 = por %p298, %p299
      %p301 = scmp.ne.s32.totalorder %s290, %s291
      %p302 = scmp.eq.s32.totalorder %s57, 0
      %p303 = por %p301, %p302
      %p304 = scmp.ne.s32.totalorder %s290, %s291
      %p305 = scmp.eq.s32.totalorder %s58, 1
      %p306 = por %p304, %p305
      %p308 = scmp.ne.s32.totalorder %s291, %s307
      %p309 = scmp.eq.s32.totalorder %s58, 0
      %p310 = por %p308, %p309
      %s312 = sadd.s32 %s311, 1
      %p315 = scmp.eq.s32.totalorder %s52, 1
      %p316 = scmp.ne.s32.totalorder %s311, %s313
      %p317 = scmp.eq.s32.totalorder %s52, 0
      %p318 = por %p316, %p317
      %p319 = scmp.ne.s32.totalorder %s311, %s313
      %p320 = scmp.eq.s32.totalorder %s57, 1
      %p321 = por %p319, %p320
      %p322 = scmp.ne.s32.totalorder %s313, %s314
      %p323 = scmp.eq.s32.totalorder %s57, 0
      %p324 = por %p322, %p323
      %p325 = scmp.ne.s32.totalorder %s313, %s314
      %p326 = scmp.eq.s32.totalorder %s58, 1
      %p327 = por %p325, %p326
      %p329 = scmp.ne.s32.totalorder %s314, %s328
      %p330 = scmp.eq.s32.totalorder %s58, 0
      %p331 = por %p329, %p330
      %s332 = ssub.s32 %s52, %s59
      %p333 = scmp.eq.s32.totalorder %s332, 0
      %s335 = sadd.s32 %s334, 1
      %s336 = scalar_select %p333, %s334, %s335
      %p339 = pneg %p333
      %p340 = scmp.eq.s32.totalorder %s52, 1
      %p341 = por %p339, %p340
      %p342 = scmp.ne.s32.totalorder %s334, %s337
      %p343 = scmp.eq.s32.totalorder %s52, 0
      %p344 = por %p342, %p343
      %p345 = scmp.ne.s32.totalorder %s334, %s337
      %p346 = scmp.eq.s32.totalorder %s57, 1
      %p347 = por %p345, %p346
      %p348 = scmp.ne.s32.totalorder %s337, %s338
      %p349 = scmp.eq.s32.totalorder %s57, 0
      %p350 = por %p348, %p349
      %p351 = scmp.ne.s32.totalorder %s337, %s338
      %p352 = scmp.eq.s32.totalorder %s58, 1
      %p353 = por %p351, %p352
      %p355 = scmp.ne.s32.totalorder %s338, %s354
      %p356 = scmp.eq.s32.totalorder %s58, 0
      %p357 = por %p355, %p356
      %s358 = ssub.s32 %s52, %s59
      %p359 = scmp.eq.s32.totalorder %s358, 0
      %s361 = sadd.s32 %s360, 1
      %s362 = scalar_select %p359, %s360, %s361
      %p365 = pneg %p359
      %p366 = scmp.eq.s32.totalorder %s52, 1
      %p367 = por %p365, %p366
      %p368 = scmp.ne.s32.totalorder %s360, %s363
      %p369 = scmp.eq.s32.totalorder %s52, 0
      %p370 = por %p368, %p369
      %p371 = scmp.ne.s32.totalorder %s360, %s363
      %p372 = scmp.eq.s32.totalorder %s57, 1
      %p373 = por %p371, %p372
      %p374 = scmp.ne.s32.totalorder %s363, %s364
      %p375 = scmp.eq.s32.totalorder %s57, 0
      %p376 = por %p374, %p375
      %p377 = scmp.ne.s32.totalorder %s363, %s364
      %p378 = scmp.eq.s32.totalorder %s58, 1
      %p379 = por %p377, %p378
      %p381 = scmp.ne.s32.totalorder %s364, %s380
      %p382 = scmp.eq.s32.totalorder %s58, 0
      %p383 = por %p381, %p382
      %s384 = ssub.s32 %s52, %s59
      %p385 = scmp.eq.s32.totalorder %s384, 0
      %s387 = sadd.s32 %s386, 1
      %s388 = scalar_select %p385, %s386, %s387
      %p391 = pneg %p385
      %p392 = scmp.eq.s32.totalorder %s52, 1
      %p393 = por %p391, %p392
      %p394 = scmp.ne.s32.totalorder %s386, %s389
      %p395 = scmp.eq.s32.totalorder %s52, 0
      %p396 = por %p394, %p395
      %p397 = scmp.ne.s32.totalorder %s386, %s389
      %p398 = scmp.eq.s32.totalorder %s57, 1
      %p399 = por %p397, %p398
      %p400 = scmp.ne.s32.totalorder %s389, %s390
      %p401 = scmp.eq.s32.totalorder %s57, 0
      %p402 = por %p400, %p401
      %p403 = scmp.ne.s32.totalorder %s389, %s390
      %p404 = scmp.eq.s32.totalorder %s58, 1
      %p405 = por %p403, %p404
      %p407 = scmp.ne.s32.totalorder %s390, %s406
      %p408 = scmp.eq.s32.totalorder %s58, 0
      %p409 = por %p407, %p408
      %s410 = ssub.s32 %s52, %s59
      %p411 = scmp.eq.s32.totalorder %s410, 0
      %s413 = sadd.s32 %s412, 1
      %s414 = scalar_select %p411, %s412, %s413
      %p417 = pneg %p411
      %p418 = scmp.eq.s32.totalorder %s52, 1
      %p419 = por %p417, %p418
      %p420 = scmp.ne.s32.totalorder %s412, %s415
      %p421 = scmp.eq.s32.totalorder %s52, 0
      %p422 = por %p420, %p421
      %p423 = scmp.ne.s32.totalorder %s412, %s415
      %p424 = scmp.eq.s32.totalorder %s57, 1
      %p425 = por %p423, %p424
      %p426 = scmp.ne.s32.totalorder %s415, %s416
      %p427 = scmp.eq.s32.totalorder %s57, 0
      %p428 = por %p426, %p427
      %p429 = scmp.ne.s32.totalorder %s415, %s416
      %p430 = scmp.eq.s32.totalorder %s58, 1
      %p431 = por %p429, %p430
      %p433 = scmp.ne.s32.totalorder %s416, %s432
      %p434 = scmp.eq.s32.totalorder %s58, 0
      %p435 = por %p433, %p434
      %s436 = ssub.s32 %s52, %s59
      %p437 = scmp.eq.s32.totalorder %s436, 0
      %s439 = sadd.s32 %s438, 1
      %s440 = scalar_select %p437, %s438, %s439
      %p443 = pneg %p437
      %p444 = scmp.eq.s32.totalorder %s52, 1
      %p445 = por %p443, %p444
      %p446 = scmp.ne.s32.totalorder %s438, %s441
      %p447 = scmp.eq.s32.totalorder %s52, 0
      %p448 = por %p446, %p447
      %p449 = scmp.ne.s32.totalorder %s438, %s441
      %p450 = scmp.eq.s32.totalorder %s57, 1
      %p451 = por %p449, %p450
      %p452 = scmp.ne.s32.totalorder %s441, %s442
      %p453 = scmp.eq.s32.totalorder %s57, 0
      %p454 = por %p452, %p453
      %p455 = scmp.ne.s32.totalorder %s441, %s442
      %p456 = scmp.eq.s32.totalorder %s58, 1
      %p457 = por %p455, %p456
      %p459 = scmp.ne.s32.totalorder %s442, %s458
      %p460 = scmp.eq.s32.totalorder %s58, 0
      %p461 = por %p459, %p460
      %s462 = ssub.s32 %s52, %s59
      %p463 = scmp.eq.s32.totalorder %s462, 0
      %s465 = sadd.s32 %s464, 1
      %s466 = scalar_select %p463, %s464, %s465
      %p469 = pneg %p463
      %p470 = scmp.eq.s32.totalorder %s52, 1
      %p471 = por %p469, %p470
      %p472 = scmp.ne.s32.totalorder %s464, %s467
      %p473 = scmp.eq.s32.totalorder %s52, 0
      %p474 = por %p472, %p473
      %p475 = scmp.ne.s32.totalorder %s464, %s467
      %p476 = scmp.eq.s32.totalorder %s57, 1
      %p477 = por %p475, %p476
      %p478 = scmp.ne.s32.totalorder %s467, %s468
      %p479 = scmp.eq.s32.totalorder %s57, 0
      %p480 = por %p478, %p479
      %p481 = scmp.ne.s32.totalorder %s467, %s468
      %p482 = scmp.eq.s32.totalorder %s58, 1
      %p483 = por %p481, %p482
      %p485 = scmp.ne.s32.totalorder %s468, %s484
      %p486 = scmp.eq.s32.totalorder %s58, 0
      %p487 = por %p485, %p486
      %s488 = ssub.s32 %s52, %s59
      %p489 = scmp.eq.s32.totalorder %s488, 0
      %s491 = sadd.s32 %s490, 1
      %s492 = scalar_select %p489, %s490, %s491
      %p495 = pneg %p489
      %p496 = scmp.eq.s32.totalorder %s52, 1
      %p497 = por %p495, %p496
      %p498 = scmp.ne.s32.totalorder %s490, %s493
      %p499 = scmp.eq.s32.totalorder %s52, 0
      %p500 = por %p498, %p499
      %p501 = scmp.ne.s32.totalorder %s490, %s493
      %p502 = scmp.eq.s32.totalorder %s57, 1
      %p503 = por %p501, %p502
      %p504 = scmp.ne.s32.totalorder %s493, %s494
      %p505 = scmp.eq.s32.totalorder %s57, 0
      %p506 = por %p504, %p505
      %p507 = scmp.ne.s32.totalorder %s493, %s494
      %p508 = scmp.eq.s32.totalorder %s58, 1
      %p509 = por %p507, %p508
      %p511 = scmp.ne.s32.totalorder %s494, %s510
      %p512 = scmp.eq.s32.totalorder %s58, 0
      %p513 = por %p511, %p512
      %s514 = ssub.s32 %s52, %s59
      %p515 = scmp.eq.s32.totalorder %s514, 0
      %s517 = sadd.s32 %s516, 1
      %s518 = scalar_select %p515, %s516, %s517
      %p521 = pneg %p515
      %p522 = scmp.eq.s32.totalorder %s52, 1
      %p523 = por %p521, %p522
      %p524 = scmp.ne.s32.totalorder %s516, %s519
      %p525 = scmp.eq.s32.totalorder %s52, 0
      %p526 = por %p524, %p525
      %p527 = scmp.ne.s32.totalorder %s516, %s519
      %p528 = scmp.eq.s32.totalorder %s57, 1
      %p529 = por %p527, %p528
      %p530 = scmp.ne.s32.totalorder %s519, %s520
      %p531 = scmp.eq.s32.totalorder %s57, 0
      %p532 = por %p530, %p531
      %p533 = scmp.ne.s32.totalorder %s519, %s520
      %p534 = scmp.eq.s32.totalorder %s58, 1
      %p535 = por %p533, %p534
      %p537 = scmp.ne.s32.totalorder %s520, %s536
      %p538 = scmp.eq.s32.totalorder %s58, 0
      %p539 = por %p537, %p538
      %s540 = ssub.s32 %s52, %s59
      %p541 = scmp.eq.s32.totalorder %s540, 0
      %s543 = sadd.s32 %s542, 1
      %s544 = scalar_select %p541, %s542, %s543
      %p547 = pneg %p541
      %p548 = scmp.eq.s32.totalorder %s52, 1
      %p549 = por %p547, %p548
      %p550 = scmp.ne.s32.totalorder %s542, %s545
      %p551 = scmp.eq.s32.totalorder %s52, 0
      %p552 = por %p550, %p551
      %p553 = scmp.ne.s32.totalorder %s542, %s545
      %p554 = scmp.eq.s32.totalorder %s57, 1
      %p555 = por %p553, %p554
      %p556 = scmp.ne.s32.totalorder %s545, %s546
      %p557 = scmp.eq.s32.totalorder %s57, 0
      %p558 = por %p556, %p557
      %p559 = scmp.ne.s32.totalorder %s545, %s546
      %p560 = scmp.eq.s32.totalorder %s58, 1
      %p561 = por %p559, %p560
      %p563 = scmp.ne.s32.totalorder %s546, %s562
      %p564 = scmp.eq.s32.totalorder %s58, 0
      %p565 = por %p563, %p564
      %s566 = ssub.s32 %s52, %s59
      %p567 = scmp.eq.s32.totalorder %s566, 0
      %s569 = sadd.s32 %s568, 1
      %s570 = scalar_select %p567, %s568, %s569
      %p573 = pneg %p567
      %p574 = scmp.eq.s32.totalorder %s52, 1
      %p575 = por %p573, %p574
      %p576 = scmp.ne.s32.totalorder %s568, %s571
      %p577 = scmp.eq.s32.totalorder %s52, 0
      %p578 = por %p576, %p577
      %p579 = scmp.ne.s32.totalorder %s568, %s571
      %p580 = scmp.eq.s32.totalorder %s57, 1
      %p581 = por %p579, %p580
      %p582 = scmp.ne.s32.totalorder %s571, %s572
      %p583 = scmp.eq.s32.totalorder %s57, 0
      %p584 = por %p582, %p583
      %p585 = scmp.ne.s32.totalorder %s571, %s572
      %p586 = scmp.eq.s32.totalorder %s58, 1
      %p587 = por %p585, %p586
      %p589 = scmp.ne.s32.totalorder %s572, %s588
      %p590 = scmp.eq.s32.totalorder %s58, 0
      %p591 = por %p589, %p590
      %s593 = sadd.s32 %s592, 1
      %p596 = scmp.eq.s32.totalorder %s52, 1
      %p597 = scmp.ne.s32.totalorder %s592, %s594
      %p598 = scmp.eq.s32.totalorder %s52, 0
      %p599 = por %p597, %p598
      %p600 = scmp.ne.s32.totalorder %s592, %s594
      %p601 = scmp.eq.s32.totalorder %s57, 1
      %p602 = por %p600, %p601
      %p603 = scmp.ne.s32.totalorder %s594, %s595
      %p604 = scmp.eq.s32.totalorder %s57, 0
      %p605 = por %p603, %p604
      %p606 = scmp.ne.s32.totalorder %s594, %s595
      %p607 = scmp.eq.s32.totalorder %s58, 1
      %p608 = por %p606, %p607
      %p610 = scmp.ne.s32.totalorder %s595, %s609
      %p611 = scmp.eq.s32.totalorder %s58, 0
      %p612 = por %p610, %p611
      %s614 = sadd.s32 %s613, 1
      %p617 = scmp.eq.s32.totalorder %s52, 1
      %p618 = scmp.ne.s32.totalorder %s613, %s615
      %p619 = scmp.eq.s32.totalorder %s52, 0
      %p620 = por %p618, %p619
      %p621 = scmp.ne.s32.totalorder %s613, %s615
      %p622 = scmp.eq.s32.totalorder %s57, 1
      %p623 = por %p621, %p622
      %p624 = scmp.ne.s32.totalorder %s615, %s616
      %p625 = scmp.eq.s32.totalorder %s57, 0
      %p626 = por %p624, %p625
      %p627 = scmp.ne.s32.totalorder %s615, %s616
      %p628 = scmp.eq.s32.totalorder %s58, 1
      %p629 = por %p627, %p628
      %p631 = scmp.ne.s32.totalorder %s616, %s630
      %p632 = scmp.eq.s32.totalorder %s58, 0
      %p633 = por %p631, %p632
      %s634 = ssub.s32 %s52, %s59
      %p635 = scmp.eq.s32.totalorder %s634, 0
      %s637 = sadd.s32 %s636, 1
      %s638 = scalar_select %p635, %s636, %s637
      %p641 = pneg %p635
      %p642 = scmp.eq.s32.totalorder %s52, 1
      %p643 = por %p641, %p642
      %p644 = scmp.ne.s32.totalorder %s636, %s639
      %p645 = scmp.eq.s32.totalorder %s52, 0
      %p646 = por %p644, %p645
      %p647 = scmp.ne.s32.totalorder %s636, %s639
      %p648 = scmp.eq.s32.totalorder %s57, 1
      %p649 = por %p647, %p648
      %p650 = scmp.ne.s32.totalorder %s639, %s640
      %p651 = scmp.eq.s32.totalorder %s57, 0
      %p652 = por %p650, %p651
      %p653 = scmp.ne.s32.totalorder %s639, %s640
      %p654 = scmp.eq.s32.totalorder %s58, 1
      %p655 = por %p653, %p654
      %p657 = scmp.ne.s32.totalorder %s640, %s656
      %p658 = scmp.eq.s32.totalorder %s58, 0
      %p659 = por %p657, %p658
      %s660 = ssub.s32 %s52, %s59
      %p661 = scmp.eq.s32.totalorder %s660, 0
      %s663 = sadd.s32 %s662, 1
      %s664 = scalar_select %p661, %s662, %s663
      %p667 = pneg %p661
      %p668 = scmp.eq.s32.totalorder %s52, 1
      %p669 = por %p667, %p668
      %p670 = scmp.ne.s32.totalorder %s662, %s665
      %p671 = scmp.eq.s32.totalorder %s52, 0
      %p672 = por %p670, %p671
      %p673 = scmp.ne.s32.totalorder %s662, %s665
      %p674 = scmp.eq.s32.totalorder %s57, 1
      %p675 = por %p673, %p674
      %p676 = scmp.ne.s32.totalorder %s665, %s666
      %p677 = scmp.eq.s32.totalorder %s57, 0
      %p678 = por %p676, %p677
      %p679 = scmp.ne.s32.totalorder %s665, %s666
      %p680 = scmp.eq.s32.totalorder %s58, 1
      %p681 = por %p679, %p680
      %p683 = scmp.ne.s32.totalorder %s666, %s682
      %p684 = scmp.eq.s32.totalorder %s58, 0
      %p685 = por %p683, %p684
      %s686 = ssub.s32 %s52, %s59
      %p687 = scmp.eq.s32.totalorder %s686, 0
      %s689 = sadd.s32 %s688, 1
      %s690 = scalar_select %p687, %s688, %s689
      %p693 = pneg %p687
      %p694 = scmp.eq.s32.totalorder %s52, 1
      %p695 = por %p693, %p694
      %p696 = scmp.ne.s32.totalorder %s688, %s691
      %p697 = scmp.eq.s32.totalorder %s52, 0
      %p698 = por %p696, %p697
      %p699 = scmp.ne.s32.totalorder %s688, %s691
      %p700 = scmp.eq.s32.totalorder %s57, 1
      %p701 = por %p699, %p700
      %p702 = scmp.ne.s32.totalorder %s691, %s692
      %p703 = scmp.eq.s32.totalorder %s57, 0
      %p704 = por %p702, %p703
      %p705 = scmp.ne.s32.totalorder %s691, %s692
      %p706 = scmp.eq.s32.totalorder %s58, 1
      %p707 = por %p705, %p706
      %p709 = scmp.ne.s32.totalorder %s692, %s708
      %p710 = scmp.eq.s32.totalorder %s58, 0
      %p711 = por %p709, %p710
      %p712 = scmp.le.s32.totalorder 1, %s52
      %p713 = scmp.lt.s32.totalorder %s52, 3
      %p714 = pnand %p712, %p713
      %p715 = pneg %p714
      // Predicated region
      $region9: #{decouple_net_forward.1} parent=5 // pred_check
        _
      $region10: #{decouple_net_forward.1} parent=5 // pred_check_branch
        %717 = sbr.rel (%p714) target = $region12
      $region11: #{decouple_net_forward.1} parent=5 // pred_region
        %s718 = ssub.s32 %s52, 1
        // Predicated region
        $region13: #{decouple_net_forward.1} parent=11 // pred_check
          %p719 = pneg %p73
        $region14: #{decouple_net_forward.1} parent=11 // pred_check_branch
          %721 = sbr.rel (%p719) target = $region16
        $region15: #{decouple_net_forward.1} parent=11 // pred_region
          _
        $region16: #{decouple_net_forward.1} parent=11 // pred_fallthru
          _
        // Predicated region
        $region17: #{decouple_net_forward.1} parent=11 // pred_check
          %p722 = pneg %p94
        $region18: #{decouple_net_forward.1} parent=11 // pred_check_branch
          %724 = sbr.rel (%p722) target = $region20
        $region19: #{decouple_net_forward.1} parent=11 // pred_region
          _
        $region20: #{decouple_net_forward.1} parent=11 // pred_fallthru
          _
        // Predicated region
        $region21: #{decouple_net_forward.1} parent=11 // pred_check
          %p725 = pneg %p115
        $region22: #{decouple_net_forward.1} parent=11 // pred_check_branch
          %727 = sbr.rel (%p725) target = $region24
        $region23: #{decouple_net_forward.1} parent=11 // pred_region
          %s729 = ssub.s32 32, 32
          %730 = vsyncadd [#allocation5], %s729
          %s732 = sshll.u32 [#allocation4], 4
          %s733 = int_to_ptr.vmem [resolvable:$true] %s732
          %735 = dma.hbm_to_vmem [thread:$0]  %s2, 32, %s733, [#allocation5]
        $region24: #{decouple_net_forward.1} parent=11 // pred_fallthru
          _
        // Predicated region
        $region25: #{decouple_net_forward.1} parent=11 // pred_check
          %p736 = pneg %p136
        $region26: #{decouple_net_forward.1} parent=11 // pred_check_branch
          %738 = sbr.rel (%p736) target = $region28
        $region27: #{decouple_net_forward.1} parent=11 // pred_region
          %s740 = ssub.s32 1920, 1920
          %741 = vsyncadd [#allocation7], %s740
          %s742 = sshll.u32 [#allocation6], 4
          %s743 = int_to_ptr.vmem [resolvable:$true] %s742
          %748 = dma.hbm_to_vmem [thread:$0]  %s3, 1920, %s743, [#allocation7], 128, 128, 8
        $region28: #{decouple_net_forward.1} parent=11 // pred_fallthru
          _
        // Predicated region
        $region29: #{decouple_net_forward.1} parent=11 // pred_check
          %p749 = pneg %p157
        $region30: #{decouple_net_forward.1} parent=11 // pred_check_branch
          %751 = sbr.rel (%p749) target = $region32
        $region31: #{decouple_net_forward.1} parent=11 // pred_region
          %s753 = ssub.s32 16, 16
          %754 = vsyncadd [#allocation7], %s753
          %s756 = sshll.u32 [#allocation8], 4
          %s757 = int_to_ptr.vmem [resolvable:$true] %s756
          %759 = dma.hbm_to_vmem [thread:$0]  %s4, 16, %s757, [#allocation7]
        $region32: #{decouple_net_forward.1} parent=11 // pred_fallthru
          _
        // Predicated region
        $region33: #{decouple_net_forward.1} parent=11 // pred_check
          %p760 = pneg %p178
        $region34: #{decouple_net_forward.1} parent=11 // pred_check_branch
          %762 = sbr.rel (%p760) target = $region36
        $region35: #{decouple_net_forward.1} parent=11 // pred_region
          %s764 = ssub.s32 16, 16
          %765 = vsyncadd [#allocation10], %s764
          %s767 = sshll.u32 [#allocation9], 4
          %s768 = int_to_ptr.vmem [resolvable:$true] %s767
          %770 = dma.hbm_to_vmem [thread:$0]  %s5, 16, %s768, [#allocation10]
        $region36: #{decouple_net_forward.1} parent=11 // pred_fallthru
          _
        // Predicated region
        $region37: #{decouple_net_forward.1} parent=11 // pred_check
          %p771 = pneg %p199
        $region38: #{decouple_net_forward.1} parent=11 // pred_check_branch
          %773 = sbr.rel (%p771) target = $region40
        $region39: #{decouple_net_forward.1} parent=11 // pred_region
          %s775 = ssub.s32 16, 16
          %776 = vsyncadd [#allocation10], %s775
          %s778 = sshll.u32 [#allocation11], 4
          %s779 = int_to_ptr.vmem [resolvable:$true] %s778
          %781 = dma.hbm_to_vmem [thread:$0]  %s6, 16, %s779, [#allocation10]
        $region40: #{decouple_net_forward.1} parent=11 // pred_fallthru
          _
        // Predicated region
        $region41: #{decouple_net_forward.1} parent=11 // pred_check
          %p782 = pneg %p324
        $region42: #{decouple_net_forward.1} parent=11 // pred_check_branch
          %784 = sbr.rel (%p782) target = $region44
        $region43: #{decouple_net_forward.1} parent=11 // pred_region
          _
        $region44: #{decouple_net_forward.1} parent=11 // pred_fallthru
          _
        // Predicated region
        $region45: #{decouple_net_forward.1} parent=11 // pred_check
          %p785 = pneg %p605
        $region46: #{decouple_net_forward.1} parent=11 // pred_check_branch
          %787 = sbr.rel (%p785) target = $region48
        $region47: #{decouple_net_forward.1} parent=11 // pred_region
          _
        $region48: #{decouple_net_forward.1} parent=11 // pred_fallthru
          _
        // Predicated region
        $region49: #{decouple_net_forward.1} parent=11 // pred_check
          %p788 = pneg %p626
        $region50: #{decouple_net_forward.1} parent=11 // pred_check_branch
          %790 = sbr.rel (%p788) target = $region52
        $region51: #{decouple_net_forward.1} parent=11 // pred_region
          %s792 = ssub.s32 16, 16
          %793 = vsyncadd [#allocation28], %s792
          %s795 = sshll.u32 [#allocation27], 4
          %s796 = int_to_ptr.vmem [resolvable:$true] %s795
          %798 = dma.hbm_to_vmem [thread:$0]  %s23, 16, %s796, [#allocation28]
        $region52: #{decouple_net_forward.1} parent=11 // pred_fallthru
          _
      $region12: #{decouple_net_forward.1} parent=5 // pred_fallthru
        _
      %p799 = scmp.lt.s32.totalorder %s52, 2
      // Predicated region
      $region53: #{decouple_net_forward.1} parent=5 // pred_check
        %p800 = pneg %p799
      $region54: #{decouple_net_forward.1} parent=5 // pred_check_branch
        %802 = sbr.rel (%p800) target = $region56
      $region55: #{decouple_net_forward.1} parent=5 // pred_region
        // Predicated region
        $region57: #{decouple_net_forward.1} parent=55 // pred_check
          %p803 = pneg %p219
        $region58: #{decouple_net_forward.1} parent=55 // pred_check_branch
          %805 = sbr.rel (%p803) target = $region60
        $region59: #{decouple_net_forward.1} parent=55 // pred_region
          %p806 = scmp.lt.s32.totalorder %s52, 1
          %s807 = scalar_select %p806, %s52, 1
          %s808 = smul.addr %s807, 16
          %s809 = smul.addr %s808, 8
          %s810 = scalar_lea.vmem %s7, %s809
        $region60: #{decouple_net_forward.1} parent=55 // pred_fallthru
          _
        // Predicated region
        $region61: #{decouple_net_forward.1} parent=55 // pred_check
          %p811 = pneg %p245
        $region62: #{decouple_net_forward.1} parent=55 // pred_check_branch
          %813 = sbr.rel (%p811) target = $region64
        $region63: #{decouple_net_forward.1} parent=55 // pred_region
          %s814 = sand.u32 %s52, 1
          %s815 = scalar_lea.sflag [#allocation13], %s814
          %s816 = sand.u32 %s235, 1
          %s817 = smul.addr %s816, 128
          %s818 = scalar_lea.vmem [#allocation12], %s817
          %s820 = ssub.s32 2048, 2048
          %821 = vsyncadd %s815, %s820
          %s822 = smul.addr %s52, 16
          %s823 = smul.addr %s822, 128
          %s824 = scalar_lea.hbm %s8, %s823
          %s825 = sshll.u32 %s818, 4
          %s826 = int_to_ptr.vmem [resolvable:$true] %s825
          %831 = dma.hbm_to_vmem [thread:$0]  %s824, 2048, %s826, %s815, 256, 256, 16
        $region64: #{decouple_net_forward.1} parent=55 // pred_fallthru
          _
        // Predicated region
        $region65: #{decouple_net_forward.1} parent=55 // pred_check
          %p832 = pneg %p271
        $region66: #{decouple_net_forward.1} parent=55 // pred_check_branch
          %834 = sbr.rel (%p832) target = $region68
        $region67: #{decouple_net_forward.1} parent=55 // pred_region
          %p835 = scmp.lt.s32.totalorder %s52, 1
          %s836 = scalar_select %p835, %s52, 1
          %s837 = smul.addr %s836, 2
          %s838 = scalar_lea.vmem %s9, %s837
        $region68: #{decouple_net_forward.1} parent=55 // pred_fallthru
          _
        // Predicated region
        $region69: #{decouple_net_forward.1} parent=55 // pred_check
          %p839 = pneg %p297
        $region70: #{decouple_net_forward.1} parent=55 // pred_check_branch
          %841 = sbr.rel (%p839) target = $region72
        $region71: #{decouple_net_forward.1} parent=55 // pred_region
          %s842 = sand.u32 %s52, 1
          %s843 = scalar_lea.sflag [#allocation13], %s842
          %s844 = sand.u32 %s287, 1
          %s845 = smul.addr %s844, 2
          %s846 = scalar_lea.vmem [#allocation14], %s845
          %s848 = ssub.s32 32, 32
          %849 = vsyncadd %s843, %s848
          %s850 = smul.addr %s52, 2
          %s851 = smul.addr %s850, 16
          %s852 = scalar_lea.hbm %s10, %s851
          %s854 = sshll.u32 %s846, 4
          %s855 = int_to_ptr.vmem [resolvable:$true] %s854
          %857 = dma.hbm_to_vmem [thread:$0]  %s852, 32, %s855, %s843
        $region72: #{decouple_net_forward.1} parent=55 // pred_fallthru
          _
        // Predicated region
        $region73: #{decouple_net_forward.1} parent=55 // pred_check
          %p858 = pneg %p344
        $region74: #{decouple_net_forward.1} parent=55 // pred_check_branch
          %860 = sbr.rel (%p858) target = $region76
        $region75: #{decouple_net_forward.1} parent=55 // pred_region
          %p861 = scmp.lt.s32.totalorder %s52, 1
          %s862 = scalar_select %p861, %s52, 1
          %s863 = smul.addr %s862, 24
          %s864 = smul.addr %s863, 8
          %s865 = scalar_lea.vmem %s12, %s864
        $region76: #{decouple_net_forward.1} parent=55 // pred_fallthru
          _
        // Predicated region
        $region77: #{decouple_net_forward.1} parent=55 // pred_check
          %p866 = pneg %p370
        $region78: #{decouple_net_forward.1} parent=55 // pred_check_branch
          %868 = sbr.rel (%p866) target = $region80
        $region79: #{decouple_net_forward.1} parent=55 // pred_region
          %p869 = scmp.lt.s32.totalorder %s52, 1
          %s870 = scalar_select %p869, %s52, 1
          %s871 = scalar_lea.vmem %s13, %s870
        $region80: #{decouple_net_forward.1} parent=55 // pred_fallthru
          _
        // Predicated region
        $region81: #{decouple_net_forward.1} parent=55 // pred_check
          %p872 = pneg %p396
        $region82: #{decouple_net_forward.1} parent=55 // pred_check_branch
          %874 = sbr.rel (%p872) target = $region84
        $region83: #{decouple_net_forward.1} parent=55 // pred_region
          %s875 = sand.u32 %s52, 1
          %s876 = scalar_lea.sflag [#allocation16], %s875
          %s877 = sand.u32 %s386, 1
          %s878 = scalar_lea.vmem [#allocation15], %s877
          %s880 = ssub.s32 16, 16
          %881 = vsyncadd %s876, %s880
          %s882 = smul.addr %s52, 16
          %s883 = scalar_lea.hbm %s14, %s882
          %s885 = sshll.u32 %s878, 4
          %s886 = int_to_ptr.vmem [resolvable:$true] %s885
          %888 = dma.hbm_to_vmem [thread:$0]  %s883, 16, %s886, %s876
        $region84: #{decouple_net_forward.1} parent=55 // pred_fallthru
          _
        // Predicated region
        $region85: #{decouple_net_forward.1} parent=55 // pred_check
          %p889 = pneg %p422
        $region86: #{decouple_net_forward.1} parent=55 // pred_check_branch
          %891 = sbr.rel (%p889) target = $region88
        $region87: #{decouple_net_forward.1} parent=55 // pred_region
          %s892 = sand.u32 %s52, 1
          %s893 = scalar_lea.sflag [#allocation16], %s892
          %s894 = sand.u32 %s412, 1
          %s895 = scalar_lea.vmem [#allocation17], %s894
          %s897 = ssub.s32 16, 16
          %898 = vsyncadd %s893, %s897
          %s899 = smul.addr %s52, 16
          %s900 = scalar_lea.hbm %s15, %s899
          %s902 = sshll.u32 %s895, 4
          %s903 = int_to_ptr.vmem [resolvable:$true] %s902
          %905 = dma.hbm_to_vmem [thread:$0]  %s900, 16, %s903, %s893
        $region88: #{decouple_net_forward.1} parent=55 // pred_fallthru
          _
        // Predicated region
        $region89: #{decouple_net_forward.1} parent=55 // pred_check
          %p906 = pneg %p448
        $region90: #{decouple_net_forward.1} parent=55 // pred_check_branch
          %908 = sbr.rel (%p906) target = $region92
        $region91: #{decouple_net_forward.1} parent=55 // pred_region
          %s909 = sand.u32 %s52, 1
          %s910 = scalar_lea.sflag [#allocation19], %s909
          %s911 = sand.u32 %s438, 1
          %s912 = smul.addr %s911, 768
          %s913 = scalar_lea.vmem [#allocation18], %s912
          %s915 = ssub.s32 12288, 12288
          %916 = vsyncadd %s910, %s915
          %s917 = smul.addr %s52, 96
          %s918 = smul.addr %s917, 128
          %s919 = scalar_lea.hbm %s16, %s918
          %s920 = sshll.u32 %s913, 4
          %s921 = int_to_ptr.vmem [resolvable:$true] %s920
          %926 = dma.hbm_to_vmem [thread:$0]  %s919, 12288, %s921, %s910, 256, 256, 16
        $region92: #{decouple_net_forward.1} parent=55 // pred_fallthru
          _
        // Predicated region
        $region93: #{decouple_net_forward.1} parent=55 // pred_check
          %p927 = pneg %p474
        $region94: #{decouple_net_forward.1} parent=55 // pred_check_branch
          %929 = sbr.rel (%p927) target = $region96
        $region95: #{decouple_net_forward.1} parent=55 // pred_region
          %s930 = sand.u32 %s52, 1
          %s931 = scalar_lea.sflag [#allocation19], %s930
          %s932 = sand.u32 %s464, 1
          %s933 = smul.addr %s932, 2
          %s934 = scalar_lea.vmem [#allocation20], %s933
          %s936 = ssub.s32 32, 32
          %937 = vsyncadd %s931, %s936
          %s938 = smul.addr %s52, 2
          %s939 = smul.addr %s938, 16
          %s940 = scalar_lea.hbm %s17, %s939
          %s942 = sshll.u32 %s934, 4
          %s943 = int_to_ptr.vmem [resolvable:$true] %s942
          %945 = dma.hbm_to_vmem [thread:$0]  %s940, 32, %s943, %s931
        $region96: #{decouple_net_forward.1} parent=55 // pred_fallthru
          _
        // Predicated region
        $region97: #{decouple_net_forward.1} parent=55 // pred_check
          %p946 = pneg %p500
        $region98: #{decouple_net_forward.1} parent=55 // pred_check_branch
          %948 = sbr.rel (%p946) target = $region100
        $region99: #{decouple_net_forward.1} parent=55 // pred_region
          %s949 = sand.u32 %s52, 1
          %s950 = scalar_lea.sflag [#allocation22], %s949
          %s951 = sand.u32 %s490, 1
          %s952 = smul.addr %s951, 2
          %s953 = scalar_lea.vmem [#allocation21], %s952
          %s955 = ssub.s32 32, 32
          %956 = vsyncadd %s950, %s955
          %s957 = smul.addr %s52, 2
          %s958 = smul.addr %s957, 16
          %s959 = scalar_lea.hbm %s18, %s958
          %s961 = sshll.u32 %s953, 4
          %s962 = int_to_ptr.vmem [resolvable:$true] %s961
          %964 = dma.hbm_to_vmem [thread:$0]  %s959, 32, %s962, %s950
        $region100: #{decouple_net_forward.1} parent=55 // pred_fallthru
          _
        // Predicated region
        $region101: #{decouple_net_forward.1} parent=55 // pred_check
          %p965 = pneg %p526
        $region102: #{decouple_net_forward.1} parent=55 // pred_check_branch
          %967 = sbr.rel (%p965) target = $region104
        $region103: #{decouple_net_forward.1} parent=55 // pred_region
          %s968 = sand.u32 %s52, 1
          %s969 = scalar_lea.sflag [#allocation22], %s968
          %s970 = sand.u32 %s516, 1
          %s971 = smul.addr %s970, 2
          %s972 = scalar_lea.vmem [#allocation23], %s971
          %s974 = ssub.s32 32, 32
          %975 = vsyncadd %s969, %s974
          %s976 = smul.addr %s52, 2
          %s977 = smul.addr %s976, 16
          %s978 = scalar_lea.hbm %s19, %s977
          %s980 = sshll.u32 %s972, 4
          %s981 = int_to_ptr.vmem [resolvable:$true] %s980
          %983 = dma.hbm_to_vmem [thread:$0]  %s978, 32, %s981, %s969
        $region104: #{decouple_net_forward.1} parent=55 // pred_fallthru
          _
        // Predicated region
        $region105: #{decouple_net_forward.1} parent=55 // pred_check
          %p984 = pneg %p552
        $region106: #{decouple_net_forward.1} parent=55 // pred_check_branch
          %986 = sbr.rel (%p984) target = $region108
        $region107: #{decouple_net_forward.1} parent=55 // pred_region
          %s987 = sand.u32 %s52, 1
          %s988 = scalar_lea.sflag [#allocation25], %s987
          %s989 = sand.u32 %s542, 1
          %s990 = smul.addr %s989, 1024
          %s991 = scalar_lea.vmem [#allocation24], %s990
          %s993 = ssub.s32 16384, 16384
          %994 = vsyncadd %s988, %s993
          %s995 = smul.addr %s52, 128
          %s996 = smul.addr %s995, 128
          %s997 = scalar_lea.hbm %s20, %s996
          %s998 = sshll.u32 %s991, 4
          %s999 = int_to_ptr.vmem [resolvable:$true] %s998
          %1004 = dma.hbm_to_vmem [thread:$0]  %s997, 16384, %s999, %s988, 512, 512, 32
        $region108: #{decouple_net_forward.1} parent=55 // pred_fallthru
          _
        // Predicated region
        $region109: #{decouple_net_forward.1} parent=55 // pred_check
          %p1005 = pneg %p578
        $region110: #{decouple_net_forward.1} parent=55 // pred_check_branch
          %1007 = sbr.rel (%p1005) target = $region112
        $region111: #{decouple_net_forward.1} parent=55 // pred_region
          %s1008 = sand.u32 %s52, 1
          %s1009 = scalar_lea.sflag [#allocation25], %s1008
          %s1010 = sand.u32 %s568, 1
          %s1011 = smul.addr %s1010, 4
          %s1012 = scalar_lea.vmem [#allocation26], %s1011
          %s1014 = ssub.s32 64, 64
          %1015 = vsyncadd %s1009, %s1014
          %s1016 = smul.addr %s52, 4
          %s1017 = smul.addr %s1016, 16
          %s1018 = scalar_lea.hbm %s21, %s1017
          %s1020 = sshll.u32 %s1012, 4
          %s1021 = int_to_ptr.vmem [resolvable:$true] %s1020
          %1023 = dma.hbm_to_vmem [thread:$0]  %s1018, 64, %s1021, %s1009
        $region112: #{decouple_net_forward.1} parent=55 // pred_fallthru
          _
      $region56: #{decouple_net_forward.1} parent=5 // pred_fallthru
        _
      %p1024 = scmp.le.s32.totalorder 1, %s52
      %p1025 = scmp.lt.s32.totalorder %s52, 3
      %p1026 = pnand %p1024, %p1025
      %p1027 = pneg %p1026
      // Predicated region
      $region113: #{decouple_net_forward.1} parent=5 // pred_check
        _
      $region114: #{decouple_net_forward.1} parent=5 // pred_check_branch
        %1029 = sbr.rel (%p1026) target = $region116
      $region115: #{decouple_net_forward.1} parent=5 // pred_region
        %s1030 = ssub.s32 %s52, 1
        // Predicated region
        $region117: #{decouple_net_forward.1} parent=115 // pred_check
          %p1031 = pneg %p115
        $region118: #{decouple_net_forward.1} parent=115 // pred_check_branch
          %1033 = sbr.rel (%p1031) target = $region120
        $region119: #{decouple_net_forward.1} parent=115 // pred_region
          %1034 = dma.done [#allocation5], 32
        $region120: #{decouple_net_forward.1} parent=115 // pred_fallthru
          _
        // Predicated region
        $region121: #{decouple_net_forward.1} parent=115 // pred_check
          %p1035 = pneg %p136
        $region122: #{decouple_net_forward.1} parent=115 // pred_check_branch
          %1037 = sbr.rel (%p1035) target = $region124
        $region123: #{decouple_net_forward.1} parent=115 // pred_region
          %1038 = dma.done [#allocation7], 1920
        $region124: #{decouple_net_forward.1} parent=115 // pred_fallthru
          _
        // Predicated region
        $region125: #{decouple_net_forward.1} parent=115 // pred_check
          %p1039 = pneg %p157
        $region126: #{decouple_net_forward.1} parent=115 // pred_check_branch
          %1041 = sbr.rel (%p1039) target = $region128
        $region127: #{decouple_net_forward.1} parent=115 // pred_region
          %1042 = dma.done [#allocation7], 16
        $region128: #{decouple_net_forward.1} parent=115 // pred_fallthru
          _
        // Predicated region
        $region129: #{decouple_net_forward.1} parent=115 // pred_check
          %p1043 = pneg %p178
        $region130: #{decouple_net_forward.1} parent=115 // pred_check_branch
          %1045 = sbr.rel (%p1043) target = $region132
        $region131: #{decouple_net_forward.1} parent=115 // pred_region
          %1046 = dma.done [#allocation10], 16
        $region132: #{decouple_net_forward.1} parent=115 // pred_fallthru
          _
        // Predicated region
        $region133: #{decouple_net_forward.1} parent=115 // pred_check
          %p1047 = pneg %p199
        $region134: #{decouple_net_forward.1} parent=115 // pred_check_branch
          %1049 = sbr.rel (%p1047) target = $region136
        $region135: #{decouple_net_forward.1} parent=115 // pred_region
          %1050 = dma.done [#allocation10], 16
        $region136: #{decouple_net_forward.1} parent=115 // pred_fallthru
          _
        %s1051 = sand.u32 %s57, 1
        %s1052 = scalar_lea.sflag [#allocation13], %s1051
        %s1053 = sand.u32 %s238, 1
        %s1054 = smul.addr %s1053, 128
        %s1055 = scalar_lea.vmem [#allocation12], %s1054
        // Predicated region
        $region137: #{decouple_net_forward.1} parent=115 // pred_check
          %p1056 = pneg %p251
        $region138: #{decouple_net_forward.1} parent=115 // pred_check_branch
          %1058 = sbr.rel (%p1056) target = $region140
        $region139: #{decouple_net_forward.1} parent=115 // pred_region
          %1059 = dma.done %s1052, 2048
        $region140: #{decouple_net_forward.1} parent=115 // pred_fallthru
          _
        %s1060 = sand.u32 %s57, 1
        %s1061 = scalar_lea.sflag [#allocation13], %s1060
        %s1062 = sand.u32 %s290, 1
        %s1063 = smul.addr %s1062, 2
        %s1064 = scalar_lea.vmem [#allocation14], %s1063
        // Predicated region
        $region141: #{decouple_net_forward.1} parent=115 // pred_check
          %p1065 = pneg %p303
        $region142: #{decouple_net_forward.1} parent=115 // pred_check_branch
          %1067 = sbr.rel (%p1065) target = $region144
        $region143: #{decouple_net_forward.1} parent=115 // pred_region
          %1068 = dma.done %s1061, 32
        $region144: #{decouple_net_forward.1} parent=115 // pred_fallthru
          _
        %s1069 = sand.u32 %s57, 1
        %s1070 = scalar_lea.sflag [#allocation16], %s1069
        %s1071 = sand.u32 %s389, 1
        %s1072 = scalar_lea.vmem [#allocation15], %s1071
        // Predicated region
        $region145: #{decouple_net_forward.1} parent=115 // pred_check
          %p1073 = pneg %p402
        $region146: #{decouple_net_forward.1} parent=115 // pred_check_branch
          %1075 = sbr.rel (%p1073) target = $region148
        $region147: #{decouple_net_forward.1} parent=115 // pred_region
          %1076 = dma.done %s1070, 16
        $region148: #{decouple_net_forward.1} parent=115 // pred_fallthru
          _
        %s1077 = sand.u32 %s57, 1
        %s1078 = scalar_lea.sflag [#allocation16], %s1077
        %s1079 = sand.u32 %s415, 1
        %s1080 = scalar_lea.vmem [#allocation17], %s1079
        // Predicated region
        $region149: #{decouple_net_forward.1} parent=115 // pred_check
          %p1081 = pneg %p428
        $region150: #{decouple_net_forward.1} parent=115 // pred_check_branch
          %1083 = sbr.rel (%p1081) target = $region152
        $region151: #{decouple_net_forward.1} parent=115 // pred_region
          %1084 = dma.done %s1078, 16
        $region152: #{decouple_net_forward.1} parent=115 // pred_fallthru
          _
        %s1085 = sand.u32 %s57, 1
        %s1086 = scalar_lea.sflag [#allocation19], %s1085
        %s1087 = sand.u32 %s441, 1
        %s1088 = smul.addr %s1087, 768
        %s1089 = scalar_lea.vmem [#allocation18], %s1088
        // Predicated region
        $region153: #{decouple_net_forward.1} parent=115 // pred_check
          %p1090 = pneg %p454
        $region154: #{decouple_net_forward.1} parent=115 // pred_check_branch
          %1092 = sbr.rel (%p1090) target = $region156
        $region155: #{decouple_net_forward.1} parent=115 // pred_region
          %1093 = dma.done %s1086, 12288
        $region156: #{decouple_net_forward.1} parent=115 // pred_fallthru
          _
        %s1094 = sand.u32 %s57, 1
        %s1095 = scalar_lea.sflag [#allocation19], %s1094
        %s1096 = sand.u32 %s467, 1
        %s1097 = smul.addr %s1096, 2
        %s1098 = scalar_lea.vmem [#allocation20], %s1097
        // Predicated region
        $region157: #{decouple_net_forward.1} parent=115 // pred_check
          %p1099 = pneg %p480
        $region158: #{decouple_net_forward.1} parent=115 // pred_check_branch
          %1101 = sbr.rel (%p1099) target = $region160
        $region159: #{decouple_net_forward.1} parent=115 // pred_region
          %1102 = dma.done %s1095, 32
        $region160: #{decouple_net_forward.1} parent=115 // pred_fallthru
          _
        %s1103 = sand.u32 %s57, 1
        %s1104 = scalar_lea.sflag [#allocation22], %s1103
        %s1105 = sand.u32 %s493, 1
        %s1106 = smul.addr %s1105, 2
        %s1107 = scalar_lea.vmem [#allocation21], %s1106
        // Predicated region
        $region161: #{decouple_net_forward.1} parent=115 // pred_check
          %p1108 = pneg %p506
        $region162: #{decouple_net_forward.1} parent=115 // pred_check_branch
          %1110 = sbr.rel (%p1108) target = $region164
        $region163: #{decouple_net_forward.1} parent=115 // pred_region
          %1111 = dma.done %s1104, 32
        $region164: #{decouple_net_forward.1} parent=115 // pred_fallthru
          _
        %s1112 = sand.u32 %s57, 1
        %s1113 = scalar_lea.sflag [#allocation22], %s1112
        %s1114 = sand.u32 %s519, 1
        %s1115 = smul.addr %s1114, 2
        %s1116 = scalar_lea.vmem [#allocation23], %s1115
        // Predicated region
        $region165: #{decouple_net_forward.1} parent=115 // pred_check
          %p1117 = pneg %p532
        $region166: #{decouple_net_forward.1} parent=115 // pred_check_branch
          %1119 = sbr.rel (%p1117) target = $region168
        $region167: #{decouple_net_forward.1} parent=115 // pred_region
          %1120 = dma.done %s1113, 32
        $region168: #{decouple_net_forward.1} parent=115 // pred_fallthru
          _
        %s1121 = sand.u32 %s57, 1
        %s1122 = scalar_lea.sflag [#allocation25], %s1121
        %s1123 = sand.u32 %s545, 1
        %s1124 = smul.addr %s1123, 1024
        %s1125 = scalar_lea.vmem [#allocation24], %s1124
        // Predicated region
        $region169: #{decouple_net_forward.1} parent=115 // pred_check
          %p1126 = pneg %p558
        $region170: #{decouple_net_forward.1} parent=115 // pred_check_branch
          %1128 = sbr.rel (%p1126) target = $region172
        $region171: #{decouple_net_forward.1} parent=115 // pred_region
          %1129 = dma.done %s1122, 16384
        $region172: #{decouple_net_forward.1} parent=115 // pred_fallthru
          _
        %s1130 = sand.u32 %s57, 1
        %s1131 = scalar_lea.sflag [#allocation25], %s1130
        %s1132 = sand.u32 %s571, 1
        %s1133 = smul.addr %s1132, 4
        %s1134 = scalar_lea.vmem [#allocation26], %s1133
        // Predicated region
        $region173: #{decouple_net_forward.1} parent=115 // pred_check
          %p1135 = pneg %p584
        $region174: #{decouple_net_forward.1} parent=115 // pred_check_branch
          %1137 = sbr.rel (%p1135) target = $region176
        $region175: #{decouple_net_forward.1} parent=115 // pred_region
          %1138 = dma.done %s1131, 64
        $region176: #{decouple_net_forward.1} parent=115 // pred_fallthru
          _
        // Predicated region
        $region177: #{decouple_net_forward.1} parent=115 // pred_check
          %p1139 = pneg %p626
        $region178: #{decouple_net_forward.1} parent=115 // pred_check_branch
          %1141 = sbr.rel (%p1139) target = $region180
        $region179: #{decouple_net_forward.1} parent=115 // pred_region
          %1142 = dma.done [#allocation28], 16
        $region180: #{decouple_net_forward.1} parent=115 // pred_fallthru
          _
        %p1143 = pneg %p73
        %p1144 = pneg %p70
        %p1145 = pneg %p94
        %p1146 = pneg %p91
        %p1147 = pneg %p115
        %p1148 = pneg %p112
        %p1149 = pneg %p136
        %p1150 = pneg %p133
        %p1151 = pneg %p157
        %p1152 = pneg %p154
        %p1153 = pneg %p178
        %p1154 = pneg %p175
        %p1155 = pneg %p199
        %p1156 = pneg %p196
        %p1157 = scmp.lt.s32.totalorder %s57, 1
        %s1158 = scalar_select %p1157, %s57, 1
        %s1159 = smul.addr %s1158, 16
        %s1160 = smul.addr %s1159, 8
        %s1161 = scalar_lea.vmem %s7, %s1160
        %p1162 = pneg %p225
        %p1163 = pneg %p222
        %s1164 = sand.u32 %s57, 1
        %s1165 = scalar_lea.sflag [#allocation13], %s1164
        %s1166 = sand.u32 %s238, 1
        %s1167 = smul.addr %s1166, 128
        %s1168 = scalar_lea.vmem [#allocation12], %s1167
        %p1169 = pneg %p251
        %p1170 = pneg %p248
        %p1171 = scmp.lt.s32.totalorder %s57, 1
        %s1172 = scalar_select %p1171, %s57, 1
        %s1173 = smul.addr %s1172, 2
        %s1174 = scalar_lea.vmem %s9, %s1173
        %p1175 = pneg %p277
        %p1176 = pneg %p274
        %s1177 = sand.u32 %s57, 1
        %s1178 = scalar_lea.sflag [#allocation13], %s1177
        %s1179 = sand.u32 %s290, 1
        %s1180 = smul.addr %s1179, 2
        %s1181 = scalar_lea.vmem [#allocation14], %s1180
        %p1182 = pneg %p303
        %p1183 = pneg %p300
        %p1184 = pneg %p324
        %p1185 = pneg %p321
        %p1186 = scmp.lt.s32.totalorder %s57, 1
        %s1187 = scalar_select %p1186, %s57, 1
        %s1188 = smul.addr %s1187, 24
        %s1189 = smul.addr %s1188, 8
        %s1190 = scalar_lea.vmem %s12, %s1189
        %p1191 = pneg %p350
        %p1192 = pneg %p347
        %p1193 = scmp.lt.s32.totalorder %s57, 1
        %s1194 = scalar_select %p1193, %s57, 1
        %s1195 = scalar_lea.vmem %s13, %s1194
        %p1196 = pneg %p376
        %p1197 = pneg %p373
        %s1198 = sand.u32 %s57, 1
        %s1199 = scalar_lea.sflag [#allocation16], %s1198
        %s1200 = sand.u32 %s389, 1
        %s1201 = scalar_lea.vmem [#allocation15], %s1200
        %p1202 = pneg %p402
        %p1203 = pneg %p399
        %s1204 = sand.u32 %s57, 1
        %s1205 = scalar_lea.sflag [#allocation16], %s1204
        %s1206 = sand.u32 %s415, 1
        %s1207 = scalar_lea.vmem [#allocation17], %s1206
        %p1208 = pneg %p428
        %p1209 = pneg %p425
        %s1210 = sand.u32 %s57, 1
        %s1211 = scalar_lea.sflag [#allocation19], %s1210
        %s1212 = sand.u32 %s441, 1
        %s1213 = smul.addr %s1212, 768
        %s1214 = scalar_lea.vmem [#allocation18], %s1213
        %p1215 = pneg %p454
        %p1216 = pneg %p451
        %s1217 = sand.u32 %s57, 1
        %s1218 = scalar_lea.sflag [#allocation19], %s1217
        %s1219 = sand.u32 %s467, 1
        %s1220 = smul.addr %s1219, 2
        %s1221 = scalar_lea.vmem [#allocation20], %s1220
        %p1222 = pneg %p480
        %p1223 = pneg %p477
        %s1224 = sand.u32 %s57, 1
        %s1225 = scalar_lea.sflag [#allocation22], %s1224
        %s1226 = sand.u32 %s493, 1
        %s1227 = smul.addr %s1226, 2
        %s1228 = scalar_lea.vmem [#allocation21], %s1227
        %p1229 = pneg %p506
        %p1230 = pneg %p503
        %s1231 = sand.u32 %s57, 1
        %s1232 = scalar_lea.sflag [#allocation22], %s1231
        %s1233 = sand.u32 %s519, 1
        %s1234 = smul.addr %s1233, 2
        %s1235 = scalar_lea.vmem [#allocation23], %s1234
        %p1236 = pneg %p532
        %p1237 = pneg %p529
        %s1238 = sand.u32 %s57, 1
        %s1239 = scalar_lea.sflag [#allocation25], %s1238
        %s1240 = sand.u32 %s545, 1
        %s1241 = smul.addr %s1240, 1024
        %s1242 = scalar_lea.vmem [#allocation24], %s1241
        %p1243 = pneg %p558
        %p1244 = pneg %p555
        %s1245 = sand.u32 %s57, 1
        %s1246 = scalar_lea.sflag [#allocation25], %s1245
        %s1247 = sand.u32 %s571, 1
        %s1248 = smul.addr %s1247, 4
        %s1249 = scalar_lea.vmem [#allocation26], %s1248
        %p1250 = pneg %p584
        %p1251 = pneg %p581
        %p1252 = pneg %p605
        %p1253 = pneg %p602
        %p1254 = pneg %p626
        %p1255 = pneg %p623
        %p1256 = pneg %p652
        %p1257 = pneg %p649
        %p1258 = scmp.lt.s32.totalorder %s57, 1
        %s1259 = scalar_select %p1258, %s57, 1
        %s1260 = smul.addr %s1259, 4
        %s1261 = smul.addr %s1260, 2
        %s1262 = scalar_lea.vmem %s24, %s1261
        %p1263 = pneg %p678
        %p1264 = pneg %p675
        %p1265 = scmp.lt.s32.totalorder %s57, 1
        %s1266 = scalar_select %p1265, %s57, 1
        %s1267 = smul.addr %s1266, 2
        %s1268 = scalar_lea.vmem %s25, %s1267
        %p1269 = pneg %p704
        %p1270 = pneg %p701
        %p1271 = scmp.lt.s32.totalorder %s57, 1
        %s1272 = scalar_select %p1271, %s57, 1
        %s1273 = scalar_lea.vmem %s26, %s1272
        %p1274 = scmp.lt.s32.totalorder %s57, 1
        %s1275 = scalar_select %p1274, %s57, 1
        %s1276 = smul.addr %s1275, 16
        %s1277 = smul.addr %s1276, 8
        %s1278 = scalar_lea.vmem %s7, %s1277
        %p1279 = scmp.lt.s32.totalorder %s57, 1
        %s1280 = scalar_select %p1279, %s57, 1
        %s1281 = smul.addr %s1280, 2
        %s1282 = scalar_lea.vmem %s9, %s1281
        %p1283 = scmp.lt.s32.totalorder %s57, 1
        %s1284 = scalar_select %p1283, %s57, 1
        %s1285 = smul.addr %s1284, 24
        %s1286 = smul.addr %s1285, 8
        %s1287 = scalar_lea.vmem %s12, %s1286
        %p1288 = scmp.lt.s32.totalorder %s57, 1
        %s1289 = scalar_select %p1288, %s57, 1
        %s1290 = scalar_lea.vmem %s13, %s1289
        %p1291 = scmp.lt.s32.totalorder %s57, 1
        %s1292 = scalar_select %p1291, %s57, 1
        %s1293 = smul.addr %s1292, 4
        %s1294 = smul.addr %s1293, 2
        %s1295 = scalar_lea.vmem %s24, %s1294
        %p1296 = scmp.lt.s32.totalorder %s57, 1
        %s1297 = scalar_select %p1296, %s57, 1
        %s1298 = smul.addr %s1297, 2
        %s1299 = scalar_lea.vmem %s25, %s1298
        %p1300 = scmp.lt.s32.totalorder %s57, 1
        %s1301 = scalar_select %p1300, %s57, 1
        %s1302 = scalar_lea.vmem %s26, %s1301
        %v1303 = vld [vmem:[%s1] sm:$0xff]
        %v1304 = vld [vmem:[%s1 + $0x8] sm:$0xff]
        %v1305 = vld [vmem:[%s1 + $0x10] sm:$0xff]
        %v1306 = vld [vmem:[%s1 + $0x18] sm:$0xff]
        %v1307 = vld [vmem:[%s0] sm:$0xff]
        %v1308 = vld [vmem:[%s0 + $0x8] sm:$0xff]
        %v1309 = vld [vmem:[%s0 + $0x10] sm:$0xff]
        %v1310 = vld [vmem:[%s0 + $0x18] sm:$0xff]
        %v1311 = vld [vmem:[#allocation6] sm:$0xff]
        %v1312 = vld [vmem:[#allocation6 + $0x8] sm:$0xff]
        %v1313 = vld [vmem:[#allocation6 + $0x10] sm:$0xff]
        %v1314 = vld [vmem:[#allocation6 + $0x18] sm:$0xff]
        %v1315 = vld [vmem:[#allocation6 + $0x20] sm:$0xff]
        %v1316 = vld [vmem:[#allocation6 + $0x28] sm:$0xff]
        %v1317 = vld [vmem:[#allocation6 + $0x30] sm:$0xff]
        %v1318 = vld [vmem:[#allocation6 + $0x38] sm:$0xff]
        %v1319 = vld [vmem:[#allocation6 + $0x40] sm:$0xff]
        %v1320 = vld [vmem:[#allocation6 + $0x48] sm:$0xff]
        %v1321 = vld [vmem:[#allocation6 + $0x50] sm:$0xff]
        %v1322 = vld [vmem:[#allocation6 + $0x58] sm:$0xff]
        %v1323 = vld [vmem:[#allocation6 + $0x60] sm:$0xff]
        %v1324 = vld [vmem:[#allocation6 + $0x68] sm:$0xff]
        %v1325 = vld [vmem:[#allocation6 + $0x70] sm:$0xff]
        %v1326 = vld [vmem:[#allocation8] sm:$0x1]
        %v1327 = vld [vmem:[#allocation9] sm:$0x1]
        %v1328 = vld [vmem:[#allocation11] sm:$0x1]
        %v1329 = vrot.slane %v1307, 6
        %v1330 = vrot.slane %v1308, 6
        %v1331 = vrot.slane %v1309, 6
        %v1332 = vrot.slane %v1310, 6
        %v1333 = vlaneseq
        %v1334 = vshrl.u32 %v1333, 7
        %vm1335 = vcmp.lt.s32.totalorder %v1334, 2
        %v1336 = vsel %vm1335, %v1331, %v1332
        %v1337 = vsel %vm1335, %v1330, %v1331
        %v1338 = vsel %vm1335, %v1329, %v1330
        %v1339 = vsel %vm1335, %v1332, %v1329
        %1341 = vset.pattern.permute.xlu0 0
        %1342 = vperm.xlu0 %1341, %v1303
        %v1343 = vpop.permute.xlu0 %1342
        %1346 = vset.pattern.permute.xlu0 0
        %1347 = vperm.xlu0 %1346, %v1304
        %v1348 = vpop.permute.xlu0 %1347
        %1351 = vset.pattern.permute.xlu0 0
        %1352 = vperm.xlu0 %1351, %v1305
        %v1353 = vpop.permute.xlu0 %1352
        %1356 = vset.pattern.permute.xlu0 0
        %1357 = vperm.xlu0 %1356, %v1306
        %v1358 = vpop.permute.xlu0 %1357
        %v1360 = vmul.f32 %v1339, %v1343
        %v1361 = vmul.f32 %v1338, %v1348
        %v1362 = vmul.f32 %v1337, %v1353
        %v1363 = vmul.f32 %v1336, %v1358
        %v1364 = vrot.slane %v1307, 2
        %v1365 = vrot.slane %v1308, 2
        %v1366 = vrot.slane %v1309, 2
        %v1367 = vrot.slane %v1310, 2
        %vm1368 = vcmp.lt.s32.totalorder %v1334, 6
        %v1369 = vsel %vm1368, %v1366, %v1367
        %v1370 = vsel %vm1368, %v1365, %v1366
        %v1371 = vsel %vm1368, %v1364, %v1365
        %v1372 = vsel %vm1368, %v1367, %v1364
        %1373 = vset.pattern.permute.xlu0 1
        %1374 = vperm.xlu0 %1373, %v1303
        %v1375 = vpop.permute.xlu0 %1374
        %1377 = vset.pattern.permute.xlu0 1
        %1378 = vperm.xlu0 %1377, %v1304
        %v1379 = vpop.permute.xlu0 %1378
        %1381 = vset.pattern.permute.xlu0 1
        %1382 = vperm.xlu0 %1381, %v1305
        %v1383 = vpop.permute.xlu0 %1382
        %1385 = vset.pattern.permute.xlu0 1
        %1386 = vperm.xlu0 %1385, %v1306
        %v1387 = vpop.permute.xlu0 %1386
        %v1389 = vmul.f32 %v1371, %v1375
        %v1390 = vmul.f32 %v1370, %v1379
        %v1391 = vmul.f32 %v1369, %v1383
        %v1392 = vmul.f32 %v1372, %v1387
        %vm1393 = vcmask 326656
        %v1395 = vsel %vm1393, %v1307, 0
        %v1398 = vsel %vm1393, %v1308, 0
        %v1401 = vsel %vm1393, %v1309, 0
        %v1404 = vsel %vm1393, %v1310, 0
        %1406 = vmatprep.subr.mxu0 0.0
        %1407 = vmatpush1.msra.mxu0 0.0
        %1408 = vmatprep.subr.mxu0 0.0
        %1409 = vmatpush1.msra.mxu0 0.0
        %1410 = vmatprep.subr.mxu0 0.0
        %1411 = vmatpush1.msra.mxu0 0.0
        %1412 = vmatprep.subr.mxu0 0.0
        %1413 = vmatpush1.msra.mxu0 0.0
        %1414 = vmatprep.subr.mxu0 0.0
        %1415 = vmatpush1.msra.mxu0 0.0
        %1416 = vmatprep.subr.mxu0 0.0
        %1417 = vmatpush1.msra.mxu0 0.0
        %1418 = vmatprep.subr.mxu0 0.0
        %1419 = vmatpush1.msra.mxu0 0.0
        %1420 = vmatprep.subr.mxu0 0.0
        %1421 = vmatpush1.msra.mxu0 0.0
        %1422 = vmatprep.subr.mxu0 0.0
        %1423 = vmatpush1.msra.mxu0 0.0
        %1424 = vmatprep.subr.mxu0 0.0
        %1425 = vmatpush1.msra.mxu0 0.0
        %1426 = vmatprep.subr.mxu0 0.0
        %1427 = vmatpush1.msra.mxu0 0.0
        %1428 = vmatprep.subr.mxu0 0.0
        %1429 = vmatpush1.msra.mxu0 %v1320
        %1430 = vmatprep.subr.mxu0 0.0
        %1431 = vmatpush1.msra.mxu0 %v1319
        %1432 = vmatprep.subr.mxu0 0.0
        %1433 = vmatpush1.msra.mxu0 %v1318
        %1434 = vmatprep.subr.mxu0 0.0
        %1435 = vmatpush1.msra.mxu0 %v1317
        %1436 = vmatprep.subr.mxu0 0.0
        %1437 = vmatpush1.msra.mxu0 %v1316
        %1438 = vmatprep.subr.mxu0 0.0
        %1439 = vmatpush2.msra.mxu0 0.0
        %1440 = vmatprep.subr.mxu0 0.0
        %1441 = vmatpush2.msra.mxu0 0.0
        %1442 = vmatprep.subr.mxu0 0.0
        %1443 = vmatpush2.msra.mxu0 0.0
        %1444 = vmatprep.subr.mxu0 0.0
        %1445 = vmatpush2.msra.mxu0 0.0
        %1446 = vmatprep.subr.mxu0 0.0
        %1447 = vmatpush2.msra.mxu0 0.0
        %1448 = vmatprep.subr.mxu0 0.0
        %1449 = vmatpush2.msra.mxu0 0.0
        %1450 = vmatprep.subr.mxu0 0.0
        %1451 = vmatpush2.msra.mxu0 0.0
        %1452 = vmatprep.subr.mxu0 0.0
        %1453 = vmatpush2.msra.mxu0 0.0
        %1454 = vmatprep.subr.mxu0 0.0
        %1455 = vmatpush2.msra.mxu0 0.0
        %1456 = vmatprep.subr.mxu0 0.0
        %1457 = vmatpush2.msra.mxu0 0.0
        %1458 = vmatprep.subr.mxu0 0.0
        %1459 = vmatpush2.msra.mxu0 0.0
        %1460 = vmatprep.subr.mxu0 0.0
        %1461 = vmatpush2.msra.mxu0 0.0
        %1462 = vmatprep.subr.mxu0 0.0
        %1463 = vmatpush2.msra.mxu0 0.0
        %1464 = vmatprep.subr.mxu0 0.0
        %1465 = vmatpush2.msra.mxu0 0.0
        %1466 = vmatprep.subr.mxu0 0.0
        %1467 = vmatpush2.msra.mxu0 0.0
        %1468 = vmatprep.subr.mxu0 0.0
        %1469 = vmatpush2.msra.mxu0 0.0
        %1470 = vmatprep.mubr.f32.mxu0 0.0
        %1471 = vmatmul.mubr.f32.gmra.mxu0 %v1395
        %v1472 = vpop.f32.mrf.mxu0
        %v1473 = vadd.f32 0.0, %v1472
        %v1474 = vpop.f32.mrf.mxu0
        %1475 = vmatprep.mubr.f32.mxu0 0.0
        %1476 = vmatmul.mubr.f32.gmra.mxu0 %v1398
        %v1477 = vpop.f32.mrf.mxu0
        %v1478 = vadd.f32 0.0, %v1477
        %v1479 = vpop.f32.mrf.mxu0
        %1480 = vmatprep.mubr.f32.mxu0 0.0
        %1481 = vmatmul.mubr.f32.gmra.mxu0 %v1401
        %v1482 = vpop.f32.mrf.mxu0
        %v1483 = vadd.f32 0.0, %v1482
        %v1484 = vpop.f32.mrf.mxu0
        %1485 = vmatprep.mubr.f32.mxu0 0.0
        %1486 = vmatmul.mubr.f32.gmra.mxu0 %v1404
        %v1487 = vpop.f32.mrf.mxu0
        %v1488 = vadd.f32 0.0, %v1487
        %v1489 = vpop.f32.mrf.mxu0
        %1490 = vdwg.mxu0
        %v1492 = vsel %vm1393, %v1360, 0
        %v1495 = vsel %vm1393, %v1361, 0
        %v1498 = vsel %vm1393, %v1362, 0
        %v1501 = vsel %vm1393, %v1363, 0
        %1503 = vmatprep.subr.mxu0 0.0
        %1504 = vmatpush1.msra.mxu0 0.0
        %1505 = vmatprep.subr.mxu0 0.0
        %1506 = vmatpush1.msra.mxu0 0.0
        %1507 = vmatprep.subr.mxu0 0.0
        %1508 = vmatpush1.msra.mxu0 0.0
        %1509 = vmatprep.subr.mxu0 0.0
        %1510 = vmatpush1.msra.mxu0 0.0
        %1511 = vmatprep.subr.mxu0 0.0
        %1512 = vmatpush1.msra.mxu0 0.0
        %1513 = vmatprep.subr.mxu0 0.0
        %1514 = vmatpush1.msra.mxu0 0.0
        %1515 = vmatprep.subr.mxu0 0.0
        %1516 = vmatpush1.msra.mxu0 0.0
        %1517 = vmatprep.subr.mxu0 0.0
        %1518 = vmatpush1.msra.mxu0 0.0
        %1519 = vmatprep.subr.mxu0 0.0
        %1520 = vmatpush1.msra.mxu0 0.0
        %1521 = vmatprep.subr.mxu0 0.0
        %1522 = vmatpush1.msra.mxu0 0.0
        %1523 = vmatprep.subr.mxu0 0.0
        %1524 = vmatpush1.msra.mxu0 0.0
        %1525 = vmatprep.subr.mxu0 0.0
        %1526 = vmatpush1.msra.mxu0 %v1315
        %1527 = vmatprep.subr.mxu0 0.0
        %1528 = vmatpush1.msra.mxu0 %v1314
        %1529 = vmatprep.subr.mxu0 0.0
        %1530 = vmatpush1.msra.mxu0 %v1313
        %1531 = vmatprep.subr.mxu0 0.0
        %1532 = vmatpush1.msra.mxu0 %v1312
        %1533 = vmatprep.subr.mxu0 0.0
        %1534 = vmatpush1.msra.mxu0 %v1311
        %1535 = vmatprep.subr.mxu0 0.0
        %1536 = vmatpush2.msra.mxu0 0.0
        %1537 = vmatprep.subr.mxu0 0.0
        %1538 = vmatpush2.msra.mxu0 0.0
        %1539 = vmatprep.subr.mxu0 0.0
        %1540 = vmatpush2.msra.mxu0 0.0
        %1541 = vmatprep.subr.mxu0 0.0
        %1542 = vmatpush2.msra.mxu0 0.0
        %1543 = vmatprep.subr.mxu0 0.0
        %1544 = vmatpush2.msra.mxu0 0.0
        %1545 = vmatprep.subr.mxu0 0.0
        %1546 = vmatpush2.msra.mxu0 0.0
        %1547 = vmatprep.subr.mxu0 0.0
        %1548 = vmatpush2.msra.mxu0 0.0
        %1549 = vmatprep.subr.mxu0 0.0
        %1550 = vmatpush2.msra.mxu0 0.0
        %1551 = vmatprep.subr.mxu0 0.0
        %1552 = vmatpush2.msra.mxu0 0.0
        %1553 = vmatprep.subr.mxu0 0.0
        %1554 = vmatpush2.msra.mxu0 0.0
        %1555 = vmatprep.subr.mxu0 0.0
        %1556 = vmatpush2.msra.mxu0 0.0
        %1557 = vmatprep.subr.mxu0 0.0
        %1558 = vmatpush2.msra.mxu0 0.0
        %1559 = vmatprep.subr.mxu0 0.0
        %1560 = vmatpush2.msra.mxu0 0.0
        %1561 = vmatprep.subr.mxu0 0.0
        %1562 = vmatpush2.msra.mxu0 0.0
        %1563 = vmatprep.subr.mxu0 0.0
        %1564 = vmatpush2.msra.mxu0 0.0
        %1565 = vmatprep.subr.mxu0 0.0
        %1566 = vmatpush2.msra.mxu0 0.0
        %1567 = vmatprep.mubr.f32.mxu0 0.0
        %1568 = vmatmul.mubr.f32.gmra.mxu0 %v1492
        %v1569 = vpop.f32.mrf.mxu0
        %v1570 = vadd.f32 %v1473, %v1569
        %v1571 = vpop.f32.mrf.mxu0
        %1572 = vmatprep.mubr.f32.mxu0 0.0
        %1573 = vmatmul.mubr.f32.gmra.mxu0 %v1495
        %v1574 = vpop.f32.mrf.mxu0
        %v1575 = vadd.f32 %v1478, %v1574
        %v1576 = vpop.f32.mrf.mxu0
        %1577 = vmatprep.mubr.f32.mxu0 0.0
        %1578 = vmatmul.mubr.f32.gmra.mxu0 %v1498
        %v1579 = vpop.f32.mrf.mxu0
        %v1580 = vadd.f32 %v1483, %v1579
        %v1581 = vpop.f32.mrf.mxu0
        %1582 = vmatprep.mubr.f32.mxu0 0.0
        %1583 = vmatmul.mubr.f32.gmra.mxu0 %v1501
        %v1584 = vpop.f32.mrf.mxu0
        %v1585 = vadd.f32 %v1488, %v1584
        %v1586 = vpop.f32.mrf.mxu0
        %1587 = vdwg.mxu0
        %v1589 = vsel %vm1393, %v1389, 0
        %v1592 = vsel %vm1393, %v1390, 0
        %v1595 = vsel %vm1393, %v1391, 0
        %v1598 = vsel %vm1393, %v1392, 0
        %1600 = vmatprep.subr.mxu0 0.0
        %1601 = vmatpush1.msra.mxu0 0.0
        %1602 = vmatprep.subr.mxu0 0.0
        %1603 = vmatpush1.msra.mxu0 0.0
        %1604 = vmatprep.subr.mxu0 0.0
        %1605 = vmatpush1.msra.mxu0 0.0
        %1606 = vmatprep.subr.mxu0 0.0
        %1607 = vmatpush1.msra.mxu0 0.0
        %1608 = vmatprep.subr.mxu0 0.0
        %1609 = vmatpush1.msra.mxu0 0.0
        %1610 = vmatprep.subr.mxu0 0.0
        %1611 = vmatpush1.msra.mxu0 0.0
        %1612 = vmatprep.subr.mxu0 0.0
        %1613 = vmatpush1.msra.mxu0 0.0
        %1614 = vmatprep.subr.mxu0 0.0
        %1615 = vmatpush1.msra.mxu0 0.0
        %1616 = vmatprep.subr.mxu0 0.0
        %1617 = vmatpush1.msra.mxu0 0.0
        %1618 = vmatprep.subr.mxu0 0.0
        %1619 = vmatpush1.msra.mxu0 0.0
        %1620 = vmatprep.subr.mxu0 0.0
        %1621 = vmatpush1.msra.mxu0 0.0
        %1622 = vmatprep.subr.mxu0 0.0
        %1623 = vmatpush1.msra.mxu0 %v1325
        %1624 = vmatprep.subr.mxu0 0.0
        %1625 = vmatpush1.msra.mxu0 %v1324
        %1626 = vmatprep.subr.mxu0 0.0
        %1627 = vmatpush1.msra.mxu0 %v1323
        %1628 = vmatprep.subr.mxu0 0.0
        %1629 = vmatpush1.msra.mxu0 %v1322
        %1630 = vmatprep.subr.mxu0 0.0
        %1631 = vmatpush1.msra.mxu0 %v1321
        %1632 = vmatprep.subr.mxu0 0.0
        %1633 = vmatpush2.msra.mxu0 0.0
        %1634 = vmatprep.subr.mxu0 0.0
        %1635 = vmatpush2.msra.mxu0 0.0
        %1636 = vmatprep.subr.mxu0 0.0
        %1637 = vmatpush2.msra.mxu0 0.0
        %1638 = vmatprep.subr.mxu0 0.0
        %1639 = vmatpush2.msra.mxu0 0.0
        %1640 = vmatprep.subr.mxu0 0.0
        %1641 = vmatpush2.msra.mxu0 0.0
        %1642 = vmatprep.subr.mxu0 0.0
        %1643 = vmatpush2.msra.mxu0 0.0
        %1644 = vmatprep.subr.mxu0 0.0
        %1645 = vmatpush2.msra.mxu0 0.0
        %1646 = vmatprep.subr.mxu0 0.0
        %1647 = vmatpush2.msra.mxu0 0.0
        %1648 = vmatprep.subr.mxu0 0.0
        %1649 = vmatpush2.msra.mxu0 0.0
        %1650 = vmatprep.subr.mxu0 0.0
        %1651 = vmatpush2.msra.mxu0 0.0
        %1652 = vmatprep.subr.mxu0 0.0
        %1653 = vmatpush2.msra.mxu0 0.0
        %1654 = vmatprep.subr.mxu0 0.0
        %1655 = vmatpush2.msra.mxu0 0.0
        %1656 = vmatprep.subr.mxu0 0.0
        %1657 = vmatpush2.msra.mxu0 0.0
        %1658 = vmatprep.subr.mxu0 0.0
        %1659 = vmatpush2.msra.mxu0 0.0
        %1660 = vmatprep.subr.mxu0 0.0
        %1661 = vmatpush2.msra.mxu0 0.0
        %1662 = vmatprep.subr.mxu0 0.0
        %1663 = vmatpush2.msra.mxu0 0.0
        %1664 = vmatprep.mubr.f32.mxu0 0.0
        %1665 = vmatmul.mubr.f32.gmra.mxu0 %v1589
        %v1666 = vpop.f32.mrf.mxu0
        %v1667 = vadd.f32 0.0, %v1666
        %v1668 = vpop.f32.mrf.mxu0
        %1669 = vmatprep.mubr.f32.mxu0 0.0
        %1670 = vmatmul.mubr.f32.gmra.mxu0 %v1592
        %v1671 = vpop.f32.mrf.mxu0
        %v1672 = vadd.f32 0.0, %v1671
        %v1673 = vpop.f32.mrf.mxu0
        %1674 = vmatprep.mubr.f32.mxu0 0.0
        %1675 = vmatmul.mubr.f32.gmra.mxu0 %v1595
        %v1676 = vpop.f32.mrf.mxu0
        %v1677 = vadd.f32 0.0, %v1676
        %v1678 = vpop.f32.mrf.mxu0
        %1679 = vmatprep.mubr.f32.mxu0 0.0
        %1680 = vmatmul.mubr.f32.gmra.mxu0 %v1598
        %v1681 = vpop.f32.mrf.mxu0
        %v1682 = vadd.f32 0.0, %v1681
        %v1683 = vpop.f32.mrf.mxu0
        %1684 = vdwg.mxu0
        %v1685 = vadd.f32 %v1570, %v1667
        %v1686 = vadd.f32 %v1575, %v1672
        %v1687 = vadd.f32 %v1580, %v1677
        %v1688 = vadd.f32 %v1585, %v1682
        %v1690 = vlaneseq
        %v1691 = vshrl.u32 %v1690, 7
        %v1692 = vsub.s32 0, %v1691
        %v1693 = vrot.slane %v1326, %v1692
        %v1695 = vadd.f32 %v1685, %v1693
        %v1696 = vadd.f32 %v1686, %v1693
        %v1697 = vadd.f32 %v1687, %v1693
        %v1698 = vadd.f32 %v1688, %v1693
        %v1700 = vlaneseq
        %v1701 = vshrl.u32 %v1700, 7
        %v1702 = vsub.s32 0, %v1701
        %v1703 = vrot.slane %v1327, %v1702
        %v1705 = vmul.f32 %v1695, %v1703
        %v1706 = vmul.f32 %v1696, %v1703
        %v1707 = vmul.f32 %v1697, %v1703
        %v1708 = vmul.f32 %v1698, %v1703
        %v1710 = vlaneseq
        %v1711 = vshrl.u32 %v1710, 7
        %v1712 = vsub.s32 0, %v1711
        %v1713 = vrot.slane %v1328, %v1712
        %v1715 = vadd.f32 %v1705, %v1713
        %v1716 = vadd.f32 %v1706, %v1713
        %v1717 = vadd.f32 %v1707, %v1713
        %v1718 = vadd.f32 %v1708, %v1713
        %v1719 = vmax.f32 %v1715, 0.0
        %v1720 = vmax.f32 %v1716, 0.0
        %v1721 = vmax.f32 %v1717, 0.0
        %v1722 = vmax.f32 %v1718, 0.0
        %v1723 = vld [vmem:[%s1278] sm:$0xff]
        %v1724 = vld [vmem:[%s1278 + $0x8] sm:$0xff]
        %v1725 = vld [vmem:[%s1278 + $0x10] sm:$0xff]
        %v1726 = vld [vmem:[%s1278 + $0x18] sm:$0xff]
        %v1727 = vld [vmem:[%s1278 + $0x20] sm:$0xff]
        %v1728 = vld [vmem:[%s1278 + $0x28] sm:$0xff]
        %v1729 = vld [vmem:[%s1278 + $0x30] sm:$0xff]
        %v1730 = vld [vmem:[%s1278 + $0x38] sm:$0xff]
        %v1731 = vld [vmem:[%s1278 + $0x40] sm:$0xff]
        %v1732 = vld [vmem:[%s1278 + $0x48] sm:$0xff]
        %v1733 = vld [vmem:[%s1278 + $0x50] sm:$0xff]
        %v1734 = vld [vmem:[%s1278 + $0x58] sm:$0xff]
        %v1735 = vld [vmem:[%s1278 + $0x60] sm:$0xff]
        %v1736 = vld [vmem:[%s1278 + $0x68] sm:$0xff]
        %v1737 = vld [vmem:[%s1278 + $0x70] sm:$0xff]
        %v1738 = vld [vmem:[%s1278 + $0x78] sm:$0xff]
        %v1739 = vld [vmem:[%s1282] sm:$0x3]
        %v1741 = vlaneseq
        %v1742 = vshrl.u32 %v1741, 7
        %v1743 = vsub.s32 0, %v1742
        %v1744 = vrot.slane %v1739, %v1743
        %v1745 = vlaneseq
        %v1746 = vshrl.u32 %v1745, 7
        %v1747 = vsub.s32 1, %v1746
        %v1748 = vrot.slane %v1739, %v1747
        %vm1751 = vcmask 523264
        %v1753 = vsel %vm1751, %v1719, 0
        %v1756 = vsel %vm1751, %v1720, 0
        %v1759 = vsel %vm1751, %v1721, 0
        %v1762 = vsel %vm1751, %v1722, 0
        %1764 = vmatprep.subr.mxu0 0.0
        %1765 = vmatpush1.msra.mxu0 0.0
        %1766 = vmatprep.subr.mxu0 0.0
        %1767 = vmatpush1.msra.mxu0 0.0
        %1768 = vmatprep.subr.mxu0 0.0
        %1769 = vmatpush1.msra.mxu0 0.0
        %1770 = vmatprep.subr.mxu0 0.0
        %1771 = vmatpush1.msra.mxu0 0.0
        %1772 = vmatprep.subr.mxu0 0.0
        %1773 = vmatpush1.msra.mxu0 0.0
        %1774 = vmatprep.subr.mxu0 0.0
        %1775 = vmatpush1.msra.mxu0 0.0
        %1776 = vmatprep.subr.mxu0 0.0
        %1777 = vmatpush1.msra.mxu0 0.0
        %1778 = vmatprep.subr.mxu0 0.0
        %1779 = vmatpush1.msra.mxu0 0.0
        %1780 = vmatprep.subr.mxu0 %v1738
        %1781 = vmatpush1.msra.mxu0 %v1737
        %1782 = vmatprep.subr.mxu0 %v1736
        %1783 = vmatpush1.msra.mxu0 %v1735
        %1784 = vmatprep.subr.mxu0 %v1734
        %1785 = vmatpush1.msra.mxu0 %v1733
        %1786 = vmatprep.subr.mxu0 %v1732
        %1787 = vmatpush1.msra.mxu0 %v1731
        %1788 = vmatprep.subr.mxu0 %v1730
        %1789 = vmatpush1.msra.mxu0 %v1729
        %1790 = vmatprep.subr.mxu0 %v1728
        %1791 = vmatpush1.msra.mxu0 %v1727
        %1792 = vmatprep.subr.mxu0 %v1726
        %1793 = vmatpush1.msra.mxu0 %v1725
        %1794 = vmatprep.subr.mxu0 %v1724
        %1795 = vmatpush1.msra.mxu0 %v1723
        %1796 = vmatprep.subr.mxu0 0.0
        %1797 = vmatpush2.msra.mxu0 0.0
        %1798 = vmatprep.subr.mxu0 0.0
        %1799 = vmatpush2.msra.mxu0 0.0
        %1800 = vmatprep.subr.mxu0 0.0
        %1801 = vmatpush2.msra.mxu0 0.0
        %1802 = vmatprep.subr.mxu0 0.0
        %1803 = vmatpush2.msra.mxu0 0.0
        %1804 = vmatprep.subr.mxu0 0.0
        %1805 = vmatpush2.msra.mxu0 0.0
        %1806 = vmatprep.subr.mxu0 0.0
        %1807 = vmatpush2.msra.mxu0 0.0
        %1808 = vmatprep.subr.mxu0 0.0
        %1809 = vmatpush2.msra.mxu0 0.0
        %1810 = vmatprep.subr.mxu0 0.0
        %1811 = vmatpush2.msra.mxu0 0.0
        %1812 = vmatprep.subr.mxu0 0.0
        %1813 = vmatpush2.msra.mxu0 0.0
        %1814 = vmatprep.subr.mxu0 0.0
        %1815 = vmatpush2.msra.mxu0 0.0
        %1816 = vmatprep.subr.mxu0 0.0
        %1817 = vmatpush2.msra.mxu0 0.0
        %1818 = vmatprep.subr.mxu0 0.0
        %1819 = vmatpush2.msra.mxu0 0.0
        %1820 = vmatprep.subr.mxu0 0.0
        %1821 = vmatpush2.msra.mxu0 0.0
        %1822 = vmatprep.subr.mxu0 0.0
        %1823 = vmatpush2.msra.mxu0 0.0
        %1824 = vmatprep.subr.mxu0 0.0
        %1825 = vmatpush2.msra.mxu0 0.0
        %1826 = vmatprep.subr.mxu0 0.0
        %1827 = vmatpush2.msra.mxu0 0.0
        %1828 = vmatprep.mubr.f32.mxu0 0.0
        %1829 = vmatmul.mubr.f32.gmra.mxu0 %v1753
        %v1830 = vpop.f32.mrf.mxu0
        %v1831 = vadd.f32 %v1744, %v1830
        %v1832 = vpop.f32.mrf.mxu0
        %v1833 = vadd.f32 %v1748, %v1832
        %1834 = vmatprep.mubr.f32.mxu0 0.0
        %1835 = vmatmul.mubr.f32.gmra.mxu0 %v1756
        %v1836 = vpop.f32.mrf.mxu0
        %v1837 = vadd.f32 %v1744, %v1836
        %v1838 = vpop.f32.mrf.mxu0
        %v1839 = vadd.f32 %v1748, %v1838
        %1840 = vmatprep.mubr.f32.mxu0 0.0
        %1841 = vmatmul.mubr.f32.gmra.mxu0 %v1759
        %v1842 = vpop.f32.mrf.mxu0
        %v1843 = vadd.f32 %v1744, %v1842
        %v1844 = vpop.f32.mrf.mxu0
        %v1845 = vadd.f32 %v1748, %v1844
        %1846 = vmatprep.mubr.f32.mxu0 0.0
        %1847 = vmatmul.mubr.f32.gmra.mxu0 %v1762
        %v1848 = vpop.f32.mrf.mxu0
        %v1849 = vadd.f32 %v1744, %v1848
        %v1850 = vpop.f32.mrf.mxu0
        %v1851 = vadd.f32 %v1748, %v1850
        %1852 = vdwg.mxu0
        %1853 = vst [vmem:[#allocation2] sm:$0xff] %v1831
        %1854 = vst.msk [vmem:[#allocation2 + $0x8] sm:$0xff] %vm1751, %v1833
        %1855 = vst [vmem:[#allocation2 + $0x10] sm:$0xff] %v1837
        %1856 = vst.msk [vmem:[#allocation2 + $0x18] sm:$0xff] %vm1751, %v1839
        %1857 = vst [vmem:[#allocation2 + $0x20] sm:$0xff] %v1843
        %1858 = vst.msk [vmem:[#allocation2 + $0x28] sm:$0xff] %vm1751, %v1845
        %1859 = vst [vmem:[#allocation2 + $0x30] sm:$0xff] %v1849
        %1860 = vst.msk [vmem:[#allocation2 + $0x38] sm:$0xff] %vm1751, %v1851
        %v1861 = vld [vmem:[%s1064] sm:$0x3]
        %v1862 = vld [vmem:[#allocation2] sm:$0x3]
        %v1863 = vld [vmem:[#allocation2 + $0x8] sm:$0x3]
        %v1864 = vld [vmem:[%s1055] sm:$0xff]
        %v1865 = vld [vmem:[%s1055 + $0x8] sm:$0xff]
        %v1866 = vld [vmem:[%s1055 + $0x10] sm:$0xff]
        %v1867 = vld [vmem:[%s1055 + $0x18] sm:$0xff]
        %v1868 = vld [vmem:[%s1055 + $0x20] sm:$0xff]
        %v1869 = vld [vmem:[%s1055 + $0x28] sm:$0xff]
        %v1870 = vld [vmem:[%s1055 + $0x30] sm:$0xff]
        %v1871 = vld [vmem:[%s1055 + $0x38] sm:$0xff]
        %v1872 = vld [vmem:[%s1055 + $0x40] sm:$0xff]
        %v1873 = vld [vmem:[%s1055 + $0x48] sm:$0xff]
        %v1874 = vld [vmem:[%s1055 + $0x50] sm:$0xff]
        %v1875 = vld [vmem:[%s1055 + $0x58] sm:$0xff]
        %v1876 = vld [vmem:[%s1055 + $0x60] sm:$0xff]
        %v1877 = vld [vmem:[%s1055 + $0x68] sm:$0xff]
        %v1878 = vld [vmem:[%s1055 + $0x70] sm:$0xff]
        %v1879 = vld [vmem:[%s1055 + $0x78] sm:$0xff]
        %v1881 = vlaneseq
        %v1882 = vshrl.u32 %v1881, 7
        %v1883 = vsub.s32 0, %v1882
        %v1884 = vrot.slane %v1861, %v1883
        %v1885 = vlaneseq
        %v1886 = vshrl.u32 %v1885, 7
        %v1887 = vsub.s32 1, %v1886
        %v1888 = vrot.slane %v1861, %v1887
        %v1892 = vsel %vm1751, 0.0, 0
        %1894 = vmatprep.subr.mxu0 0.0
        %1895 = vmatpush1.msra.mxu0 0.0
        %1896 = vmatprep.subr.mxu0 0.0
        %1897 = vmatpush1.msra.mxu0 0.0
        %1898 = vmatprep.subr.mxu0 0.0
        %1899 = vmatpush1.msra.mxu0 0.0
        %1900 = vmatprep.subr.mxu0 0.0
        %1901 = vmatpush1.msra.mxu0 0.0
        %1902 = vmatprep.subr.mxu0 0.0
        %1903 = vmatpush1.msra.mxu0 0.0
        %1904 = vmatprep.subr.mxu0 0.0
        %1905 = vmatpush1.msra.mxu0 0.0
        %1906 = vmatprep.subr.mxu0 0.0
        %1907 = vmatpush1.msra.mxu0 0.0
        %1908 = vmatprep.subr.mxu0 0.0
        %1909 = vmatpush1.msra.mxu0 0.0
        %1910 = vmatprep.subr.mxu0 %v1879
        %1911 = vmatpush1.msra.mxu0 %v1878
        %1912 = vmatprep.subr.mxu0 %v1877
        %1913 = vmatpush1.msra.mxu0 %v1876
        %1914 = vmatprep.subr.mxu0 %v1875
        %1915 = vmatpush1.msra.mxu0 %v1874
        %1916 = vmatprep.subr.mxu0 %v1873
        %1917 = vmatpush1.msra.mxu0 %v1872
        %1918 = vmatprep.subr.mxu0 %v1871
        %1919 = vmatpush1.msra.mxu0 %v1870
        %1920 = vmatprep.subr.mxu0 %v1869
        %1921 = vmatpush1.msra.mxu0 %v1868
        %1922 = vmatprep.subr.mxu0 %v1867
        %1923 = vmatpush1.msra.mxu0 %v1866
        %1924 = vmatprep.subr.mxu0 %v1865
        %1925 = vmatpush1.msra.mxu0 %v1864
        %1926 = vmatprep.subr.mxu0 0.0
        %1927 = vmatpush2.msra.mxu0 0.0
        %1928 = vmatprep.subr.mxu0 0.0
        %1929 = vmatpush2.msra.mxu0 0.0
        %1930 = vmatprep.subr.mxu0 0.0
        %1931 = vmatpush2.msra.mxu0 0.0
        %1932 = vmatprep.subr.mxu0 0.0
        %1933 = vmatpush2.msra.mxu0 0.0
        %1934 = vmatprep.subr.mxu0 0.0
        %1935 = vmatpush2.msra.mxu0 0.0
        %1936 = vmatprep.subr.mxu0 0.0
        %1937 = vmatpush2.msra.mxu0 0.0
        %1938 = vmatprep.subr.mxu0 0.0
        %1939 = vmatpush2.msra.mxu0 0.0
        %1940 = vmatprep.subr.mxu0 0.0
        %1941 = vmatpush2.msra.mxu0 0.0
        %1942 = vmatprep.subr.mxu0 0.0
        %1943 = vmatpush2.msra.mxu0 0.0
        %1944 = vmatprep.subr.mxu0 0.0
        %1945 = vmatpush2.msra.mxu0 0.0
        %1946 = vmatprep.subr.mxu0 0.0
        %1947 = vmatpush2.msra.mxu0 0.0
        %1948 = vmatprep.subr.mxu0 0.0
        %1949 = vmatpush2.msra.mxu0 0.0
        %1950 = vmatprep.subr.mxu0 0.0
        %1951 = vmatpush2.msra.mxu0 0.0
        %1952 = vmatprep.subr.mxu0 0.0
        %1953 = vmatpush2.msra.mxu0 0.0
        %1954 = vmatprep.subr.mxu0 0.0
        %1955 = vmatpush2.msra.mxu0 0.0
        %1956 = vmatprep.subr.mxu0 0.0
        %1957 = vmatpush2.msra.mxu0 0.0
        %1958 = vmatprep.mubr.f32.mxu0 0.0
        %1959 = vmatmul.mubr.f32.gmra.mxu0 %v1892
        %v1960 = vpop.f32.mrf.mxu0
        %v1961 = vadd.f32 %v1884, %v1960
        %v1962 = vpop.f32.mrf.mxu0
        %v1963 = vadd.f32 %v1888, %v1962
        %1964 = vdwg.mxu0
        %v1965 = vadd.f32 %v1862, %v1961
        %v1966 = vxor.u32 %v1965, 2147483648
        %v1967 = vmul.f32 %v1966, 1.442695
        %v1968 = vpow.pop %v1967
        %v1969 = vadd.f32 %v1968, 1.0
        %v1970 = vrcp.pop %v1969
        %v1971 = vmul.f32 1.0, %v1970
        %v1972 = vmul.f32 %v1971, %v1963
        %v1973 = vadd.f32 %v1863, %v1972
        %v1974 = vtanh.pop %v1973
        %v1975 = vsub.f32 1.0, %v1971
        %1977 = vrot.lane.b32.xlu0 %v1974, 64
        %v1978 = vpop.permute.xlu0 %1977
        %v1980 = vmul.f32 %v1975, %v1978
        %v1981 = vmul.f32 %v1971, 0.0
        %v1982 = vadd.f32 %v1980, %v1981
        %1984 = vrot.lane.b32.xlu0 %v1982, 64
        %v1985 = vpop.permute.xlu0 %1984
        %vm1987 = vcmask 517120
        %1988 = vst.msk [vmem:[#allocation3] sm:$0x3] %vm1987, %v1985
        %v1989 = vld [vmem:[#allocation2] sm:$0xc]
        %v1990 = vld [vmem:[#allocation2 + $0x8] sm:$0xc]
        %v1991 = vld [vmem:[%s1055] sm:$0xff]
        %v1992 = vld [vmem:[%s1055 + $0x8] sm:$0xff]
        %v1993 = vld [vmem:[%s1055 + $0x10] sm:$0xff]
        %v1994 = vld [vmem:[%s1055 + $0x18] sm:$0xff]
        %v1995 = vld [vmem:[%s1055 + $0x20] sm:$0xff]
        %v1996 = vld [vmem:[%s1055 + $0x28] sm:$0xff]
        %v1997 = vld [vmem:[%s1055 + $0x30] sm:$0xff]
        %v1998 = vld [vmem:[%s1055 + $0x38] sm:$0xff]
        %v1999 = vld [vmem:[%s1055 + $0x40] sm:$0xff]
        %v2000 = vld [vmem:[%s1055 + $0x48] sm:$0xff]
        %v2001 = vld [vmem:[%s1055 + $0x50] sm:$0xff]
        %v2002 = vld [vmem:[%s1055 + $0x58] sm:$0xff]
        %v2003 = vld [vmem:[%s1055 + $0x60] sm:$0xff]
        %v2004 = vld [vmem:[%s1055 + $0x68] sm:$0xff]
        %v2005 = vld [vmem:[%s1055 + $0x70] sm:$0xff]
        %v2006 = vld [vmem:[%s1055 + $0x78] sm:$0xff]
        %v2007 = vsel %vm1751, %v1985, 0
        %2009 = vmatprep.subr.mxu0 0.0
        %2010 = vmatpush1.msra.mxu0 0.0
        %2011 = vmatprep.subr.mxu0 0.0
        %2012 = vmatpush1.msra.mxu0 0.0
        %2013 = vmatprep.subr.mxu0 0.0
        %2014 = vmatpush1.msra.mxu0 0.0
        %2015 = vmatprep.subr.mxu0 0.0
        %2016 = vmatpush1.msra.mxu0 0.0
        %2017 = vmatprep.subr.mxu0 0.0
        %2018 = vmatpush1.msra.mxu0 0.0
        %2019 = vmatprep.subr.mxu0 0.0
        %2020 = vmatpush1.msra.mxu0 0.0
        %2021 = vmatprep.subr.mxu0 0.0
        %2022 = vmatpush1.msra.mxu0 0.0
        %2023 = vmatprep.subr.mxu0 0.0
        %2024 = vmatpush1.msra.mxu0 0.0
        %2025 = vmatprep.subr.mxu0 %v2006
        %2026 = vmatpush1.msra.mxu0 %v2005
        %2027 = vmatprep.subr.mxu0 %v2004
        %2028 = vmatpush1.msra.mxu0 %v2003
        %2029 = vmatprep.subr.mxu0 %v2002
        %2030 = vmatpush1.msra.mxu0 %v2001
        %2031 = vmatprep.subr.mxu0 %v2000
        %2032 = vmatpush1.msra.mxu0 %v1999
        %2033 = vmatprep.subr.mxu0 %v1998
        %2034 = vmatpush1.msra.mxu0 %v1997
        %2035 = vmatprep.subr.mxu0 %v1996
        %2036 = vmatpush1.msra.mxu0 %v1995
        %2037 = vmatprep.subr.mxu0 %v1994
        %2038 = vmatpush1.msra.mxu0 %v1993
        %2039 = vmatprep.subr.mxu0 %v1992
        %2040 = vmatpush1.msra.mxu0 %v1991
        %2041 = vmatprep.subr.mxu0 0.0
        %2042 = vmatpush2.msra.mxu0 0.0
        %2043 = vmatprep.subr.mxu0 0.0
        %2044 = vmatpush2.msra.mxu0 0.0
        %2045 = vmatprep.subr.mxu0 0.0
        %2046 = vmatpush2.msra.mxu0 0.0
        %2047 = vmatprep.subr.mxu0 0.0
        %2048 = vmatpush2.msra.mxu0 0.0
        %2049 = vmatprep.subr.mxu0 0.0
        %2050 = vmatpush2.msra.mxu0 0.0
        %2051 = vmatprep.subr.mxu0 0.0
        %2052 = vmatpush2.msra.mxu0 0.0
        %2053 = vmatprep.subr.mxu0 0.0
        %2054 = vmatpush2.msra.mxu0 0.0
        %2055 = vmatprep.subr.mxu0 0.0
        %2056 = vmatpush2.msra.mxu0 0.0
        %2057 = vmatprep.subr.mxu0 0.0
        %2058 = vmatpush2.msra.mxu0 0.0
        %2059 = vmatprep.subr.mxu0 0.0
        %2060 = vmatpush2.msra.mxu0 0.0
        %2061 = vmatprep.subr.mxu0 0.0
        %2062 = vmatpush2.msra.mxu0 0.0
        %2063 = vmatprep.subr.mxu0 0.0
        %2064 = vmatpush2.msra.mxu0 0.0
        %2065 = vmatprep.subr.mxu0 0.0
        %2066 = vmatpush2.msra.mxu0 0.0
        %2067 = vmatprep.subr.mxu0 0.0
        %2068 = vmatpush2.msra.mxu0 0.0
        %2069 = vmatprep.subr.mxu0 0.0
        %2070 = vmatpush2.msra.mxu0 0.0
        %2071 = vmatprep.subr.mxu0 0.0
        %2072 = vmatpush2.msra.mxu0 0.0
        %2073 = vmatprep.mubr.f32.mxu0 0.0
        %2074 = vmatmul.mubr.f32.gmra.mxu0 %v2007
        %v2075 = vpop.f32.mrf.mxu0
        %v2076 = vadd.f32 %v1884, %v2075
        %v2077 = vpop.f32.mrf.mxu0
        %v2078 = vadd.f32 %v1888, %v2077
        %2079 = vdwg.mxu0
        %v2081 = vrot.slane %v2076, 6
        %v2083 = vadd.f32 %v1989, %v2081
        %v2084 = vxor.u32 %v2083, 2147483648
        %v2085 = vmul.f32 %v2084, 1.442695
        %v2086 = vpow.pop %v2085
        %v2087 = vadd.f32 %v2086, 1.0
        %v2088 = vrcp.pop %v2087
        %v2089 = vmul.f32 1.0, %v2088
        %v2091 = vrot.slane %v2078, 6
        %v2093 = vmul.f32 %v2089, %v2091
        %v2094 = vadd.f32 %v1990, %v2093
        %v2095 = vtanh.pop %v2094
        %v2096 = vsub.f32 1.0, %v2089
        %2098 = vrot.lane.b32.xlu0 %v2095, 64
        %v2099 = vpop.permute.xlu0 %2098
        %v2101 = vmul.f32 %v2096, %v2099
        %v2102 = vrot.slane %v1982, 6
        %v2104 = vmul.f32 %v2089, %v2102
        %v2105 = vadd.f32 %v2101, %v2104
        %2107 = vrot.lane.b32.xlu0 %v2105, 64
        %v2108 = vpop.permute.xlu0 %2107
        %vm2110 = vcmask 519170
        %2111 = vst.msk [vmem:[#allocation3] sm:$0xc] %vm2110, %v2108
        %v2112 = vld [vmem:[#allocation2] sm:$0x30]
        %v2113 = vld [vmem:[#allocation2 + $0x8] sm:$0x30]
        %v2114 = vld [vmem:[%s1055] sm:$0xff]
        %v2115 = vld [vmem:[%s1055 + $0x8] sm:$0xff]
        %v2116 = vld [vmem:[%s1055 + $0x10] sm:$0xff]
        %v2117 = vld [vmem:[%s1055 + $0x18] sm:$0xff]
        %v2118 = vld [vmem:[%s1055 + $0x20] sm:$0xff]
        %v2119 = vld [vmem:[%s1055 + $0x28] sm:$0xff]
        %v2120 = vld [vmem:[%s1055 + $0x30] sm:$0xff]
        %v2121 = vld [vmem:[%s1055 + $0x38] sm:$0xff]
        %v2122 = vld [vmem:[%s1055 + $0x40] sm:$0xff]
        %v2123 = vld [vmem:[%s1055 + $0x48] sm:$0xff]
        %v2124 = vld [vmem:[%s1055 + $0x50] sm:$0xff]
        %v2125 = vld [vmem:[%s1055 + $0x58] sm:$0xff]
        %v2126 = vld [vmem:[%s1055 + $0x60] sm:$0xff]
        %v2127 = vld [vmem:[%s1055 + $0x68] sm:$0xff]
        %v2128 = vld [vmem:[%s1055 + $0x70] sm:$0xff]
        %v2129 = vld [vmem:[%s1055 + $0x78] sm:$0xff]
        %v2130 = vrot.slane %v2105, 2
        %2131 = vrot.lane.b32.xlu0 %v2130, 64
        %v2132 = vpop.permute.xlu0 %2131
        %v2133 = vsel %vm1751, %v2132, 0
        %2135 = vmatprep.subr.mxu0 0.0
        %2136 = vmatpush1.msra.mxu0 0.0
        %2137 = vmatprep.subr.mxu0 0.0
        %2138 = vmatpush1.msra.mxu0 0.0
        %2139 = vmatprep.subr.mxu0 0.0
        %2140 = vmatpush1.msra.mxu0 0.0
        %2141 = vmatprep.subr.mxu0 0.0
        %2142 = vmatpush1.msra.mxu0 0.0
        %2143 = vmatprep.subr.mxu0 0.0
        %2144 = vmatpush1.msra.mxu0 0.0
        %2145 = vmatprep.subr.mxu0 0.0
        %2146 = vmatpush1.msra.mxu0 0.0
        %2147 = vmatprep.subr.mxu0 0.0
        %2148 = vmatpush1.msra.mxu0 0.0
        %2149 = vmatprep.subr.mxu0 0.0
        %2150 = vmatpush1.msra.mxu0 0.0
        %2151 = vmatprep.subr.mxu0 %v2129
        %2152 = vmatpush1.msra.mxu0 %v2128
        %2153 = vmatprep.subr.mxu0 %v2127
        %2154 = vmatpush1.msra.mxu0 %v2126
        %2155 = vmatprep.subr.mxu0 %v2125
        %2156 = vmatpush1.msra.mxu0 %v2124
        %2157 = vmatprep.subr.mxu0 %v2123
        %2158 = vmatpush1.msra.mxu0 %v2122
        %2159 = vmatprep.subr.mxu0 %v2121
        %2160 = vmatpush1.msra.mxu0 %v2120
        %2161 = vmatprep.subr.mxu0 %v2119
        %2162 = vmatpush1.msra.mxu0 %v2118
        %2163 = vmatprep.subr.mxu0 %v2117
        %2164 = vmatpush1.msra.mxu0 %v2116
        %2165 = vmatprep.subr.mxu0 %v2115
        %2166 = vmatpush1.msra.mxu0 %v2114
        %2167 = vmatprep.subr.mxu0 0.0
        %2168 = vmatpush2.msra.mxu0 0.0
        %2169 = vmatprep.subr.mxu0 0.0
        %2170 = vmatpush2.msra.mxu0 0.0
        %2171 = vmatprep.subr.mxu0 0.0
        %2172 = vmatpush2.msra.mxu0 0.0
        %2173 = vmatprep.subr.mxu0 0.0
        %2174 = vmatpush2.msra.mxu0 0.0
        %2175 = vmatprep.subr.mxu0 0.0
        %2176 = vmatpush2.msra.mxu0 0.0
        %2177 = vmatprep.subr.mxu0 0.0
        %2178 = vmatpush2.msra.mxu0 0.0
        %2179 = vmatprep.subr.mxu0 0.0
        %2180 = vmatpush2.msra.mxu0 0.0
        %2181 = vmatprep.subr.mxu0 0.0
        %2182 = vmatpush2.msra.mxu0 0.0
        %2183 = vmatprep.subr.mxu0 0.0
        %2184 = vmatpush2.msra.mxu0 0.0
        %2185 = vmatprep.subr.mxu0 0.0
        %2186 = vmatpush2.msra.mxu0 0.0
        %2187 = vmatprep.subr.mxu0 0.0
        %2188 = vmatpush2.msra.mxu0 0.0
        %2189 = vmatprep.subr.mxu0 0.0
        %2190 = vmatpush2.msra.mxu0 0.0
        %2191 = vmatprep.subr.mxu0 0.0
        %2192 = vmatpush2.msra.mxu0 0.0
        %2193 = vmatprep.subr.mxu0 0.0
        %2194 = vmatpush2.msra.mxu0 0.0
        %2195 = vmatprep.subr.mxu0 0.0
        %2196 = vmatpush2.msra.mxu0 0.0
        %2197 = vmatprep.subr.mxu0 0.0
        %2198 = vmatpush2.msra.mxu0 0.0
        %2199 = vmatprep.mubr.f32.mxu0 0.0
        %2200 = vmatmul.mubr.f32.gmra.mxu0 %v2133
        %v2201 = vpop.f32.mrf.mxu0
        %v2202 = vadd.f32 %v1884, %v2201
        %v2203 = vpop.f32.mrf.mxu0
        %v2204 = vadd.f32 %v1888, %v2203
        %2205 = vdwg.mxu0
        %v2207 = vrot.slane %v2202, 4
        %v2209 = vadd.f32 %v2112, %v2207
        %v2210 = vxor.u32 %v2209, 2147483648
        %v2211 = vmul.f32 %v2210, 1.442695
        %v2212 = vpow.pop %v2211
        %v2213 = vadd.f32 %v2212, 1.0
        %v2214 = vrcp.pop %v2213
        %v2215 = vmul.f32 1.0, %v2214
        %v2217 = vrot.slane %v2204, 4
        %v2219 = vmul.f32 %v2215, %v2217
        %v2220 = vadd.f32 %v2113, %v2219
        %v2221 = vtanh.pop %v2220
        %v2222 = vsub.f32 1.0, %v2215
        %2224 = vrot.lane.b32.xlu0 %v2221, 64
        %v2225 = vpop.permute.xlu0 %2224
        %v2227 = vmul.f32 %v2222, %v2225
        %v2228 = vrot.slane %v2105, 6
        %v2230 = vmul.f32 %v2215, %v2228
        %v2231 = vadd.f32 %v2227, %v2230
        %2233 = vrot.lane.b32.xlu0 %v2231, 64
        %v2234 = vpop.permute.xlu0 %2233
        %vm2236 = vcmask 521220
        %2237 = vst.msk [vmem:[#allocation3] sm:$0x30] %vm2236, %v2234
        %v2238 = vld [vmem:[#allocation2] sm:$0xc0]
        %v2239 = vld [vmem:[#allocation2 + $0x8] sm:$0xc0]
        %v2240 = vld [vmem:[%s1055] sm:$0xff]
        %v2241 = vld [vmem:[%s1055 + $0x8] sm:$0xff]
        %v2242 = vld [vmem:[%s1055 + $0x10] sm:$0xff]
        %v2243 = vld [vmem:[%s1055 + $0x18] sm:$0xff]
        %v2244 = vld [vmem:[%s1055 + $0x20] sm:$0xff]
        %v2245 = vld [vmem:[%s1055 + $0x28] sm:$0xff]
        %v2246 = vld [vmem:[%s1055 + $0x30] sm:$0xff]
        %v2247 = vld [vmem:[%s1055 + $0x38] sm:$0xff]
        %v2248 = vld [vmem:[%s1055 + $0x40] sm:$0xff]
        %v2249 = vld [vmem:[%s1055 + $0x48] sm:$0xff]
        %v2250 = vld [vmem:[%s1055 + $0x50] sm:$0xff]
        %v2251 = vld [vmem:[%s1055 + $0x58] sm:$0xff]
        %v2252 = vld [vmem:[%s1055 + $0x60] sm:$0xff]
        %v2253 = vld [vmem:[%s1055 + $0x68] sm:$0xff]
        %v2254 = vld [vmem:[%s1055 + $0x70] sm:$0xff]
        %v2255 = vld [vmem:[%s1055 + $0x78] sm:$0xff]
        %v2256 = vrot.slane %v2231, 4
        %2257 = vrot.lane.b32.xlu0 %v2256, 64
        %v2258 = vpop.permute.xlu0 %2257
        %v2259 = vsel %vm1751, %v2258, 0
        %2261 = vmatprep.subr.mxu0 0.0
        %2262 = vmatpush1.msra.mxu0 0.0
        %2263 = vmatprep.subr.mxu0 0.0
        %2264 = vmatpush1.msra.mxu0 0.0
        %2265 = vmatprep.subr.mxu0 0.0
        %2266 = vmatpush1.msra.mxu0 0.0
        %2267 = vmatprep.subr.mxu0 0.0
        %2268 = vmatpush1.msra.mxu0 0.0
        %2269 = vmatprep.subr.mxu0 0.0
        %2270 = vmatpush1.msra.mxu0 0.0
        %2271 = vmatprep.subr.mxu0 0.0
        %2272 = vmatpush1.msra.mxu0 0.0
        %2273 = vmatprep.subr.mxu0 0.0
        %2274 = vmatpush1.msra.mxu0 0.0
        %2275 = vmatprep.subr.mxu0 0.0
        %2276 = vmatpush1.msra.mxu0 0.0
        %2277 = vmatprep.subr.mxu0 %v2255
        %2278 = vmatpush1.msra.mxu0 %v2254
        %2279 = vmatprep.subr.mxu0 %v2253
        %2280 = vmatpush1.msra.mxu0 %v2252
        %2281 = vmatprep.subr.mxu0 %v2251
        %2282 = vmatpush1.msra.mxu0 %v2250
        %2283 = vmatprep.subr.mxu0 %v2249
        %2284 = vmatpush1.msra.mxu0 %v2248
        %2285 = vmatprep.subr.mxu0 %v2247
        %2286 = vmatpush1.msra.mxu0 %v2246
        %2287 = vmatprep.subr.mxu0 %v2245
        %2288 = vmatpush1.msra.mxu0 %v2244
        %2289 = vmatprep.subr.mxu0 %v2243
        %2290 = vmatpush1.msra.mxu0 %v2242
        %2291 = vmatprep.subr.mxu0 %v2241
        %2292 = vmatpush1.msra.mxu0 %v2240
        %2293 = vmatprep.subr.mxu0 0.0
        %2294 = vmatpush2.msra.mxu0 0.0
        %2295 = vmatprep.subr.mxu0 0.0
        %2296 = vmatpush2.msra.mxu0 0.0
        %2297 = vmatprep.subr.mxu0 0.0
        %2298 = vmatpush2.msra.mxu0 0.0
        %2299 = vmatprep.subr.mxu0 0.0
        %2300 = vmatpush2.msra.mxu0 0.0
        %2301 = vmatprep.subr.mxu0 0.0
        %2302 = vmatpush2.msra.mxu0 0.0
        %2303 = vmatprep.subr.mxu0 0.0
        %2304 = vmatpush2.msra.mxu0 0.0
        %2305 = vmatprep.subr.mxu0 0.0
        %2306 = vmatpush2.msra.mxu0 0.0
        %2307 = vmatprep.subr.mxu0 0.0
        %2308 = vmatpush2.msra.mxu0 0.0
        %2309 = vmatprep.subr.mxu0 0.0
        %2310 = vmatpush2.msra.mxu0 0.0
        %2311 = vmatprep.subr.mxu0 0.0
        %2312 = vmatpush2.msra.mxu0 0.0
        %2313 = vmatprep.subr.mxu0 0.0
        %2314 = vmatpush2.msra.mxu0 0.0
        %2315 = vmatprep.subr.mxu0 0.0
        %2316 = vmatpush2.msra.mxu0 0.0
        %2317 = vmatprep.subr.mxu0 0.0
        %2318 = vmatpush2.msra.mxu0 0.0
        %2319 = vmatprep.subr.mxu0 0.0
        %2320 = vmatpush2.msra.mxu0 0.0
        %2321 = vmatprep.subr.mxu0 0.0
        %2322 = vmatpush2.msra.mxu0 0.0
        %2323 = vmatprep.subr.mxu0 0.0
        %2324 = vmatpush2.msra.mxu0 0.0
        %2325 = vmatprep.mubr.f32.mxu0 0.0
        %2326 = vmatmul.mubr.f32.gmra.mxu0 %v2259
        %v2327 = vpop.f32.mrf.mxu0
        %v2328 = vadd.f32 %v1884, %v2327
        %v2329 = vpop.f32.mrf.mxu0
        %v2330 = vadd.f32 %v1888, %v2329
        %2331 = vdwg.mxu0
        %v2333 = vrot.slane %v2328, 2
        %v2335 = vadd.f32 %v2238, %v2333
        %v2336 = vxor.u32 %v2335, 2147483648
        %v2337 = vmul.f32 %v2336, 1.442695
        %v2338 = vpow.pop %v2337
        %v2339 = vadd.f32 %v2338, 1.0
        %v2340 = vrcp.pop %v2339
        %v2341 = vmul.f32 1.0, %v2340
        %v2343 = vrot.slane %v2330, 2
        %v2345 = vmul.f32 %v2341, %v2343
        %v2346 = vadd.f32 %v2239, %v2345
        %v2347 = vtanh.pop %v2346
        %v2348 = vsub.f32 1.0, %v2341
        %2350 = vrot.lane.b32.xlu0 %v2347, 64
        %v2351 = vpop.permute.xlu0 %2350
        %v2353 = vmul.f32 %v2348, %v2351
        %v2354 = vrot.slane %v2231, 6
        %v2356 = vmul.f32 %v2341, %v2354
        %v2357 = vadd.f32 %v2353, %v2356
        %2359 = vrot.lane.b32.xlu0 %v2357, 64
        %v2360 = vpop.permute.xlu0 %2359
        %vm2362 = vcmask 523270
        %2363 = vst.msk [vmem:[#allocation3] sm:$0xc0] %vm2362, %v2360
        %v2364 = vld [vmem:[#allocation2 + $0x10] sm:$0x3]
        %v2365 = vld [vmem:[#allocation2 + $0x18] sm:$0x3]
        %v2366 = vld [vmem:[%s1055] sm:$0xff]
        %v2367 = vld [vmem:[%s1055 + $0x8] sm:$0xff]
        %v2368 = vld [vmem:[%s1055 + $0x10] sm:$0xff]
        %v2369 = vld [vmem:[%s1055 + $0x18] sm:$0xff]
        %v2370 = vld [vmem:[%s1055 + $0x20] sm:$0xff]
        %v2371 = vld [vmem:[%s1055 + $0x28] sm:$0xff]
        %v2372 = vld [vmem:[%s1055 + $0x30] sm:$0xff]
        %v2373 = vld [vmem:[%s1055 + $0x38] sm:$0xff]
        %v2374 = vld [vmem:[%s1055 + $0x40] sm:$0xff]
        %v2375 = vld [vmem:[%s1055 + $0x48] sm:$0xff]
        %v2376 = vld [vmem:[%s1055 + $0x50] sm:$0xff]
        %v2377 = vld [vmem:[%s1055 + $0x58] sm:$0xff]
        %v2378 = vld [vmem:[%s1055 + $0x60] sm:$0xff]
        %v2379 = vld [vmem:[%s1055 + $0x68] sm:$0xff]
        %v2380 = vld [vmem:[%s1055 + $0x70] sm:$0xff]
        %v2381 = vld [vmem:[%s1055 + $0x78] sm:$0xff]
        %v2382 = vrot.slane %v2357, 6
        %2383 = vrot.lane.b32.xlu0 %v2382, 64
        %v2384 = vpop.permute.xlu0 %2383
        %v2385 = vsel %vm1751, %v2384, 0
        %2387 = vmatprep.subr.mxu0 0.0
        %2388 = vmatpush1.msra.mxu0 0.0
        %2389 = vmatprep.subr.mxu0 0.0
        %2390 = vmatpush1.msra.mxu0 0.0
        %2391 = vmatprep.subr.mxu0 0.0
        %2392 = vmatpush1.msra.mxu0 0.0
        %2393 = vmatprep.subr.mxu0 0.0
        %2394 = vmatpush1.msra.mxu0 0.0
        %2395 = vmatprep.subr.mxu0 0.0
        %2396 = vmatpush1.msra.mxu0 0.0
        %2397 = vmatprep.subr.mxu0 0.0
        %2398 = vmatpush1.msra.mxu0 0.0
        %2399 = vmatprep.subr.mxu0 0.0
        %2400 = vmatpush1.msra.mxu0 0.0
        %2401 = vmatprep.subr.mxu0 0.0
        %2402 = vmatpush1.msra.mxu0 0.0
        %2403 = vmatprep.subr.mxu0 %v2381
        %2404 = vmatpush1.msra.mxu0 %v2380
        %2405 = vmatprep.subr.mxu0 %v2379
        %2406 = vmatpush1.msra.mxu0 %v2378
        %2407 = vmatprep.subr.mxu0 %v2377
        %2408 = vmatpush1.msra.mxu0 %v2376
        %2409 = vmatprep.subr.mxu0 %v2375
        %2410 = vmatpush1.msra.mxu0 %v2374
        %2411 = vmatprep.subr.mxu0 %v2373
        %2412 = vmatpush1.msra.mxu0 %v2372
        %2413 = vmatprep.subr.mxu0 %v2371
        %2414 = vmatpush1.msra.mxu0 %v2370
        %2415 = vmatprep.subr.mxu0 %v2369
        %2416 = vmatpush1.msra.mxu0 %v2368
        %2417 = vmatprep.subr.mxu0 %v2367
        %2418 = vmatpush1.msra.mxu0 %v2366
        %2419 = vmatprep.subr.mxu0 0.0
        %2420 = vmatpush2.msra.mxu0 0.0
        %2421 = vmatprep.subr.mxu0 0.0
        %2422 = vmatpush2.msra.mxu0 0.0
        %2423 = vmatprep.subr.mxu0 0.0
        %2424 = vmatpush2.msra.mxu0 0.0
        %2425 = vmatprep.subr.mxu0 0.0
        %2426 = vmatpush2.msra.mxu0 0.0
        %2427 = vmatprep.subr.mxu0 0.0
        %2428 = vmatpush2.msra.mxu0 0.0
        %2429 = vmatprep.subr.mxu0 0.0
        %2430 = vmatpush2.msra.mxu0 0.0
        %2431 = vmatprep.subr.mxu0 0.0
        %2432 = vmatpush2.msra.mxu0 0.0
        %2433 = vmatprep.subr.mxu0 0.0
        %2434 = vmatpush2.msra.mxu0 0.0
        %2435 = vmatprep.subr.mxu0 0.0
        %2436 = vmatpush2.msra.mxu0 0.0
        %2437 = vmatprep.subr.mxu0 0.0
        %2438 = vmatpush2.msra.mxu0 0.0
        %2439 = vmatprep.subr.mxu0 0.0
        %2440 = vmatpush2.msra.mxu0 0.0
        %2441 = vmatprep.subr.mxu0 0.0
        %2442 = vmatpush2.msra.mxu0 0.0
        %2443 = vmatprep.subr.mxu0 0.0
        %2444 = vmatpush2.msra.mxu0 0.0
        %2445 = vmatprep.subr.mxu0 0.0
        %2446 = vmatpush2.msra.mxu0 0.0
        %2447 = vmatprep.subr.mxu0 0.0
        %2448 = vmatpush2.msra.mxu0 0.0
        %2449 = vmatprep.subr.mxu0 0.0
        %2450 = vmatpush2.msra.mxu0 0.0
        %2451 = vmatprep.mubr.f32.mxu0 0.0
        %2452 = vmatmul.mubr.f32.gmra.mxu0 %v2385
        %v2453 = vpop.f32.mrf.mxu0
        %v2454 = vadd.f32 %v1884, %v2453
        %v2455 = vpop.f32.mrf.mxu0
        %v2456 = vadd.f32 %v1888, %v2455
        %2457 = vdwg.mxu0
        %v2458 = vadd.f32 %v2364, %v2454
        %v2459 = vxor.u32 %v2458, 2147483648
        %v2460 = vmul.f32 %v2459, 1.442695
        %v2461 = vpow.pop %v2460
        %v2462 = vadd.f32 %v2461, 1.0
        %v2463 = vrcp.pop %v2462
        %v2464 = vmul.f32 1.0, %v2463
        %v2465 = vmul.f32 %v2464, %v2456
        %v2466 = vadd.f32 %v2365, %v2465
        %v2467 = vtanh.pop %v2466
        %v2468 = vsub.f32 1.0, %v2464
        %2470 = vrot.lane.b32.xlu0 %v2467, 64
        %v2471 = vpop.permute.xlu0 %2470
        %v2473 = vmul.f32 %v2468, %v2471
        %v2475 = vmul.f32 %v2464, %v2382
        %v2476 = vadd.f32 %v2473, %v2475
        %2478 = vrot.lane.b32.xlu0 %v2476, 64
        %v2479 = vpop.permute.xlu0 %2478
        %2481 = vst.msk [vmem:[#allocation3 + $0x8] sm:$0x3] %vm1987, %v2479
        %v2482 = vld [vmem:[#allocation2 + $0x10] sm:$0xc]
        %v2483 = vld [vmem:[#allocation2 + $0x18] sm:$0xc]
        %v2484 = vld [vmem:[%s1055] sm:$0xff]
        %v2485 = vld [vmem:[%s1055 + $0x8] sm:$0xff]
        %v2486 = vld [vmem:[%s1055 + $0x10] sm:$0xff]
        %v2487 = vld [vmem:[%s1055 + $0x18] sm:$0xff]
        %v2488 = vld [vmem:[%s1055 + $0x20] sm:$0xff]
        %v2489 = vld [vmem:[%s1055 + $0x28] sm:$0xff]
        %v2490 = vld [vmem:[%s1055 + $0x30] sm:$0xff]
        %v2491 = vld [vmem:[%s1055 + $0x38] sm:$0xff]
        %v2492 = vld [vmem:[%s1055 + $0x40] sm:$0xff]
        %v2493 = vld [vmem:[%s1055 + $0x48] sm:$0xff]
        %v2494 = vld [vmem:[%s1055 + $0x50] sm:$0xff]
        %v2495 = vld [vmem:[%s1055 + $0x58] sm:$0xff]
        %v2496 = vld [vmem:[%s1055 + $0x60] sm:$0xff]
        %v2497 = vld [vmem:[%s1055 + $0x68] sm:$0xff]
        %v2498 = vld [vmem:[%s1055 + $0x70] sm:$0xff]
        %v2499 = vld [vmem:[%s1055 + $0x78] sm:$0xff]
        %v2500 = vsel %vm1751, %v2479, 0
        %2502 = vmatprep.subr.mxu0 0.0
        %2503 = vmatpush1.msra.mxu0 0.0
        %2504 = vmatprep.subr.mxu0 0.0
        %2505 = vmatpush1.msra.mxu0 0.0
        %2506 = vmatprep.subr.mxu0 0.0
        %2507 = vmatpush1.msra.mxu0 0.0
        %2508 = vmatprep.subr.mxu0 0.0
        %2509 = vmatpush1.msra.mxu0 0.0
        %2510 = vmatprep.subr.mxu0 0.0
        %2511 = vmatpush1.msra.mxu0 0.0
        %2512 = vmatprep.subr.mxu0 0.0
        %2513 = vmatpush1.msra.mxu0 0.0
        %2514 = vmatprep.subr.mxu0 0.0
        %2515 = vmatpush1.msra.mxu0 0.0
        %2516 = vmatprep.subr.mxu0 0.0
        %2517 = vmatpush1.msra.mxu0 0.0
        %2518 = vmatprep.subr.mxu0 %v2499
        %2519 = vmatpush1.msra.mxu0 %v2498
        %2520 = vmatprep.subr.mxu0 %v2497
        %2521 = vmatpush1.msra.mxu0 %v2496
        %2522 = vmatprep.subr.mxu0 %v2495
        %2523 = vmatpush1.msra.mxu0 %v2494
        %2524 = vmatprep.subr.mxu0 %v2493
        %2525 = vmatpush1.msra.mxu0 %v2492
        %2526 = vmatprep.subr.mxu0 %v2491
        %2527 = vmatpush1.msra.mxu0 %v2490
        %2528 = vmatprep.subr.mxu0 %v2489
        %2529 = vmatpush1.msra.mxu0 %v2488
        %2530 = vmatprep.subr.mxu0 %v2487
        %2531 = vmatpush1.msra.mxu0 %v2486
        %2532 = vmatprep.subr.mxu0 %v2485
        %2533 = vmatpush1.msra.mxu0 %v2484
        %2534 = vmatprep.subr.mxu0 0.0
        %2535 = vmatpush2.msra.mxu0 0.0
        %2536 = vmatprep.subr.mxu0 0.0
        %2537 = vmatpush2.msra.mxu0 0.0
        %2538 = vmatprep.subr.mxu0 0.0
        %2539 = vmatpush2.msra.mxu0 0.0
        %2540 = vmatprep.subr.mxu0 0.0
        %2541 = vmatpush2.msra.mxu0 0.0
        %2542 = vmatprep.subr.mxu0 0.0
        %2543 = vmatpush2.msra.mxu0 0.0
        %2544 = vmatprep.subr.mxu0 0.0
        %2545 = vmatpush2.msra.mxu0 0.0
        %2546 = vmatprep.subr.mxu0 0.0
        %2547 = vmatpush2.msra.mxu0 0.0
        %2548 = vmatprep.subr.mxu0 0.0
        %2549 = vmatpush2.msra.mxu0 0.0
        %2550 = vmatprep.subr.mxu0 0.0
        %2551 = vmatpush2.msra.mxu0 0.0
        %2552 = vmatprep.subr.mxu0 0.0
        %2553 = vmatpush2.msra.mxu0 0.0
        %2554 = vmatprep.subr.mxu0 0.0
        %2555 = vmatpush2.msra.mxu0 0.0
        %2556 = vmatprep.subr.mxu0 0.0
        %2557 = vmatpush2.msra.mxu0 0.0
        %2558 = vmatprep.subr.mxu0 0.0
        %2559 = vmatpush2.msra.mxu0 0.0
        %2560 = vmatprep.subr.mxu0 0.0
        %2561 = vmatpush2.msra.mxu0 0.0
        %2562 = vmatprep.subr.mxu0 0.0
        %2563 = vmatpush2.msra.mxu0 0.0
        %2564 = vmatprep.subr.mxu0 0.0
        %2565 = vmatpush2.msra.mxu0 0.0
        %2566 = vmatprep.mubr.f32.mxu0 0.0
        %2567 = vmatmul.mubr.f32.gmra.mxu0 %v2500
        %v2568 = vpop.f32.mrf.mxu0
        %v2569 = vadd.f32 %v1884, %v2568
        %v2570 = vpop.f32.mrf.mxu0
        %v2571 = vadd.f32 %v1888, %v2570
        %2572 = vdwg.mxu0
        %v2574 = vrot.slane %v2569, 6
        %v2576 = vadd.f32 %v2482, %v2574
        %v2577 = vxor.u32 %v2576, 2147483648
        %v2578 = vmul.f32 %v2577, 1.442695
        %v2579 = vpow.pop %v2578
        %v2580 = vadd.f32 %v2579, 1.0
        %v2581 = vrcp.pop %v2580
        %v2582 = vmul.f32 1.0, %v2581
        %v2584 = vrot.slane %v2571, 6
        %v2586 = vmul.f32 %v2582, %v2584
        %v2587 = vadd.f32 %v2483, %v2586
        %v2588 = vtanh.pop %v2587
        %v2589 = vsub.f32 1.0, %v2582
        %2591 = vrot.lane.b32.xlu0 %v2588, 64
        %v2592 = vpop.permute.xlu0 %2591
        %v2594 = vmul.f32 %v2589, %v2592
        %v2595 = vrot.slane %v2476, 6
        %v2597 = vmul.f32 %v2582, %v2595
        %v2598 = vadd.f32 %v2594, %v2597
        %2600 = vrot.lane.b32.xlu0 %v2598, 64
        %v2601 = vpop.permute.xlu0 %2600
        %2603 = vst.msk [vmem:[#allocation3 + $0x8] sm:$0xc] %vm2110, %v2601
        %v2604 = vld [vmem:[#allocation2 + $0x10] sm:$0x30]
        %v2605 = vld [vmem:[#allocation2 + $0x18] sm:$0x30]
        %v2606 = vld [vmem:[%s1055] sm:$0xff]
        %v2607 = vld [vmem:[%s1055 + $0x8] sm:$0xff]
        %v2608 = vld [vmem:[%s1055 + $0x10] sm:$0xff]
        %v2609 = vld [vmem:[%s1055 + $0x18] sm:$0xff]
        %v2610 = vld [vmem:[%s1055 + $0x20] sm:$0xff]
        %v2611 = vld [vmem:[%s1055 + $0x28] sm:$0xff]
        %v2612 = vld [vmem:[%s1055 + $0x30] sm:$0xff]
        %v2613 = vld [vmem:[%s1055 + $0x38] sm:$0xff]
        %v2614 = vld [vmem:[%s1055 + $0x40] sm:$0xff]
        %v2615 = vld [vmem:[%s1055 + $0x48] sm:$0xff]
        %v2616 = vld [vmem:[%s1055 + $0x50] sm:$0xff]
        %v2617 = vld [vmem:[%s1055 + $0x58] sm:$0xff]
        %v2618 = vld [vmem:[%s1055 + $0x60] sm:$0xff]
        %v2619 = vld [vmem:[%s1055 + $0x68] sm:$0xff]
        %v2620 = vld [vmem:[%s1055 + $0x70] sm:$0xff]
        %v2621 = vld [vmem:[%s1055 + $0x78] sm:$0xff]
        %v2622 = vrot.slane %v2598, 2
        %2623 = vrot.lane.b32.xlu0 %v2622, 64
        %v2624 = vpop.permute.xlu0 %2623
        %v2625 = vsel %vm1751, %v2624, 0
        %2627 = vmatprep.subr.mxu0 0.0
        %2628 = vmatpush1.msra.mxu0 0.0
        %2629 = vmatprep.subr.mxu0 0.0
        %2630 = vmatpush1.msra.mxu0 0.0
        %2631 = vmatprep.subr.mxu0 0.0
        %2632 = vmatpush1.msra.mxu0 0.0
        %2633 = vmatprep.subr.mxu0 0.0
        %2634 = vmatpush1.msra.mxu0 0.0
        %2635 = vmatprep.subr.mxu0 0.0
        %2636 = vmatpush1.msra.mxu0 0.0
        %2637 = vmatprep.subr.mxu0 0.0
        %2638 = vmatpush1.msra.mxu0 0.0
        %2639 = vmatprep.subr.mxu0 0.0
        %2640 = vmatpush1.msra.mxu0 0.0
        %2641 = vmatprep.subr.mxu0 0.0
        %2642 = vmatpush1.msra.mxu0 0.0
        %2643 = vmatprep.subr.mxu0 %v2621
        %2644 = vmatpush1.msra.mxu0 %v2620
        %2645 = vmatprep.subr.mxu0 %v2619
        %2646 = vmatpush1.msra.mxu0 %v2618
        %2647 = vmatprep.subr.mxu0 %v2617
        %2648 = vmatpush1.msra.mxu0 %v2616
        %2649 = vmatprep.subr.mxu0 %v2615
        %2650 = vmatpush1.msra.mxu0 %v2614
        %2651 = vmatprep.subr.mxu0 %v2613
        %2652 = vmatpush1.msra.mxu0 %v2612
        %2653 = vmatprep.subr.mxu0 %v2611
        %2654 = vmatpush1.msra.mxu0 %v2610
        %2655 = vmatprep.subr.mxu0 %v2609
        %2656 = vmatpush1.msra.mxu0 %v2608
        %2657 = vmatprep.subr.mxu0 %v2607
        %2658 = vmatpush1.msra.mxu0 %v2606
        %2659 = vmatprep.subr.mxu0 0.0
        %2660 = vmatpush2.msra.mxu0 0.0
        %2661 = vmatprep.subr.mxu0 0.0
        %2662 = vmatpush2.msra.mxu0 0.0
        %2663 = vmatprep.subr.mxu0 0.0
        %2664 = vmatpush2.msra.mxu0 0.0
        %2665 = vmatprep.subr.mxu0 0.0
        %2666 = vmatpush2.msra.mxu0 0.0
        %2667 = vmatprep.subr.mxu0 0.0
        %2668 = vmatpush2.msra.mxu0 0.0
        %2669 = vmatprep.subr.mxu0 0.0
        %2670 = vmatpush2.msra.mxu0 0.0
        %2671 = vmatprep.subr.mxu0 0.0
        %2672 = vmatpush2.msra.mxu0 0.0
        %2673 = vmatprep.subr.mxu0 0.0
        %2674 = vmatpush2.msra.mxu0 0.0
        %2675 = vmatprep.subr.mxu0 0.0
        %2676 = vmatpush2.msra.mxu0 0.0
        %2677 = vmatprep.subr.mxu0 0.0
        %2678 = vmatpush2.msra.mxu0 0.0
        %2679 = vmatprep.subr.mxu0 0.0
        %2680 = vmatpush2.msra.mxu0 0.0
        %2681 = vmatprep.subr.mxu0 0.0
        %2682 = vmatpush2.msra.mxu0 0.0
        %2683 = vmatprep.subr.mxu0 0.0
        %2684 = vmatpush2.msra.mxu0 0.0
        %2685 = vmatprep.subr.mxu0 0.0
        %2686 = vmatpush2.msra.mxu0 0.0
        %2687 = vmatprep.subr.mxu0 0.0
        %2688 = vmatpush2.msra.mxu0 0.0
        %2689 = vmatprep.subr.mxu0 0.0
        %2690 = vmatpush2.msra.mxu0 0.0
        %2691 = vmatprep.mubr.f32.mxu0 0.0
        %2692 = vmatmul.mubr.f32.gmra.mxu0 %v2625
        %v2693 = vpop.f32.mrf.mxu0
        %v2694 = vadd.f32 %v1884, %v2693
        %v2695 = vpop.f32.mrf.mxu0
        %v2696 = vadd.f32 %v1888, %v2695
        %2697 = vdwg.mxu0
        %v2699 = vrot.slane %v2694, 4
        %v2701 = vadd.f32 %v2604, %v2699
        %v2702 = vxor.u32 %v2701, 2147483648
        %v2703 = vmul.f32 %v2702, 1.442695
        %v2704 = vpow.pop %v2703
        %v2705 = vadd.f32 %v2704, 1.0
        %v2706 = vrcp.pop %v2705
        %v2707 = vmul.f32 1.0, %v2706
        %v2709 = vrot.slane %v2696, 4
        %v2711 = vmul.f32 %v2707, %v2709
        %v2712 = vadd.f32 %v2605, %v2711
        %v2713 = vtanh.pop %v2712
        %v2714 = vsub.f32 1.0, %v2707
        %2716 = vrot.lane.b32.xlu0 %v2713, 64
        %v2717 = vpop.permute.xlu0 %2716
        %v2719 = vmul.f32 %v2714, %v2717
        %v2720 = vrot.slane %v2598, 6
        %v2722 = vmul.f32 %v2707, %v2720
        %v2723 = vadd.f32 %v2719, %v2722
        %2725 = vrot.lane.b32.xlu0 %v2723, 64
        %v2726 = vpop.permute.xlu0 %2725
        %2728 = vst.msk [vmem:[#allocation3 + $0x8] sm:$0x30] %vm2236, %v2726
        %v2729 = vld [vmem:[#allocation2 + $0x10] sm:$0xc0]
        %v2730 = vld [vmem:[#allocation2 + $0x18] sm:$0xc0]
        %v2731 = vld [vmem:[%s1055] sm:$0xff]
        %v2732 = vld [vmem:[%s1055 + $0x8] sm:$0xff]
        %v2733 = vld [vmem:[%s1055 + $0x10] sm:$0xff]
        %v2734 = vld [vmem:[%s1055 + $0x18] sm:$0xff]
        %v2735 = vld [vmem:[%s1055 + $0x20] sm:$0xff]
        %v2736 = vld [vmem:[%s1055 + $0x28] sm:$0xff]
        %v2737 = vld [vmem:[%s1055 + $0x30] sm:$0xff]
        %v2738 = vld [vmem:[%s1055 + $0x38] sm:$0xff]
        %v2739 = vld [vmem:[%s1055 + $0x40] sm:$0xff]
        %v2740 = vld [vmem:[%s1055 + $0x48] sm:$0xff]
        %v2741 = vld [vmem:[%s1055 + $0x50] sm:$0xff]
        %v2742 = vld [vmem:[%s1055 + $0x58] sm:$0xff]
        %v2743 = vld [vmem:[%s1055 + $0x60] sm:$0xff]
        %v2744 = vld [vmem:[%s1055 + $0x68] sm:$0xff]
        %v2745 = vld [vmem:[%s1055 + $0x70] sm:$0xff]
        %v2746 = vld [vmem:[%s1055 + $0x78] sm:$0xff]
        %v2747 = vrot.slane %v2723, 4
        %2748 = vrot.lane.b32.xlu0 %v2747, 64
        %v2749 = vpop.permute.xlu0 %2748
        %v2750 = vsel %vm1751, %v2749, 0
        %2752 = vmatprep.subr.mxu0 0.0
        %2753 = vmatpush1.msra.mxu0 0.0
        %2754 = vmatprep.subr.mxu0 0.0
        %2755 = vmatpush1.msra.mxu0 0.0
        %2756 = vmatprep.subr.mxu0 0.0
        %2757 = vmatpush1.msra.mxu0 0.0
        %2758 = vmatprep.subr.mxu0 0.0
        %2759 = vmatpush1.msra.mxu0 0.0
        %2760 = vmatprep.subr.mxu0 0.0
        %2761 = vmatpush1.msra.mxu0 0.0
        %2762 = vmatprep.subr.mxu0 0.0
        %2763 = vmatpush1.msra.mxu0 0.0
        %2764 = vmatprep.subr.mxu0 0.0
        %2765 = vmatpush1.msra.mxu0 0.0
        %2766 = vmatprep.subr.mxu0 0.0
        %2767 = vmatpush1.msra.mxu0 0.0
        %2768 = vmatprep.subr.mxu0 %v2746
        %2769 = vmatpush1.msra.mxu0 %v2745
        %2770 = vmatprep.subr.mxu0 %v2744
        %2771 = vmatpush1.msra.mxu0 %v2743
        %2772 = vmatprep.subr.mxu0 %v2742
        %2773 = vmatpush1.msra.mxu0 %v2741
        %2774 = vmatprep.subr.mxu0 %v2740
        %2775 = vmatpush1.msra.mxu0 %v2739
        %2776 = vmatprep.subr.mxu0 %v2738
        %2777 = vmatpush1.msra.mxu0 %v2737
        %2778 = vmatprep.subr.mxu0 %v2736
        %2779 = vmatpush1.msra.mxu0 %v2735
        %2780 = vmatprep.subr.mxu0 %v2734
        %2781 = vmatpush1.msra.mxu0 %v2733
        %2782 = vmatprep.subr.mxu0 %v2732
        %2783 = vmatpush1.msra.mxu0 %v2731
        %2784 = vmatprep.subr.mxu0 0.0
        %2785 = vmatpush2.msra.mxu0 0.0
        %2786 = vmatprep.subr.mxu0 0.0
        %2787 = vmatpush2.msra.mxu0 0.0
        %2788 = vmatprep.subr.mxu0 0.0
        %2789 = vmatpush2.msra.mxu0 0.0
        %2790 = vmatprep.subr.mxu0 0.0
        %2791 = vmatpush2.msra.mxu0 0.0
        %2792 = vmatprep.subr.mxu0 0.0
        %2793 = vmatpush2.msra.mxu0 0.0
        %2794 = vmatprep.subr.mxu0 0.0
        %2795 = vmatpush2.msra.mxu0 0.0
        %2796 = vmatprep.subr.mxu0 0.0
        %2797 = vmatpush2.msra.mxu0 0.0
        %2798 = vmatprep.subr.mxu0 0.0
        %2799 = vmatpush2.msra.mxu0 0.0
        %2800 = vmatprep.subr.mxu0 0.0
        %2801 = vmatpush2.msra.mxu0 0.0
        %2802 = vmatprep.subr.mxu0 0.0
        %2803 = vmatpush2.msra.mxu0 0.0
        %2804 = vmatprep.subr.mxu0 0.0
        %2805 = vmatpush2.msra.mxu0 0.0
        %2806 = vmatprep.subr.mxu0 0.0
        %2807 = vmatpush2.msra.mxu0 0.0
        %2808 = vmatprep.subr.mxu0 0.0
        %2809 = vmatpush2.msra.mxu0 0.0
        %2810 = vmatprep.subr.mxu0 0.0
        %2811 = vmatpush2.msra.mxu0 0.0
        %2812 = vmatprep.subr.mxu0 0.0
        %2813 = vmatpush2.msra.mxu0 0.0
        %2814 = vmatprep.subr.mxu0 0.0
        %2815 = vmatpush2.msra.mxu0 0.0
        %2816 = vmatprep.mubr.f32.mxu0 0.0
        %2817 = vmatmul.mubr.f32.gmra.mxu0 %v2750
        %v2818 = vpop.f32.mrf.mxu0
        %v2819 = vadd.f32 %v1884, %v2818
        %v2820 = vpop.f32.mrf.mxu0
        %v2821 = vadd.f32 %v1888, %v2820
        %2822 = vdwg.mxu0
        %v2824 = vrot.slane %v2819, 2
        %v2826 = vadd.f32 %v2729, %v2824
        %v2827 = vxor.u32 %v2826, 2147483648
        %v2828 = vmul.f32 %v2827, 1.442695
        %v2829 = vpow.pop %v2828
        %v2830 = vadd.f32 %v2829, 1.0
        %v2831 = vrcp.pop %v2830
        %v2832 = vmul.f32 1.0, %v2831
        %v2834 = vrot.slane %v2821, 2
        %v2836 = vmul.f32 %v2832, %v2834
        %v2837 = vadd.f32 %v2730, %v2836
        %v2838 = vtanh.pop %v2837
        %v2839 = vsub.f32 1.0, %v2832
        %2841 = vrot.lane.b32.xlu0 %v2838, 64
        %v2842 = vpop.permute.xlu0 %2841
        %v2844 = vmul.f32 %v2839, %v2842
        %v2845 = vrot.slane %v2723, 6
        %v2847 = vmul.f32 %v2832, %v2845
        %v2848 = vadd.f32 %v2844, %v2847
        %2850 = vrot.lane.b32.xlu0 %v2848, 64
        %v2851 = vpop.permute.xlu0 %2850
        %2853 = vst.msk [vmem:[#allocation3 + $0x8] sm:$0xc0] %vm2362, %v2851
        %v2854 = vld [vmem:[#allocation2 + $0x20] sm:$0x3]
        %v2855 = vld [vmem:[#allocation2 + $0x28] sm:$0x3]
        %v2856 = vld [vmem:[%s1055] sm:$0xff]
        %v2857 = vld [vmem:[%s1055 + $0x8] sm:$0xff]
        %v2858 = vld [vmem:[%s1055 + $0x10] sm:$0xff]
        %v2859 = vld [vmem:[%s1055 + $0x18] sm:$0xff]
        %v2860 = vld [vmem:[%s1055 + $0x20] sm:$0xff]
        %v2861 = vld [vmem:[%s1055 + $0x28] sm:$0xff]
        %v2862 = vld [vmem:[%s1055 + $0x30] sm:$0xff]
        %v2863 = vld [vmem:[%s1055 + $0x38] sm:$0xff]
        %v2864 = vld [vmem:[%s1055 + $0x40] sm:$0xff]
        %v2865 = vld [vmem:[%s1055 + $0x48] sm:$0xff]
        %v2866 = vld [vmem:[%s1055 + $0x50] sm:$0xff]
        %v2867 = vld [vmem:[%s1055 + $0x58] sm:$0xff]
        %v2868 = vld [vmem:[%s1055 + $0x60] sm:$0xff]
        %v2869 = vld [vmem:[%s1055 + $0x68] sm:$0xff]
        %v2870 = vld [vmem:[%s1055 + $0x70] sm:$0xff]
        %v2871 = vld [vmem:[%s1055 + $0x78] sm:$0xff]
        %v2872 = vrot.slane %v2848, 6
        %2873 = vrot.lane.b32.xlu0 %v2872, 64
        %v2874 = vpop.permute.xlu0 %2873
        %v2875 = vsel %vm1751, %v2874, 0
        %2877 = vmatprep.subr.mxu0 0.0
        %2878 = vmatpush1.msra.mxu0 0.0
        %2879 = vmatprep.subr.mxu0 0.0
        %2880 = vmatpush1.msra.mxu0 0.0
        %2881 = vmatprep.subr.mxu0 0.0
        %2882 = vmatpush1.msra.mxu0 0.0
        %2883 = vmatprep.subr.mxu0 0.0
        %2884 = vmatpush1.msra.mxu0 0.0
        %2885 = vmatprep.subr.mxu0 0.0
        %2886 = vmatpush1.msra.mxu0 0.0
        %2887 = vmatprep.subr.mxu0 0.0
        %2888 = vmatpush1.msra.mxu0 0.0
        %2889 = vmatprep.subr.mxu0 0.0
        %2890 = vmatpush1.msra.mxu0 0.0
        %2891 = vmatprep.subr.mxu0 0.0
        %2892 = vmatpush1.msra.mxu0 0.0
        %2893 = vmatprep.subr.mxu0 %v2871
        %2894 = vmatpush1.msra.mxu0 %v2870
        %2895 = vmatprep.subr.mxu0 %v2869
        %2896 = vmatpush1.msra.mxu0 %v2868
        %2897 = vmatprep.subr.mxu0 %v2867
        %2898 = vmatpush1.msra.mxu0 %v2866
        %2899 = vmatprep.subr.mxu0 %v2865
        %2900 = vmatpush1.msra.mxu0 %v2864
        %2901 = vmatprep.subr.mxu0 %v2863
        %2902 = vmatpush1.msra.mxu0 %v2862
        %2903 = vmatprep.subr.mxu0 %v2861
        %2904 = vmatpush1.msra.mxu0 %v2860
        %2905 = vmatprep.subr.mxu0 %v2859
        %2906 = vmatpush1.msra.mxu0 %v2858
        %2907 = vmatprep.subr.mxu0 %v2857
        %2908 = vmatpush1.msra.mxu0 %v2856
        %2909 = vmatprep.subr.mxu0 0.0
        %2910 = vmatpush2.msra.mxu0 0.0
        %2911 = vmatprep.subr.mxu0 0.0
        %2912 = vmatpush2.msra.mxu0 0.0
        %2913 = vmatprep.subr.mxu0 0.0
        %2914 = vmatpush2.msra.mxu0 0.0
        %2915 = vmatprep.subr.mxu0 0.0
        %2916 = vmatpush2.msra.mxu0 0.0
        %2917 = vmatprep.subr.mxu0 0.0
        %2918 = vmatpush2.msra.mxu0 0.0
        %2919 = vmatprep.subr.mxu0 0.0
        %2920 = vmatpush2.msra.mxu0 0.0
        %2921 = vmatprep.subr.mxu0 0.0
        %2922 = vmatpush2.msra.mxu0 0.0
        %2923 = vmatprep.subr.mxu0 0.0
        %2924 = vmatpush2.msra.mxu0 0.0
        %2925 = vmatprep.subr.mxu0 0.0
        %2926 = vmatpush2.msra.mxu0 0.0
        %2927 = vmatprep.subr.mxu0 0.0
        %2928 = vmatpush2.msra.mxu0 0.0
        %2929 = vmatprep.subr.mxu0 0.0
        %2930 = vmatpush2.msra.mxu0 0.0
        %2931 = vmatprep.subr.mxu0 0.0
        %2932 = vmatpush2.msra.mxu0 0.0
        %2933 = vmatprep.subr.mxu0 0.0
        %2934 = vmatpush2.msra.mxu0 0.0
        %2935 = vmatprep.subr.mxu0 0.0
        %2936 = vmatpush2.msra.mxu0 0.0
        %2937 = vmatprep.subr.mxu0 0.0
        %2938 = vmatpush2.msra.mxu0 0.0
        %2939 = vmatprep.subr.mxu0 0.0
        %2940 = vmatpush2.msra.mxu0 0.0
        %2941 = vmatprep.mubr.f32.mxu0 0.0
        %2942 = vmatmul.mubr.f32.gmra.mxu0 %v2875
        %v2943 = vpop.f32.mrf.mxu0
        %v2944 = vadd.f32 %v1884, %v2943
        %v2945 = vpop.f32.mrf.mxu0
        %v2946 = vadd.f32 %v1888, %v2945
        %2947 = vdwg.mxu0
        %v2948 = vadd.f32 %v2854, %v2944
        %v2949 = vxor.u32 %v2948, 2147483648
        %v2950 = vmul.f32 %v2949, 1.442695
        %v2951 = vpow.pop %v2950
        %v2952 = vadd.f32 %v2951, 1.0
        %v2953 = vrcp.pop %v2952
        %v2954 = vmul.f32 1.0, %v2953
        %v2955 = vmul.f32 %v2954, %v2946
        %v2956 = vadd.f32 %v2855, %v2955
        %v2957 = vtanh.pop %v2956
        %v2958 = vsub.f32 1.0, %v2954
        %2960 = vrot.lane.b32.xlu0 %v2957, 64
        %v2961 = vpop.permute.xlu0 %2960
        %v2963 = vmul.f32 %v2958, %v2961
        %v2965 = vmul.f32 %v2954, %v2872
        %v2966 = vadd.f32 %v2963, %v2965
        %2968 = vrot.lane.b32.xlu0 %v2966, 64
        %v2969 = vpop.permute.xlu0 %2968
        %2971 = vst.msk [vmem:[#allocation3 + $0x10] sm:$0x3] %vm1987, %v2969
        %v2972 = vld [vmem:[#allocation2 + $0x20] sm:$0xc]
        %v2973 = vld [vmem:[#allocation2 + $0x28] sm:$0xc]
        %v2974 = vld [vmem:[%s1055] sm:$0xff]
        %v2975 = vld [vmem:[%s1055 + $0x8] sm:$0xff]
        %v2976 = vld [vmem:[%s1055 + $0x10] sm:$0xff]
        %v2977 = vld [vmem:[%s1055 + $0x18] sm:$0xff]
        %v2978 = vld [vmem:[%s1055 + $0x20] sm:$0xff]
        %v2979 = vld [vmem:[%s1055 + $0x28] sm:$0xff]
        %v2980 = vld [vmem:[%s1055 + $0x30] sm:$0xff]
        %v2981 = vld [vmem:[%s1055 + $0x38] sm:$0xff]
        %v2982 = vld [vmem:[%s1055 + $0x40] sm:$0xff]
        %v2983 = vld [vmem:[%s1055 + $0x48] sm:$0xff]
        %v2984 = vld [vmem:[%s1055 + $0x50] sm:$0xff]
        %v2985 = vld [vmem:[%s1055 + $0x58] sm:$0xff]
        %v2986 = vld [vmem:[%s1055 + $0x60] sm:$0xff]
        %v2987 = vld [vmem:[%s1055 + $0x68] sm:$0xff]
        %v2988 = vld [vmem:[%s1055 + $0x70] sm:$0xff]
        %v2989 = vld [vmem:[%s1055 + $0x78] sm:$0xff]
        %v2990 = vsel %vm1751, %v2969, 0
        %2992 = vmatprep.subr.mxu0 0.0
        %2993 = vmatpush1.msra.mxu0 0.0
        %2994 = vmatprep.subr.mxu0 0.0
        %2995 = vmatpush1.msra.mxu0 0.0
        %2996 = vmatprep.subr.mxu0 0.0
        %2997 = vmatpush1.msra.mxu0 0.0
        %2998 = vmatprep.subr.mxu0 0.0
        %2999 = vmatpush1.msra.mxu0 0.0
        %3000 = vmatprep.subr.mxu0 0.0
        %3001 = vmatpush1.msra.mxu0 0.0
        %3002 = vmatprep.subr.mxu0 0.0
        %3003 = vmatpush1.msra.mxu0 0.0
        %3004 = vmatprep.subr.mxu0 0.0
        %3005 = vmatpush1.msra.mxu0 0.0
        %3006 = vmatprep.subr.mxu0 0.0
        %3007 = vmatpush1.msra.mxu0 0.0
        %3008 = vmatprep.subr.mxu0 %v2989
        %3009 = vmatpush1.msra.mxu0 %v2988
        %3010 = vmatprep.subr.mxu0 %v2987
        %3011 = vmatpush1.msra.mxu0 %v2986
        %3012 = vmatprep.subr.mxu0 %v2985
        %3013 = vmatpush1.msra.mxu0 %v2984
        %3014 = vmatprep.subr.mxu0 %v2983
        %3015 = vmatpush1.msra.mxu0 %v2982
        %3016 = vmatprep.subr.mxu0 %v2981
        %3017 = vmatpush1.msra.mxu0 %v2980
        %3018 = vmatprep.subr.mxu0 %v2979
        %3019 = vmatpush1.msra.mxu0 %v2978
        %3020 = vmatprep.subr.mxu0 %v2977
        %3021 = vmatpush1.msra.mxu0 %v2976
        %3022 = vmatprep.subr.mxu0 %v2975
        %3023 = vmatpush1.msra.mxu0 %v2974
        %3024 = vmatprep.subr.mxu0 0.0
        %3025 = vmatpush2.msra.mxu0 0.0
        %3026 = vmatprep.subr.mxu0 0.0
        %3027 = vmatpush2.msra.mxu0 0.0
        %3028 = vmatprep.subr.mxu0 0.0
        %3029 = vmatpush2.msra.mxu0 0.0
        %3030 = vmatprep.subr.mxu0 0.0
        %3031 = vmatpush2.msra.mxu0 0.0
        %3032 = vmatprep.subr.mxu0 0.0
        %3033 = vmatpush2.msra.mxu0 0.0
        %3034 = vmatprep.subr.mxu0 0.0
        %3035 = vmatpush2.msra.mxu0 0.0
        %3036 = vmatprep.subr.mxu0 0.0
        %3037 = vmatpush2.msra.mxu0 0.0
        %3038 = vmatprep.subr.mxu0 0.0
        %3039 = vmatpush2.msra.mxu0 0.0
        %3040 = vmatprep.subr.mxu0 0.0
        %3041 = vmatpush2.msra.mxu0 0.0
        %3042 = vmatprep.subr.mxu0 0.0
        %3043 = vmatpush2.msra.mxu0 0.0
        %3044 = vmatprep.subr.mxu0 0.0
        %3045 = vmatpush2.msra.mxu0 0.0
        %3046 = vmatprep.subr.mxu0 0.0
        %3047 = vmatpush2.msra.mxu0 0.0
        %3048 = vmatprep.subr.mxu0 0.0
        %3049 = vmatpush2.msra.mxu0 0.0
        %3050 = vmatprep.subr.mxu0 0.0
        %3051 = vmatpush2.msra.mxu0 0.0
        %3052 = vmatprep.subr.mxu0 0.0
        %3053 = vmatpush2.msra.mxu0 0.0
        %3054 = vmatprep.subr.mxu0 0.0
        %3055 = vmatpush2.msra.mxu0 0.0
        %3056 = vmatprep.mubr.f32.mxu0 0.0
        %3057 = vmatmul.mubr.f32.gmra.mxu0 %v2990
        %v3058 = vpop.f32.mrf.mxu0
        %v3059 = vadd.f32 %v1884, %v3058
        %v3060 = vpop.f32.mrf.mxu0
        %v3061 = vadd.f32 %v1888, %v3060
        %3062 = vdwg.mxu0
        %v3064 = vrot.slane %v3059, 6
        %v3066 = vadd.f32 %v2972, %v3064
        %v3067 = vxor.u32 %v3066, 2147483648
        %v3068 = vmul.f32 %v3067, 1.442695
        %v3069 = vpow.pop %v3068
        %v3070 = vadd.f32 %v3069, 1.0
        %v3071 = vrcp.pop %v3070
        %v3072 = vmul.f32 1.0, %v3071
        %v3074 = vrot.slane %v3061, 6
        %v3076 = vmul.f32 %v3072, %v3074
        %v3077 = vadd.f32 %v2973, %v3076
        %v3078 = vtanh.pop %v3077
        %v3079 = vsub.f32 1.0, %v3072
        %3081 = vrot.lane.b32.xlu0 %v3078, 64
        %v3082 = vpop.permute.xlu0 %3081
        %v3084 = vmul.f32 %v3079, %v3082
        %v3085 = vrot.slane %v2966, 6
        %v3087 = vmul.f32 %v3072, %v3085
        %v3088 = vadd.f32 %v3084, %v3087
        %3090 = vrot.lane.b32.xlu0 %v3088, 64
        %v3091 = vpop.permute.xlu0 %3090
        %3093 = vst.msk [vmem:[#allocation3 + $0x10] sm:$0xc] %vm2110, %v3091
        %v3094 = vld [vmem:[#allocation2 + $0x20] sm:$0x30]
        %v3095 = vld [vmem:[#allocation2 + $0x28] sm:$0x30]
        %v3096 = vld [vmem:[%s1055] sm:$0xff]
        %v3097 = vld [vmem:[%s1055 + $0x8] sm:$0xff]
        %v3098 = vld [vmem:[%s1055 + $0x10] sm:$0xff]
        %v3099 = vld [vmem:[%s1055 + $0x18] sm:$0xff]
        %v3100 = vld [vmem:[%s1055 + $0x20] sm:$0xff]
        %v3101 = vld [vmem:[%s1055 + $0x28] sm:$0xff]
        %v3102 = vld [vmem:[%s1055 + $0x30] sm:$0xff]
        %v3103 = vld [vmem:[%s1055 + $0x38] sm:$0xff]
        %v3104 = vld [vmem:[%s1055 + $0x40] sm:$0xff]
        %v3105 = vld [vmem:[%s1055 + $0x48] sm:$0xff]
        %v3106 = vld [vmem:[%s1055 + $0x50] sm:$0xff]
        %v3107 = vld [vmem:[%s1055 + $0x58] sm:$0xff]
        %v3108 = vld [vmem:[%s1055 + $0x60] sm:$0xff]
        %v3109 = vld [vmem:[%s1055 + $0x68] sm:$0xff]
        %v3110 = vld [vmem:[%s1055 + $0x70] sm:$0xff]
        %v3111 = vld [vmem:[%s1055 + $0x78] sm:$0xff]
        %v3112 = vrot.slane %v3088, 2
        %3113 = vrot.lane.b32.xlu0 %v3112, 64
        %v3114 = vpop.permute.xlu0 %3113
        %v3115 = vsel %vm1751, %v3114, 0
        %3117 = vmatprep.subr.mxu0 0.0
        %3118 = vmatpush1.msra.mxu0 0.0
        %3119 = vmatprep.subr.mxu0 0.0
        %3120 = vmatpush1.msra.mxu0 0.0
        %3121 = vmatprep.subr.mxu0 0.0
        %3122 = vmatpush1.msra.mxu0 0.0
        %3123 = vmatprep.subr.mxu0 0.0
        %3124 = vmatpush1.msra.mxu0 0.0
        %3125 = vmatprep.subr.mxu0 0.0
        %3126 = vmatpush1.msra.mxu0 0.0
        %3127 = vmatprep.subr.mxu0 0.0
        %3128 = vmatpush1.msra.mxu0 0.0
        %3129 = vmatprep.subr.mxu0 0.0
        %3130 = vmatpush1.msra.mxu0 0.0
        %3131 = vmatprep.subr.mxu0 0.0
        %3132 = vmatpush1.msra.mxu0 0.0
        %3133 = vmatprep.subr.mxu0 %v3111
        %3134 = vmatpush1.msra.mxu0 %v3110
        %3135 = vmatprep.subr.mxu0 %v3109
        %3136 = vmatpush1.msra.mxu0 %v3108
        %3137 = vmatprep.subr.mxu0 %v3107
        %3138 = vmatpush1.msra.mxu0 %v3106
        %3139 = vmatprep.subr.mxu0 %v3105
        %3140 = vmatpush1.msra.mxu0 %v3104
        %3141 = vmatprep.subr.mxu0 %v3103
        %3142 = vmatpush1.msra.mxu0 %v3102
        %3143 = vmatprep.subr.mxu0 %v3101
        %3144 = vmatpush1.msra.mxu0 %v3100
        %3145 = vmatprep.subr.mxu0 %v3099
        %3146 = vmatpush1.msra.mxu0 %v3098
        %3147 = vmatprep.subr.mxu0 %v3097
        %3148 = vmatpush1.msra.mxu0 %v3096
        %3149 = vmatprep.subr.mxu0 0.0
        %3150 = vmatpush2.msra.mxu0 0.0
        %3151 = vmatprep.subr.mxu0 0.0
        %3152 = vmatpush2.msra.mxu0 0.0
        %3153 = vmatprep.subr.mxu0 0.0
        %3154 = vmatpush2.msra.mxu0 0.0
        %3155 = vmatprep.subr.mxu0 0.0
        %3156 = vmatpush2.msra.mxu0 0.0
        %3157 = vmatprep.subr.mxu0 0.0
        %3158 = vmatpush2.msra.mxu0 0.0
        %3159 = vmatprep.subr.mxu0 0.0
        %3160 = vmatpush2.msra.mxu0 0.0
        %3161 = vmatprep.subr.mxu0 0.0
        %3162 = vmatpush2.msra.mxu0 0.0
        %3163 = vmatprep.subr.mxu0 0.0
        %3164 = vmatpush2.msra.mxu0 0.0
        %3165 = vmatprep.subr.mxu0 0.0
        %3166 = vmatpush2.msra.mxu0 0.0
        %3167 = vmatprep.subr.mxu0 0.0
        %3168 = vmatpush2.msra.mxu0 0.0
        %3169 = vmatprep.subr.mxu0 0.0
        %3170 = vmatpush2.msra.mxu0 0.0
        %3171 = vmatprep.subr.mxu0 0.0
        %3172 = vmatpush2.msra.mxu0 0.0
        %3173 = vmatprep.subr.mxu0 0.0
        %3174 = vmatpush2.msra.mxu0 0.0
        %3175 = vmatprep.subr.mxu0 0.0
        %3176 = vmatpush2.msra.mxu0 0.0
        %3177 = vmatprep.subr.mxu0 0.0
        %3178 = vmatpush2.msra.mxu0 0.0
        %3179 = vmatprep.subr.mxu0 0.0
        %3180 = vmatpush2.msra.mxu0 0.0
        %3181 = vmatprep.mubr.f32.mxu0 0.0
        %3182 = vmatmul.mubr.f32.gmra.mxu0 %v3115
        %v3183 = vpop.f32.mrf.mxu0
        %v3184 = vadd.f32 %v1884, %v3183
        %v3185 = vpop.f32.mrf.mxu0
        %v3186 = vadd.f32 %v1888, %v3185
        %3187 = vdwg.mxu0
        %v3189 = vrot.slane %v3184, 4
        %v3191 = vadd.f32 %v3094, %v3189
        %v3192 = vxor.u32 %v3191, 2147483648
        %v3193 = vmul.f32 %v3192, 1.442695
        %v3194 = vpow.pop %v3193
        %v3195 = vadd.f32 %v3194, 1.0
        %v3196 = vrcp.pop %v3195
        %v3197 = vmul.f32 1.0, %v3196
        %v3199 = vrot.slane %v3186, 4
        %v3201 = vmul.f32 %v3197, %v3199
        %v3202 = vadd.f32 %v3095, %v3201
        %v3203 = vtanh.pop %v3202
        %v3204 = vsub.f32 1.0, %v3197
        %3206 = vrot.lane.b32.xlu0 %v3203, 64
        %v3207 = vpop.permute.xlu0 %3206
        %v3209 = vmul.f32 %v3204, %v3207
        %v3210 = vrot.slane %v3088, 6
        %v3212 = vmul.f32 %v3197, %v3210
        %v3213 = vadd.f32 %v3209, %v3212
        %3215 = vrot.lane.b32.xlu0 %v3213, 64
        %v3216 = vpop.permute.xlu0 %3215
        %3218 = vst.msk [vmem:[#allocation3 + $0x10] sm:$0x30] %vm2236, %v3216
        %v3219 = vld [vmem:[#allocation2 + $0x20] sm:$0xc0]
        %v3220 = vld [vmem:[#allocation2 + $0x28] sm:$0xc0]
        %v3221 = vld [vmem:[%s1055] sm:$0xff]
        %v3222 = vld [vmem:[%s1055 + $0x8] sm:$0xff]
        %v3223 = vld [vmem:[%s1055 + $0x10] sm:$0xff]
        %v3224 = vld [vmem:[%s1055 + $0x18] sm:$0xff]
        %v3225 = vld [vmem:[%s1055 + $0x20] sm:$0xff]
        %v3226 = vld [vmem:[%s1055 + $0x28] sm:$0xff]
        %v3227 = vld [vmem:[%s1055 + $0x30] sm:$0xff]
        %v3228 = vld [vmem:[%s1055 + $0x38] sm:$0xff]
        %v3229 = vld [vmem:[%s1055 + $0x40] sm:$0xff]
        %v3230 = vld [vmem:[%s1055 + $0x48] sm:$0xff]
        %v3231 = vld [vmem:[%s1055 + $0x50] sm:$0xff]
        %v3232 = vld [vmem:[%s1055 + $0x58] sm:$0xff]
        %v3233 = vld [vmem:[%s1055 + $0x60] sm:$0xff]
        %v3234 = vld [vmem:[%s1055 + $0x68] sm:$0xff]
        %v3235 = vld [vmem:[%s1055 + $0x70] sm:$0xff]
        %v3236 = vld [vmem:[%s1055 + $0x78] sm:$0xff]
        %v3237 = vrot.slane %v3213, 4
        %3238 = vrot.lane.b32.xlu0 %v3237, 64
        %v3239 = vpop.permute.xlu0 %3238
        %v3240 = vsel %vm1751, %v3239, 0
        %3242 = vmatprep.subr.mxu0 0.0
        %3243 = vmatpush1.msra.mxu0 0.0
        %3244 = vmatprep.subr.mxu0 0.0
        %3245 = vmatpush1.msra.mxu0 0.0
        %3246 = vmatprep.subr.mxu0 0.0
        %3247 = vmatpush1.msra.mxu0 0.0
        %3248 = vmatprep.subr.mxu0 0.0
        %3249 = vmatpush1.msra.mxu0 0.0
        %3250 = vmatprep.subr.mxu0 0.0
        %3251 = vmatpush1.msra.mxu0 0.0
        %3252 = vmatprep.subr.mxu0 0.0
        %3253 = vmatpush1.msra.mxu0 0.0
        %3254 = vmatprep.subr.mxu0 0.0
        %3255 = vmatpush1.msra.mxu0 0.0
        %3256 = vmatprep.subr.mxu0 0.0
        %3257 = vmatpush1.msra.mxu0 0.0
        %3258 = vmatprep.subr.mxu0 %v3236
        %3259 = vmatpush1.msra.mxu0 %v3235
        %3260 = vmatprep.subr.mxu0 %v3234
        %3261 = vmatpush1.msra.mxu0 %v3233
        %3262 = vmatprep.subr.mxu0 %v3232
        %3263 = vmatpush1.msra.mxu0 %v3231
        %3264 = vmatprep.subr.mxu0 %v3230
        %3265 = vmatpush1.msra.mxu0 %v3229
        %3266 = vmatprep.subr.mxu0 %v3228
        %3267 = vmatpush1.msra.mxu0 %v3227
        %3268 = vmatprep.subr.mxu0 %v3226
        %3269 = vmatpush1.msra.mxu0 %v3225
        %3270 = vmatprep.subr.mxu0 %v3224
        %3271 = vmatpush1.msra.mxu0 %v3223
        %3272 = vmatprep.subr.mxu0 %v3222
        %3273 = vmatpush1.msra.mxu0 %v3221
        %3274 = vmatprep.subr.mxu0 0.0
        %3275 = vmatpush2.msra.mxu0 0.0
        %3276 = vmatprep.subr.mxu0 0.0
        %3277 = vmatpush2.msra.mxu0 0.0
        %3278 = vmatprep.subr.mxu0 0.0
        %3279 = vmatpush2.msra.mxu0 0.0
        %3280 = vmatprep.subr.mxu0 0.0
        %3281 = vmatpush2.msra.mxu0 0.0
        %3282 = vmatprep.subr.mxu0 0.0
        %3283 = vmatpush2.msra.mxu0 0.0
        %3284 = vmatprep.subr.mxu0 0.0
        %3285 = vmatpush2.msra.mxu0 0.0
        %3286 = vmatprep.subr.mxu0 0.0
        %3287 = vmatpush2.msra.mxu0 0.0
        %3288 = vmatprep.subr.mxu0 0.0
        %3289 = vmatpush2.msra.mxu0 0.0
        %3290 = vmatprep.subr.mxu0 0.0
        %3291 = vmatpush2.msra.mxu0 0.0
        %3292 = vmatprep.subr.mxu0 0.0
        %3293 = vmatpush2.msra.mxu0 0.0
        %3294 = vmatprep.subr.mxu0 0.0
        %3295 = vmatpush2.msra.mxu0 0.0
        %3296 = vmatprep.subr.mxu0 0.0
        %3297 = vmatpush2.msra.mxu0 0.0
        %3298 = vmatprep.subr.mxu0 0.0
        %3299 = vmatpush2.msra.mxu0 0.0
        %3300 = vmatprep.subr.mxu0 0.0
        %3301 = vmatpush2.msra.mxu0 0.0
        %3302 = vmatprep.subr.mxu0 0.0
        %3303 = vmatpush2.msra.mxu0 0.0
        %3304 = vmatprep.subr.mxu0 0.0
        %3305 = vmatpush2.msra.mxu0 0.0
        %3306 = vmatprep.mubr.f32.mxu0 0.0
        %3307 = vmatmul.mubr.f32.gmra.mxu0 %v3240
        %v3308 = vpop.f32.mrf.mxu0
        %v3309 = vadd.f32 %v1884, %v3308
        %v3310 = vpop.f32.mrf.mxu0
        %v3311 = vadd.f32 %v1888, %v3310
        %3312 = vdwg.mxu0
        %v3314 = vrot.slane %v3309, 2
        %v3316 = vadd.f32 %v3219, %v3314
        %v3317 = vxor.u32 %v3316, 2147483648
        %v3318 = vmul.f32 %v3317, 1.442695
        %v3319 = vpow.pop %v3318
        %v3320 = vadd.f32 %v3319, 1.0
        %v3321 = vrcp.pop %v3320
        %v3322 = vmul.f32 1.0, %v3321
        %v3324 = vrot.slane %v3311, 2
        %v3326 = vmul.f32 %v3322, %v3324
        %v3327 = vadd.f32 %v3220, %v3326
        %v3328 = vtanh.pop %v3327
        %v3329 = vsub.f32 1.0, %v3322
        %3331 = vrot.lane.b32.xlu0 %v3328, 64
        %v3332 = vpop.permute.xlu0 %3331
        %v3334 = vmul.f32 %v3329, %v3332
        %v3335 = vrot.slane %v3213, 6
        %v3337 = vmul.f32 %v3322, %v3335
        %v3338 = vadd.f32 %v3334, %v3337
        %3340 = vrot.lane.b32.xlu0 %v3338, 64
        %v3341 = vpop.permute.xlu0 %3340
        %3343 = vst.msk [vmem:[#allocation3 + $0x10] sm:$0xc0] %vm2362, %v3341
        %v3344 = vld [vmem:[#allocation2 + $0x30] sm:$0x3]
        %v3345 = vld [vmem:[#allocation2 + $0x38] sm:$0x3]
        %v3346 = vld [vmem:[%s1055] sm:$0xff]
        %v3347 = vld [vmem:[%s1055 + $0x8] sm:$0xff]
        %v3348 = vld [vmem:[%s1055 + $0x10] sm:$0xff]
        %v3349 = vld [vmem:[%s1055 + $0x18] sm:$0xff]
        %v3350 = vld [vmem:[%s1055 + $0x20] sm:$0xff]
        %v3351 = vld [vmem:[%s1055 + $0x28] sm:$0xff]
        %v3352 = vld [vmem:[%s1055 + $0x30] sm:$0xff]
        %v3353 = vld [vmem:[%s1055 + $0x38] sm:$0xff]
        %v3354 = vld [vmem:[%s1055 + $0x40] sm:$0xff]
        %v3355 = vld [vmem:[%s1055 + $0x48] sm:$0xff]
        %v3356 = vld [vmem:[%s1055 + $0x50] sm:$0xff]
        %v3357 = vld [vmem:[%s1055 + $0x58] sm:$0xff]
        %v3358 = vld [vmem:[%s1055 + $0x60] sm:$0xff]
        %v3359 = vld [vmem:[%s1055 + $0x68] sm:$0xff]
        %v3360 = vld [vmem:[%s1055 + $0x70] sm:$0xff]
        %v3361 = vld [vmem:[%s1055 + $0x78] sm:$0xff]
        %v3362 = vrot.slane %v3338, 6
        %3363 = vrot.lane.b32.xlu0 %v3362, 64
        %v3364 = vpop.permute.xlu0 %3363
        %v3365 = vsel %vm1751, %v3364, 0
        %3367 = vmatprep.subr.mxu0 0.0
        %3368 = vmatpush1.msra.mxu0 0.0
        %3369 = vmatprep.subr.mxu0 0.0
        %3370 = vmatpush1.msra.mxu0 0.0
        %3371 = vmatprep.subr.mxu0 0.0
        %3372 = vmatpush1.msra.mxu0 0.0
        %3373 = vmatprep.subr.mxu0 0.0
        %3374 = vmatpush1.msra.mxu0 0.0
        %3375 = vmatprep.subr.mxu0 0.0
        %3376 = vmatpush1.msra.mxu0 0.0
        %3377 = vmatprep.subr.mxu0 0.0
        %3378 = vmatpush1.msra.mxu0 0.0
        %3379 = vmatprep.subr.mxu0 0.0
        %3380 = vmatpush1.msra.mxu0 0.0
        %3381 = vmatprep.subr.mxu0 0.0
        %3382 = vmatpush1.msra.mxu0 0.0
        %3383 = vmatprep.subr.mxu0 %v3361
        %3384 = vmatpush1.msra.mxu0 %v3360
        %3385 = vmatprep.subr.mxu0 %v3359
        %3386 = vmatpush1.msra.mxu0 %v3358
        %3387 = vmatprep.subr.mxu0 %v3357
        %3388 = vmatpush1.msra.mxu0 %v3356
        %3389 = vmatprep.subr.mxu0 %v3355
        %3390 = vmatpush1.msra.mxu0 %v3354
        %3391 = vmatprep.subr.mxu0 %v3353
        %3392 = vmatpush1.msra.mxu0 %v3352
        %3393 = vmatprep.subr.mxu0 %v3351
        %3394 = vmatpush1.msra.mxu0 %v3350
        %3395 = vmatprep.subr.mxu0 %v3349
        %3396 = vmatpush1.msra.mxu0 %v3348
        %3397 = vmatprep.subr.mxu0 %v3347
        %3398 = vmatpush1.msra.mxu0 %v3346
        %3399 = vmatprep.subr.mxu0 0.0
        %3400 = vmatpush2.msra.mxu0 0.0
        %3401 = vmatprep.subr.mxu0 0.0
        %3402 = vmatpush2.msra.mxu0 0.0
        %3403 = vmatprep.subr.mxu0 0.0
        %3404 = vmatpush2.msra.mxu0 0.0
        %3405 = vmatprep.subr.mxu0 0.0
        %3406 = vmatpush2.msra.mxu0 0.0
        %3407 = vmatprep.subr.mxu0 0.0
        %3408 = vmatpush2.msra.mxu0 0.0
        %3409 = vmatprep.subr.mxu0 0.0
        %3410 = vmatpush2.msra.mxu0 0.0
        %3411 = vmatprep.subr.mxu0 0.0
        %3412 = vmatpush2.msra.mxu0 0.0
        %3413 = vmatprep.subr.mxu0 0.0
        %3414 = vmatpush2.msra.mxu0 0.0
        %3415 = vmatprep.subr.mxu0 0.0
        %3416 = vmatpush2.msra.mxu0 0.0
        %3417 = vmatprep.subr.mxu0 0.0
        %3418 = vmatpush2.msra.mxu0 0.0
        %3419 = vmatprep.subr.mxu0 0.0
        %3420 = vmatpush2.msra.mxu0 0.0
        %3421 = vmatprep.subr.mxu0 0.0
        %3422 = vmatpush2.msra.mxu0 0.0
        %3423 = vmatprep.subr.mxu0 0.0
        %3424 = vmatpush2.msra.mxu0 0.0
        %3425 = vmatprep.subr.mxu0 0.0
        %3426 = vmatpush2.msra.mxu0 0.0
        %3427 = vmatprep.subr.mxu0 0.0
        %3428 = vmatpush2.msra.mxu0 0.0
        %3429 = vmatprep.subr.mxu0 0.0
        %3430 = vmatpush2.msra.mxu0 0.0
        %3431 = vmatprep.mubr.f32.mxu0 0.0
        %3432 = vmatmul.mubr.f32.gmra.mxu0 %v3365
        %v3433 = vpop.f32.mrf.mxu0
        %v3434 = vadd.f32 %v1884, %v3433
        %v3435 = vpop.f32.mrf.mxu0
        %v3436 = vadd.f32 %v1888, %v3435
        %3437 = vdwg.mxu0
        %v3438 = vadd.f32 %v3344, %v3434
        %v3439 = vxor.u32 %v3438, 2147483648
        %v3440 = vmul.f32 %v3439, 1.442695
        %v3441 = vpow.pop %v3440
        %v3442 = vadd.f32 %v3441, 1.0
        %v3443 = vrcp.pop %v3442
        %v3444 = vmul.f32 1.0, %v3443
        %v3445 = vmul.f32 %v3444, %v3436
        %v3446 = vadd.f32 %v3345, %v3445
        %v3447 = vtanh.pop %v3446
        %v3448 = vsub.f32 1.0, %v3444
        %3450 = vrot.lane.b32.xlu0 %v3447, 64
        %v3451 = vpop.permute.xlu0 %3450
        %v3453 = vmul.f32 %v3448, %v3451
        %v3455 = vmul.f32 %v3444, %v3362
        %v3456 = vadd.f32 %v3453, %v3455
        %3458 = vrot.lane.b32.xlu0 %v3456, 64
        %v3459 = vpop.permute.xlu0 %3458
        %3461 = vst.msk [vmem:[#allocation3 + $0x18] sm:$0x3] %vm1987, %v3459
        %v3462 = vld [vmem:[#allocation2 + $0x30] sm:$0xc]
        %v3463 = vld [vmem:[#allocation2 + $0x38] sm:$0xc]
        %v3464 = vld [vmem:[%s1055] sm:$0xff]
        %v3465 = vld [vmem:[%s1055 + $0x8] sm:$0xff]
        %v3466 = vld [vmem:[%s1055 + $0x10] sm:$0xff]
        %v3467 = vld [vmem:[%s1055 + $0x18] sm:$0xff]
        %v3468 = vld [vmem:[%s1055 + $0x20] sm:$0xff]
        %v3469 = vld [vmem:[%s1055 + $0x28] sm:$0xff]
        %v3470 = vld [vmem:[%s1055 + $0x30] sm:$0xff]
        %v3471 = vld [vmem:[%s1055 + $0x38] sm:$0xff]
        %v3472 = vld [vmem:[%s1055 + $0x40] sm:$0xff]
        %v3473 = vld [vmem:[%s1055 + $0x48] sm:$0xff]
        %v3474 = vld [vmem:[%s1055 + $0x50] sm:$0xff]
        %v3475 = vld [vmem:[%s1055 + $0x58] sm:$0xff]
        %v3476 = vld [vmem:[%s1055 + $0x60] sm:$0xff]
        %v3477 = vld [vmem:[%s1055 + $0x68] sm:$0xff]
        %v3478 = vld [vmem:[%s1055 + $0x70] sm:$0xff]
        %v3479 = vld [vmem:[%s1055 + $0x78] sm:$0xff]
        %v3480 = vsel %vm1751, %v3459, 0
        %3482 = vmatprep.subr.mxu0 0.0
        %3483 = vmatpush1.msra.mxu0 0.0
        %3484 = vmatprep.subr.mxu0 0.0
        %3485 = vmatpush1.msra.mxu0 0.0
        %3486 = vmatprep.subr.mxu0 0.0
        %3487 = vmatpush1.msra.mxu0 0.0
        %3488 = vmatprep.subr.mxu0 0.0
        %3489 = vmatpush1.msra.mxu0 0.0
        %3490 = vmatprep.subr.mxu0 0.0
        %3491 = vmatpush1.msra.mxu0 0.0
        %3492 = vmatprep.subr.mxu0 0.0
        %3493 = vmatpush1.msra.mxu0 0.0
        %3494 = vmatprep.subr.mxu0 0.0
        %3495 = vmatpush1.msra.mxu0 0.0
        %3496 = vmatprep.subr.mxu0 0.0
        %3497 = vmatpush1.msra.mxu0 0.0
        %3498 = vmatprep.subr.mxu0 %v3479
        %3499 = vmatpush1.msra.mxu0 %v3478
        %3500 = vmatprep.subr.mxu0 %v3477
        %3501 = vmatpush1.msra.mxu0 %v3476
        %3502 = vmatprep.subr.mxu0 %v3475
        %3503 = vmatpush1.msra.mxu0 %v3474
        %3504 = vmatprep.subr.mxu0 %v3473
        %3505 = vmatpush1.msra.mxu0 %v3472
        %3506 = vmatprep.subr.mxu0 %v3471
        %3507 = vmatpush1.msra.mxu0 %v3470
        %3508 = vmatprep.subr.mxu0 %v3469
        %3509 = vmatpush1.msra.mxu0 %v3468
        %3510 = vmatprep.subr.mxu0 %v3467
        %3511 = vmatpush1.msra.mxu0 %v3466
        %3512 = vmatprep.subr.mxu0 %v3465
        %3513 = vmatpush1.msra.mxu0 %v3464
        %3514 = vmatprep.subr.mxu0 0.0
        %3515 = vmatpush2.msra.mxu0 0.0
        %3516 = vmatprep.subr.mxu0 0.0
        %3517 = vmatpush2.msra.mxu0 0.0
        %3518 = vmatprep.subr.mxu0 0.0
        %3519 = vmatpush2.msra.mxu0 0.0
        %3520 = vmatprep.subr.mxu0 0.0
        %3521 = vmatpush2.msra.mxu0 0.0
        %3522 = vmatprep.subr.mxu0 0.0
        %3523 = vmatpush2.msra.mxu0 0.0
        %3524 = vmatprep.subr.mxu0 0.0
        %3525 = vmatpush2.msra.mxu0 0.0
        %3526 = vmatprep.subr.mxu0 0.0
        %3527 = vmatpush2.msra.mxu0 0.0
        %3528 = vmatprep.subr.mxu0 0.0
        %3529 = vmatpush2.msra.mxu0 0.0
        %3530 = vmatprep.subr.mxu0 0.0
        %3531 = vmatpush2.msra.mxu0 0.0
        %3532 = vmatprep.subr.mxu0 0.0
        %3533 = vmatpush2.msra.mxu0 0.0
        %3534 = vmatprep.subr.mxu0 0.0
        %3535 = vmatpush2.msra.mxu0 0.0
        %3536 = vmatprep.subr.mxu0 0.0
        %3537 = vmatpush2.msra.mxu0 0.0
        %3538 = vmatprep.subr.mxu0 0.0
        %3539 = vmatpush2.msra.mxu0 0.0
        %3540 = vmatprep.subr.mxu0 0.0
        %3541 = vmatpush2.msra.mxu0 0.0
        %3542 = vmatprep.subr.mxu0 0.0
        %3543 = vmatpush2.msra.mxu0 0.0
        %3544 = vmatprep.subr.mxu0 0.0
        %3545 = vmatpush2.msra.mxu0 0.0
        %3546 = vmatprep.mubr.f32.mxu0 0.0
        %3547 = vmatmul.mubr.f32.gmra.mxu0 %v3480
        %v3548 = vpop.f32.mrf.mxu0
        %v3549 = vadd.f32 %v1884, %v3548
        %v3550 = vpop.f32.mrf.mxu0
        %v3551 = vadd.f32 %v1888, %v3550
        %3552 = vdwg.mxu0
        %v3554 = vrot.slane %v3549, 6
        %v3556 = vadd.f32 %v3462, %v3554
        %v3557 = vxor.u32 %v3556, 2147483648
        %v3558 = vmul.f32 %v3557, 1.442695
        %v3559 = vpow.pop %v3558
        %v3560 = vadd.f32 %v3559, 1.0
        %v3561 = vrcp.pop %v3560
        %v3562 = vmul.f32 1.0, %v3561
        %v3564 = vrot.slane %v3551, 6
        %v3566 = vmul.f32 %v3562, %v3564
        %v3567 = vadd.f32 %v3463, %v3566
        %v3568 = vtanh.pop %v3567
        %v3569 = vsub.f32 1.0, %v3562
        %3571 = vrot.lane.b32.xlu0 %v3568, 64
        %v3572 = vpop.permute.xlu0 %3571
        %v3574 = vmul.f32 %v3569, %v3572
        %v3575 = vrot.slane %v3456, 6
        %v3577 = vmul.f32 %v3562, %v3575
        %v3578 = vadd.f32 %v3574, %v3577
        %3580 = vrot.lane.b32.xlu0 %v3578, 64
        %v3581 = vpop.permute.xlu0 %3580
        %3583 = vst.msk [vmem:[#allocation3 + $0x18] sm:$0xc] %vm2110, %v3581
        %v3584 = vld [vmem:[#allocation2 + $0x30] sm:$0x30]
        %v3585 = vld [vmem:[#allocation2 + $0x38] sm:$0x30]
        %v3586 = vld [vmem:[%s1055] sm:$0xff]
        %v3587 = vld [vmem:[%s1055 + $0x8] sm:$0xff]
        %v3588 = vld [vmem:[%s1055 + $0x10] sm:$0xff]
        %v3589 = vld [vmem:[%s1055 + $0x18] sm:$0xff]
        %v3590 = vld [vmem:[%s1055 + $0x20] sm:$0xff]
        %v3591 = vld [vmem:[%s1055 + $0x28] sm:$0xff]
        %v3592 = vld [vmem:[%s1055 + $0x30] sm:$0xff]
        %v3593 = vld [vmem:[%s1055 + $0x38] sm:$0xff]
        %v3594 = vld [vmem:[%s1055 + $0x40] sm:$0xff]
        %v3595 = vld [vmem:[%s1055 + $0x48] sm:$0xff]
        %v3596 = vld [vmem:[%s1055 + $0x50] sm:$0xff]
        %v3597 = vld [vmem:[%s1055 + $0x58] sm:$0xff]
        %v3598 = vld [vmem:[%s1055 + $0x60] sm:$0xff]
        %v3599 = vld [vmem:[%s1055 + $0x68] sm:$0xff]
        %v3600 = vld [vmem:[%s1055 + $0x70] sm:$0xff]
        %v3601 = vld [vmem:[%s1055 + $0x78] sm:$0xff]
        %v3602 = vrot.slane %v3578, 2
        %3603 = vrot.lane.b32.xlu0 %v3602, 64
        %v3604 = vpop.permute.xlu0 %3603
        %v3605 = vsel %vm1751, %v3604, 0
        %3607 = vmatprep.subr.mxu0 0.0
        %3608 = vmatpush1.msra.mxu0 0.0
        %3609 = vmatprep.subr.mxu0 0.0
        %3610 = vmatpush1.msra.mxu0 0.0
        %3611 = vmatprep.subr.mxu0 0.0
        %3612 = vmatpush1.msra.mxu0 0.0
        %3613 = vmatprep.subr.mxu0 0.0
        %3614 = vmatpush1.msra.mxu0 0.0
        %3615 = vmatprep.subr.mxu0 0.0
        %3616 = vmatpush1.msra.mxu0 0.0
        %3617 = vmatprep.subr.mxu0 0.0
        %3618 = vmatpush1.msra.mxu0 0.0
        %3619 = vmatprep.subr.mxu0 0.0
        %3620 = vmatpush1.msra.mxu0 0.0
        %3621 = vmatprep.subr.mxu0 0.0
        %3622 = vmatpush1.msra.mxu0 0.0
        %3623 = vmatprep.subr.mxu0 %v3601
        %3624 = vmatpush1.msra.mxu0 %v3600
        %3625 = vmatprep.subr.mxu0 %v3599
        %3626 = vmatpush1.msra.mxu0 %v3598
        %3627 = vmatprep.subr.mxu0 %v3597
        %3628 = vmatpush1.msra.mxu0 %v3596
        %3629 = vmatprep.subr.mxu0 %v3595
        %3630 = vmatpush1.msra.mxu0 %v3594
        %3631 = vmatprep.subr.mxu0 %v3593
        %3632 = vmatpush1.msra.mxu0 %v3592
        %3633 = vmatprep.subr.mxu0 %v3591
        %3634 = vmatpush1.msra.mxu0 %v3590
        %3635 = vmatprep.subr.mxu0 %v3589
        %3636 = vmatpush1.msra.mxu0 %v3588
        %3637 = vmatprep.subr.mxu0 %v3587
        %3638 = vmatpush1.msra.mxu0 %v3586
        %3639 = vmatprep.subr.mxu0 0.0
        %3640 = vmatpush2.msra.mxu0 0.0
        %3641 = vmatprep.subr.mxu0 0.0
        %3642 = vmatpush2.msra.mxu0 0.0
        %3643 = vmatprep.subr.mxu0 0.0
        %3644 = vmatpush2.msra.mxu0 0.0
        %3645 = vmatprep.subr.mxu0 0.0
        %3646 = vmatpush2.msra.mxu0 0.0
        %3647 = vmatprep.subr.mxu0 0.0
        %3648 = vmatpush2.msra.mxu0 0.0
        %3649 = vmatprep.subr.mxu0 0.0
        %3650 = vmatpush2.msra.mxu0 0.0
        %3651 = vmatprep.subr.mxu0 0.0
        %3652 = vmatpush2.msra.mxu0 0.0
        %3653 = vmatprep.subr.mxu0 0.0
        %3654 = vmatpush2.msra.mxu0 0.0
        %3655 = vmatprep.subr.mxu0 0.0
        %3656 = vmatpush2.msra.mxu0 0.0
        %3657 = vmatprep.subr.mxu0 0.0
        %3658 = vmatpush2.msra.mxu0 0.0
        %3659 = vmatprep.subr.mxu0 0.0
        %3660 = vmatpush2.msra.mxu0 0.0
        %3661 = vmatprep.subr.mxu0 0.0
        %3662 = vmatpush2.msra.mxu0 0.0
        %3663 = vmatprep.subr.mxu0 0.0
        %3664 = vmatpush2.msra.mxu0 0.0
        %3665 = vmatprep.subr.mxu0 0.0
        %3666 = vmatpush2.msra.mxu0 0.0
        %3667 = vmatprep.subr.mxu0 0.0
        %3668 = vmatpush2.msra.mxu0 0.0
        %3669 = vmatprep.subr.mxu0 0.0
        %3670 = vmatpush2.msra.mxu0 0.0
        %3671 = vmatprep.mubr.f32.mxu0 0.0
        %3672 = vmatmul.mubr.f32.gmra.mxu0 %v3605
        %v3673 = vpop.f32.mrf.mxu0
        %v3674 = vadd.f32 %v1884, %v3673
        %v3675 = vpop.f32.mrf.mxu0
        %v3676 = vadd.f32 %v1888, %v3675
        %3677 = vdwg.mxu0
        %v3679 = vrot.slane %v3674, 4
        %v3681 = vadd.f32 %v3584, %v3679
        %v3682 = vxor.u32 %v3681, 2147483648
        %v3683 = vmul.f32 %v3682, 1.442695
        %v3684 = vpow.pop %v3683
        %v3685 = vadd.f32 %v3684, 1.0
        %v3686 = vrcp.pop %v3685
        %v3687 = vmul.f32 1.0, %v3686
        %v3689 = vrot.slane %v3676, 4
        %v3691 = vmul.f32 %v3687, %v3689
        %v3692 = vadd.f32 %v3585, %v3691
        %v3693 = vtanh.pop %v3692
        %v3694 = vsub.f32 1.0, %v3687
        %3696 = vrot.lane.b32.xlu0 %v3693, 64
        %v3697 = vpop.permute.xlu0 %3696
        %v3699 = vmul.f32 %v3694, %v3697
        %v3700 = vrot.slane %v3578, 6
        %v3702 = vmul.f32 %v3687, %v3700
        %v3703 = vadd.f32 %v3699, %v3702
        %3705 = vrot.lane.b32.xlu0 %v3703, 64
        %v3706 = vpop.permute.xlu0 %3705
        %3708 = vst.msk [vmem:[#allocation3 + $0x18] sm:$0x30] %vm2236, %v3706
        %v3709 = vld [vmem:[#allocation2 + $0x30] sm:$0xc0]
        %v3710 = vld [vmem:[#allocation2 + $0x38] sm:$0xc0]
        %v3711 = vld [vmem:[%s1055] sm:$0xff]
        %v3712 = vld [vmem:[%s1055 + $0x8] sm:$0xff]
        %v3713 = vld [vmem:[%s1055 + $0x10] sm:$0xff]
        %v3714 = vld [vmem:[%s1055 + $0x18] sm:$0xff]
        %v3715 = vld [vmem:[%s1055 + $0x20] sm:$0xff]
        %v3716 = vld [vmem:[%s1055 + $0x28] sm:$0xff]
        %v3717 = vld [vmem:[%s1055 + $0x30] sm:$0xff]
        %v3718 = vld [vmem:[%s1055 + $0x38] sm:$0xff]
        %v3719 = vld [vmem:[%s1055 + $0x40] sm:$0xff]
        %v3720 = vld [vmem:[%s1055 + $0x48] sm:$0xff]
        %v3721 = vld [vmem:[%s1055 + $0x50] sm:$0xff]
        %v3722 = vld [vmem:[%s1055 + $0x58] sm:$0xff]
        %v3723 = vld [vmem:[%s1055 + $0x60] sm:$0xff]
        %v3724 = vld [vmem:[%s1055 + $0x68] sm:$0xff]
        %v3725 = vld [vmem:[%s1055 + $0x70] sm:$0xff]
        %v3726 = vld [vmem:[%s1055 + $0x78] sm:$0xff]
        %v3727 = vrot.slane %v3703, 4
        %3728 = vrot.lane.b32.xlu0 %v3727, 64
        %v3729 = vpop.permute.xlu0 %3728
        %v3730 = vsel %vm1751, %v3729, 0
        %3732 = vmatprep.subr.mxu0 0.0
        %3733 = vmatpush1.msra.mxu0 0.0
        %3734 = vmatprep.subr.mxu0 0.0
        %3735 = vmatpush1.msra.mxu0 0.0
        %3736 = vmatprep.subr.mxu0 0.0
        %3737 = vmatpush1.msra.mxu0 0.0
        %3738 = vmatprep.subr.mxu0 0.0
        %3739 = vmatpush1.msra.mxu0 0.0
        %3740 = vmatprep.subr.mxu0 0.0
        %3741 = vmatpush1.msra.mxu0 0.0
        %3742 = vmatprep.subr.mxu0 0.0
        %3743 = vmatpush1.msra.mxu0 0.0
        %3744 = vmatprep.subr.mxu0 0.0
        %3745 = vmatpush1.msra.mxu0 0.0
        %3746 = vmatprep.subr.mxu0 0.0
        %3747 = vmatpush1.msra.mxu0 0.0
        %3748 = vmatprep.subr.mxu0 %v3726
        %3749 = vmatpush1.msra.mxu0 %v3725
        %3750 = vmatprep.subr.mxu0 %v3724
        %3751 = vmatpush1.msra.mxu0 %v3723
        %3752 = vmatprep.subr.mxu0 %v3722
        %3753 = vmatpush1.msra.mxu0 %v3721
        %3754 = vmatprep.subr.mxu0 %v3720
        %3755 = vmatpush1.msra.mxu0 %v3719
        %3756 = vmatprep.subr.mxu0 %v3718
        %3757 = vmatpush1.msra.mxu0 %v3717
        %3758 = vmatprep.subr.mxu0 %v3716
        %3759 = vmatpush1.msra.mxu0 %v3715
        %3760 = vmatprep.subr.mxu0 %v3714
        %3761 = vmatpush1.msra.mxu0 %v3713
        %3762 = vmatprep.subr.mxu0 %v3712
        %3763 = vmatpush1.msra.mxu0 %v3711
        %3764 = vmatprep.subr.mxu0 0.0
        %3765 = vmatpush2.msra.mxu0 0.0
        %3766 = vmatprep.subr.mxu0 0.0
        %3767 = vmatpush2.msra.mxu0 0.0
        %3768 = vmatprep.subr.mxu0 0.0
        %3769 = vmatpush2.msra.mxu0 0.0
        %3770 = vmatprep.subr.mxu0 0.0
        %3771 = vmatpush2.msra.mxu0 0.0
        %3772 = vmatprep.subr.mxu0 0.0
        %3773 = vmatpush2.msra.mxu0 0.0
        %3774 = vmatprep.subr.mxu0 0.0
        %3775 = vmatpush2.msra.mxu0 0.0
        %3776 = vmatprep.subr.mxu0 0.0
        %3777 = vmatpush2.msra.mxu0 0.0
        %3778 = vmatprep.subr.mxu0 0.0
        %3779 = vmatpush2.msra.mxu0 0.0
        %3780 = vmatprep.subr.mxu0 0.0
        %3781 = vmatpush2.msra.mxu0 0.0
        %3782 = vmatprep.subr.mxu0 0.0
        %3783 = vmatpush2.msra.mxu0 0.0
        %3784 = vmatprep.subr.mxu0 0.0
        %3785 = vmatpush2.msra.mxu0 0.0
        %3786 = vmatprep.subr.mxu0 0.0
        %3787 = vmatpush2.msra.mxu0 0.0
        %3788 = vmatprep.subr.mxu0 0.0
        %3789 = vmatpush2.msra.mxu0 0.0
        %3790 = vmatprep.subr.mxu0 0.0
        %3791 = vmatpush2.msra.mxu0 0.0
        %3792 = vmatprep.subr.mxu0 0.0
        %3793 = vmatpush2.msra.mxu0 0.0
        %3794 = vmatprep.subr.mxu0 0.0
        %3795 = vmatpush2.msra.mxu0 0.0
        %3796 = vmatprep.mubr.f32.mxu0 0.0
        %3797 = vmatmul.mubr.f32.gmra.mxu0 %v3730
        %v3798 = vpop.f32.mrf.mxu0
        %v3799 = vadd.f32 %v1884, %v3798
        %v3800 = vpop.f32.mrf.mxu0
        %v3801 = vadd.f32 %v1888, %v3800
        %3802 = vdwg.mxu0
        %v3804 = vrot.slane %v3799, 2
        %v3806 = vadd.f32 %v3709, %v3804
        %v3807 = vxor.u32 %v3806, 2147483648
        %v3808 = vmul.f32 %v3807, 1.442695
        %v3809 = vpow.pop %v3808
        %v3810 = vadd.f32 %v3809, 1.0
        %v3811 = vrcp.pop %v3810
        %v3812 = vmul.f32 1.0, %v3811
        %v3814 = vrot.slane %v3801, 2
        %v3816 = vmul.f32 %v3812, %v3814
        %v3817 = vadd.f32 %v3710, %v3816
        %v3818 = vtanh.pop %v3817
        %v3819 = vsub.f32 1.0, %v3812
        %3821 = vrot.lane.b32.xlu0 %v3818, 64
        %v3822 = vpop.permute.xlu0 %3821
        %v3824 = vmul.f32 %v3819, %v3822
        %v3825 = vrot.slane %v3703, 6
        %v3827 = vmul.f32 %v3812, %v3825
        %v3828 = vadd.f32 %v3824, %v3827
        %3830 = vrot.lane.b32.xlu0 %v3828, 64
        %v3831 = vpop.permute.xlu0 %3830
        %3833 = vst.msk [vmem:[#allocation3 + $0x18] sm:$0xc0] %vm2362, %v3831
        %v3834 = vld [vmem:[#allocation3] sm:$0xff]
        %v3835 = vld [vmem:[#allocation3 + $0x8] sm:$0xff]
        %v3836 = vld [vmem:[#allocation3 + $0x10] sm:$0xff]
        %v3837 = vld [vmem:[#allocation3 + $0x18] sm:$0xff]
        %v3838 = vld [vmem:[%s1287] sm:$0xff]
        %v3839 = vld [vmem:[%s1287 + $0x8] sm:$0xff]
        %v3840 = vld [vmem:[%s1287 + $0x10] sm:$0xff]
        %v3841 = vld [vmem:[%s1287 + $0x18] sm:$0xff]
        %v3842 = vld [vmem:[%s1287 + $0x20] sm:$0xff]
        %v3843 = vld [vmem:[%s1287 + $0x28] sm:$0xff]
        %v3844 = vld [vmem:[%s1287 + $0x30] sm:$0xff]
        %v3845 = vld [vmem:[%s1287 + $0x38] sm:$0xff]
        %v3846 = vld [vmem:[%s1287 + $0x40] sm:$0xff]
        %v3847 = vld [vmem:[%s1287 + $0x48] sm:$0xff]
        %v3848 = vld [vmem:[%s1287 + $0x50] sm:$0xff]
        %v3849 = vld [vmem:[%s1287 + $0x58] sm:$0xff]
        %v3850 = vld [vmem:[%s1287 + $0x60] sm:$0xff]
        %v3851 = vld [vmem:[%s1287 + $0x68] sm:$0xff]
        %v3852 = vld [vmem:[%s1287 + $0x70] sm:$0xff]
        %v3853 = vld [vmem:[%s1287 + $0x78] sm:$0xff]
        %v3854 = vld [vmem:[%s1287 + $0x80] sm:$0xff]
        %v3855 = vld [vmem:[%s1287 + $0x88] sm:$0xff]
        %v3856 = vld [vmem:[%s1287 + $0x90] sm:$0xff]
        %v3857 = vld [vmem:[%s1287 + $0x98] sm:$0xff]
        %v3858 = vld [vmem:[%s1287 + $0xa0] sm:$0xff]
        %v3859 = vld [vmem:[%s1287 + $0xa8] sm:$0xff]
        %v3860 = vld [vmem:[%s1287 + $0xb0] sm:$0xff]
        %v3861 = vld [vmem:[%s1287 + $0xb8] sm:$0xff]
        %v3862 = vld [vmem:[%s1290] sm:$0x1]
        %v3863 = vld [vmem:[%s1072] sm:$0x1]
        %v3864 = vld [vmem:[%s1080] sm:$0x1]
        %v3865 = vrot.slane %v3834, 6
        %v3866 = vrot.slane %v3835, 6
        %v3867 = vrot.slane %v3836, 6
        %v3868 = vrot.slane %v3837, 6
        %v3869 = vsel %vm1335, %v3867, %v3868
        %v3870 = vsel %vm1335, %v3866, %v3867
        %v3871 = vsel %vm1335, %v3865, %v3866
        %v3872 = vsel %vm1335, %v3868, %v3865
        %v3873 = vmul.f32 %v3872, %v1343
        %v3874 = vmul.f32 %v3871, %v1348
        %v3875 = vmul.f32 %v3870, %v1353
        %v3876 = vmul.f32 %v3869, %v1358
        %v3877 = vrot.slane %v3834, 2
        %v3878 = vrot.slane %v3835, 2
        %v3879 = vrot.slane %v3836, 2
        %v3880 = vrot.slane %v3837, 2
        %v3881 = vsel %vm1368, %v3879, %v3880
        %v3882 = vsel %vm1368, %v3878, %v3879
        %v3883 = vsel %vm1368, %v3877, %v3878
        %v3884 = vsel %vm1368, %v3880, %v3877
        %v3885 = vmul.f32 %v3883, %v1375
        %v3886 = vmul.f32 %v3882, %v1379
        %v3887 = vmul.f32 %v3881, %v1383
        %v3888 = vmul.f32 %v3884, %v1387
        %v3890 = vsel %vm1751, %v3834, 0
        %v3893 = vsel %vm1751, %v3835, 0
        %v3896 = vsel %vm1751, %v3836, 0
        %v3899 = vsel %vm1751, %v3837, 0
        %3901 = vmatprep.subr.mxu0 0.0
        %3902 = vmatpush1.msra.mxu0 0.0
        %3903 = vmatprep.subr.mxu0 0.0
        %3904 = vmatpush1.msra.mxu0 0.0
        %3905 = vmatprep.subr.mxu0 0.0
        %3906 = vmatpush1.msra.mxu0 0.0
        %3907 = vmatprep.subr.mxu0 0.0
        %3908 = vmatpush1.msra.mxu0 0.0
        %3909 = vmatprep.subr.mxu0 0.0
        %3910 = vmatpush1.msra.mxu0 0.0
        %3911 = vmatprep.subr.mxu0 0.0
        %3912 = vmatpush1.msra.mxu0 0.0
        %3913 = vmatprep.subr.mxu0 0.0
        %3914 = vmatpush1.msra.mxu0 0.0
        %3915 = vmatprep.subr.mxu0 0.0
        %3916 = vmatpush1.msra.mxu0 0.0
        %3917 = vmatprep.subr.mxu0 0.0
        %3918 = vmatpush1.msra.mxu0 %v3853
        %3919 = vmatprep.subr.mxu0 0.0
        %3920 = vmatpush1.msra.mxu0 %v3852
        %3921 = vmatprep.subr.mxu0 0.0
        %3922 = vmatpush1.msra.mxu0 %v3851
        %3923 = vmatprep.subr.mxu0 0.0
        %3924 = vmatpush1.msra.mxu0 %v3850
        %3925 = vmatprep.subr.mxu0 0.0
        %3926 = vmatpush1.msra.mxu0 %v3849
        %3927 = vmatprep.subr.mxu0 0.0
        %3928 = vmatpush1.msra.mxu0 %v3848
        %3929 = vmatprep.subr.mxu0 0.0
        %3930 = vmatpush1.msra.mxu0 %v3847
        %3931 = vmatprep.subr.mxu0 0.0
        %3932 = vmatpush1.msra.mxu0 %v3846
        %3933 = vmatprep.subr.mxu0 0.0
        %3934 = vmatpush2.msra.mxu0 0.0
        %3935 = vmatprep.subr.mxu0 0.0
        %3936 = vmatpush2.msra.mxu0 0.0
        %3937 = vmatprep.subr.mxu0 0.0
        %3938 = vmatpush2.msra.mxu0 0.0
        %3939 = vmatprep.subr.mxu0 0.0
        %3940 = vmatpush2.msra.mxu0 0.0
        %3941 = vmatprep.subr.mxu0 0.0
        %3942 = vmatpush2.msra.mxu0 0.0
        %3943 = vmatprep.subr.mxu0 0.0
        %3944 = vmatpush2.msra.mxu0 0.0
        %3945 = vmatprep.subr.mxu0 0.0
        %3946 = vmatpush2.msra.mxu0 0.0
        %3947 = vmatprep.subr.mxu0 0.0
        %3948 = vmatpush2.msra.mxu0 0.0
        %3949 = vmatprep.subr.mxu0 0.0
        %3950 = vmatpush2.msra.mxu0 0.0
        %3951 = vmatprep.subr.mxu0 0.0
        %3952 = vmatpush2.msra.mxu0 0.0
        %3953 = vmatprep.subr.mxu0 0.0
        %3954 = vmatpush2.msra.mxu0 0.0
        %3955 = vmatprep.subr.mxu0 0.0
        %3956 = vmatpush2.msra.mxu0 0.0
        %3957 = vmatprep.subr.mxu0 0.0
        %3958 = vmatpush2.msra.mxu0 0.0
        %3959 = vmatprep.subr.mxu0 0.0
        %3960 = vmatpush2.msra.mxu0 0.0
        %3961 = vmatprep.subr.mxu0 0.0
        %3962 = vmatpush2.msra.mxu0 0.0
        %3963 = vmatprep.subr.mxu0 0.0
        %3964 = vmatpush2.msra.mxu0 0.0
        %3965 = vmatprep.mubr.f32.mxu0 0.0
        %3966 = vmatmul.mubr.f32.gmra.mxu0 %v3890
        %v3967 = vpop.f32.mrf.mxu0
        %v3968 = vadd.f32 0.0, %v3967
        %v3969 = vpop.f32.mrf.mxu0
        %3970 = vmatprep.mubr.f32.mxu0 0.0
        %3971 = vmatmul.mubr.f32.gmra.mxu0 %v3893
        %v3972 = vpop.f32.mrf.mxu0
        %v3973 = vadd.f32 0.0, %v3972
        %v3974 = vpop.f32.mrf.mxu0
        %3975 = vmatprep.mubr.f32.mxu0 0.0
        %3976 = vmatmul.mubr.f32.gmra.mxu0 %v3896
        %v3977 = vpop.f32.mrf.mxu0
        %v3978 = vadd.f32 0.0, %v3977
        %v3979 = vpop.f32.mrf.mxu0
        %3980 = vmatprep.mubr.f32.mxu0 0.0
        %3981 = vmatmul.mubr.f32.gmra.mxu0 %v3899
        %v3982 = vpop.f32.mrf.mxu0
        %v3983 = vadd.f32 0.0, %v3982
        %v3984 = vpop.f32.mrf.mxu0
        %3985 = vdwg.mxu0
        %v3987 = vsel %vm1751, %v3873, 0
        %v3990 = vsel %vm1751, %v3874, 0
        %v3993 = vsel %vm1751, %v3875, 0
        %v3996 = vsel %vm1751, %v3876, 0
        %3998 = vmatprep.subr.mxu0 0.0
        %3999 = vmatpush1.msra.mxu0 0.0
        %4000 = vmatprep.subr.mxu0 0.0
        %4001 = vmatpush1.msra.mxu0 0.0
        %4002 = vmatprep.subr.mxu0 0.0
        %4003 = vmatpush1.msra.mxu0 0.0
        %4004 = vmatprep.subr.mxu0 0.0
        %4005 = vmatpush1.msra.mxu0 0.0
        %4006 = vmatprep.subr.mxu0 0.0
        %4007 = vmatpush1.msra.mxu0 0.0
        %4008 = vmatprep.subr.mxu0 0.0
        %4009 = vmatpush1.msra.mxu0 0.0
        %4010 = vmatprep.subr.mxu0 0.0
        %4011 = vmatpush1.msra.mxu0 0.0
        %4012 = vmatprep.subr.mxu0 0.0
        %4013 = vmatpush1.msra.mxu0 0.0
        %4014 = vmatprep.subr.mxu0 0.0
        %4015 = vmatpush1.msra.mxu0 %v3845
        %4016 = vmatprep.subr.mxu0 0.0
        %4017 = vmatpush1.msra.mxu0 %v3844
        %4018 = vmatprep.subr.mxu0 0.0
        %4019 = vmatpush1.msra.mxu0 %v3843
        %4020 = vmatprep.subr.mxu0 0.0
        %4021 = vmatpush1.msra.mxu0 %v3842
        %4022 = vmatprep.subr.mxu0 0.0
        %4023 = vmatpush1.msra.mxu0 %v3841
        %4024 = vmatprep.subr.mxu0 0.0
        %4025 = vmatpush1.msra.mxu0 %v3840
        %4026 = vmatprep.subr.mxu0 0.0
        %4027 = vmatpush1.msra.mxu0 %v3839
        %4028 = vmatprep.subr.mxu0 0.0
        %4029 = vmatpush1.msra.mxu0 %v3838
        %4030 = vmatprep.subr.mxu0 0.0
        %4031 = vmatpush2.msra.mxu0 0.0
        %4032 = vmatprep.subr.mxu0 0.0
        %4033 = vmatpush2.msra.mxu0 0.0
        %4034 = vmatprep.subr.mxu0 0.0
        %4035 = vmatpush2.msra.mxu0 0.0
        %4036 = vmatprep.subr.mxu0 0.0
        %4037 = vmatpush2.msra.mxu0 0.0
        %4038 = vmatprep.subr.mxu0 0.0
        %4039 = vmatpush2.msra.mxu0 0.0
        %4040 = vmatprep.subr.mxu0 0.0
        %4041 = vmatpush2.msra.mxu0 0.0
        %4042 = vmatprep.subr.mxu0 0.0
        %4043 = vmatpush2.msra.mxu0 0.0
        %4044 = vmatprep.subr.mxu0 0.0
        %4045 = vmatpush2.msra.mxu0 0.0
        %4046 = vmatprep.subr.mxu0 0.0
        %4047 = vmatpush2.msra.mxu0 0.0
        %4048 = vmatprep.subr.mxu0 0.0
        %4049 = vmatpush2.msra.mxu0 0.0
        %4050 = vmatprep.subr.mxu0 0.0
        %4051 = vmatpush2.msra.mxu0 0.0
        %4052 = vmatprep.subr.mxu0 0.0
        %4053 = vmatpush2.msra.mxu0 0.0
        %4054 = vmatprep.subr.mxu0 0.0
        %4055 = vmatpush2.msra.mxu0 0.0
        %4056 = vmatprep.subr.mxu0 0.0
        %4057 = vmatpush2.msra.mxu0 0.0
        %4058 = vmatprep.subr.mxu0 0.0
        %4059 = vmatpush2.msra.mxu0 0.0
        %4060 = vmatprep.subr.mxu0 0.0
        %4061 = vmatpush2.msra.mxu0 0.0
        %4062 = vmatprep.mubr.f32.mxu0 0.0
        %4063 = vmatmul.mubr.f32.gmra.mxu0 %v3987
        %v4064 = vpop.f32.mrf.mxu0
        %v4065 = vadd.f32 %v3968, %v4064
        %v4066 = vpop.f32.mrf.mxu0
        %4067 = vmatprep.mubr.f32.mxu0 0.0
        %4068 = vmatmul.mubr.f32.gmra.mxu0 %v3990
        %v4069 = vpop.f32.mrf.mxu0
        %v4070 = vadd.f32 %v3973, %v4069
        %v4071 = vpop.f32.mrf.mxu0
        %4072 = vmatprep.mubr.f32.mxu0 0.0
        %4073 = vmatmul.mubr.f32.gmra.mxu0 %v3993
        %v4074 = vpop.f32.mrf.mxu0
        %v4075 = vadd.f32 %v3978, %v4074
        %v4076 = vpop.f32.mrf.mxu0
        %4077 = vmatprep.mubr.f32.mxu0 0.0
        %4078 = vmatmul.mubr.f32.gmra.mxu0 %v3996
        %v4079 = vpop.f32.mrf.mxu0
        %v4080 = vadd.f32 %v3983, %v4079
        %v4081 = vpop.f32.mrf.mxu0
        %4082 = vdwg.mxu0
        %v4084 = vsel %vm1751, %v3885, 0
        %v4087 = vsel %vm1751, %v3886, 0
        %v4090 = vsel %vm1751, %v3887, 0
        %v4093 = vsel %vm1751, %v3888, 0
        %4095 = vmatprep.subr.mxu0 0.0
        %4096 = vmatpush1.msra.mxu0 0.0
        %4097 = vmatprep.subr.mxu0 0.0
        %4098 = vmatpush1.msra.mxu0 0.0
        %4099 = vmatprep.subr.mxu0 0.0
        %4100 = vmatpush1.msra.mxu0 0.0
        %4101 = vmatprep.subr.mxu0 0.0
        %4102 = vmatpush1.msra.mxu0 0.0
        %4103 = vmatprep.subr.mxu0 0.0
        %4104 = vmatpush1.msra.mxu0 0.0
        %4105 = vmatprep.subr.mxu0 0.0
        %4106 = vmatpush1.msra.mxu0 0.0
        %4107 = vmatprep.subr.mxu0 0.0
        %4108 = vmatpush1.msra.mxu0 0.0
        %4109 = vmatprep.subr.mxu0 0.0
        %4110 = vmatpush1.msra.mxu0 0.0
        %4111 = vmatprep.subr.mxu0 0.0
        %4112 = vmatpush1.msra.mxu0 %v3861
        %4113 = vmatprep.subr.mxu0 0.0
        %4114 = vmatpush1.msra.mxu0 %v3860
        %4115 = vmatprep.subr.mxu0 0.0
        %4116 = vmatpush1.msra.mxu0 %v3859
        %4117 = vmatprep.subr.mxu0 0.0
        %4118 = vmatpush1.msra.mxu0 %v3858
        %4119 = vmatprep.subr.mxu0 0.0
        %4120 = vmatpush1.msra.mxu0 %v3857
        %4121 = vmatprep.subr.mxu0 0.0
        %4122 = vmatpush1.msra.mxu0 %v3856
        %4123 = vmatprep.subr.mxu0 0.0
        %4124 = vmatpush1.msra.mxu0 %v3855
        %4125 = vmatprep.subr.mxu0 0.0
        %4126 = vmatpush1.msra.mxu0 %v3854
        %4127 = vmatprep.subr.mxu0 0.0
        %4128 = vmatpush2.msra.mxu0 0.0
        %4129 = vmatprep.subr.mxu0 0.0
        %4130 = vmatpush2.msra.mxu0 0.0
        %4131 = vmatprep.subr.mxu0 0.0
        %4132 = vmatpush2.msra.mxu0 0.0
        %4133 = vmatprep.subr.mxu0 0.0
        %4134 = vmatpush2.msra.mxu0 0.0
        %4135 = vmatprep.subr.mxu0 0.0
        %4136 = vmatpush2.msra.mxu0 0.0
        %4137 = vmatprep.subr.mxu0 0.0
        %4138 = vmatpush2.msra.mxu0 0.0
        %4139 = vmatprep.subr.mxu0 0.0
        %4140 = vmatpush2.msra.mxu0 0.0
        %4141 = vmatprep.subr.mxu0 0.0
        %4142 = vmatpush2.msra.mxu0 0.0
        %4143 = vmatprep.subr.mxu0 0.0
        %4144 = vmatpush2.msra.mxu0 0.0
        %4145 = vmatprep.subr.mxu0 0.0
        %4146 = vmatpush2.msra.mxu0 0.0
        %4147 = vmatprep.subr.mxu0 0.0
        %4148 = vmatpush2.msra.mxu0 0.0
        %4149 = vmatprep.subr.mxu0 0.0
        %4150 = vmatpush2.msra.mxu0 0.0
        %4151 = vmatprep.subr.mxu0 0.0
        %4152 = vmatpush2.msra.mxu0 0.0
        %4153 = vmatprep.subr.mxu0 0.0
        %4154 = vmatpush2.msra.mxu0 0.0
        %4155 = vmatprep.subr.mxu0 0.0
        %4156 = vmatpush2.msra.mxu0 0.0
        %4157 = vmatprep.subr.mxu0 0.0
        %4158 = vmatpush2.msra.mxu0 0.0
        %4159 = vmatprep.mubr.f32.mxu0 0.0
        %4160 = vmatmul.mubr.f32.gmra.mxu0 %v4084
        %v4161 = vpop.f32.mrf.mxu0
        %v4162 = vadd.f32 0.0, %v4161
        %v4163 = vpop.f32.mrf.mxu0
        %4164 = vmatprep.mubr.f32.mxu0 0.0
        %4165 = vmatmul.mubr.f32.gmra.mxu0 %v4087
        %v4166 = vpop.f32.mrf.mxu0
        %v4167 = vadd.f32 0.0, %v4166
        %v4168 = vpop.f32.mrf.mxu0
        %4169 = vmatprep.mubr.f32.mxu0 0.0
        %4170 = vmatmul.mubr.f32.gmra.mxu0 %v4090
        %v4171 = vpop.f32.mrf.mxu0
        %v4172 = vadd.f32 0.0, %v4171
        %v4173 = vpop.f32.mrf.mxu0
        %4174 = vmatprep.mubr.f32.mxu0 0.0
        %4175 = vmatmul.mubr.f32.gmra.mxu0 %v4093
        %v4176 = vpop.f32.mrf.mxu0
        %v4177 = vadd.f32 0.0, %v4176
        %v4178 = vpop.f32.mrf.mxu0
        %4179 = vdwg.mxu0
        %v4180 = vadd.f32 %v4065, %v4162
        %v4181 = vadd.f32 %v4070, %v4167
        %v4182 = vadd.f32 %v4075, %v4172
        %v4183 = vadd.f32 %v4080, %v4177
        %v4185 = vlaneseq
        %v4186 = vshrl.u32 %v4185, 7
        %v4187 = vsub.s32 0, %v4186
        %v4188 = vrot.slane %v3862, %v4187
        %v4190 = vadd.f32 %v4180, %v4188
        %v4191 = vadd.f32 %v4181, %v4188
        %v4192 = vadd.f32 %v4182, %v4188
        %v4193 = vadd.f32 %v4183, %v4188
        %v4195 = vlaneseq
        %v4196 = vshrl.u32 %v4195, 7
        %v4197 = vsub.s32 0, %v4196
        %v4198 = vrot.slane %v3863, %v4197
        %v4200 = vmul.f32 %v4190, %v4198
        %v4201 = vmul.f32 %v4191, %v4198
        %v4202 = vmul.f32 %v4192, %v4198
        %v4203 = vmul.f32 %v4193, %v4198
        %v4205 = vlaneseq
        %v4206 = vshrl.u32 %v4205, 7
        %v4207 = vsub.s32 0, %v4206
        %v4208 = vrot.slane %v3864, %v4207
        %v4210 = vadd.f32 %v4200, %v4208
        %v4211 = vadd.f32 %v4201, %v4208
        %v4212 = vadd.f32 %v4202, %v4208
        %v4213 = vadd.f32 %v4203, %v4208
        %v4214 = vmax.f32 %v4210, 0.0
        %v4215 = vmax.f32 %v4211, 0.0
        %v4216 = vmax.f32 %v4212, 0.0
        %v4217 = vmax.f32 %v4213, 0.0
        %v4218 = vld [vmem:[%s1089] sm:$0xff]
        %v4219 = vld [vmem:[%s1089 + $0x8] sm:$0xff]
        %v4220 = vld [vmem:[%s1089 + $0x10] sm:$0xff]
        %v4221 = vld [vmem:[%s1089 + $0x18] sm:$0xff]
        %v4222 = vld [vmem:[%s1089 + $0x20] sm:$0xff]
        %v4223 = vld [vmem:[%s1089 + $0x28] sm:$0xff]
        %v4224 = vld [vmem:[%s1089 + $0x30] sm:$0xff]
        %v4225 = vld [vmem:[%s1089 + $0x38] sm:$0xff]
        %v4226 = vld [vmem:[%s1089 + $0x40] sm:$0xff]
        %v4227 = vld [vmem:[%s1089 + $0x48] sm:$0xff]
        %v4228 = vld [vmem:[%s1089 + $0x50] sm:$0xff]
        %v4229 = vld [vmem:[%s1089 + $0x58] sm:$0xff]
        %v4230 = vld [vmem:[%s1089 + $0x60] sm:$0xff]
        %v4231 = vld [vmem:[%s1089 + $0x68] sm:$0xff]
        %v4232 = vld [vmem:[%s1089 + $0x70] sm:$0xff]
        %v4233 = vld [vmem:[%s1089 + $0x78] sm:$0xff]
        %v4234 = vld [vmem:[%s1089 + $0x80] sm:$0xff]
        %v4235 = vld [vmem:[%s1089 + $0x88] sm:$0xff]
        %v4236 = vld [vmem:[%s1089 + $0x90] sm:$0xff]
        %v4237 = vld [vmem:[%s1089 + $0x98] sm:$0xff]
        %v4238 = vld [vmem:[%s1089 + $0xa0] sm:$0xff]
        %v4239 = vld [vmem:[%s1089 + $0xa8] sm:$0xff]
        %v4240 = vld [vmem:[%s1089 + $0xb0] sm:$0xff]
        %v4241 = vld [vmem:[%s1089 + $0xb8] sm:$0xff]
        %v4242 = vld [vmem:[%s1089 + $0xc0] sm:$0xff]
        %v4243 = vld [vmem:[%s1089 + $0xc8] sm:$0xff]
        %v4244 = vld [vmem:[%s1089 + $0xd0] sm:$0xff]
        %v4245 = vld [vmem:[%s1089 + $0xd8] sm:$0xff]
        %v4246 = vld [vmem:[%s1089 + $0xe0] sm:$0xff]
        %v4247 = vld [vmem:[%s1089 + $0xe8] sm:$0xff]
        %v4248 = vld [vmem:[%s1089 + $0xf0] sm:$0xff]
        %v4249 = vld [vmem:[%s1089 + $0xf8] sm:$0xff]
        %v4250 = vld [vmem:[%s1089 + $0x100] sm:$0xff]
        %v4251 = vld [vmem:[%s1089 + $0x108] sm:$0xff]
        %v4252 = vld [vmem:[%s1089 + $0x110] sm:$0xff]
        %v4253 = vld [vmem:[%s1089 + $0x118] sm:$0xff]
        %v4254 = vld [vmem:[%s1089 + $0x120] sm:$0xff]
        %v4255 = vld [vmem:[%s1089 + $0x128] sm:$0xff]
        %v4256 = vld [vmem:[%s1089 + $0x130] sm:$0xff]
        %v4257 = vld [vmem:[%s1089 + $0x138] sm:$0xff]
        %v4258 = vld [vmem:[%s1089 + $0x140] sm:$0xff]
        %v4259 = vld [vmem:[%s1089 + $0x148] sm:$0xff]
        %v4260 = vld [vmem:[%s1089 + $0x150] sm:$0xff]
        %v4261 = vld [vmem:[%s1089 + $0x158] sm:$0xff]
        %v4262 = vld [vmem:[%s1089 + $0x160] sm:$0xff]
        %v4263 = vld [vmem:[%s1089 + $0x168] sm:$0xff]
        %v4264 = vld [vmem:[%s1089 + $0x170] sm:$0xff]
        %v4265 = vld [vmem:[%s1089 + $0x178] sm:$0xff]
        %v4266 = vld [vmem:[%s1089 + $0x180] sm:$0xff]
        %v4267 = vld [vmem:[%s1089 + $0x188] sm:$0xff]
        %v4268 = vld [vmem:[%s1089 + $0x190] sm:$0xff]
        %v4269 = vld [vmem:[%s1089 + $0x198] sm:$0xff]
        %v4270 = vld [vmem:[%s1089 + $0x1a0] sm:$0xff]
        %v4271 = vld [vmem:[%s1089 + $0x1a8] sm:$0xff]
        %v4272 = vld [vmem:[%s1089 + $0x1b0] sm:$0xff]
        %v4273 = vld [vmem:[%s1089 + $0x1b8] sm:$0xff]
        %v4274 = vld [vmem:[%s1089 + $0x1c0] sm:$0xff]
        %v4275 = vld [vmem:[%s1089 + $0x1c8] sm:$0xff]
        %v4276 = vld [vmem:[%s1089 + $0x1d0] sm:$0xff]
        %v4277 = vld [vmem:[%s1089 + $0x1d8] sm:$0xff]
        %v4278 = vld [vmem:[%s1089 + $0x1e0] sm:$0xff]
        %v4279 = vld [vmem:[%s1089 + $0x1e8] sm:$0xff]
        %v4280 = vld [vmem:[%s1089 + $0x1f0] sm:$0xff]
        %v4281 = vld [vmem:[%s1089 + $0x1f8] sm:$0xff]
        %v4282 = vld [vmem:[%s1089 + $0x200] sm:$0xff]
        %v4283 = vld [vmem:[%s1089 + $0x208] sm:$0xff]
        %v4284 = vld [vmem:[%s1089 + $0x210] sm:$0xff]
        %v4285 = vld [vmem:[%s1089 + $0x218] sm:$0xff]
        %v4286 = vld [vmem:[%s1089 + $0x220] sm:$0xff]
        %v4287 = vld [vmem:[%s1089 + $0x228] sm:$0xff]
        %v4288 = vld [vmem:[%s1089 + $0x230] sm:$0xff]
        %v4289 = vld [vmem:[%s1089 + $0x238] sm:$0xff]
        %v4290 = vld [vmem:[%s1089 + $0x240] sm:$0xff]
        %v4291 = vld [vmem:[%s1089 + $0x248] sm:$0xff]
        %v4292 = vld [vmem:[%s1089 + $0x250] sm:$0xff]
        %v4293 = vld [vmem:[%s1089 + $0x258] sm:$0xff]
        %v4294 = vld [vmem:[%s1089 + $0x260] sm:$0xff]
        %v4295 = vld [vmem:[%s1089 + $0x268] sm:$0xff]
        %v4296 = vld [vmem:[%s1089 + $0x270] sm:$0xff]
        %v4297 = vld [vmem:[%s1089 + $0x278] sm:$0xff]
        %v4298 = vld [vmem:[%s1089 + $0x280] sm:$0xff]
        %v4299 = vld [vmem:[%s1089 + $0x288] sm:$0xff]
        %v4300 = vld [vmem:[%s1089 + $0x290] sm:$0xff]
        %v4301 = vld [vmem:[%s1089 + $0x298] sm:$0xff]
        %v4302 = vld [vmem:[%s1089 + $0x2a0] sm:$0xff]
        %v4303 = vld [vmem:[%s1089 + $0x2a8] sm:$0xff]
        %v4304 = vld [vmem:[%s1089 + $0x2b0] sm:$0xff]
        %v4305 = vld [vmem:[%s1089 + $0x2b8] sm:$0xff]
        %v4306 = vld [vmem:[%s1089 + $0x2c0] sm:$0xff]
        %v4307 = vld [vmem:[%s1089 + $0x2c8] sm:$0xff]
        %v4308 = vld [vmem:[%s1089 + $0x2d0] sm:$0xff]
        %v4309 = vld [vmem:[%s1089 + $0x2d8] sm:$0xff]
        %v4310 = vld [vmem:[%s1089 + $0x2e0] sm:$0xff]
        %v4311 = vld [vmem:[%s1089 + $0x2e8] sm:$0xff]
        %v4312 = vld [vmem:[%s1089 + $0x2f0] sm:$0xff]
        %v4313 = vld [vmem:[%s1089 + $0x2f8] sm:$0xff]
        %v4314 = vld [vmem:[%s1098] sm:$0x3]
        %v4315 = vld [vmem:[%s1107] sm:$0x3]
        %v4316 = vld [vmem:[%s1116] sm:$0x3]
        %v4317 = vrot.slane %v4214, 6
        %v4318 = vrot.slane %v4215, 6
        %v4319 = vrot.slane %v4216, 6
        %v4320 = vrot.slane %v4217, 6
        %v4321 = vsel %vm1335, %v4319, %v4320
        %v4322 = vsel %vm1335, %v4318, %v4319
        %v4323 = vsel %vm1335, %v4317, %v4318
        %v4324 = vsel %vm1335, %v4320, %v4317
        %v4325 = vmul.f32 %v4324, %v1343
        %v4326 = vmul.f32 %v4323, %v1348
        %v4327 = vmul.f32 %v4322, %v1353
        %v4328 = vmul.f32 %v4321, %v1358
        %v4329 = vrot.slane %v4214, 2
        %v4330 = vrot.slane %v4215, 2
        %v4331 = vrot.slane %v4216, 2
        %v4332 = vrot.slane %v4217, 2
        %v4333 = vsel %vm1368, %v4331, %v4332
        %v4334 = vsel %vm1368, %v4330, %v4331
        %v4335 = vsel %vm1368, %v4329, %v4330
        %v4336 = vsel %vm1368, %v4332, %v4329
        %v4337 = vmul.f32 %v4335, %v1375
        %v4338 = vmul.f32 %v4334, %v1379
        %v4339 = vmul.f32 %v4333, %v1383
        %v4340 = vmul.f32 %v4336, %v1387
        %4341 = vmatprep.subr.mxu0 %v4281
        %4342 = vmatpush1.msra.mxu0 %v4280
        %4343 = vmatprep.subr.mxu0 %v4279
        %4344 = vmatpush1.msra.mxu0 %v4278
        %4345 = vmatprep.subr.mxu0 %v4277
        %4346 = vmatpush1.msra.mxu0 %v4276
        %4347 = vmatprep.subr.mxu0 %v4275
        %4348 = vmatpush1.msra.mxu0 %v4274
        %4349 = vmatprep.subr.mxu0 %v4273
        %4350 = vmatpush1.msra.mxu0 %v4272
        %4351 = vmatprep.subr.mxu0 %v4271
        %4352 = vmatpush1.msra.mxu0 %v4270
        %4353 = vmatprep.subr.mxu0 %v4269
        %4354 = vmatpush1.msra.mxu0 %v4268
        %4355 = vmatprep.subr.mxu0 %v4267
        %4356 = vmatpush1.msra.mxu0 %v4266
        %4357 = vmatprep.subr.mxu0 %v4265
        %4358 = vmatpush1.msra.mxu0 %v4264
        %4359 = vmatprep.subr.mxu0 %v4263
        %4360 = vmatpush1.msra.mxu0 %v4262
        %4361 = vmatprep.subr.mxu0 %v4261
        %4362 = vmatpush1.msra.mxu0 %v4260
        %4363 = vmatprep.subr.mxu0 %v4259
        %4364 = vmatpush1.msra.mxu0 %v4258
        %4365 = vmatprep.subr.mxu0 %v4257
        %4366 = vmatpush1.msra.mxu0 %v4256
        %4367 = vmatprep.subr.mxu0 %v4255
        %4368 = vmatpush1.msra.mxu0 %v4254
        %4369 = vmatprep.subr.mxu0 %v4253
        %4370 = vmatpush1.msra.mxu0 %v4252
        %4371 = vmatprep.subr.mxu0 %v4251
        %4372 = vmatpush1.msra.mxu0 %v4250
        %4373 = vmatprep.subr.mxu0 0.0
        %4374 = vmatpush2.msra.mxu0 0.0
        %4375 = vmatprep.subr.mxu0 0.0
        %4376 = vmatpush2.msra.mxu0 0.0
        %4377 = vmatprep.subr.mxu0 0.0
        %4378 = vmatpush2.msra.mxu0 0.0
        %4379 = vmatprep.subr.mxu0 0.0
        %4380 = vmatpush2.msra.mxu0 0.0
        %4381 = vmatprep.subr.mxu0 0.0
        %4382 = vmatpush2.msra.mxu0 0.0
        %4383 = vmatprep.subr.mxu0 0.0
        %4384 = vmatpush2.msra.mxu0 0.0
        %4385 = vmatprep.subr.mxu0 0.0
        %4386 = vmatpush2.msra.mxu0 0.0
        %4387 = vmatprep.subr.mxu0 0.0
        %4388 = vmatpush2.msra.mxu0 0.0
        %4389 = vmatprep.subr.mxu0 0.0
        %4390 = vmatpush2.msra.mxu0 0.0
        %4391 = vmatprep.subr.mxu0 0.0
        %4392 = vmatpush2.msra.mxu0 0.0
        %4393 = vmatprep.subr.mxu0 0.0
        %4394 = vmatpush2.msra.mxu0 0.0
        %4395 = vmatprep.subr.mxu0 0.0
        %4396 = vmatpush2.msra.mxu0 0.0
        %4397 = vmatprep.subr.mxu0 0.0
        %4398 = vmatpush2.msra.mxu0 0.0
        %4399 = vmatprep.subr.mxu0 0.0
        %4400 = vmatpush2.msra.mxu0 0.0
        %4401 = vmatprep.subr.mxu0 0.0
        %4402 = vmatpush2.msra.mxu0 0.0
        %4403 = vmatprep.subr.mxu0 0.0
        %4404 = vmatpush2.msra.mxu0 0.0
        %4405 = vmatprep.mubr.f32.mxu0 0.0
        %4406 = vmatmul.mubr.f32.gmra.mxu0 %v4214
        %v4407 = vpop.f32.mrf.mxu0
        %v4408 = vadd.f32 0.0, %v4407
        %v4409 = vpop.f32.mrf.mxu0
        %v4410 = vadd.f32 0.0, %v4409
        %4411 = vmatprep.mubr.f32.mxu0 0.0
        %4412 = vmatmul.mubr.f32.gmra.mxu0 %v4215
        %v4413 = vpop.f32.mrf.mxu0
        %v4414 = vadd.f32 0.0, %v4413
        %v4415 = vpop.f32.mrf.mxu0
        %v4416 = vadd.f32 0.0, %v4415
        %4417 = vmatprep.mubr.f32.mxu0 0.0
        %4418 = vmatmul.mubr.f32.gmra.mxu0 %v4216
        %v4419 = vpop.f32.mrf.mxu0
        %v4420 = vadd.f32 0.0, %v4419
        %v4421 = vpop.f32.mrf.mxu0
        %v4422 = vadd.f32 0.0, %v4421
        %4423 = vmatprep.mubr.f32.mxu0 0.0
        %4424 = vmatmul.mubr.f32.gmra.mxu0 %v4217
        %v4425 = vpop.f32.mrf.mxu0
        %v4426 = vadd.f32 0.0, %v4425
        %v4427 = vpop.f32.mrf.mxu0
        %v4428 = vadd.f32 0.0, %v4427
        %4429 = vdwg.mxu0
        %4430 = vmatprep.subr.mxu0 %v4249
        %4431 = vmatpush1.msra.mxu0 %v4248
        %4432 = vmatprep.subr.mxu0 %v4247
        %4433 = vmatpush1.msra.mxu0 %v4246
        %4434 = vmatprep.subr.mxu0 %v4245
        %4435 = vmatpush1.msra.mxu0 %v4244
        %4436 = vmatprep.subr.mxu0 %v4243
        %4437 = vmatpush1.msra.mxu0 %v4242
        %4438 = vmatprep.subr.mxu0 %v4241
        %4439 = vmatpush1.msra.mxu0 %v4240
        %4440 = vmatprep.subr.mxu0 %v4239
        %4441 = vmatpush1.msra.mxu0 %v4238
        %4442 = vmatprep.subr.mxu0 %v4237
        %4443 = vmatpush1.msra.mxu0 %v4236
        %4444 = vmatprep.subr.mxu0 %v4235
        %4445 = vmatpush1.msra.mxu0 %v4234
        %4446 = vmatprep.subr.mxu0 %v4233
        %4447 = vmatpush1.msra.mxu0 %v4232
        %4448 = vmatprep.subr.mxu0 %v4231
        %4449 = vmatpush1.msra.mxu0 %v4230
        %4450 = vmatprep.subr.mxu0 %v4229
        %4451 = vmatpush1.msra.mxu0 %v4228
        %4452 = vmatprep.subr.mxu0 %v4227
        %4453 = vmatpush1.msra.mxu0 %v4226
        %4454 = vmatprep.subr.mxu0 %v4225
        %4455 = vmatpush1.msra.mxu0 %v4224
        %4456 = vmatprep.subr.mxu0 %v4223
        %4457 = vmatpush1.msra.mxu0 %v4222
        %4458 = vmatprep.subr.mxu0 %v4221
        %4459 = vmatpush1.msra.mxu0 %v4220
        %4460 = vmatprep.subr.mxu0 %v4219
        %4461 = vmatpush1.msra.mxu0 %v4218
        %4462 = vmatprep.subr.mxu0 0.0
        %4463 = vmatpush2.msra.mxu0 0.0
        %4464 = vmatprep.subr.mxu0 0.0
        %4465 = vmatpush2.msra.mxu0 0.0
        %4466 = vmatprep.subr.mxu0 0.0
        %4467 = vmatpush2.msra.mxu0 0.0
        %4468 = vmatprep.subr.mxu0 0.0
        %4469 = vmatpush2.msra.mxu0 0.0
        %4470 = vmatprep.subr.mxu0 0.0
        %4471 = vmatpush2.msra.mxu0 0.0
        %4472 = vmatprep.subr.mxu0 0.0
        %4473 = vmatpush2.msra.mxu0 0.0
        %4474 = vmatprep.subr.mxu0 0.0
        %4475 = vmatpush2.msra.mxu0 0.0
        %4476 = vmatprep.subr.mxu0 0.0
        %4477 = vmatpush2.msra.mxu0 0.0
        %4478 = vmatprep.subr.mxu0 0.0
        %4479 = vmatpush2.msra.mxu0 0.0
        %4480 = vmatprep.subr.mxu0 0.0
        %4481 = vmatpush2.msra.mxu0 0.0
        %4482 = vmatprep.subr.mxu0 0.0
        %4483 = vmatpush2.msra.mxu0 0.0
        %4484 = vmatprep.subr.mxu0 0.0
        %4485 = vmatpush2.msra.mxu0 0.0
        %4486 = vmatprep.subr.mxu0 0.0
        %4487 = vmatpush2.msra.mxu0 0.0
        %4488 = vmatprep.subr.mxu0 0.0
        %4489 = vmatpush2.msra.mxu0 0.0
        %4490 = vmatprep.subr.mxu0 0.0
        %4491 = vmatpush2.msra.mxu0 0.0
        %4492 = vmatprep.subr.mxu0 0.0
        %4493 = vmatpush2.msra.mxu0 0.0
        %4494 = vmatprep.mubr.f32.mxu0 0.0
        %4495 = vmatmul.mubr.f32.gmra.mxu0 %v4325
        %v4496 = vpop.f32.mrf.mxu0
        %v4497 = vadd.f32 %v4408, %v4496
        %v4498 = vpop.f32.mrf.mxu0
        %v4499 = vadd.f32 %v4410, %v4498
        %4500 = vmatprep.mubr.f32.mxu0 0.0
        %4501 = vmatmul.mubr.f32.gmra.mxu0 %v4326
        %v4502 = vpop.f32.mrf.mxu0
        %v4503 = vadd.f32 %v4414, %v4502
        %v4504 = vpop.f32.mrf.mxu0
        %v4505 = vadd.f32 %v4416, %v4504
        %4506 = vmatprep.mubr.f32.mxu0 0.0
        %4507 = vmatmul.mubr.f32.gmra.mxu0 %v4327
        %v4508 = vpop.f32.mrf.mxu0
        %v4509 = vadd.f32 %v4420, %v4508
        %v4510 = vpop.f32.mrf.mxu0
        %v4511 = vadd.f32 %v4422, %v4510
        %4512 = vmatprep.mubr.f32.mxu0 0.0
        %4513 = vmatmul.mubr.f32.gmra.mxu0 %v4328
        %v4514 = vpop.f32.mrf.mxu0
        %v4515 = vadd.f32 %v4426, %v4514
        %v4516 = vpop.f32.mrf.mxu0
        %v4517 = vadd.f32 %v4428, %v4516
        %4518 = vdwg.mxu0
        %4519 = vmatprep.subr.mxu0 %v4313
        %4520 = vmatpush1.msra.mxu0 %v4312
        %4521 = vmatprep.subr.mxu0 %v4311
        %4522 = vmatpush1.msra.mxu0 %v4310
        %4523 = vmatprep.subr.mxu0 %v4309
        %4524 = vmatpush1.msra.mxu0 %v4308
        %4525 = vmatprep.subr.mxu0 %v4307
        %4526 = vmatpush1.msra.mxu0 %v4306
        %4527 = vmatprep.subr.mxu0 %v4305
        %4528 = vmatpush1.msra.mxu0 %v4304
        %4529 = vmatprep.subr.mxu0 %v4303
        %4530 = vmatpush1.msra.mxu0 %v4302
        %4531 = vmatprep.subr.mxu0 %v4301
        %4532 = vmatpush1.msra.mxu0 %v4300
        %4533 = vmatprep.subr.mxu0 %v4299
        %4534 = vmatpush1.msra.mxu0 %v4298
        %4535 = vmatprep.subr.mxu0 %v4297
        %4536 = vmatpush1.msra.mxu0 %v4296
        %4537 = vmatprep.subr.mxu0 %v4295
        %4538 = vmatpush1.msra.mxu0 %v4294
        %4539 = vmatprep.subr.mxu0 %v4293
        %4540 = vmatpush1.msra.mxu0 %v4292
        %4541 = vmatprep.subr.mxu0 %v4291
        %4542 = vmatpush1.msra.mxu0 %v4290
        %4543 = vmatprep.subr.mxu0 %v4289
        %4544 = vmatpush1.msra.mxu0 %v4288
        %4545 = vmatprep.subr.mxu0 %v4287
        %4546 = vmatpush1.msra.mxu0 %v4286
        %4547 = vmatprep.subr.mxu0 %v4285
        %4548 = vmatpush1.msra.mxu0 %v4284
        %4549 = vmatprep.subr.mxu0 %v4283
        %4550 = vmatpush1.msra.mxu0 %v4282
        %4551 = vmatprep.subr.mxu0 0.0
        %4552 = vmatpush2.msra.mxu0 0.0
        %4553 = vmatprep.subr.mxu0 0.0
        %4554 = vmatpush2.msra.mxu0 0.0
        %4555 = vmatprep.subr.mxu0 0.0
        %4556 = vmatpush2.msra.mxu0 0.0
        %4557 = vmatprep.subr.mxu0 0.0
        %4558 = vmatpush2.msra.mxu0 0.0
        %4559 = vmatprep.subr.mxu0 0.0
        %4560 = vmatpush2.msra.mxu0 0.0
        %4561 = vmatprep.subr.mxu0 0.0
        %4562 = vmatpush2.msra.mxu0 0.0
        %4563 = vmatprep.subr.mxu0 0.0
        %4564 = vmatpush2.msra.mxu0 0.0
        %4565 = vmatprep.subr.mxu0 0.0
        %4566 = vmatpush2.msra.mxu0 0.0
        %4567 = vmatprep.subr.mxu0 0.0
        %4568 = vmatpush2.msra.mxu0 0.0
        %4569 = vmatprep.subr.mxu0 0.0
        %4570 = vmatpush2.msra.mxu0 0.0
        %4571 = vmatprep.subr.mxu0 0.0
        %4572 = vmatpush2.msra.mxu0 0.0
        %4573 = vmatprep.subr.mxu0 0.0
        %4574 = vmatpush2.msra.mxu0 0.0
        %4575 = vmatprep.subr.mxu0 0.0
        %4576 = vmatpush2.msra.mxu0 0.0
        %4577 = vmatprep.subr.mxu0 0.0
        %4578 = vmatpush2.msra.mxu0 0.0
        %4579 = vmatprep.subr.mxu0 0.0
        %4580 = vmatpush2.msra.mxu0 0.0
        %4581 = vmatprep.subr.mxu0 0.0
        %4582 = vmatpush2.msra.mxu0 0.0
        %4583 = vmatprep.mubr.f32.mxu0 0.0
        %4584 = vmatmul.mubr.f32.gmra.mxu0 %v4337
        %v4585 = vpop.f32.mrf.mxu0
        %v4586 = vadd.f32 0.0, %v4585
        %v4587 = vpop.f32.mrf.mxu0
        %v4588 = vadd.f32 0.0, %v4587
        %4589 = vmatprep.mubr.f32.mxu0 0.0
        %4590 = vmatmul.mubr.f32.gmra.mxu0 %v4338
        %v4591 = vpop.f32.mrf.mxu0
        %v4592 = vadd.f32 0.0, %v4591
        %v4593 = vpop.f32.mrf.mxu0
        %v4594 = vadd.f32 0.0, %v4593
        %4595 = vmatprep.mubr.f32.mxu0 0.0
        %4596 = vmatmul.mubr.f32.gmra.mxu0 %v4339
        %v4597 = vpop.f32.mrf.mxu0
        %v4598 = vadd.f32 0.0, %v4597
        %v4599 = vpop.f32.mrf.mxu0
        %v4600 = vadd.f32 0.0, %v4599
        %4601 = vmatprep.mubr.f32.mxu0 0.0
        %4602 = vmatmul.mubr.f32.gmra.mxu0 %v4340
        %v4603 = vpop.f32.mrf.mxu0
        %v4604 = vadd.f32 0.0, %v4603
        %v4605 = vpop.f32.mrf.mxu0
        %v4606 = vadd.f32 0.0, %v4605
        %4607 = vdwg.mxu0
        %v4608 = vadd.f32 %v4497, %v4586
        %v4609 = vadd.f32 %v4499, %v4588
        %v4610 = vadd.f32 %v4503, %v4592
        %v4611 = vadd.f32 %v4505, %v4594
        %v4612 = vadd.f32 %v4509, %v4598
        %v4613 = vadd.f32 %v4511, %v4600
        %v4614 = vadd.f32 %v4515, %v4604
        %v4615 = vadd.f32 %v4517, %v4606
        %v4617 = vlaneseq
        %v4618 = vshrl.u32 %v4617, 7
        %v4619 = vsub.s32 0, %v4618
        %v4620 = vrot.slane %v4314, %v4619
        %v4621 = vlaneseq
        %v4622 = vshrl.u32 %v4621, 7
        %v4623 = vsub.s32 1, %v4622
        %v4624 = vrot.slane %v4314, %v4623
        %v4627 = vadd.f32 %v4608, %v4620
        %v4628 = vadd.f32 %v4609, %v4624
        %v4629 = vadd.f32 %v4610, %v4620
        %v4630 = vadd.f32 %v4611, %v4624
        %v4631 = vadd.f32 %v4612, %v4620
        %v4632 = vadd.f32 %v4613, %v4624
        %v4633 = vadd.f32 %v4614, %v4620
        %v4634 = vadd.f32 %v4615, %v4624
        %v4636 = vlaneseq
        %v4637 = vshrl.u32 %v4636, 7
        %v4638 = vsub.s32 0, %v4637
        %v4639 = vrot.slane %v4315, %v4638
        %v4640 = vlaneseq
        %v4641 = vshrl.u32 %v4640, 7
        %v4642 = vsub.s32 1, %v4641
        %v4643 = vrot.slane %v4315, %v4642
        %v4646 = vmul.f32 %v4627, %v4639
        %v4647 = vmul.f32 %v4628, %v4643
        %v4648 = vmul.f32 %v4629, %v4639
        %v4649 = vmul.f32 %v4630, %v4643
        %v4650 = vmul.f32 %v4631, %v4639
        %v4651 = vmul.f32 %v4632, %v4643
        %v4652 = vmul.f32 %v4633, %v4639
        %v4653 = vmul.f32 %v4634, %v4643
        %v4655 = vlaneseq
        %v4656 = vshrl.u32 %v4655, 7
        %v4657 = vsub.s32 0, %v4656
        %v4658 = vrot.slane %v4316, %v4657
        %v4659 = vlaneseq
        %v4660 = vshrl.u32 %v4659, 7
        %v4661 = vsub.s32 1, %v4660
        %v4662 = vrot.slane %v4316, %v4661
        %v4665 = vadd.f32 %v4646, %v4658
        %v4666 = vadd.f32 %v4647, %v4662
        %v4667 = vadd.f32 %v4648, %v4658
        %v4668 = vadd.f32 %v4649, %v4662
        %v4669 = vadd.f32 %v4650, %v4658
        %v4670 = vadd.f32 %v4651, %v4662
        %v4671 = vadd.f32 %v4652, %v4658
        %v4672 = vadd.f32 %v4653, %v4662
        %v4673 = vmax.f32 %v4665, 0.0
        %v4674 = vmax.f32 %v4666, 0.0
        %v4675 = vmax.f32 %v4667, 0.0
        %v4676 = vmax.f32 %v4668, 0.0
        %v4677 = vmax.f32 %v4669, 0.0
        %v4678 = vmax.f32 %v4670, 0.0
        %v4679 = vmax.f32 %v4671, 0.0
        %v4680 = vmax.f32 %v4672, 0.0
        %v4681 = vld [vmem:[#allocation4] sm:$0x3]
        %vm4682 = vcmask 261120
        %v4684 = vsel %vm4682, %v4681, 0
        %4686 = vmatprep.subr.mxu0 0.0
        %4687 = vmatpush1.msra.mxu0 0.0
        %4688 = vmatprep.subr.mxu0 0.0
        %4689 = vmatpush1.msra.mxu0 0.0
        %4690 = vmatprep.subr.mxu0 0.0
        %4691 = vmatpush1.msra.mxu0 0.0
        %4692 = vmatprep.subr.mxu0 0.0
        %4693 = vmatpush1.msra.mxu0 0.0
        %4694 = vmatprep.subr.mxu0 0.0
        %4695 = vmatpush1.msra.mxu0 0.0
        %4696 = vmatprep.subr.mxu0 0.0
        %4697 = vmatpush1.msra.mxu0 0.0
        %4698 = vmatprep.subr.mxu0 0.0
        %4699 = vmatpush1.msra.mxu0 0.0
        %4700 = vmatprep.subr.mxu0 0.0
        %4701 = vmatpush1.msra.mxu0 0.0
        %4702 = vmatprep.subr.mxu0 0.0
        %4703 = vmatpush1.msra.mxu0 0.0
        %4704 = vmatprep.subr.mxu0 0.0
        %4705 = vmatpush1.msra.mxu0 0.0
        %4706 = vmatprep.subr.mxu0 0.0
        %4707 = vmatpush1.msra.mxu0 0.0
        %4708 = vmatprep.subr.mxu0 0.0
        %4709 = vmatpush1.msra.mxu0 0.0
        %4710 = vmatprep.subr.mxu0 %v4680
        %4711 = vmatpush1.msra.mxu0 %v4679
        %4712 = vmatprep.subr.mxu0 %v4678
        %4713 = vmatpush1.msra.mxu0 %v4677
        %4714 = vmatprep.subr.mxu0 %v4676
        %4715 = vmatpush1.msra.mxu0 %v4675
        %4716 = vmatprep.subr.mxu0 %v4674
        %4717 = vmatpush1.msra.mxu0 %v4673
        %4718 = vmatprep.subr.mxu0 0.0
        %4719 = vmatpush2.msra.mxu0 0.0
        %4720 = vmatprep.subr.mxu0 0.0
        %4721 = vmatpush2.msra.mxu0 0.0
        %4722 = vmatprep.subr.mxu0 0.0
        %4723 = vmatpush2.msra.mxu0 0.0
        %4724 = vmatprep.subr.mxu0 0.0
        %4725 = vmatpush2.msra.mxu0 0.0
        %4726 = vmatprep.subr.mxu0 0.0
        %4727 = vmatpush2.msra.mxu0 0.0
        %4728 = vmatprep.subr.mxu0 0.0
        %4729 = vmatpush2.msra.mxu0 0.0
        %4730 = vmatprep.subr.mxu0 0.0
        %4731 = vmatpush2.msra.mxu0 0.0
        %4732 = vmatprep.subr.mxu0 0.0
        %4733 = vmatpush2.msra.mxu0 0.0
        %4734 = vmatprep.subr.mxu0 0.0
        %4735 = vmatpush2.msra.mxu0 0.0
        %4736 = vmatprep.subr.mxu0 0.0
        %4737 = vmatpush2.msra.mxu0 0.0
        %4738 = vmatprep.subr.mxu0 0.0
        %4739 = vmatpush2.msra.mxu0 0.0
        %4740 = vmatprep.subr.mxu0 0.0
        %4741 = vmatpush2.msra.mxu0 0.0
        %4742 = vmatprep.subr.mxu0 0.0
        %4743 = vmatpush2.msra.mxu0 0.0
        %4744 = vmatprep.subr.mxu0 0.0
        %4745 = vmatpush2.msra.mxu0 0.0
        %4746 = vmatprep.subr.mxu0 0.0
        %4747 = vmatpush2.msra.mxu0 0.0
        %4748 = vmatprep.subr.mxu0 0.0
        %4749 = vmatpush2.msra.mxu0 0.0
        %4750 = vmatprep.mubr.f32.mxu0 0.0
        %4751 = vmatmul.mubr.f32.gmra.mxu0 %v4684
        %v4752 = vpop.f32.mrf.mxu0
        %v4753 = vadd.f32 0.0, %v4752
        %v4754 = vpop.f32.mrf.mxu0
        %v4755 = vadd.f32 0.0, %v4754
        %4756 = vdwg.mxu0
        %v4757 = vld [vmem:[%s1125] sm:$0xff]
        %v4758 = vld [vmem:[%s1125 + $0x8] sm:$0xff]
        %v4759 = vld [vmem:[%s1125 + $0x10] sm:$0xff]
        %v4760 = vld [vmem:[%s1125 + $0x18] sm:$0xff]
        %v4761 = vld [vmem:[%s1125 + $0x20] sm:$0xff]
        %v4762 = vld [vmem:[%s1125 + $0x28] sm:$0xff]
        %v4763 = vld [vmem:[%s1125 + $0x30] sm:$0xff]
        %v4764 = vld [vmem:[%s1125 + $0x38] sm:$0xff]
        %v4765 = vld [vmem:[%s1125 + $0x40] sm:$0xff]
        %v4766 = vld [vmem:[%s1125 + $0x48] sm:$0xff]
        %v4767 = vld [vmem:[%s1125 + $0x50] sm:$0xff]
        %v4768 = vld [vmem:[%s1125 + $0x58] sm:$0xff]
        %v4769 = vld [vmem:[%s1125 + $0x60] sm:$0xff]
        %v4770 = vld [vmem:[%s1125 + $0x68] sm:$0xff]
        %v4771 = vld [vmem:[%s1125 + $0x70] sm:$0xff]
        %v4772 = vld [vmem:[%s1125 + $0x78] sm:$0xff]
        %v4773 = vld [vmem:[%s1125 + $0x80] sm:$0xff]
        %v4774 = vld [vmem:[%s1125 + $0x88] sm:$0xff]
        %v4775 = vld [vmem:[%s1125 + $0x90] sm:$0xff]
        %v4776 = vld [vmem:[%s1125 + $0x98] sm:$0xff]
        %v4777 = vld [vmem:[%s1125 + $0xa0] sm:$0xff]
        %v4778 = vld [vmem:[%s1125 + $0xa8] sm:$0xff]
        %v4779 = vld [vmem:[%s1125 + $0xb0] sm:$0xff]
        %v4780 = vld [vmem:[%s1125 + $0xb8] sm:$0xff]
        %v4781 = vld [vmem:[%s1125 + $0xc0] sm:$0xff]
        %v4782 = vld [vmem:[%s1125 + $0xc8] sm:$0xff]
        %v4783 = vld [vmem:[%s1125 + $0xd0] sm:$0xff]
        %v4784 = vld [vmem:[%s1125 + $0xd8] sm:$0xff]
        %v4785 = vld [vmem:[%s1125 + $0xe0] sm:$0xff]
        %v4786 = vld [vmem:[%s1125 + $0xe8] sm:$0xff]
        %v4787 = vld [vmem:[%s1125 + $0xf0] sm:$0xff]
        %v4788 = vld [vmem:[%s1125 + $0xf8] sm:$0xff]
        %v4789 = vld [vmem:[%s1125 + $0x100] sm:$0xff]
        %v4790 = vld [vmem:[%s1125 + $0x108] sm:$0xff]
        %v4791 = vld [vmem:[%s1125 + $0x110] sm:$0xff]
        %v4792 = vld [vmem:[%s1125 + $0x118] sm:$0xff]
        %v4793 = vld [vmem:[%s1125 + $0x120] sm:$0xff]
        %v4794 = vld [vmem:[%s1125 + $0x128] sm:$0xff]
        %v4795 = vld [vmem:[%s1125 + $0x130] sm:$0xff]
        %v4796 = vld [vmem:[%s1125 + $0x138] sm:$0xff]
        %v4797 = vld [vmem:[%s1125 + $0x140] sm:$0xff]
        %v4798 = vld [vmem:[%s1125 + $0x148] sm:$0xff]
        %v4799 = vld [vmem:[%s1125 + $0x150] sm:$0xff]
        %v4800 = vld [vmem:[%s1125 + $0x158] sm:$0xff]
        %v4801 = vld [vmem:[%s1125 + $0x160] sm:$0xff]
        %v4802 = vld [vmem:[%s1125 + $0x168] sm:$0xff]
        %v4803 = vld [vmem:[%s1125 + $0x170] sm:$0xff]
        %v4804 = vld [vmem:[%s1125 + $0x178] sm:$0xff]
        %v4805 = vld [vmem:[%s1125 + $0x180] sm:$0xff]
        %v4806 = vld [vmem:[%s1125 + $0x188] sm:$0xff]
        %v4807 = vld [vmem:[%s1125 + $0x190] sm:$0xff]
        %v4808 = vld [vmem:[%s1125 + $0x198] sm:$0xff]
        %v4809 = vld [vmem:[%s1125 + $0x1a0] sm:$0xff]
        %v4810 = vld [vmem:[%s1125 + $0x1a8] sm:$0xff]
        %v4811 = vld [vmem:[%s1125 + $0x1b0] sm:$0xff]
        %v4812 = vld [vmem:[%s1125 + $0x1b8] sm:$0xff]
        %v4813 = vld [vmem:[%s1125 + $0x1c0] sm:$0xff]
        %v4814 = vld [vmem:[%s1125 + $0x1c8] sm:$0xff]
        %v4815 = vld [vmem:[%s1125 + $0x1d0] sm:$0xff]
        %v4816 = vld [vmem:[%s1125 + $0x1d8] sm:$0xff]
        %v4817 = vld [vmem:[%s1125 + $0x1e0] sm:$0xff]
        %v4818 = vld [vmem:[%s1125 + $0x1e8] sm:$0xff]
        %v4819 = vld [vmem:[%s1125 + $0x1f0] sm:$0xff]
        %v4820 = vld [vmem:[%s1125 + $0x1f8] sm:$0xff]
        %v4821 = vld [vmem:[%s1125 + $0x200] sm:$0xff]
        %v4822 = vld [vmem:[%s1125 + $0x208] sm:$0xff]
        %v4823 = vld [vmem:[%s1125 + $0x210] sm:$0xff]
        %v4824 = vld [vmem:[%s1125 + $0x218] sm:$0xff]
        %v4825 = vld [vmem:[%s1125 + $0x220] sm:$0xff]
        %v4826 = vld [vmem:[%s1125 + $0x228] sm:$0xff]
        %v4827 = vld [vmem:[%s1125 + $0x230] sm:$0xff]
        %v4828 = vld [vmem:[%s1125 + $0x238] sm:$0xff]
        %v4829 = vld [vmem:[%s1125 + $0x240] sm:$0xff]
        %v4830 = vld [vmem:[%s1125 + $0x248] sm:$0xff]
        %v4831 = vld [vmem:[%s1125 + $0x250] sm:$0xff]
        %v4832 = vld [vmem:[%s1125 + $0x258] sm:$0xff]
        %v4833 = vld [vmem:[%s1125 + $0x260] sm:$0xff]
        %v4834 = vld [vmem:[%s1125 + $0x268] sm:$0xff]
        %v4835 = vld [vmem:[%s1125 + $0x270] sm:$0xff]
        %v4836 = vld [vmem:[%s1125 + $0x278] sm:$0xff]
        %v4837 = vld [vmem:[%s1125 + $0x280] sm:$0xff]
        %v4838 = vld [vmem:[%s1125 + $0x288] sm:$0xff]
        %v4839 = vld [vmem:[%s1125 + $0x290] sm:$0xff]
        %v4840 = vld [vmem:[%s1125 + $0x298] sm:$0xff]
        %v4841 = vld [vmem:[%s1125 + $0x2a0] sm:$0xff]
        %v4842 = vld [vmem:[%s1125 + $0x2a8] sm:$0xff]
        %v4843 = vld [vmem:[%s1125 + $0x2b0] sm:$0xff]
        %v4844 = vld [vmem:[%s1125 + $0x2b8] sm:$0xff]
        %v4845 = vld [vmem:[%s1125 + $0x2c0] sm:$0xff]
        %v4846 = vld [vmem:[%s1125 + $0x2c8] sm:$0xff]
        %v4847 = vld [vmem:[%s1125 + $0x2d0] sm:$0xff]
        %v4848 = vld [vmem:[%s1125 + $0x2d8] sm:$0xff]
        %v4849 = vld [vmem:[%s1125 + $0x2e0] sm:$0xff]
        %v4850 = vld [vmem:[%s1125 + $0x2e8] sm:$0xff]
        %v4851 = vld [vmem:[%s1125 + $0x2f0] sm:$0xff]
        %v4852 = vld [vmem:[%s1125 + $0x2f8] sm:$0xff]
        %v4853 = vld [vmem:[%s1125 + $0x300] sm:$0xff]
        %v4854 = vld [vmem:[%s1125 + $0x308] sm:$0xff]
        %v4855 = vld [vmem:[%s1125 + $0x310] sm:$0xff]
        %v4856 = vld [vmem:[%s1125 + $0x318] sm:$0xff]
        %v4857 = vld [vmem:[%s1125 + $0x320] sm:$0xff]
        %v4858 = vld [vmem:[%s1125 + $0x328] sm:$0xff]
        %v4859 = vld [vmem:[%s1125 + $0x330] sm:$0xff]
        %v4860 = vld [vmem:[%s1125 + $0x338] sm:$0xff]
        %v4861 = vld [vmem:[%s1125 + $0x340] sm:$0xff]
        %v4862 = vld [vmem:[%s1125 + $0x348] sm:$0xff]
        %v4863 = vld [vmem:[%s1125 + $0x350] sm:$0xff]
        %v4864 = vld [vmem:[%s1125 + $0x358] sm:$0xff]
        %v4865 = vld [vmem:[%s1125 + $0x360] sm:$0xff]
        %v4866 = vld [vmem:[%s1125 + $0x368] sm:$0xff]
        %v4867 = vld [vmem:[%s1125 + $0x370] sm:$0xff]
        %v4868 = vld [vmem:[%s1125 + $0x378] sm:$0xff]
        %v4869 = vld [vmem:[%s1125 + $0x380] sm:$0xff]
        %v4870 = vld [vmem:[%s1125 + $0x388] sm:$0xff]
        %v4871 = vld [vmem:[%s1125 + $0x390] sm:$0xff]
        %v4872 = vld [vmem:[%s1125 + $0x398] sm:$0xff]
        %v4873 = vld [vmem:[%s1125 + $0x3a0] sm:$0xff]
        %v4874 = vld [vmem:[%s1125 + $0x3a8] sm:$0xff]
        %v4875 = vld [vmem:[%s1125 + $0x3b0] sm:$0xff]
        %v4876 = vld [vmem:[%s1125 + $0x3b8] sm:$0xff]
        %v4877 = vld [vmem:[%s1125 + $0x3c0] sm:$0xff]
        %v4878 = vld [vmem:[%s1125 + $0x3c8] sm:$0xff]
        %v4879 = vld [vmem:[%s1125 + $0x3d0] sm:$0xff]
        %v4880 = vld [vmem:[%s1125 + $0x3d8] sm:$0xff]
        %v4881 = vld [vmem:[%s1125 + $0x3e0] sm:$0xff]
        %v4882 = vld [vmem:[%s1125 + $0x3e8] sm:$0xff]
        %v4883 = vld [vmem:[%s1125 + $0x3f0] sm:$0xff]
        %v4884 = vld [vmem:[%s1125 + $0x3f8] sm:$0xff]
        %v4885 = vld [vmem:[%s1134] sm:$0xf]
        %v4887 = vlaneseq
        %v4888 = vshrl.u32 %v4887, 7
        %v4889 = vsub.s32 0, %v4888
        %v4890 = vrot.slane %v4885, %v4889
        %v4891 = vlaneseq
        %v4892 = vshrl.u32 %v4891, 7
        %v4893 = vsub.s32 1, %v4892
        %v4894 = vrot.slane %v4885, %v4893
        %v4895 = vlaneseq
        %v4896 = vshrl.u32 %v4895, 7
        %v4897 = vsub.s32 2, %v4896
        %v4898 = vrot.slane %v4885, %v4897
        %v4899 = vlaneseq
        %v4900 = vshrl.u32 %v4899, 7
        %v4901 = vsub.s32 3, %v4900
        %v4902 = vrot.slane %v4885, %v4901
        %4907 = vmatprep.subr.mxu0 %v4818
        %4908 = vmatpush1.msra.mxu0 %v4817
        %4909 = vmatprep.subr.mxu0 %v4814
        %4910 = vmatpush1.msra.mxu0 %v4813
        %4911 = vmatprep.subr.mxu0 %v4810
        %4912 = vmatpush1.msra.mxu0 %v4809
        %4913 = vmatprep.subr.mxu0 %v4806
        %4914 = vmatpush1.msra.mxu0 %v4805
        %4915 = vmatprep.subr.mxu0 %v4802
        %4916 = vmatpush1.msra.mxu0 %v4801
        %4917 = vmatprep.subr.mxu0 %v4798
        %4918 = vmatpush1.msra.mxu0 %v4797
        %4919 = vmatprep.subr.mxu0 %v4794
        %4920 = vmatpush1.msra.mxu0 %v4793
        %4921 = vmatprep.subr.mxu0 %v4790
        %4922 = vmatpush1.msra.mxu0 %v4789
        %4923 = vmatprep.subr.mxu0 %v4786
        %4924 = vmatpush1.msra.mxu0 %v4785
        %4925 = vmatprep.subr.mxu0 %v4782
        %4926 = vmatpush1.msra.mxu0 %v4781
        %4927 = vmatprep.subr.mxu0 %v4778
        %4928 = vmatpush1.msra.mxu0 %v4777
        %4929 = vmatprep.subr.mxu0 %v4774
        %4930 = vmatpush1.msra.mxu0 %v4773
        %4931 = vmatprep.subr.mxu0 %v4770
        %4932 = vmatpush1.msra.mxu0 %v4769
        %4933 = vmatprep.subr.mxu0 %v4766
        %4934 = vmatpush1.msra.mxu0 %v4765
        %4935 = vmatprep.subr.mxu0 %v4762
        %4936 = vmatpush1.msra.mxu0 %v4761
        %4937 = vmatprep.subr.mxu0 %v4758
        %4938 = vmatpush1.msra.mxu0 %v4757
        %4939 = vmatprep.subr.mxu0 %v4882
        %4940 = vmatpush2.msra.mxu0 %v4881
        %4941 = vmatprep.subr.mxu0 %v4878
        %4942 = vmatpush2.msra.mxu0 %v4877
        %4943 = vmatprep.subr.mxu0 %v4874
        %4944 = vmatpush2.msra.mxu0 %v4873
        %4945 = vmatprep.subr.mxu0 %v4870
        %4946 = vmatpush2.msra.mxu0 %v4869
        %4947 = vmatprep.subr.mxu0 %v4866
        %4948 = vmatpush2.msra.mxu0 %v4865
        %4949 = vmatprep.subr.mxu0 %v4862
        %4950 = vmatpush2.msra.mxu0 %v4861
        %4951 = vmatprep.subr.mxu0 %v4858
        %4952 = vmatpush2.msra.mxu0 %v4857
        %4953 = vmatprep.subr.mxu0 %v4854
        %4954 = vmatpush2.msra.mxu0 %v4853
        %4955 = vmatprep.subr.mxu0 %v4850
        %4956 = vmatpush2.msra.mxu0 %v4849
        %4957 = vmatprep.subr.mxu0 %v4846
        %4958 = vmatpush2.msra.mxu0 %v4845
        %4959 = vmatprep.subr.mxu0 %v4842
        %4960 = vmatpush2.msra.mxu0 %v4841
        %4961 = vmatprep.subr.mxu0 %v4838
        %4962 = vmatpush2.msra.mxu0 %v4837
        %4963 = vmatprep.subr.mxu0 %v4834
        %4964 = vmatpush2.msra.mxu0 %v4833
        %4965 = vmatprep.subr.mxu0 %v4830
        %4966 = vmatpush2.msra.mxu0 %v4829
        %4967 = vmatprep.subr.mxu0 %v4826
        %4968 = vmatpush2.msra.mxu0 %v4825
        %4969 = vmatprep.subr.mxu0 %v4822
        %4970 = vmatpush2.msra.mxu0 %v4821
        %4971 = vmatprep.mubr.f32.mxu0 %v4755
        %4972 = vmatmul.mubr.f32.gmra.mxu0 %v4753
        %v4973 = vpop.f32.mrf.mxu0
        %v4974 = vadd.f32 %v4890, %v4973
        %v4975 = vpop.f32.mrf.mxu0
        %v4976 = vadd.f32 %v4894, %v4975
        %4977 = vdwg.mxu0
        %4978 = vmatprep.subr.mxu0 %v4820
        %4979 = vmatpush1.msra.mxu0 %v4819
        %4980 = vmatprep.subr.mxu0 %v4816
        %4981 = vmatpush1.msra.mxu0 %v4815
        %4982 = vmatprep.subr.mxu0 %v4812
        %4983 = vmatpush1.msra.mxu0 %v4811
        %4984 = vmatprep.subr.mxu0 %v4808
        %4985 = vmatpush1.msra.mxu0 %v4807
        %4986 = vmatprep.subr.mxu0 %v4804
        %4987 = vmatpush1.msra.mxu0 %v4803
        %4988 = vmatprep.subr.mxu0 %v4800
        %4989 = vmatpush1.msra.mxu0 %v4799
        %4990 = vmatprep.subr.mxu0 %v4796
        %4991 = vmatpush1.msra.mxu0 %v4795
        %4992 = vmatprep.subr.mxu0 %v4792
        %4993 = vmatpush1.msra.mxu0 %v4791
        %4994 = vmatprep.subr.mxu0 %v4788
        %4995 = vmatpush1.msra.mxu0 %v4787
        %4996 = vmatprep.subr.mxu0 %v4784
        %4997 = vmatpush1.msra.mxu0 %v4783
        %4998 = vmatprep.subr.mxu0 %v4780
        %4999 = vmatpush1.msra.mxu0 %v4779
        %5000 = vmatprep.subr.mxu0 %v4776
        %5001 = vmatpush1.msra.mxu0 %v4775
        %5002 = vmatprep.subr.mxu0 %v4772
        %5003 = vmatpush1.msra.mxu0 %v4771
        %5004 = vmatprep.subr.mxu0 %v4768
        %5005 = vmatpush1.msra.mxu0 %v4767
        %5006 = vmatprep.subr.mxu0 %v4764
        %5007 = vmatpush1.msra.mxu0 %v4763
        %5008 = vmatprep.subr.mxu0 %v4760
        %5009 = vmatpush1.msra.mxu0 %v4759
        %5010 = vmatprep.subr.mxu0 %v4884
        %5011 = vmatpush2.msra.mxu0 %v4883
        %5012 = vmatprep.subr.mxu0 %v4880
        %5013 = vmatpush2.msra.mxu0 %v4879
        %5014 = vmatprep.subr.mxu0 %v4876
        %5015 = vmatpush2.msra.mxu0 %v4875
        %5016 = vmatprep.subr.mxu0 %v4872
        %5017 = vmatpush2.msra.mxu0 %v4871
        %5018 = vmatprep.subr.mxu0 %v4868
        %5019 = vmatpush2.msra.mxu0 %v4867
        %5020 = vmatprep.subr.mxu0 %v4864
        %5021 = vmatpush2.msra.mxu0 %v4863
        %5022 = vmatprep.subr.mxu0 %v4860
        %5023 = vmatpush2.msra.mxu0 %v4859
        %5024 = vmatprep.subr.mxu0 %v4856
        %5025 = vmatpush2.msra.mxu0 %v4855
        %5026 = vmatprep.subr.mxu0 %v4852
        %5027 = vmatpush2.msra.mxu0 %v4851
        %5028 = vmatprep.subr.mxu0 %v4848
        %5029 = vmatpush2.msra.mxu0 %v4847
        %5030 = vmatprep.subr.mxu0 %v4844
        %5031 = vmatpush2.msra.mxu0 %v4843
        %5032 = vmatprep.subr.mxu0 %v4840
        %5033 = vmatpush2.msra.mxu0 %v4839
        %5034 = vmatprep.subr.mxu0 %v4836
        %5035 = vmatpush2.msra.mxu0 %v4835
        %5036 = vmatprep.subr.mxu0 %v4832
        %5037 = vmatpush2.msra.mxu0 %v4831
        %5038 = vmatprep.subr.mxu0 %v4828
        %5039 = vmatpush2.msra.mxu0 %v4827
        %5040 = vmatprep.subr.mxu0 %v4824
        %5041 = vmatpush2.msra.mxu0 %v4823
        %5042 = vmatprep.mubr.f32.mxu0 %v4755
        %5043 = vmatmul.mubr.f32.gmra.mxu0 %v4753
        %v5044 = vpop.f32.mrf.mxu0
        %v5045 = vadd.f32 %v4898, %v5044
        %v5046 = vpop.f32.mrf.mxu0
        %v5047 = vadd.f32 %v4902, %v5046
        %5048 = vdwg.mxu0
        %v5053 = vcombine.low %v4974, %v4976
        %v5054 = vcombine.low %v5045, %v5047
        %v5056 = vunpack.c.l.s4 1983009808
        %v5057 = vunpack.c.0.s8 %v5056
        %v5058 = vlaneseq
        %v5059 = vshrl.u32 %v5058, 7
        %v5060 = vsub.s32 %v5057, %v5059
        %v5061 = vrot.slane %v5053, %v5060
        %v5063 = vunpack.c.l.s4 1983009808
        %v5064 = vunpack.c.0.s8 %v5063
        %v5065 = vlaneseq
        %v5066 = vshrl.u32 %v5065, 7
        %v5067 = vsub.s32 %v5064, %v5066
        %v5068 = vrot.slane %v5054, %v5067
        %v5069 = vcombine.low %v5061, %v5068
        %5071 = vst [vmem:[%s1295] sm:$0xff] %v5069
        %p5072 = scmp.eq.s32.totalorder %s57, 0
        // Predicated region
        $region181: #{decouple_net_forward.1} parent=115 // pred_check
          %p5073 = pneg %p5072
        $region182: #{decouple_net_forward.1} parent=115 // pred_check_branch
          %5075 = sbr.rel (%p5073) target = $region184
        $region183: #{decouple_net_forward.1} parent=115 // pred_region
          %v5076 = vld [vmem:[%s22] sm:$0xff]
          %v5077 = vld [vmem:[%s22 + $0x8] sm:$0xff]
          %v5078 = vld [vmem:[%s22 + $0x10] sm:$0xff]
          %v5079 = vld [vmem:[%s22 + $0x18] sm:$0xff]
          %v5080 = vld [vmem:[%s22 + $0x20] sm:$0xff]
          %v5081 = vld [vmem:[%s22 + $0x28] sm:$0xff]
          %v5082 = vld [vmem:[%s22 + $0x30] sm:$0xff]
          %v5083 = vld [vmem:[%s22 + $0x38] sm:$0xff]
          %v5084 = vld [vmem:[%s22 + $0x40] sm:$0xff]
          %v5085 = vld [vmem:[%s22 + $0x48] sm:$0xff]
          %v5086 = vld [vmem:[%s22 + $0x50] sm:$0xff]
          %v5087 = vld [vmem:[%s22 + $0x58] sm:$0xff]
          %v5088 = vld [vmem:[%s22 + $0x60] sm:$0xff]
          %v5089 = vld [vmem:[%s22 + $0x68] sm:$0xff]
          %v5090 = vld [vmem:[%s22 + $0x70] sm:$0xff]
          %v5091 = vld [vmem:[%s22 + $0x78] sm:$0xff]
          %v5092 = vld [vmem:[%s22 + $0x80] sm:$0xff]
          %v5093 = vld [vmem:[%s22 + $0x88] sm:$0xff]
          %v5094 = vld [vmem:[%s22 + $0x90] sm:$0xff]
          %v5095 = vld [vmem:[%s22 + $0x98] sm:$0xff]
          %v5096 = vld [vmem:[%s22 + $0xa0] sm:$0xff]
          %v5097 = vld [vmem:[%s22 + $0xa8] sm:$0xff]
          %v5098 = vld [vmem:[%s22 + $0xb0] sm:$0xff]
          %v5099 = vld [vmem:[%s22 + $0xb8] sm:$0xff]
          %v5100 = vld [vmem:[%s22 + $0xc0] sm:$0xff]
          %v5101 = vld [vmem:[%s22 + $0xc8] sm:$0xff]
          %v5102 = vld [vmem:[%s22 + $0xd0] sm:$0xff]
          %v5103 = vld [vmem:[%s22 + $0xd8] sm:$0xff]
          %v5104 = vld [vmem:[%s22 + $0xe0] sm:$0xff]
          %v5105 = vld [vmem:[%s22 + $0xe8] sm:$0xff]
          %v5106 = vld [vmem:[%s22 + $0xf0] sm:$0xff]
          %v5107 = vld [vmem:[%s22 + $0xf8] sm:$0xff]
          %v5108 = vld [vmem:[%s22 + $0x100] sm:$0xff]
          %v5109 = vld [vmem:[%s22 + $0x108] sm:$0xff]
          %v5110 = vld [vmem:[%s22 + $0x110] sm:$0xff]
          %v5111 = vld [vmem:[%s22 + $0x118] sm:$0xff]
          %v5112 = vld [vmem:[%s22 + $0x120] sm:$0xff]
          %v5113 = vld [vmem:[%s22 + $0x128] sm:$0xff]
          %v5114 = vld [vmem:[%s22 + $0x130] sm:$0xff]
          %v5115 = vld [vmem:[%s22 + $0x138] sm:$0xff]
          %v5116 = vld [vmem:[%s22 + $0x140] sm:$0xff]
          %v5117 = vld [vmem:[%s22 + $0x148] sm:$0xff]
          %v5118 = vld [vmem:[%s22 + $0x150] sm:$0xff]
          %v5119 = vld [vmem:[%s22 + $0x158] sm:$0xff]
          %v5120 = vld [vmem:[%s22 + $0x160] sm:$0xff]
          %v5121 = vld [vmem:[%s22 + $0x168] sm:$0xff]
          %v5122 = vld [vmem:[%s22 + $0x170] sm:$0xff]
          %v5123 = vld [vmem:[%s22 + $0x178] sm:$0xff]
          %v5124 = vld [vmem:[%s22 + $0x180] sm:$0xff]
          %v5125 = vld [vmem:[%s22 + $0x188] sm:$0xff]
          %v5126 = vld [vmem:[%s22 + $0x190] sm:$0xff]
          %v5127 = vld [vmem:[%s22 + $0x198] sm:$0xff]
          %v5128 = vld [vmem:[%s22 + $0x1a0] sm:$0xff]
          %v5129 = vld [vmem:[%s22 + $0x1a8] sm:$0xff]
          %v5130 = vld [vmem:[%s22 + $0x1b0] sm:$0xff]
          %v5131 = vld [vmem:[%s22 + $0x1b8] sm:$0xff]
          %v5132 = vld [vmem:[%s22 + $0x1c0] sm:$0xff]
          %v5133 = vld [vmem:[%s22 + $0x1c8] sm:$0xff]
          %v5134 = vld [vmem:[%s22 + $0x1d0] sm:$0xff]
          %v5135 = vld [vmem:[%s22 + $0x1d8] sm:$0xff]
          %v5136 = vld [vmem:[%s22 + $0x1e0] sm:$0xff]
          %v5137 = vld [vmem:[%s22 + $0x1e8] sm:$0xff]
          %v5138 = vld [vmem:[%s22 + $0x1f0] sm:$0xff]
          %v5139 = vld [vmem:[%s22 + $0x1f8] sm:$0xff]
          %v5140 = vld [vmem:[#allocation27] sm:$0x1]
          %v5142 = vlaneseq
          %v5143 = vshrl.u32 %v5142, 7
          %v5144 = vsub.s32 0, %v5143
          %v5145 = vrot.slane %v5140, %v5144
          %5147 = vmatprep.subr.mxu0 0.0
          %5148 = vmatpush1.msra.mxu0 %v5091
          %5149 = vmatprep.subr.mxu0 0.0
          %5150 = vmatpush1.msra.mxu0 %v5090
          %5151 = vmatprep.subr.mxu0 0.0
          %5152 = vmatpush1.msra.mxu0 %v5089
          %5153 = vmatprep.subr.mxu0 0.0
          %5154 = vmatpush1.msra.mxu0 %v5088
          %5155 = vmatprep.subr.mxu0 0.0
          %5156 = vmatpush1.msra.mxu0 %v5087
          %5157 = vmatprep.subr.mxu0 0.0
          %5158 = vmatpush1.msra.mxu0 %v5086
          %5159 = vmatprep.subr.mxu0 0.0
          %5160 = vmatpush1.msra.mxu0 %v5085
          %5161 = vmatprep.subr.mxu0 0.0
          %5162 = vmatpush1.msra.mxu0 %v5084
          %5163 = vmatprep.subr.mxu0 0.0
          %5164 = vmatpush1.msra.mxu0 %v5083
          %5165 = vmatprep.subr.mxu0 0.0
          %5166 = vmatpush1.msra.mxu0 %v5082
          %5167 = vmatprep.subr.mxu0 0.0
          %5168 = vmatpush1.msra.mxu0 %v5081
          %5169 = vmatprep.subr.mxu0 0.0
          %5170 = vmatpush1.msra.mxu0 %v5080
          %5171 = vmatprep.subr.mxu0 0.0
          %5172 = vmatpush1.msra.mxu0 %v5079
          %5173 = vmatprep.subr.mxu0 0.0
          %5174 = vmatpush1.msra.mxu0 %v5078
          %5175 = vmatprep.subr.mxu0 0.0
          %5176 = vmatpush1.msra.mxu0 %v5077
          %5177 = vmatprep.subr.mxu0 0.0
          %5178 = vmatpush1.msra.mxu0 %v5076
          %5179 = vmatprep.subr.mxu0 0.0
          %5180 = vmatpush2.msra.mxu0 %v5107
          %5181 = vmatprep.subr.mxu0 0.0
          %5182 = vmatpush2.msra.mxu0 %v5106
          %5183 = vmatprep.subr.mxu0 0.0
          %5184 = vmatpush2.msra.mxu0 %v5105
          %5185 = vmatprep.subr.mxu0 0.0
          %5186 = vmatpush2.msra.mxu0 %v5104
          %5187 = vmatprep.subr.mxu0 0.0
          %5188 = vmatpush2.msra.mxu0 %v5103
          %5189 = vmatprep.subr.mxu0 0.0
          %5190 = vmatpush2.msra.mxu0 %v5102
          %5191 = vmatprep.subr.mxu0 0.0
          %5192 = vmatpush2.msra.mxu0 %v5101
          %5193 = vmatprep.subr.mxu0 0.0
          %5194 = vmatpush2.msra.mxu0 %v5100
          %5195 = vmatprep.subr.mxu0 0.0
          %5196 = vmatpush2.msra.mxu0 %v5099
          %5197 = vmatprep.subr.mxu0 0.0
          %5198 = vmatpush2.msra.mxu0 %v5098
          %5199 = vmatprep.subr.mxu0 0.0
          %5200 = vmatpush2.msra.mxu0 %v5097
          %5201 = vmatprep.subr.mxu0 0.0
          %5202 = vmatpush2.msra.mxu0 %v5096
          %5203 = vmatprep.subr.mxu0 0.0
          %5204 = vmatpush2.msra.mxu0 %v5095
          %5205 = vmatprep.subr.mxu0 0.0
          %5206 = vmatpush2.msra.mxu0 %v5094
          %5207 = vmatprep.subr.mxu0 0.0
          %5208 = vmatpush2.msra.mxu0 %v5093
          %5209 = vmatprep.subr.mxu0 0.0
          %5210 = vmatpush2.msra.mxu0 %v5092
          %5211 = vmatprep.mubr.f32.mxu0 %v4976
          %5212 = vmatmul.mubr.f32.gmra.mxu0 %v4974
          %v5213 = vpop.f32.mrf.mxu0
          %v5214 = vadd.f32 %v5145, %v5213
          %v5215 = vpop.f32.mrf.mxu0
          %5216 = vdwg.mxu0
          %5217 = vmatprep.subr.mxu0 0.0
          %5218 = vmatpush1.msra.mxu0 %v5123
          %5219 = vmatprep.subr.mxu0 0.0
          %5220 = vmatpush1.msra.mxu0 %v5122
          %5221 = vmatprep.subr.mxu0 0.0
          %5222 = vmatpush1.msra.mxu0 %v5121
          %5223 = vmatprep.subr.mxu0 0.0
          %5224 = vmatpush1.msra.mxu0 %v5120
          %5225 = vmatprep.subr.mxu0 0.0
          %5226 = vmatpush1.msra.mxu0 %v5119
          %5227 = vmatprep.subr.mxu0 0.0
          %5228 = vmatpush1.msra.mxu0 %v5118
          %5229 = vmatprep.subr.mxu0 0.0
          %5230 = vmatpush1.msra.mxu0 %v5117
          %5231 = vmatprep.subr.mxu0 0.0
          %5232 = vmatpush1.msra.mxu0 %v5116
          %5233 = vmatprep.subr.mxu0 0.0
          %5234 = vmatpush1.msra.mxu0 %v5115
          %5235 = vmatprep.subr.mxu0 0.0
          %5236 = vmatpush1.msra.mxu0 %v5114
          %5237 = vmatprep.subr.mxu0 0.0
          %5238 = vmatpush1.msra.mxu0 %v5113
          %5239 = vmatprep.subr.mxu0 0.0
          %5240 = vmatpush1.msra.mxu0 %v5112
          %5241 = vmatprep.subr.mxu0 0.0
          %5242 = vmatpush1.msra.mxu0 %v5111
          %5243 = vmatprep.subr.mxu0 0.0
          %5244 = vmatpush1.msra.mxu0 %v5110
          %5245 = vmatprep.subr.mxu0 0.0
          %5246 = vmatpush1.msra.mxu0 %v5109
          %5247 = vmatprep.subr.mxu0 0.0
          %5248 = vmatpush1.msra.mxu0 %v5108
          %5249 = vmatprep.subr.mxu0 0.0
          %5250 = vmatpush2.msra.mxu0 %v5139
          %5251 = vmatprep.subr.mxu0 0.0
          %5252 = vmatpush2.msra.mxu0 %v5138
          %5253 = vmatprep.subr.mxu0 0.0
          %5254 = vmatpush2.msra.mxu0 %v5137
          %5255 = vmatprep.subr.mxu0 0.0
          %5256 = vmatpush2.msra.mxu0 %v5136
          %5257 = vmatprep.subr.mxu0 0.0
          %5258 = vmatpush2.msra.mxu0 %v5135
          %5259 = vmatprep.subr.mxu0 0.0
          %5260 = vmatpush2.msra.mxu0 %v5134
          %5261 = vmatprep.subr.mxu0 0.0
          %5262 = vmatpush2.msra.mxu0 %v5133
          %5263 = vmatprep.subr.mxu0 0.0
          %5264 = vmatpush2.msra.mxu0 %v5132
          %5265 = vmatprep.subr.mxu0 0.0
          %5266 = vmatpush2.msra.mxu0 %v5131
          %5267 = vmatprep.subr.mxu0 0.0
          %5268 = vmatpush2.msra.mxu0 %v5130
          %5269 = vmatprep.subr.mxu0 0.0
          %5270 = vmatpush2.msra.mxu0 %v5129
          %5271 = vmatprep.subr.mxu0 0.0
          %5272 = vmatpush2.msra.mxu0 %v5128
          %5273 = vmatprep.subr.mxu0 0.0
          %5274 = vmatpush2.msra.mxu0 %v5127
          %5275 = vmatprep.subr.mxu0 0.0
          %5276 = vmatpush2.msra.mxu0 %v5126
          %5277 = vmatprep.subr.mxu0 0.0
          %5278 = vmatpush2.msra.mxu0 %v5125
          %5279 = vmatprep.subr.mxu0 0.0
          %5280 = vmatpush2.msra.mxu0 %v5124
          %5281 = vmatprep.mubr.f32.mxu0 %v5047
          %5282 = vmatmul.mubr.f32.gmra.mxu0 %v5045
          %v5283 = vpop.f32.mrf.mxu0
          %v5284 = vadd.f32 %v5214, %v5283
          %v5285 = vpop.f32.mrf.mxu0
          %5286 = vdwg.mxu0
          %vm5287 = vcmask 74752
          %5288 = vst.msk [vmem:[%s1299] sm:$0x3] %vm5287, %v5284
          %v5289 = vld [vmem:[%s11] sm:$0xff]
          %v5290 = vld [vmem:[%s11 + $0x8] sm:$0xff]
          %v5291 = vld [vmem:[%s11 + $0x10] sm:$0xff]
          %v5292 = vld [vmem:[%s11 + $0x18] sm:$0xff]
          %v5293 = vld [vmem:[%s11 + $0x20] sm:$0xff]
          %v5294 = vld [vmem:[%s11 + $0x28] sm:$0xff]
          %v5295 = vld [vmem:[%s11 + $0x30] sm:$0xff]
          %v5296 = vld [vmem:[%s11 + $0x38] sm:$0xff]
          %v5297 = vld [vmem:[%s11 + $0x40] sm:$0xff]
          %v5298 = vld [vmem:[%s11 + $0x48] sm:$0xff]
          %v5299 = vld [vmem:[%s11 + $0x50] sm:$0xff]
          %v5300 = vld [vmem:[%s11 + $0x58] sm:$0xff]
          %v5301 = vld [vmem:[%s11 + $0x60] sm:$0xff]
          %v5302 = vld [vmem:[%s11 + $0x68] sm:$0xff]
          %v5303 = vld [vmem:[%s11 + $0x70] sm:$0xff]
          %v5304 = vld [vmem:[%s11 + $0x78] sm:$0xff]
          %s5305 = scalar_lea.vmem %s11, 128
          %v5306 = vld [vmem:[%s5305] sm:$0xff]
          %v5307 = vld [vmem:[%s5305 + $0x8] sm:$0xff]
          %v5308 = vld [vmem:[%s5305 + $0x10] sm:$0xff]
          %v5309 = vld [vmem:[%s5305 + $0x18] sm:$0xff]
          %v5310 = vld [vmem:[%s5305 + $0x20] sm:$0xff]
          %v5311 = vld [vmem:[%s5305 + $0x28] sm:$0xff]
          %v5312 = vld [vmem:[%s5305 + $0x30] sm:$0xff]
          %v5313 = vld [vmem:[%s5305 + $0x38] sm:$0xff]
          %v5314 = vld [vmem:[%s5305 + $0x40] sm:$0xff]
          %v5315 = vld [vmem:[%s5305 + $0x48] sm:$0xff]
          %v5316 = vld [vmem:[%s5305 + $0x50] sm:$0xff]
          %v5317 = vld [vmem:[%s5305 + $0x58] sm:$0xff]
          %v5318 = vld [vmem:[%s5305 + $0x60] sm:$0xff]
          %v5319 = vld [vmem:[%s5305 + $0x68] sm:$0xff]
          %v5320 = vld [vmem:[%s5305 + $0x70] sm:$0xff]
          %v5321 = vld [vmem:[%s5305 + $0x78] sm:$0xff]
          %v5323 = vsel %vm1751, %v5290, 0
          %v5326 = vsel %vm1751, %v5292, 0
          %v5329 = vsel %vm1751, %v5294, 0
          %v5332 = vsel %vm1751, %v5296, 0
          %v5335 = vsel %vm1751, %v5298, 0
          %v5338 = vsel %vm1751, %v5300, 0
          %v5341 = vsel %vm1751, %v5302, 0
          %v5344 = vsel %vm1751, %v5304, 0
          %v5347 = vsel %vm1751, %v5307, 0
          %v5350 = vsel %vm1751, %v5309, 0
          %v5353 = vsel %vm1751, %v5311, 0
          %v5356 = vsel %vm1751, %v5313, 0
          %v5359 = vsel %vm1751, %v5315, 0
          %v5362 = vsel %vm1751, %v5317, 0
          %v5365 = vsel %vm1751, %v5319, 0
          %v5368 = vsel %vm1751, %v5321, 0
          %5370 = vmatprep.subr.mxu0 0.0
          %5371 = vmatpush1.xpose.msra.mxu0 0.0
          %5372 = vmatprep.subr.mxu0 0.0
          %5373 = vmatpush1.xpose.msra.mxu0 0.0
          %5374 = vmatprep.subr.mxu0 0.0
          %5375 = vmatpush1.xpose.msra.mxu0 0.0
          %5376 = vmatprep.subr.mxu0 0.0
          %5377 = vmatpush1.xpose.msra.mxu0 0.0
          %5378 = vmatprep.subr.mxu0 0.0
          %5379 = vmatpush1.xpose.msra.mxu0 0.0
          %5380 = vmatprep.subr.mxu0 0.0
          %5381 = vmatpush1.xpose.msra.mxu0 0.0
          %5382 = vmatprep.subr.mxu0 0.0
          %5383 = vmatpush1.xpose.msra.mxu0 0.0
          %5384 = vmatprep.subr.mxu0 0.0
          %5385 = vmatpush1.xpose.msra.mxu0 0.0
          %5386 = vmatprep.subr.mxu0 %v5368
          %5387 = vmatpush1.xpose.msra.mxu0 %v5320
          %5388 = vmatprep.subr.mxu0 %v5365
          %5389 = vmatpush1.xpose.msra.mxu0 %v5318
          %5390 = vmatprep.subr.mxu0 %v5362
          %5391 = vmatpush1.xpose.msra.mxu0 %v5316
          %5392 = vmatprep.subr.mxu0 %v5359
          %5393 = vmatpush1.xpose.msra.mxu0 %v5314
          %5394 = vmatprep.subr.mxu0 %v5356
          %5395 = vmatpush1.xpose.msra.mxu0 %v5312
          %5396 = vmatprep.subr.mxu0 %v5353
          %5397 = vmatpush1.xpose.msra.mxu0 %v5310
          %5398 = vmatprep.subr.mxu0 %v5350
          %5399 = vmatpush1.xpose.msra.mxu0 %v5308
          %5400 = vmatprep.subr.mxu0 %v5347
          %5401 = vmatpush1.xpose.msra.mxu0 %v5306
          %5402 = vmatprep.subr.mxu0 0.0
          %5403 = vmatpush2.xpose.msra.mxu0 0.0
          %5404 = vmatprep.subr.mxu0 0.0
          %5405 = vmatpush2.xpose.msra.mxu0 0.0
          %5406 = vmatprep.subr.mxu0 0.0
          %5407 = vmatpush2.xpose.msra.mxu0 0.0
          %5408 = vmatprep.subr.mxu0 0.0
          %5409 = vmatpush2.xpose.msra.mxu0 0.0
          %5410 = vmatprep.subr.mxu0 0.0
          %5411 = vmatpush2.xpose.msra.mxu0 0.0
          %5412 = vmatprep.subr.mxu0 0.0
          %5413 = vmatpush2.xpose.msra.mxu0 0.0
          %5414 = vmatprep.subr.mxu0 0.0
          %5415 = vmatpush2.xpose.msra.mxu0 0.0
          %5416 = vmatprep.subr.mxu0 0.0
          %5417 = vmatpush2.xpose.msra.mxu0 0.0
          %5418 = vmatprep.subr.mxu0 0.0
          %5419 = vmatpush2.xpose.msra.mxu0 0.0
          %5420 = vmatprep.subr.mxu0 0.0
          %5421 = vmatpush2.xpose.msra.mxu0 0.0
          %5422 = vmatprep.subr.mxu0 0.0
          %5423 = vmatpush2.xpose.msra.mxu0 0.0
          %5424 = vmatprep.subr.mxu0 0.0
          %5425 = vmatpush2.xpose.msra.mxu0 0.0
          %5426 = vmatprep.subr.mxu0 0.0
          %5427 = vmatpush2.xpose.msra.mxu0 0.0
          %5428 = vmatprep.subr.mxu0 0.0
          %5429 = vmatpush2.xpose.msra.mxu0 0.0
          %5430 = vmatprep.subr.mxu0 0.0
          %5431 = vmatpush2.xpose.msra.mxu0 0.0
          %5432 = vmatprep.subr.mxu0 0.0
          %5433 = vmatpush2.xpose.msra.mxu0 0.0
          %5434 = vmatprep.mubr.f32.mxu0 %v5323
          %5435 = vmatmul.mubr.f32.gmra.mxu0 %v5289
          %v5436 = vpop.f32.mrf.mxu0
          %v5437 = vadd.f32 0.0, %v5436
          %v5438 = vpop.f32.mrf.mxu0
          %5439 = vmatprep.mubr.f32.mxu0 %v5326
          %5440 = vmatmul.mubr.f32.gmra.mxu0 %v5291
          %v5441 = vpop.f32.mrf.mxu0
          %v5442 = vadd.f32 0.0, %v5441
          %v5443 = vpop.f32.mrf.mxu0
          %5444 = vmatprep.mubr.f32.mxu0 %v5329
          %5445 = vmatmul.mubr.f32.gmra.mxu0 %v5293
          %v5446 = vpop.f32.mrf.mxu0
          %v5447 = vadd.f32 0.0, %v5446
          %v5448 = vpop.f32.mrf.mxu0
          %5449 = vmatprep.mubr.f32.mxu0 %v5332
          %5450 = vmatmul.mubr.f32.gmra.mxu0 %v5295
          %v5451 = vpop.f32.mrf.mxu0
          %v5452 = vadd.f32 0.0, %v5451
          %v5453 = vpop.f32.mrf.mxu0
          %5454 = vmatprep.mubr.f32.mxu0 %v5335
          %5455 = vmatmul.mubr.f32.gmra.mxu0 %v5297
          %v5456 = vpop.f32.mrf.mxu0
          %v5457 = vadd.f32 0.0, %v5456
          %v5458 = vpop.f32.mrf.mxu0
          %5459 = vmatprep.mubr.f32.mxu0 %v5338
          %5460 = vmatmul.mubr.f32.gmra.mxu0 %v5299
          %v5461 = vpop.f32.mrf.mxu0
          %v5462 = vadd.f32 0.0, %v5461
          %v5463 = vpop.f32.mrf.mxu0
          %5464 = vmatprep.mubr.f32.mxu0 %v5341
          %5465 = vmatmul.mubr.f32.gmra.mxu0 %v5301
          %v5466 = vpop.f32.mrf.mxu0
          %v5467 = vadd.f32 0.0, %v5466
          %v5468 = vpop.f32.mrf.mxu0
          %5469 = vmatprep.mubr.f32.mxu0 %v5344
          %5470 = vmatmul.mubr.f32.gmra.mxu0 %v5303
          %v5471 = vpop.f32.mrf.mxu0
          %v5472 = vadd.f32 0.0, %v5471
          %v5473 = vpop.f32.mrf.mxu0
          %5474 = vdwg.mxu0
          %v5475 = vand.u32 2147483647, %v5437
          %v5476 = vand.u32 2147483647, %v5442
          %v5477 = vand.u32 2147483647, %v5447
          %v5478 = vand.u32 2147483647, %v5452
          %v5479 = vand.u32 2147483647, %v5457
          %v5480 = vand.u32 2147483647, %v5462
          %v5481 = vand.u32 2147483647, %v5467
          %v5482 = vand.u32 2147483647, %v5472
          %v5483 = vsel %vm1751, %v5475, 0.0
          %v5484 = vsel %vm1751, %v5476, 0.0
          %v5485 = vadd.f32 %v5483, %v5484
          %v5486 = vsel %vm1751, %v5477, 0.0
          %v5487 = vadd.f32 %v5485, %v5486
          %v5488 = vsel %vm1751, %v5478, 0.0
          %v5489 = vadd.f32 %v5487, %v5488
          %v5490 = vsel %vm1751, %v5479, 0.0
          %v5491 = vadd.f32 %v5489, %v5490
          %v5492 = vsel %vm1751, %v5480, 0.0
          %v5493 = vadd.f32 %v5491, %v5492
          %v5494 = vsel %vm1751, %v5481, 0.0
          %v5495 = vadd.f32 %v5493, %v5494
          %v5496 = vsel %vm1751, %v5482, 0.0
          %v5497 = vadd.f32 %v5495, %v5496
          %5498 = vadd.xlane.f32.xlu0 %v5497
          %v5499 = vpop.xlane.xlu0 %5498
          %v5500 = vrot.slane %v5499, 4
          %v5501 = vadd.f32 %v5499, %v5500
          %v5502 = vrot.slane %v5501, 2
          %v5503 = vadd.f32 %v5501, %v5502
          %v5504 = vrot.slane %v5503, 1
          %v5505 = vadd.f32 %v5503, %v5504
          %s5506 = vtos %v5505
          %v5507 = vstv %s5506
          %vm5508 = vcmask 0
          %5509 = vst.msk [vmem:[%s1302] sm:$0x1] %vm5508, %v5507
        $region184: #{decouple_net_forward.1} parent=115 // pred_fallthru
          _
        %p5510 = scmp.ne.s32.totalorder %s57, 0
        // Predicated region
        $region185: #{decouple_net_forward.1} parent=115 // pred_check
          %p5511 = pneg %p5510
        $region186: #{decouple_net_forward.1} parent=115 // pred_check_branch
          %5513 = sbr.rel (%p5511) target = $region188
        $region187: #{decouple_net_forward.1} parent=115 // pred_region
          %vm5514 = vcmask 74752
          %5515 = vst.msk [vmem:[%s1299] sm:$0x3] %vm5514, 0.0
          %vm5516 = vcmask 0
          %5517 = vst.msk [vmem:[%s1302] sm:$0x1] %vm5516, 0.0
        $region188: #{decouple_net_forward.1} parent=115 // pred_fallthru
          _
        %p5518 = scmp.lt.s32.totalorder %s57, 1
        %s5519 = scalar_select %p5518, %s57, 1
        %s5520 = smul.addr %s5519, 4
        %s5521 = smul.addr %s5520, 2
        %s5522 = scalar_lea.vmem %s24, %s5521
        %p5523 = scmp.lt.s32.totalorder %s57, 1
        %s5524 = scalar_select %p5523, %s57, 1
        %s5525 = smul.addr %s5524, 2
        %s5526 = scalar_lea.vmem %s25, %s5525
        %p5527 = scmp.lt.s32.totalorder %s57, 1
        %s5528 = scalar_select %p5527, %s57, 1
        %s5529 = scalar_lea.vmem %s26, %s5528
        // Predicated region
        $region189: #{decouple_net_forward.1} parent=115 // pred_check
          %p5530 = pneg %p649
        $region190: #{decouple_net_forward.1} parent=115 // pred_check_branch
          %5532 = sbr.rel (%p5530) target = $region192
        $region191: #{decouple_net_forward.1} parent=115 // pred_region
          _
        $region192: #{decouple_net_forward.1} parent=115 // pred_fallthru
          _
        // Predicated region
        $region193: #{decouple_net_forward.1} parent=115 // pred_check
          %p5533 = pneg %p675
        $region194: #{decouple_net_forward.1} parent=115 // pred_check_branch
          %5535 = sbr.rel (%p5533) target = $region196
        $region195: #{decouple_net_forward.1} parent=115 // pred_region
          _
        $region196: #{decouple_net_forward.1} parent=115 // pred_fallthru
          _
        // Predicated region
        $region197: #{decouple_net_forward.1} parent=115 // pred_check
          %p5536 = pneg %p701
        $region198: #{decouple_net_forward.1} parent=115 // pred_check_branch
          %5538 = sbr.rel (%p5536) target = $region200
        $region199: #{decouple_net_forward.1} parent=115 // pred_region
          _
        $region200: #{decouple_net_forward.1} parent=115 // pred_fallthru
          _
      $region116: #{decouple_net_forward.1} parent=5 // pred_fallthru
        _
      %p5539 = scmp.le.s32.totalorder 2, %s52
      // Predicated region
      $region201: #{decouple_net_forward.1} parent=5 // pred_check
        %p5540 = pneg %p5539
      $region202: #{decouple_net_forward.1} parent=5 // pred_check_branch
        %5542 = sbr.rel (%p5540) target = $region204
      $region203: #{decouple_net_forward.1} parent=5 // pred_region
        %s5543 = ssub.s32 %s52, 2
        // Predicated region
        $region205: #{decouple_net_forward.1} parent=203 // pred_check
          %p5544 = pneg %p655
        $region206: #{decouple_net_forward.1} parent=203 // pred_check_branch
          %5546 = sbr.rel (%p5544) target = $region208
        $region207: #{decouple_net_forward.1} parent=203 // pred_region
          %p5547 = scmp.lt.s32.totalorder %s58, 1
          %s5548 = scalar_select %p5547, %s58, 1
          %s5549 = smul.addr %s5548, 4
          %s5550 = smul.addr %s5549, 2
          %s5551 = scalar_lea.vmem %s24, %s5550
        $region208: #{decouple_net_forward.1} parent=203 // pred_fallthru
          _
        // Predicated region
        $region209: #{decouple_net_forward.1} parent=203 // pred_check
          %p5552 = pneg %p681
        $region210: #{decouple_net_forward.1} parent=203 // pred_check_branch
          %5554 = sbr.rel (%p5552) target = $region212
        $region211: #{decouple_net_forward.1} parent=203 // pred_region
          %p5555 = scmp.lt.s32.totalorder %s58, 1
          %s5556 = scalar_select %p5555, %s58, 1
          %s5557 = smul.addr %s5556, 2
          %s5558 = scalar_lea.vmem %s25, %s5557
        $region212: #{decouple_net_forward.1} parent=203 // pred_fallthru
          _
        // Predicated region
        $region213: #{decouple_net_forward.1} parent=203 // pred_check
          %p5559 = pneg %p707
        $region214: #{decouple_net_forward.1} parent=203 // pred_check_branch
          %5561 = sbr.rel (%p5559) target = $region216
        $region215: #{decouple_net_forward.1} parent=203 // pred_region
          %p5562 = scmp.lt.s32.totalorder %s58, 1
          %s5563 = scalar_select %p5562, %s58, 1
          %s5564 = scalar_lea.vmem %s26, %s5563
        $region216: #{decouple_net_forward.1} parent=203 // pred_fallthru
          _
      $region204: #{decouple_net_forward.1} parent=5 // pred_fallthru
        _
    $region6: #{decouple_net_forward.1} parent=1 // loop_footer
      %s56 = sadd.s32 1, %s52
    $region7: #{decouple_net_forward.1} parent=1 // loop_footer_branch
      %51 = sbr.rel target = $region3
    $region8: #{decouple_net_forward.1} parent=1 // loop_exit
      _
    %5565 = vsyncpa [#allocation5], 1
    %s5566 = scalar_lea.sflag [#allocation5], 1
    %5567 = vsyncpa %s5566, 1
    %5568 = vsyncpa [#allocation7], 1
    %5569 = vsyncpa [#allocation10], 1
    %5570 = vsyncpa [#allocation13], 1
    %s5571 = scalar_lea.sflag [#allocation13], 1
    %5572 = vsyncpa %s5571, 1
    %5573 = vsyncpa [#allocation16], 1
    %s5574 = scalar_lea.sflag [#allocation16], 1
    %5575 = vsyncpa %s5574, 1
    %5576 = vsyncpa [#allocation19], 1
    %s5577 = scalar_lea.sflag [#allocation19], 1
    %5578 = vsyncpa %s5577, 1
    %5579 = vsyncpa [#allocation22], 1
    %s5580 = scalar_lea.sflag [#allocation22], 1
    %5581 = vsyncpa %s5580, 1
    %5582 = vsyncpa [#allocation25], 1
    %s5583 = scalar_lea.sflag [#allocation25], 1
    %5584 = vsyncpa %s5583, 1
    %5585 = vsyncpa [#allocation28], 1

</llo_original>
